<compile_context>
chip_gen: v6e
topology: v6e:2x2x1
jax: 0.10.0
libtpu: 0.0.40
codegen_flags: <defaults>
</compile_context>

<pallas_src>
import functools

import jax
import jax.numpy as jnp
from jax.experimental import pallas as pl
from jax.experimental.pallas import tpu as pltpu

FEAT_CHANNELS = 960  # mobilenet_v3_large: backbone.features[-1][0].out_channels


def _hardswish(y):
    return y * (jnp.clip(y + 3.0, 0.0, 6.0) * (1.0 / 6.0))


def _hardsigmoid(y):
    return jnp.clip(y + 3.0, 0.0, 6.0) * (1.0 / 6.0)


# ---------------- kernel 1: fused per-image backbone block + global pool ----------------

def _backbone_kernel(p_ref, sw_ref, sb_ref, ew_ref, eb_ref, dw_ref, db_ref,
                     s1w_ref, s1b_ref, s2w_ref, s2b_ref, fw_ref, fb_ref,
                     o_ref, *, H, W, inv_hw):
    HW = H * W
    C = ew_ref.shape[1]                                    # expanded channels (64)

    # --- stem 3x3/s2 conv (pre-im2col'd patches, K padded to 32) + hardswish ---
    s = jnp.dot(p_ref[0], sw_ref[...], preferred_element_type=jnp.float32)
    s = _hardswish(s + sb_ref[...])                        # (HW, 16) f32, stays in VMEM

    # --- expand 1x1 (16 -> C) + ReLU ---
    e = jnp.dot(s.astype(jnp.bfloat16), ew_ref[...],
                preferred_element_type=jnp.float32)
    e = jnp.maximum(e + eb_ref[...], 0.0)                  # (HW, C) f32

    # --- depthwise 3x3, stride 1, pad 1 + ReLU (values only; no scratch round trip) ---
    e3 = e.reshape(H, W, C)
    zr = jnp.zeros((1, W, C), jnp.float32)
    zc = jnp.zeros((H + 2, 1, C), jnp.float32)
    ep = jnp.concatenate([zc, jnp.concatenate([zr, e3, zr], axis=0), zc], axis=1)
    acc = jnp.zeros((H, W, C), jnp.float32)
    for k in range(9):                                     # static 3x3 taps, unrolled
        di, dj = k // 3, k % 3
        acc = acc + ep[di:di + H, dj:dj + W, :] * dw_ref[k].reshape(1, 1, C)
    h = jnp.maximum(acc + db_ref[...].reshape(1, 1, C), 0.0).reshape(HW, C)

    # --- SE: global pool -> fc -> ReLU -> fc -> hardsigmoid (computed once per image) ---
    pooled_h = jnp.sum(h, axis=0, keepdims=True) * inv_hw  # (1, C)
    t = jnp.dot(pooled_h.astype(jnp.bfloat16), s1w_ref[...],
                preferred_element_type=jnp.float32) + s1b_ref[...]
    t = jnp.maximum(t, 0.0)
    t = jnp.dot(t.astype(jnp.bfloat16), s2w_ref[...],
                preferred_element_type=jnp.float32) + s2b_ref[...]
    scale = _hardsigmoid(t)                                # (1, C)

    # --- SE scale -> folded proj@last 1x1 (C -> 960) + hardswish -> global avg pool ---
    hb = (h * scale).astype(jnp.bfloat16)                  # (HW, C)
    f = jnp.dot(hb, fw_ref[...], preferred_element_type=jnp.float32) + fb_ref[...]
    f = _hardswish(f)                                      # (HW, 960) f32 (VMEM only)
    o_ref[0] = (jnp.sum(f, axis=0, keepdims=True) * inv_hw).astype(o_ref.dtype)


def backbone_pool(patches, kp, H, W):
    """Fused backbone block + adaptive_avg_pool2d. Returns (B, FEAT_CHANNELS) f32."""
    B, HW, Kp = patches.shape
    Cs = kp["stem_w"].shape[1]
    C = kp["exp_w"].shape[1]
    Cse = kp["se1_w"].shape[1]
    F = kp["fused_w"].shape[1]

    out = pl.pallas_call(
        functools.partial(_backbone_kernel, H=H, W=W, inv_hw=1.0 / float(H * W)),
        out_shape=jax.ShapeDtypeStruct((B, 1, F), jnp.float32),
        grid=(B,),
        in_specs=[pl.BlockSpec((1, HW, Kp), lambda b: (b, 0, 0)),
                  pl.BlockSpec((Kp, Cs), lambda b: (0, 0)),
                  pl.BlockSpec((1, Cs), lambda b: (0, 0)),
                  pl.BlockSpec((Cs, C), lambda b: (0, 0)),
                  pl.BlockSpec((1, C), lambda b: (0, 0)),
                  pl.BlockSpec((9, 1, C), lambda b: (0, 0, 0)),
                  pl.BlockSpec((1, C), lambda b: (0, 0)),
                  pl.BlockSpec((C, Cse), lambda b: (0, 0)),
                  pl.BlockSpec((1, Cse), lambda b: (0, 0)),
                  pl.BlockSpec((Cse, C), lambda b: (0, 0)),
                  pl.BlockSpec((1, C), lambda b: (0, 0)),
                  pl.BlockSpec((C, F), lambda b: (0, 0)),
                  pl.BlockSpec((1, F), lambda b: (0, 0))],
        out_specs=pl.BlockSpec((1, 1, F), lambda b: (b, 0, 0)),
        compiler_params=pltpu.CompilerParams(dimension_semantics=("parallel",)),
    )(patches, kp["stem_w"], kp["stem_b"], kp["exp_w"], kp["exp_b"],
      kp["dw_w"], kp["dw_b"], kp["se1_w"], kp["se1_b"], kp["se2_w"], kp["se2_b"],
      kp["fused_w"], kp["fused_b"])
    return out.reshape(B, F)


# ---------------------- kernel 2: batched fc1 + relu + fc2 head ----------------------

def _head_kernel(x_ref, f1w_ref, f1b_ref, f2w_ref, f2b_ref, o_ref):
    y = jnp.dot(x_ref[...].astype(jnp.bfloat16), f1w_ref[...],
                preferred_element_type=jnp.float32) + f1b_ref[...]
    y = jnp.maximum(y, 0.0)                                # F.relu(fc1(x))
    y = jnp.dot(y.astype(jnp.bfloat16), f2w_ref[...],
                preferred_element_type=jnp.float32) + f2b_ref[...]
    o_ref[...] = y.astype(o_ref.dtype)


def head(pooled, kp, num_out):
    B, F = pooled.shape
    F1 = kp["fc1_w"].shape[1]
    return pl.pallas_call(
        _head_kernel,
        out_shape=jax.ShapeDtypeStruct((B, num_out), jnp.float32),
        grid=(1,),
        in_specs=[pl.BlockSpec((B, F), lambda i: (0, 0)),
                  pl.BlockSpec((F, F1), lambda i: (0, 0)),
                  pl.BlockSpec((1, F1), lambda i: (0, 0)),
                  pl.BlockSpec((F1, num_out), lambda i: (0, 0)),
                  pl.BlockSpec((1, num_out), lambda i: (0, 0))],
        out_specs=pl.BlockSpec((B, num_out), lambda i: (0, 0)),
        compiler_params=pltpu.CompilerParams(dimension_semantics=("arbitrary",)),
    )(pooled, kp["fc1_w"], kp["fc1_b"], kp["fc2_w"], kp["fc2_b"])


# ----------------------------------- parameters -----------------------------------

def init_params(key, num_classes=2):
    d = dict(stem=16, exp=64, se=16, proj=24, feat=FEAT_CHANNELS,
             fc1=512, out=num_classes * 4)
    ks = jax.random.split(key, 9)

    def w(k, shape, fan_in):
        return jax.random.normal(k, shape, jnp.float32) / jnp.sqrt(jnp.float32(fan_in))

    return {
        "stem_w": w(ks[0], (3, 3, 3, d["stem"]), 27),
        "stem_b": jnp.zeros((d["stem"],), jnp.float32),
        "exp_w":  w(ks[1], (d["stem"], d["exp"]), d["stem"]),
        "exp_b":  jnp.zeros((d["exp"],), jnp.float32),
        "dw_w":   w(ks[2], (3, 3, d["exp"]), 9),
        "dw_b":   jnp.zeros((d["exp"],), jnp.float32),
        "se1_w":  w(ks[3], (d["exp"], d["se"]), d["exp"]),
        "se1_b":  jnp.zeros((d["se"],), jnp.float32),
        "se2_w":  w(ks[4], (d["se"], d["exp"]), d["se"]),
        "se2_b":  jnp.zeros((d["exp"],), jnp.float32),
        "proj_w": w(ks[5], (d["exp"], d["proj"]), d["exp"]),
        "proj_b": jnp.zeros((d["proj"],), jnp.float32),
        "last_w": w(ks[6], (d["proj"], d["feat"]), d["proj"]),
        "last_b": jnp.zeros((d["feat"],), jnp.float32),
        "fc1_w":  w(ks[7], (d["feat"], d["fc1"]), d["feat"]),
        "fc1_b":  jnp.zeros((d["fc1"],), jnp.float32),
        "fc2_w":  w(ks[8], (d["fc1"], d["out"]), d["fc1"]),
        "fc2_b":  jnp.zeros((d["out"],), jnp.float32),
    }


def prepare_kernel_params(params):
    """Fold / cast / pad raw f32 params into kernel-ready form (f32 math, once)."""
    bf, f32 = jnp.bfloat16, jnp.float32
    stem_w = params["stem_w"].reshape(27, -1)
    stem_w = jnp.pad(stem_w, ((0, 32 - 27), (0, 0)))        # 8-aligned contraction dim
    # Fold project(64->24) and last 1x1(24->960): no nonlinearity between them.
    fused_w = params["proj_w"] @ params["last_w"]            # (64, 960) f32
    fused_b = params["proj_b"] @ params["last_w"] + params["last_b"]
    C = params["exp_w"].shape[1]
    return {
        "stem_w": stem_w.astype(bf),
        "stem_b": params["stem_b"].reshape(1, -1).astype(f32),
        "exp_w":  params["exp_w"].astype(bf),
        "exp_b":  params["exp_b"].reshape(1, -1).astype(f32),
        "dw_w":   params["dw_w"].reshape(9, 1, C).astype(f32),
        "dw_b":   params["dw_b"].reshape(1, -1).astype(f32),
        "se1_w":  params["se1_w"].astype(bf),
        "se1_b":  params["se1_b"].reshape(1, -1).astype(f32),
        "se2_w":  params["se2_w"].astype(bf),
        "se2_b":  params["se2_b"].reshape(1, -1).astype(f32),
        "fused_w": fused_w.astype(bf),
        "fused_b": fused_b.reshape(1, -1).astype(f32),
        "fc1_w":  params["fc1_w"].astype(bf),
        "fc1_b":  params["fc1_b"].reshape(1, -1).astype(f32),
        "fc2_w":  params["fc2_w"].astype(bf),
        "fc2_b":  params["fc2_b"].reshape(1, -1).astype(f32),
    }


# ------------------------------------ forward ------------------------------------

def im2col_stem(x_nhwc):
    """im2col for the 3x3/s2/pad1 stem conv, emitted in bf16, K padded 27->32."""
    B, H, W, Cin = x_nhwc.shape
    assert H % 2 == 0 and W % 2 == 0
    Ho, Wo = H // 2, W // 2
    xp = jnp.pad(x_nhwc.astype(jnp.bfloat16), ((0, 0), (1, 1), (1, 1), (0, 0)))
    cols = [xp[:, di:di + H:2, dj:dj + W:2, :] for di in range(3) for dj in range(3)]
    patches = jnp.concatenate(cols, axis=-1).reshape(B, Ho * Wo, 9 * Cin)
    patches = jnp.pad(patches, ((0, 0), (0, 0), (0, 32 - 9 * Cin)))
    return patches, Ho, Wo


def bounding_box_mobilenet_forward(params, x_nchw, num_classes=2):
    kp = prepare_kernel_params(params)
    # NCHW (PyTorch) -> NHWC (kernel layout)
    x = jnp.transpose(x_nchw, (0, 2, 3, 1)).astype(jnp.float32)

    patches, H, W = im2col_stem(x)                       # (B, H*W, 32) bf16
    pooled = backbone_pool(patches, kp, H, W)            # (B, 960) f32
    out = head(pooled, kp, num_classes * 4)              # (B, num_classes*4) f32
    return out.reshape(-1, num_classes, 4)


if __name__ == "__main__":
    key = jax.random.PRNGKey(0)
    pkey, xkey = jax.random.split(key)
    params = init_params(pkey, num_classes=2)
    x = jax.random.normal(xkey, (2, 3, 32, 32), jnp.float32)   # NCHW, like PyTorch

    fwd = jax.jit(functools.partial(bounding_box_mobilenet_forward, params))
    out = jax.block_until_ready(fwd(x))
    assert out.shape == (2, 2, 4) and out.dtype == jnp.float32
    print("KERNEL_OK")
</pallas_src>

<mosaic_0001>
module attributes {stable_mosaic.version = 11 : i64} {
  func.func @_backbone_kernel(%arg0: i32, %arg1: memref<1x256x32xbf16, #tpu.memory_space<vmem>>, %arg2: memref<32x16xbf16, #tpu.memory_space<vmem>>, %arg3: memref<1x16xf32, #tpu.memory_space<vmem>>, %arg4: memref<16x64xbf16, #tpu.memory_space<vmem>>, %arg5: memref<1x64xf32, #tpu.memory_space<vmem>>, %arg6: memref<9x1x64xf32, #tpu.memory_space<vmem>>, %arg7: memref<1x64xf32, #tpu.memory_space<vmem>>, %arg8: memref<64x16xbf16, #tpu.memory_space<vmem>>, %arg9: memref<1x16xf32, #tpu.memory_space<vmem>>, %arg10: memref<16x64xbf16, #tpu.memory_space<vmem>>, %arg11: memref<1x64xf32, #tpu.memory_space<vmem>>, %arg12: memref<64x960xbf16, #tpu.memory_space<vmem>>, %arg13: memref<1x960xf32, #tpu.memory_space<vmem>>, %arg14: memref<1x1x960xf32, #tpu.memory_space<vmem>>) attributes {dimension_semantics = [#tpu.dimension_semantics<parallel>], iteration_bounds = array<i64: 2>, scalar_prefetch = 0 : i64, scratch_operands = 0 : i64, tpu.core_type = #tpu.core_type<tc>, window_params = [{transform_indices = @transform_0, window_bounds = array<i64: 1, 256, 32>}, {pipeline_mode = #tpu.pipeline_mode<synchronous>, transform_indices = @transform_1, window_bounds = array<i64: 32, 16>}, {pipeline_mode = #tpu.pipeline_mode<synchronous>, transform_indices = @transform_2, window_bounds = array<i64: 1, 16>}, {pipeline_mode = #tpu.pipeline_mode<synchronous>, transform_indices = @transform_3, window_bounds = array<i64: 16, 64>}, {pipeline_mode = #tpu.pipeline_mode<synchronous>, transform_indices = @transform_4, window_bounds = array<i64: 1, 64>}, {pipeline_mode = #tpu.pipeline_mode<synchronous>, transform_indices = @transform_5, window_bounds = array<i64: 9, 1, 64>}, {pipeline_mode = #tpu.pipeline_mode<synchronous>, transform_indices = @transform_6, window_bounds = array<i64: 1, 64>}, {pipeline_mode = #tpu.pipeline_mode<synchronous>, transform_indices = @transform_7, window_bounds = array<i64: 64, 16>}, {pipeline_mode = #tpu.pipeline_mode<synchronous>, transform_indices = @transform_8, window_bounds = array<i64: 1, 16>}, {pipeline_mode = #tpu.pipeline_mode<synchronous>, transform_indices = @transform_9, window_bounds = array<i64: 16, 64>}, {pipeline_mode = #tpu.pipeline_mode<synchronous>, transform_indices = @transform_10, window_bounds = array<i64: 1, 64>}, {pipeline_mode = #tpu.pipeline_mode<synchronous>, transform_indices = @transform_11, window_bounds = array<i64: 64, 960>}, {pipeline_mode = #tpu.pipeline_mode<synchronous>, transform_indices = @transform_12, window_bounds = array<i64: 1, 960>}, {transform_indices = @transform_13, window_bounds = array<i64: 1, 1, 960>}]} {
    %c0 = arith.constant 0 : index
    %c0_0 = arith.constant 0 : index
    %c0_1 = arith.constant 0 : index
    %0 = vector.load %arg1[%c0, %c0_0, %c0_1] : memref<1x256x32xbf16, #tpu.memory_space<vmem>>, vector<1x256x32xbf16>
    %1 = vector.shape_cast %0 : vector<1x256x32xbf16> to vector<256x32xbf16>
    %c0_2 = arith.constant 0 : index
    %c0_3 = arith.constant 0 : index
    %2 = vector.load %arg2[%c0_2, %c0_3] : memref<32x16xbf16, #tpu.memory_space<vmem>>, vector<32x16xbf16>
    %cst = arith.constant dense<0.000000e+00> : vector<256x16xf32>
    %3 = tpu.matmul %1, %2, %cst {dimension_numbers = #tpu.dot_dimension_numbers<[1], [0], [0], [1], [0, 0, 1, 1], [], []>} : vector<256x32xbf16>, vector<32x16xbf16>, vector<256x16xf32> -> vector<256x16xf32>
    %c0_4 = arith.constant 0 : index
    %c0_5 = arith.constant 0 : index
    %4 = vector.load %arg3[%c0_4, %c0_5] : memref<1x16xf32, #tpu.memory_space<vmem>>, vector<1x16xf32>
    %5 = vector.broadcast %4 : vector<1x16xf32> to vector<256x16xf32>
    %6 = arith.addf %3, %5 : vector<256x16xf32>
    %cst_6 = arith.constant 3.000000e+00 : f32
    %7 = vector.broadcast %cst_6 : f32 to vector<256x16xf32>
    %8 = arith.addf %6, %7 : vector<256x16xf32>
    %cst_7 = arith.constant 0.000000e+00 : f32
    %cst_8 = arith.constant 6.000000e+00 : f32
    %9 = vector.broadcast %cst_7 : f32 to vector<256x16xf32>
    %10 = arith.maximumf %9, %8 : vector<256x16xf32>
    %11 = vector.broadcast %cst_8 : f32 to vector<256x16xf32>
    %12 = arith.minimumf %11, %10 : vector<256x16xf32>
    %cst_9 = arith.constant 0.166666672 : f32
    %13 = vector.broadcast %cst_9 : f32 to vector<256x16xf32>
    %14 = arith.mulf %12, %13 : vector<256x16xf32>
    %15 = arith.mulf %6, %14 : vector<256x16xf32>
    %16 = arith.truncf %15 : vector<256x16xf32> to vector<256x16xbf16>
    %c0_10 = arith.constant 0 : index
    %c0_11 = arith.constant 0 : index
    %17 = vector.load %arg4[%c0_10, %c0_11] : memref<16x64xbf16, #tpu.memory_space<vmem>>, vector<16x64xbf16>
    %cst_12 = arith.constant dense<0.000000e+00> : vector<256x64xf32>
    %18 = tpu.matmul %16, %17, %cst_12 {dimension_numbers = #tpu.dot_dimension_numbers<[1], [0], [0], [1], [0, 0, 1, 1], [], []>} : vector<256x16xbf16>, vector<16x64xbf16>, vector<256x64xf32> -> vector<256x64xf32>
    %c0_13 = arith.constant 0 : index
    %c0_14 = arith.constant 0 : index
    %19 = vector.load %arg5[%c0_13, %c0_14] : memref<1x64xf32, #tpu.memory_space<vmem>>, vector<1x64xf32>
    %20 = vector.broadcast %19 : vector<1x64xf32> to vector<256x64xf32>
    %21 = arith.addf %18, %20 : vector<256x64xf32>
    %cst_15 = arith.constant 0.000000e+00 : f32
    %22 = vector.broadcast %cst_15 : f32 to vector<256x64xf32>
    %23 = arith.maximumf %21, %22 : vector<256x64xf32>
    %24 = vector.shape_cast %23 : vector<256x64xf32> to vector<16x16x64xf32>
    %cst_16 = arith.constant 0.000000e+00 : f32
    %25 = vector.broadcast %cst_16 : f32 to vector<1x16x64xf32>
    %cst_17 = arith.constant 0.000000e+00 : f32
    %26 = vector.broadcast %cst_17 : f32 to vector<18x1x64xf32>
    %27 = tpu.concatenate %25, %24, %25 in 0 : vector<1x16x64xf32>, vector<16x16x64xf32>, vector<1x16x64xf32> -> vector<18x16x64xf32>
    %28 = tpu.concatenate %26, %27, %26 in 1 : vector<18x1x64xf32>, vector<18x16x64xf32>, vector<18x1x64xf32> -> vector<18x18x64xf32>
    %cst_18 = arith.constant 0.000000e+00 : f32
    %29 = vector.broadcast %cst_18 : f32 to vector<16x16x64xf32>
    %30 = vector.extract_strided_slice %28 {offsets = [0, 0, 0], sizes = [16, 16, 64], strides = [1, 1, 1]} : vector<18x18x64xf32> to vector<16x16x64xf32>
    %c0_19 = arith.constant 0 : index
    %c0_20 = arith.constant 0 : index
    %c0_21 = arith.constant 0 : index
    %31 = vector.load %arg6[%c0_19, %c0_20, %c0_21] : memref<9x1x64xf32, #tpu.memory_space<vmem>>, vector<1x1x64xf32>
    %32 = vector.shape_cast %31 : vector<1x1x64xf32> to vector<1x64xf32>
    %33 = vector.shape_cast %32 : vector<1x64xf32> to vector<1x1x64xf32>
    %34 = vector.broadcast %33 : vector<1x1x64xf32> to vector<16x16x64xf32>
    %35 = arith.mulf %30, %34 : vector<16x16x64xf32>
    %36 = arith.addf %29, %35 : vector<16x16x64xf32>
    %37 = vector.extract_strided_slice %28 {offsets = [0, 1, 0], sizes = [16, 16, 64], strides = [1, 1, 1]} : vector<18x18x64xf32> to vector<16x16x64xf32>
    %c1 = arith.constant 1 : index
    %c0_22 = arith.constant 0 : index
    %c0_23 = arith.constant 0 : index
    %38 = vector.load %arg6[%c1, %c0_22, %c0_23] : memref<9x1x64xf32, #tpu.memory_space<vmem>>, vector<1x1x64xf32>
    %39 = vector.shape_cast %38 : vector<1x1x64xf32> to vector<1x64xf32>
    %40 = vector.shape_cast %39 : vector<1x64xf32> to vector<1x1x64xf32>
    %41 = vector.broadcast %40 : vector<1x1x64xf32> to vector<16x16x64xf32>
    %42 = arith.mulf %37, %41 : vector<16x16x64xf32>
    %43 = arith.addf %36, %42 : vector<16x16x64xf32>
    %44 = vector.extract_strided_slice %28 {offsets = [0, 2, 0], sizes = [16, 16, 64], strides = [1, 1, 1]} : vector<18x18x64xf32> to vector<16x16x64xf32>
    %c2 = arith.constant 2 : index
    %c0_24 = arith.constant 0 : index
    %c0_25 = arith.constant 0 : index
    %45 = vector.load %arg6[%c2, %c0_24, %c0_25] : memref<9x1x64xf32, #tpu.memory_space<vmem>>, vector<1x1x64xf32>
    %46 = vector.shape_cast %45 : vector<1x1x64xf32> to vector<1x64xf32>
    %47 = vector.shape_cast %46 : vector<1x64xf32> to vector<1x1x64xf32>
    %48 = vector.broadcast %47 : vector<1x1x64xf32> to vector<16x16x64xf32>
    %49 = arith.mulf %44, %48 : vector<16x16x64xf32>
    %50 = arith.addf %43, %49 : vector<16x16x64xf32>
    %51 = vector.extract_strided_slice %28 {offsets = [1, 0, 0], sizes = [16, 16, 64], strides = [1, 1, 1]} : vector<18x18x64xf32> to vector<16x16x64xf32>
    %c3 = arith.constant 3 : index
    %c0_26 = arith.constant 0 : index
    %c0_27 = arith.constant 0 : index
    %52 = vector.load %arg6[%c3, %c0_26, %c0_27] : memref<9x1x64xf32, #tpu.memory_space<vmem>>, vector<1x1x64xf32>
    %53 = vector.shape_cast %52 : vector<1x1x64xf32> to vector<1x64xf32>
    %54 = vector.shape_cast %53 : vector<1x64xf32> to vector<1x1x64xf32>
    %55 = vector.broadcast %54 : vector<1x1x64xf32> to vector<16x16x64xf32>
    %56 = arith.mulf %51, %55 : vector<16x16x64xf32>
    %57 = arith.addf %50, %56 : vector<16x16x64xf32>
    %58 = vector.extract_strided_slice %28 {offsets = [1, 1, 0], sizes = [16, 16, 64], strides = [1, 1, 1]} : vector<18x18x64xf32> to vector<16x16x64xf32>
    %c4 = arith.constant 4 : index
    %c0_28 = arith.constant 0 : index
    %c0_29 = arith.constant 0 : index
    %59 = vector.load %arg6[%c4, %c0_28, %c0_29] : memref<9x1x64xf32, #tpu.memory_space<vmem>>, vector<1x1x64xf32>
    %60 = vector.shape_cast %59 : vector<1x1x64xf32> to vector<1x64xf32>
    %61 = vector.shape_cast %60 : vector<1x64xf32> to vector<1x1x64xf32>
    %62 = vector.broadcast %61 : vector<1x1x64xf32> to vector<16x16x64xf32>
    %63 = arith.mulf %58, %62 : vector<16x16x64xf32>
    %64 = arith.addf %57, %63 : vector<16x16x64xf32>
    %65 = vector.extract_strided_slice %28 {offsets = [1, 2, 0], sizes = [16, 16, 64], strides = [1, 1, 1]} : vector<18x18x64xf32> to vector<16x16x64xf32>
    %c5 = arith.constant 5 : index
    %c0_30 = arith.constant 0 : index
    %c0_31 = arith.constant 0 : index
    %66 = vector.load %arg6[%c5, %c0_30, %c0_31] : memref<9x1x64xf32, #tpu.memory_space<vmem>>, vector<1x1x64xf32>
    %67 = vector.shape_cast %66 : vector<1x1x64xf32> to vector<1x64xf32>
    %68 = vector.shape_cast %67 : vector<1x64xf32> to vector<1x1x64xf32>
    %69 = vector.broadcast %68 : vector<1x1x64xf32> to vector<16x16x64xf32>
    %70 = arith.mulf %65, %69 : vector<16x16x64xf32>
    %71 = arith.addf %64, %70 : vector<16x16x64xf32>
    %72 = vector.extract_strided_slice %28 {offsets = [2, 0, 0], sizes = [16, 16, 64], strides = [1, 1, 1]} : vector<18x18x64xf32> to vector<16x16x64xf32>
    %c6 = arith.constant 6 : index
    %c0_32 = arith.constant 0 : index
    %c0_33 = arith.constant 0 : index
    %73 = vector.load %arg6[%c6, %c0_32, %c0_33] : memref<9x1x64xf32, #tpu.memory_space<vmem>>, vector<1x1x64xf32>
    %74 = vector.shape_cast %73 : vector<1x1x64xf32> to vector<1x64xf32>
    %75 = vector.shape_cast %74 : vector<1x64xf32> to vector<1x1x64xf32>
    %76 = vector.broadcast %75 : vector<1x1x64xf32> to vector<16x16x64xf32>
    %77 = arith.mulf %72, %76 : vector<16x16x64xf32>
    %78 = arith.addf %71, %77 : vector<16x16x64xf32>
    %79 = vector.extract_strided_slice %28 {offsets = [2, 1, 0], sizes = [16, 16, 64], strides = [1, 1, 1]} : vector<18x18x64xf32> to vector<16x16x64xf32>
    %c7 = arith.constant 7 : index
    %c0_34 = arith.constant 0 : index
    %c0_35 = arith.constant 0 : index
    %80 = vector.load %arg6[%c7, %c0_34, %c0_35] : memref<9x1x64xf32, #tpu.memory_space<vmem>>, vector<1x1x64xf32>
    %81 = vector.shape_cast %80 : vector<1x1x64xf32> to vector<1x64xf32>
    %82 = vector.shape_cast %81 : vector<1x64xf32> to vector<1x1x64xf32>
    %83 = vector.broadcast %82 : vector<1x1x64xf32> to vector<16x16x64xf32>
    %84 = arith.mulf %79, %83 : vector<16x16x64xf32>
    %85 = arith.addf %78, %84 : vector<16x16x64xf32>
    %86 = vector.extract_strided_slice %28 {offsets = [2, 2, 0], sizes = [16, 16, 64], strides = [1, 1, 1]} : vector<18x18x64xf32> to vector<16x16x64xf32>
    %c8 = arith.constant 8 : index
    %c0_36 = arith.constant 0 : index
    %c0_37 = arith.constant 0 : index
    %87 = vector.load %arg6[%c8, %c0_36, %c0_37] : memref<9x1x64xf32, #tpu.memory_space<vmem>>, vector<1x1x64xf32>
    %88 = vector.shape_cast %87 : vector<1x1x64xf32> to vector<1x64xf32>
    %89 = vector.shape_cast %88 : vector<1x64xf32> to vector<1x1x64xf32>
    %90 = vector.broadcast %89 : vector<1x1x64xf32> to vector<16x16x64xf32>
    %91 = arith.mulf %86, %90 : vector<16x16x64xf32>
    %92 = arith.addf %85, %91 : vector<16x16x64xf32>
    %c0_38 = arith.constant 0 : index
    %c0_39 = arith.constant 0 : index
    %93 = vector.load %arg7[%c0_38, %c0_39] : memref<1x64xf32, #tpu.memory_space<vmem>>, vector<1x64xf32>
    %94 = vector.shape_cast %93 : vector<1x64xf32> to vector<1x1x64xf32>
    %95 = vector.broadcast %94 : vector<1x1x64xf32> to vector<16x16x64xf32>
    %96 = arith.addf %92, %95 : vector<16x16x64xf32>
    %cst_40 = arith.constant 0.000000e+00 : f32
    %97 = vector.broadcast %cst_40 : f32 to vector<16x16x64xf32>
    %98 = arith.maximumf %96, %97 : vector<16x16x64xf32>
    %99 = vector.shape_cast %98 : vector<16x16x64xf32> to vector<256x64xf32>
    %cst_41 = arith.constant dense<0.000000e+00> : vector<64xf32>
    %100 = vector.multi_reduction <add>, %99, %cst_41 [0] : vector<256x64xf32> to vector<64xf32>
    %101 = vector.shape_cast %100 : vector<64xf32> to vector<1x64xf32>
    %cst_42 = arith.constant 3.906250e-03 : f32
    %102 = vector.broadcast %cst_42 : f32 to vector<1x64xf32>
    %103 = arith.mulf %101, %102 : vector<1x64xf32>
    %104 = arith.truncf %103 : vector<1x64xf32> to vector<1x64xbf16>
    %c0_43 = arith.constant 0 : index
    %c0_44 = arith.constant 0 : index
    %105 = vector.load %arg8[%c0_43, %c0_44] : memref<64x16xbf16, #tpu.memory_space<vmem>>, vector<64x16xbf16>
    %cst_45 = arith.constant dense<0.000000e+00> : vector<1x16xf32>
    %106 = tpu.matmul %104, %105, %cst_45 {dimension_numbers = #tpu.dot_dimension_numbers<[1], [0], [0], [1], [0, 0, 1, 1], [], []>} : vector<1x64xbf16>, vector<64x16xbf16>, vector<1x16xf32> -> vector<1x16xf32>
    %c0_46 = arith.constant 0 : index
    %c0_47 = arith.constant 0 : index
    %107 = vector.load %arg9[%c0_46, %c0_47] : memref<1x16xf32, #tpu.memory_space<vmem>>, vector<1x16xf32>
    %108 = arith.addf %106, %107 : vector<1x16xf32>
    %cst_48 = arith.constant 0.000000e+00 : f32
    %109 = vector.broadcast %cst_48 : f32 to vector<1x16xf32>
    %110 = arith.maximumf %108, %109 : vector<1x16xf32>
    %111 = arith.truncf %110 : vector<1x16xf32> to vector<1x16xbf16>
    %c0_49 = arith.constant 0 : index
    %c0_50 = arith.constant 0 : index
    %112 = vector.load %arg10[%c0_49, %c0_50] : memref<16x64xbf16, #tpu.memory_space<vmem>>, vector<16x64xbf16>
    %cst_51 = arith.constant dense<0.000000e+00> : vector<1x64xf32>
    %113 = tpu.matmul %111, %112, %cst_51 {dimension_numbers = #tpu.dot_dimension_numbers<[1], [0], [0], [1], [0, 0, 1, 1], [], []>} : vector<1x16xbf16>, vector<16x64xbf16>, vector<1x64xf32> -> vector<1x64xf32>
    %c0_52 = arith.constant 0 : index
    %c0_53 = arith.constant 0 : index
    %114 = vector.load %arg11[%c0_52, %c0_53] : memref<1x64xf32, #tpu.memory_space<vmem>>, vector<1x64xf32>
    %115 = arith.addf %113, %114 : vector<1x64xf32>
    %cst_54 = arith.constant 3.000000e+00 : f32
    %116 = vector.broadcast %cst_54 : f32 to vector<1x64xf32>
    %117 = arith.addf %115, %116 : vector<1x64xf32>
    %cst_55 = arith.constant 0.000000e+00 : f32
    %cst_56 = arith.constant 6.000000e+00 : f32
    %118 = vector.broadcast %cst_55 : f32 to vector<1x64xf32>
    %119 = arith.maximumf %118, %117 : vector<1x64xf32>
    %120 = vector.broadcast %cst_56 : f32 to vector<1x64xf32>
    %121 = arith.minimumf %120, %119 : vector<1x64xf32>
    %cst_57 = arith.constant 0.166666672 : f32
    %122 = vector.broadcast %cst_57 : f32 to vector<1x64xf32>
    %123 = arith.mulf %121, %122 : vector<1x64xf32>
    %124 = vector.broadcast %123 : vector<1x64xf32> to vector<256x64xf32>
    %125 = arith.mulf %99, %124 : vector<256x64xf32>
    %126 = arith.truncf %125 : vector<256x64xf32> to vector<256x64xbf16>
    %c0_58 = arith.constant 0 : index
    %c0_59 = arith.constant 0 : index
    %127 = vector.load %arg12[%c0_58, %c0_59] : memref<64x960xbf16, #tpu.memory_space<vmem>>, vector<64x960xbf16>
    %cst_60 = arith.constant dense<0.000000e+00> : vector<256x960xf32>
    %128 = tpu.matmul %126, %127, %cst_60 {dimension_numbers = #tpu.dot_dimension_numbers<[1], [0], [0], [1], [0, 0, 1, 1], [], []>} : vector<256x64xbf16>, vector<64x960xbf16>, vector<256x960xf32> -> vector<256x960xf32>
    %c0_61 = arith.constant 0 : index
    %c0_62 = arith.constant 0 : index
    %129 = vector.load %arg13[%c0_61, %c0_62] : memref<1x960xf32, #tpu.memory_space<vmem>>, vector<1x960xf32>
    %130 = vector.broadcast %129 : vector<1x960xf32> to vector<256x960xf32>
    %131 = arith.addf %128, %130 : vector<256x960xf32>
    %cst_63 = arith.constant 3.000000e+00 : f32
    %132 = vector.broadcast %cst_63 : f32 to vector<256x960xf32>
    %133 = arith.addf %131, %132 : vector<256x960xf32>
    %cst_64 = arith.constant 0.000000e+00 : f32
    %cst_65 = arith.constant 6.000000e+00 : f32
    %134 = vector.broadcast %cst_64 : f32 to vector<256x960xf32>
    %135 = arith.maximumf %134, %133 : vector<256x960xf32>
    %136 = vector.broadcast %cst_65 : f32 to vector<256x960xf32>
    %137 = arith.minimumf %136, %135 : vector<256x960xf32>
    %cst_66 = arith.constant 0.166666672 : f32
    %138 = vector.broadcast %cst_66 : f32 to vector<256x960xf32>
    %139 = arith.mulf %137, %138 : vector<256x960xf32>
    %140 = arith.mulf %131, %139 : vector<256x960xf32>
    %cst_67 = arith.constant dense<0.000000e+00> : vector<960xf32>
    %141 = vector.multi_reduction <add>, %140, %cst_67 [0] : vector<256x960xf32> to vector<960xf32>
    %142 = vector.shape_cast %141 : vector<960xf32> to vector<1x960xf32>
    %cst_68 = arith.constant 3.906250e-03 : f32
    %143 = vector.broadcast %cst_68 : f32 to vector<1x960xf32>
    %144 = arith.mulf %142, %143 : vector<1x960xf32>
    %c0_69 = arith.constant 0 : index
    %c0_70 = arith.constant 0 : index
    %c0_71 = arith.constant 0 : index
    %145 = vector.load %arg14[%c0_69, %c0_70, %c0_71] : memref<1x1x960xf32, #tpu.memory_space<vmem>>, vector<1x1x960xf32>
    %146 = vector.shape_cast %145 : vector<1x1x960xf32> to vector<1x960xf32>
    %147 = vector.shape_cast %144 : vector<1x960xf32> to vector<1x1x960xf32>
    tpu.vector_store %arg14[%c0_69, %c0_70, %c0_71], %147 {strides = array<i32>} : memref<1x1x960xf32, #tpu.memory_space<vmem>>, vector<1x1x960xf32>,
    return
  }
  func.func @transform_0(%arg0: i32) -> (i32, i32, i32) {
    %c0_i32 = arith.constant 0 : i32
    %c0_i32_0 = arith.constant 0 : i32
    %c0_i32_1 = arith.constant 0 : i32
    return %arg0, %c0_i32, %c0_i32_0 : i32, i32, i32
  }
  func.func @transform_1(%arg0: i32) -> (i32, i32) {
    %c0_i32 = arith.constant 0 : i32
    %c0_i32_0 = arith.constant 0 : i32
    %c0_i32_1 = arith.constant 0 : i32
    return %c0_i32, %c0_i32_0 : i32, i32
  }
  func.func @transform_2(%arg0: i32) -> (i32, i32) {
    %c0_i32 = arith.constant 0 : i32
    %c0_i32_0 = arith.constant 0 : i32
    %c0_i32_1 = arith.constant 0 : i32
    return %c0_i32, %c0_i32_0 : i32, i32
  }
  func.func @transform_3(%arg0: i32) -> (i32, i32) {
    %c0_i32 = arith.constant 0 : i32
    %c0_i32_0 = arith.constant 0 : i32
    %c0_i32_1 = arith.constant 0 : i32
    return %c0_i32, %c0_i32_0 : i32, i32
  }
  func.func @transform_4(%arg0: i32) -> (i32, i32) {
    %c0_i32 = arith.constant 0 : i32
    %c0_i32_0 = arith.constant 0 : i32
    %c0_i32_1 = arith.constant 0 : i32
    return %c0_i32, %c0_i32_0 : i32, i32
  }
  func.func @transform_5(%arg0: i32) -> (i32, i32, i32) {
    %c0_i32 = arith.constant 0 : i32
    %c0_i32_0 = arith.constant 0 : i32
    %c0_i32_1 = arith.constant 0 : i32
    %c0_i32_2 = arith.constant 0 : i32
    return %c0_i32, %c0_i32_0, %c0_i32_1 : i32, i32, i32
  }
  func.func @transform_6(%arg0: i32) -> (i32, i32) {
    %c0_i32 = arith.constant 0 : i32
    %c0_i32_0 = arith.constant 0 : i32
    %c0_i32_1 = arith.constant 0 : i32
    return %c0_i32, %c0_i32_0 : i32, i32
  }
  func.func @transform_7(%arg0: i32) -> (i32, i32) {
    %c0_i32 = arith.constant 0 : i32
    %c0_i32_0 = arith.constant 0 : i32
    %c0_i32_1 = arith.constant 0 : i32
    return %c0_i32, %c0_i32_0 : i32, i32
  }
  func.func @transform_8(%arg0: i32) -> (i32, i32) {
    %c0_i32 = arith.constant 0 : i32
    %c0_i32_0 = arith.constant 0 : i32
    %c0_i32_1 = arith.constant 0 : i32
    return %c0_i32, %c0_i32_0 : i32, i32
  }
  func.func @transform_9(%arg0: i32) -> (i32, i32) {
    %c0_i32 = arith.constant 0 : i32
    %c0_i32_0 = arith.constant 0 : i32
    %c0_i32_1 = arith.constant 0 : i32
    return %c0_i32, %c0_i32_0 : i32, i32
  }
  func.func @transform_10(%arg0: i32) -> (i32, i32) {
    %c0_i32 = arith.constant 0 : i32
    %c0_i32_0 = arith.constant 0 : i32
    %c0_i32_1 = arith.constant 0 : i32
    return %c0_i32, %c0_i32_0 : i32, i32
  }
  func.func @transform_11(%arg0: i32) -> (i32, i32) {
    %c0_i32 = arith.constant 0 : i32
    %c0_i32_0 = arith.constant 0 : i32
    %c0_i32_1 = arith.constant 0 : i32
    return %c0_i32, %c0_i32_0 : i32, i32
  }
  func.func @transform_12(%arg0: i32) -> (i32, i32) {
    %c0_i32 = arith.constant 0 : i32
    %c0_i32_0 = arith.constant 0 : i32
    %c0_i32_1 = arith.constant 0 : i32
    return %c0_i32, %c0_i32_0 : i32, i32
  }
  func.func @transform_13(%arg0: i32) -> (i32, i32, i32) {
    %c0_i32 = arith.constant 0 : i32
    %c0_i32_0 = arith.constant 0 : i32
    %c0_i32_1 = arith.constant 0 : i32
    return %arg0, %c0_i32, %c0_i32_0 : i32, i32, i32
  }
}

module attributes {stable_mosaic.version = 11 : i64} {
  func.func @_head_kernel(%arg0: i32, %arg1: memref<2x960xf32, #tpu.memory_space<vmem>>, %arg2: memref<960x512xbf16, #tpu.memory_space<vmem>>, %arg3: memref<1x512xf32, #tpu.memory_space<vmem>>, %arg4: memref<512x8xbf16, #tpu.memory_space<vmem>>, %arg5: memref<1x8xf32, #tpu.memory_space<vmem>>, %arg6: memref<2x8xf32, #tpu.memory_space<vmem>>) attributes {dimension_semantics = [#tpu.dimension_semantics<arbitrary>], iteration_bounds = array<i64: 1>, scalar_prefetch = 0 : i64, scratch_operands = 0 : i64, tpu.core_type = #tpu.core_type<tc>, window_params = [{pipeline_mode = #tpu.pipeline_mode<synchronous>, transform_indices = @transform_0, window_bounds = array<i64: 2, 960>}, {pipeline_mode = #tpu.pipeline_mode<synchronous>, transform_indices = @transform_1, window_bounds = array<i64: 960, 512>}, {pipeline_mode = #tpu.pipeline_mode<synchronous>, transform_indices = @transform_2, window_bounds = array<i64: 1, 512>}, {pipeline_mode = #tpu.pipeline_mode<synchronous>, transform_indices = @transform_3, window_bounds = array<i64: 512, 8>}, {pipeline_mode = #tpu.pipeline_mode<synchronous>, transform_indices = @transform_4, window_bounds = array<i64: 1, 8>}, {pipeline_mode = #tpu.pipeline_mode<synchronous>, transform_indices = @transform_5, window_bounds = array<i64: 2, 8>}]} {
    %c0 = arith.constant 0 : index
    %c0_0 = arith.constant 0 : index
    %0 = vector.load %arg1[%c0, %c0_0] : memref<2x960xf32, #tpu.memory_space<vmem>>, vector<2x960xf32>
    %1 = arith.truncf %0 : vector<2x960xf32> to vector<2x960xbf16>
    %c0_1 = arith.constant 0 : index
    %c0_2 = arith.constant 0 : index
    %2 = vector.load %arg2[%c0_1, %c0_2] : memref<960x512xbf16, #tpu.memory_space<vmem>>, vector<960x512xbf16>
    %cst = arith.constant dense<0.000000e+00> : vector<2x512xf32>
    %3 = tpu.matmul %1, %2, %cst {dimension_numbers = #tpu.dot_dimension_numbers<[1], [0], [0], [1], [0, 0, 1, 1], [], []>} : vector<2x960xbf16>, vector<960x512xbf16>, vector<2x512xf32> -> vector<2x512xf32>
    %c0_3 = arith.constant 0 : index
    %c0_4 = arith.constant 0 : index
    %4 = vector.load %arg3[%c0_3, %c0_4] : memref<1x512xf32, #tpu.memory_space<vmem>>, vector<1x512xf32>
    %5 = vector.broadcast %4 : vector<1x512xf32> to vector<2x512xf32>
    %6 = arith.addf %3, %5 : vector<2x512xf32>
    %cst_5 = arith.constant 0.000000e+00 : f32
    %7 = vector.broadcast %cst_5 : f32 to vector<2x512xf32>
    %8 = arith.maximumf %6, %7 : vector<2x512xf32>
    %9 = arith.truncf %8 : vector<2x512xf32> to vector<2x512xbf16>
    %c0_6 = arith.constant 0 : index
    %c0_7 = arith.constant 0 : index
    %10 = vector.load %arg4[%c0_6, %c0_7] : memref<512x8xbf16, #tpu.memory_space<vmem>>, vector<512x8xbf16>
    %cst_8 = arith.constant dense<0.000000e+00> : vector<2x8xf32>
    %11 = tpu.matmul %9, %10, %cst_8 {dimension_numbers = #tpu.dot_dimension_numbers<[1], [0], [0], [1], [0, 0, 1, 1], [], []>} : vector<2x512xbf16>, vector<512x8xbf16>, vector<2x8xf32> -> vector<2x8xf32>
    %c0_9 = arith.constant 0 : index
    %c0_10 = arith.constant 0 : index
    %12 = vector.load %arg5[%c0_9, %c0_10] : memref<1x8xf32, #tpu.memory_space<vmem>>, vector<1x8xf32>
    %13 = vector.broadcast %12 : vector<1x8xf32> to vector<2x8xf32>
    %14 = arith.addf %11, %13 : vector<2x8xf32>
    %c0_11 = arith.constant 0 : index
    %c0_12 = arith.constant 0 : index
    %15 = vector.load %arg6[%c0_11, %c0_12] : memref<2x8xf32, #tpu.memory_space<vmem>>, vector<2x8xf32>
    tpu.vector_store %arg6[%c0_11, %c0_12], %14 {strides = array<i32>} : memref<2x8xf32, #tpu.memory_space<vmem>>, vector<2x8xf32>,
    return
  }
  func.func @transform_0(%arg0: i32) -> (i32, i32) {
    %c0_i32 = arith.constant 0 : i32
    %c0_i32_0 = arith.constant 0 : i32
    %c0_i32_1 = arith.constant 0 : i32
    return %c0_i32, %c0_i32_0 : i32, i32
  }
  func.func @transform_1(%arg0: i32) -> (i32, i32) {
    %c0_i32 = arith.constant 0 : i32
    %c0_i32_0 = arith.constant 0 : i32
    %c0_i32_1 = arith.constant 0 : i32
    return %c0_i32, %c0_i32_0 : i32, i32
  }
  func.func @transform_2(%arg0: i32) -> (i32, i32) {
    %c0_i32 = arith.constant 0 : i32
    %c0_i32_0 = arith.constant 0 : i32
    %c0_i32_1 = arith.constant 0 : i32
    return %c0_i32, %c0_i32_0 : i32, i32
  }
  func.func @transform_3(%arg0: i32) -> (i32, i32) {
    %c0_i32 = arith.constant 0 : i32
    %c0_i32_0 = arith.constant 0 : i32
    %c0_i32_1 = arith.constant 0 : i32
    return %c0_i32, %c0_i32_0 : i32, i32
  }
  func.func @transform_4(%arg0: i32) -> (i32, i32) {
    %c0_i32 = arith.constant 0 : i32
    %c0_i32_0 = arith.constant 0 : i32
    %c0_i32_1 = arith.constant 0 : i32
    return %c0_i32, %c0_i32_0 : i32, i32
  }
  func.func @transform_5(%arg0: i32) -> (i32, i32) {
    %c0_i32 = arith.constant 0 : i32
    %c0_i32_0 = arith.constant 0 : i32
    %c0_i32_1 = arith.constant 0 : i32
    return %c0_i32, %c0_i32_0 : i32, i32
  }
}

</mosaic_0001>

<llo_original>
// kernel: bounding_box_mobilenet_forward.3
$region0: #{bounding_box_mobilenet_forward.3}
  #allocation0 [shape = 'u32[]', space=smem, size = 0x4, offset = 0x4, fixed_abs, tag = 'smem constant byte address 0x4 - core index']
  #allocation1 [shape = 'u32[144,128]{1,0:T(1,128)}', space=vmem, size = 0x12000, scoped, tag = 'internal scratch']
  %s0 = inlined_call_operand.vmem [shape: f32[2,960], index: 0, kind: input, shape index: {}]
  %s1 = inlined_call_operand.vmem [shape: bf16[960,512], index: 1, kind: input, shape index: {}]
  %s2 = inlined_call_operand.vmem [shape: f32[1,512], index: 2, kind: input, shape index: {}]
  %s3 = inlined_call_operand.vmem [shape: bf16[512,8], index: 3, kind: input, shape index: {}]
  %s4 = inlined_call_operand.vmem [shape: f32[1,8], index: 4, kind: input, shape index: {}]
  %s5 = inlined_call_operand.vmem [shape: f32[2,8], index: 5, kind: output, shape index: {}]
  %s6 = sld [smem:[#allocation0]]
  $region30: #{bounding_box_mobilenet_forward.3} parent=0
    _
  %s8 = ssub.s32 1, %s6
  %s9 = scalar_select 0, %s8, %s6
  // Predicated region
  $region2: #{bounding_box_mobilenet_forward.3} parent=0 // pred_check
    _
  $region3: #{bounding_box_mobilenet_forward.3} parent=0 // pred_check_branch
    %11 = sbr.rel (0) target = $region5
  $region4: #{bounding_box_mobilenet_forward.3} parent=0 // pred_region
    _
  $region5: #{bounding_box_mobilenet_forward.3} parent=0 // pred_fallthru
    _
  // Predicated region
  $region6: #{bounding_box_mobilenet_forward.3} parent=0 // pred_check
    _
  $region7: #{bounding_box_mobilenet_forward.3} parent=0 // pred_check_branch
    %13 = sbr.rel (0) target = $region9
  $region8: #{bounding_box_mobilenet_forward.3} parent=0 // pred_region
    _
  $region9: #{bounding_box_mobilenet_forward.3} parent=0 // pred_fallthru
    _
  // Predicated region
  $region10: #{bounding_box_mobilenet_forward.3} parent=0 // pred_check
    _
  $region11: #{bounding_box_mobilenet_forward.3} parent=0 // pred_check_branch
    %15 = sbr.rel (0) target = $region13
  $region12: #{bounding_box_mobilenet_forward.3} parent=0 // pred_region
    _
  $region13: #{bounding_box_mobilenet_forward.3} parent=0 // pred_fallthru
    _
  // Predicated region
  $region14: #{bounding_box_mobilenet_forward.3} parent=0 // pred_check
    _
  $region15: #{bounding_box_mobilenet_forward.3} parent=0 // pred_check_branch
    %17 = sbr.rel (0) target = $region17
  $region16: #{bounding_box_mobilenet_forward.3} parent=0 // pred_region
    _
  $region17: #{bounding_box_mobilenet_forward.3} parent=0 // pred_fallthru
    _
  // Predicated region
  $region18: #{bounding_box_mobilenet_forward.3} parent=0 // pred_check
    _
  $region19: #{bounding_box_mobilenet_forward.3} parent=0 // pred_check_branch
    %19 = sbr.rel (0) target = $region21
  $region20: #{bounding_box_mobilenet_forward.3} parent=0 // pred_region
    _
  $region21: #{bounding_box_mobilenet_forward.3} parent=0 // pred_fallthru
    _
  %v21 = vld [vmem:[%s0] sm:$0xff]
  %v22 = vld [vmem:[%s0 + $0x8] sm:$0xff]
  %v25 = vcombine.high %v21, %v21
  %v27 = vunpack.c.l.s4 1983009808
  %v28 = vunpack.c.0.s8 %v27
  %v29 = vlaneseq
  %v30 = vshrl.u32 %v29, 7
  %v31 = vsub.s32 %v28, %v30
  %v32 = vrot.slane %v21, %v31
  %v34 = vunpack.c.l.s4 1983009808
  %v35 = vunpack.c.0.s8 %v34
  %v36 = vlaneseq
  %v37 = vshrl.u32 %v36, 7
  %v38 = vsub.s32 %v35, %v37
  %v39 = vrot.slane %v25, %v38
  %v40 = vcombine.high %v32, %v32
  %v41 = vcombine.high %v39, %v39
  %v42 = vcombine.high %v22, %v22
  %v44 = vunpack.c.l.s4 1983009808
  %v45 = vunpack.c.0.s8 %v44
  %v46 = vlaneseq
  %v47 = vshrl.u32 %v46, 7
  %v48 = vsub.s32 %v45, %v47
  %v49 = vrot.slane %v22, %v48
  %v51 = vunpack.c.l.s4 1983009808
  %v52 = vunpack.c.0.s8 %v51
  %v53 = vlaneseq
  %v54 = vshrl.u32 %v53, 7
  %v55 = vsub.s32 %v52, %v54
  %v56 = vrot.slane %v42, %v55
  %v57 = vcombine.high %v49, %v49
  %v58 = vcombine.high %v56, %v56
  %v67 = vpack.c.bf16 %v32, %v32
  %v68 = vpack.c.bf16 %v40, %v40
  %v69 = vpack.c.bf16 %v39, %v39
  %v70 = vpack.c.bf16 %v41, %v41
  %v71 = vpack.c.bf16 %v49, %v49
  %v72 = vpack.c.bf16 %v57, %v57
  %v73 = vpack.c.bf16 %v56, %v56
  %v74 = vpack.c.bf16 %v58, %v58
  %v75 = vld [vmem:[%s1] sm:$0xff]
  %v76 = vld [vmem:[%s1 + $0x8] sm:$0xff]
  %v77 = vld [vmem:[%s1 + $0x10] sm:$0xff]
  %v78 = vld [vmem:[%s1 + $0x18] sm:$0xff]
  %v79 = vld [vmem:[%s1 + $0x20] sm:$0xff]
  %v80 = vld [vmem:[%s1 + $0x28] sm:$0xff]
  %v81 = vld [vmem:[%s1 + $0x30] sm:$0xff]
  %v82 = vld [vmem:[%s1 + $0x38] sm:$0xff]
  %v83 = vld [vmem:[%s1 + $0x40] sm:$0xff]
  %v84 = vld [vmem:[%s1 + $0x48] sm:$0xff]
  %v85 = vld [vmem:[%s1 + $0x50] sm:$0xff]
  %v86 = vld [vmem:[%s1 + $0x58] sm:$0xff]
  %v87 = vld [vmem:[%s1 + $0x60] sm:$0xff]
  %v88 = vld [vmem:[%s1 + $0x68] sm:$0xff]
  %v89 = vld [vmem:[%s1 + $0x70] sm:$0xff]
  %v90 = vld [vmem:[%s1 + $0x78] sm:$0xff]
  %v91 = vld [vmem:[%s1 + $0x80] sm:$0xff]
  %v92 = vld [vmem:[%s1 + $0x88] sm:$0xff]
  %v93 = vld [vmem:[%s1 + $0x90] sm:$0xff]
  %v94 = vld [vmem:[%s1 + $0x98] sm:$0xff]
  %v95 = vld [vmem:[%s1 + $0xa0] sm:$0xff]
  %v96 = vld [vmem:[%s1 + $0xa8] sm:$0xff]
  %v97 = vld [vmem:[%s1 + $0xb0] sm:$0xff]
  %v98 = vld [vmem:[%s1 + $0xb8] sm:$0xff]
  %v99 = vld [vmem:[%s1 + $0xc0] sm:$0xff]
  %v100 = vld [vmem:[%s1 + $0xc8] sm:$0xff]
  %v101 = vld [vmem:[%s1 + $0xd0] sm:$0xff]
  %v102 = vld [vmem:[%s1 + $0xd8] sm:$0xff]
  %v103 = vld [vmem:[%s1 + $0xe0] sm:$0xff]
  %v104 = vld [vmem:[%s1 + $0xe8] sm:$0xff]
  %v105 = vld [vmem:[%s1 + $0xf0] sm:$0xff]
  %v106 = vld [vmem:[%s1 + $0xf8] sm:$0xff]
  %v107 = vld [vmem:[%s1 + $0x100] sm:$0xff]
  %v108 = vld [vmem:[%s1 + $0x108] sm:$0xff]
  %v109 = vld [vmem:[%s1 + $0x110] sm:$0xff]
  %v110 = vld [vmem:[%s1 + $0x118] sm:$0xff]
  %v111 = vld [vmem:[%s1 + $0x120] sm:$0xff]
  %v112 = vld [vmem:[%s1 + $0x128] sm:$0xff]
  %v113 = vld [vmem:[%s1 + $0x130] sm:$0xff]
  %v114 = vld [vmem:[%s1 + $0x138] sm:$0xff]
  %v115 = vld [vmem:[%s1 + $0x140] sm:$0xff]
  %v116 = vld [vmem:[%s1 + $0x148] sm:$0xff]
  %v117 = vld [vmem:[%s1 + $0x150] sm:$0xff]
  %v118 = vld [vmem:[%s1 + $0x158] sm:$0xff]
  %v119 = vld [vmem:[%s1 + $0x160] sm:$0xff]
  %v120 = vld [vmem:[%s1 + $0x168] sm:$0xff]
  %v121 = vld [vmem:[%s1 + $0x170] sm:$0xff]
  %v122 = vld [vmem:[%s1 + $0x178] sm:$0xff]
  %v123 = vld [vmem:[%s1 + $0x180] sm:$0xff]
  %v124 = vld [vmem:[%s1 + $0x188] sm:$0xff]
  %v125 = vld [vmem:[%s1 + $0x190] sm:$0xff]
  %v126 = vld [vmem:[%s1 + $0x198] sm:$0xff]
  %v127 = vld [vmem:[%s1 + $0x1a0] sm:$0xff]
  %v128 = vld [vmem:[%s1 + $0x1a8] sm:$0xff]
  %v129 = vld [vmem:[%s1 + $0x1b0] sm:$0xff]
  %v130 = vld [vmem:[%s1 + $0x1b8] sm:$0xff]
  %v131 = vld [vmem:[%s1 + $0x1c0] sm:$0xff]
  %v132 = vld [vmem:[%s1 + $0x1c8] sm:$0xff]
  %v133 = vld [vmem:[%s1 + $0x1d0] sm:$0xff]
  %v134 = vld [vmem:[%s1 + $0x1d8] sm:$0xff]
  %v135 = vld [vmem:[%s1 + $0x1e0] sm:$0xff]
  %v136 = vld [vmem:[%s1 + $0x1e8] sm:$0xff]
  %v137 = vld [vmem:[%s1 + $0x1f0] sm:$0xff]
  %v138 = vld [vmem:[%s1 + $0x1f8] sm:$0xff]
  %v139 = vld [vmem:[%s1 + $0x200] sm:$0xff]
  %v140 = vld [vmem:[%s1 + $0x208] sm:$0xff]
  %v141 = vld [vmem:[%s1 + $0x210] sm:$0xff]
  %v142 = vld [vmem:[%s1 + $0x218] sm:$0xff]
  %v143 = vld [vmem:[%s1 + $0x220] sm:$0xff]
  %v144 = vld [vmem:[%s1 + $0x228] sm:$0xff]
  %v145 = vld [vmem:[%s1 + $0x230] sm:$0xff]
  %v146 = vld [vmem:[%s1 + $0x238] sm:$0xff]
  %v147 = vld [vmem:[%s1 + $0x240] sm:$0xff]
  %v148 = vld [vmem:[%s1 + $0x248] sm:$0xff]
  %v149 = vld [vmem:[%s1 + $0x250] sm:$0xff]
  %v150 = vld [vmem:[%s1 + $0x258] sm:$0xff]
  %v151 = vld [vmem:[%s1 + $0x260] sm:$0xff]
  %v152 = vld [vmem:[%s1 + $0x268] sm:$0xff]
  %v153 = vld [vmem:[%s1 + $0x270] sm:$0xff]
  %v154 = vld [vmem:[%s1 + $0x278] sm:$0xff]
  %v155 = vld [vmem:[%s1 + $0x280] sm:$0xff]
  %v156 = vld [vmem:[%s1 + $0x288] sm:$0xff]
  %v157 = vld [vmem:[%s1 + $0x290] sm:$0xff]
  %v158 = vld [vmem:[%s1 + $0x298] sm:$0xff]
  %v159 = vld [vmem:[%s1 + $0x2a0] sm:$0xff]
  %v160 = vld [vmem:[%s1 + $0x2a8] sm:$0xff]
  %v161 = vld [vmem:[%s1 + $0x2b0] sm:$0xff]
  %v162 = vld [vmem:[%s1 + $0x2b8] sm:$0xff]
  %v163 = vld [vmem:[%s1 + $0x2c0] sm:$0xff]
  %v164 = vld [vmem:[%s1 + $0x2c8] sm:$0xff]
  %v165 = vld [vmem:[%s1 + $0x2d0] sm:$0xff]
  %v166 = vld [vmem:[%s1 + $0x2d8] sm:$0xff]
  %v167 = vld [vmem:[%s1 + $0x2e0] sm:$0xff]
  %v168 = vld [vmem:[%s1 + $0x2e8] sm:$0xff]
  %v169 = vld [vmem:[%s1 + $0x2f0] sm:$0xff]
  %v170 = vld [vmem:[%s1 + $0x2f8] sm:$0xff]
  %v171 = vld [vmem:[%s1 + $0x300] sm:$0xff]
  %v172 = vld [vmem:[%s1 + $0x308] sm:$0xff]
  %v173 = vld [vmem:[%s1 + $0x310] sm:$0xff]
  %v174 = vld [vmem:[%s1 + $0x318] sm:$0xff]
  %v175 = vld [vmem:[%s1 + $0x320] sm:$0xff]
  %v176 = vld [vmem:[%s1 + $0x328] sm:$0xff]
  %v177 = vld [vmem:[%s1 + $0x330] sm:$0xff]
  %v178 = vld [vmem:[%s1 + $0x338] sm:$0xff]
  %v179 = vld [vmem:[%s1 + $0x340] sm:$0xff]
  %v180 = vld [vmem:[%s1 + $0x348] sm:$0xff]
  %v181 = vld [vmem:[%s1 + $0x350] sm:$0xff]
  %v182 = vld [vmem:[%s1 + $0x358] sm:$0xff]
  %v183 = vld [vmem:[%s1 + $0x360] sm:$0xff]
  %v184 = vld [vmem:[%s1 + $0x368] sm:$0xff]
  %v185 = vld [vmem:[%s1 + $0x370] sm:$0xff]
  %v186 = vld [vmem:[%s1 + $0x378] sm:$0xff]
  %v187 = vld [vmem:[%s1 + $0x380] sm:$0xff]
  %v188 = vld [vmem:[%s1 + $0x388] sm:$0xff]
  %v189 = vld [vmem:[%s1 + $0x390] sm:$0xff]
  %v190 = vld [vmem:[%s1 + $0x398] sm:$0xff]
  %v191 = vld [vmem:[%s1 + $0x3a0] sm:$0xff]
  %v192 = vld [vmem:[%s1 + $0x3a8] sm:$0xff]
  %v193 = vld [vmem:[%s1 + $0x3b0] sm:$0xff]
  %v194 = vld [vmem:[%s1 + $0x3b8] sm:$0xff]
  %v195 = vld [vmem:[%s1 + $0x3c0] sm:$0xff]
  %v196 = vld [vmem:[%s1 + $0x3c8] sm:$0xff]
  %v197 = vld [vmem:[%s1 + $0x3d0] sm:$0xff]
  %v198 = vld [vmem:[%s1 + $0x3d8] sm:$0xff]
  %v199 = vld [vmem:[%s1 + $0x3e0] sm:$0xff]
  %v200 = vld [vmem:[%s1 + $0x3e8] sm:$0xff]
  %v201 = vld [vmem:[%s1 + $0x3f0] sm:$0xff]
  %v202 = vld [vmem:[%s1 + $0x3f8] sm:$0xff]
  %v203 = vld [vmem:[%s1 + $0x400] sm:$0xff]
  %v204 = vld [vmem:[%s1 + $0x408] sm:$0xff]
  %v205 = vld [vmem:[%s1 + $0x410] sm:$0xff]
  %v206 = vld [vmem:[%s1 + $0x418] sm:$0xff]
  %v207 = vld [vmem:[%s1 + $0x420] sm:$0xff]
  %v208 = vld [vmem:[%s1 + $0x428] sm:$0xff]
  %v209 = vld [vmem:[%s1 + $0x430] sm:$0xff]
  %v210 = vld [vmem:[%s1 + $0x438] sm:$0xff]
  %v211 = vld [vmem:[%s1 + $0x440] sm:$0xff]
  %v212 = vld [vmem:[%s1 + $0x448] sm:$0xff]
  %v213 = vld [vmem:[%s1 + $0x450] sm:$0xff]
  %v214 = vld [vmem:[%s1 + $0x458] sm:$0xff]
  %v215 = vld [vmem:[%s1 + $0x460] sm:$0xff]
  %v216 = vld [vmem:[%s1 + $0x468] sm:$0xff]
  %v217 = vld [vmem:[%s1 + $0x470] sm:$0xff]
  %v218 = vld [vmem:[%s1 + $0x478] sm:$0xff]
  %v219 = vld [vmem:[%s1 + $0x480] sm:$0xff]
  %v220 = vld [vmem:[%s1 + $0x488] sm:$0xff]
  %v221 = vld [vmem:[%s1 + $0x490] sm:$0xff]
  %v222 = vld [vmem:[%s1 + $0x498] sm:$0xff]
  %v223 = vld [vmem:[%s1 + $0x4a0] sm:$0xff]
  %v224 = vld [vmem:[%s1 + $0x4a8] sm:$0xff]
  %v225 = vld [vmem:[%s1 + $0x4b0] sm:$0xff]
  %v226 = vld [vmem:[%s1 + $0x4b8] sm:$0xff]
  %v227 = vld [vmem:[%s1 + $0x4c0] sm:$0xff]
  %v228 = vld [vmem:[%s1 + $0x4c8] sm:$0xff]
  %v229 = vld [vmem:[%s1 + $0x4d0] sm:$0xff]
  %v230 = vld [vmem:[%s1 + $0x4d8] sm:$0xff]
  %v231 = vld [vmem:[%s1 + $0x4e0] sm:$0xff]
  %v232 = vld [vmem:[%s1 + $0x4e8] sm:$0xff]
  %v233 = vld [vmem:[%s1 + $0x4f0] sm:$0xff]
  %v234 = vld [vmem:[%s1 + $0x4f8] sm:$0xff]
  %v235 = vld [vmem:[%s1 + $0x500] sm:$0xff]
  %v236 = vld [vmem:[%s1 + $0x508] sm:$0xff]
  %v237 = vld [vmem:[%s1 + $0x510] sm:$0xff]
  %v238 = vld [vmem:[%s1 + $0x518] sm:$0xff]
  %v239 = vld [vmem:[%s1 + $0x520] sm:$0xff]
  %v240 = vld [vmem:[%s1 + $0x528] sm:$0xff]
  %v241 = vld [vmem:[%s1 + $0x530] sm:$0xff]
  %v242 = vld [vmem:[%s1 + $0x538] sm:$0xff]
  %v243 = vld [vmem:[%s1 + $0x540] sm:$0xff]
  %v244 = vld [vmem:[%s1 + $0x548] sm:$0xff]
  %v245 = vld [vmem:[%s1 + $0x550] sm:$0xff]
  %v246 = vld [vmem:[%s1 + $0x558] sm:$0xff]
  %v247 = vld [vmem:[%s1 + $0x560] sm:$0xff]
  %v248 = vld [vmem:[%s1 + $0x568] sm:$0xff]
  %v249 = vld [vmem:[%s1 + $0x570] sm:$0xff]
  %v250 = vld [vmem:[%s1 + $0x578] sm:$0xff]
  %v251 = vld [vmem:[%s1 + $0x580] sm:$0xff]
  %v252 = vld [vmem:[%s1 + $0x588] sm:$0xff]
  %v253 = vld [vmem:[%s1 + $0x590] sm:$0xff]
  %v254 = vld [vmem:[%s1 + $0x598] sm:$0xff]
  %v255 = vld [vmem:[%s1 + $0x5a0] sm:$0xff]
  %v256 = vld [vmem:[%s1 + $0x5a8] sm:$0xff]
  %v257 = vld [vmem:[%s1 + $0x5b0] sm:$0xff]
  %v258 = vld [vmem:[%s1 + $0x5b8] sm:$0xff]
  %v259 = vld [vmem:[%s1 + $0x5c0] sm:$0xff]
  %v260 = vld [vmem:[%s1 + $0x5c8] sm:$0xff]
  %v261 = vld [vmem:[%s1 + $0x5d0] sm:$0xff]
  %v262 = vld [vmem:[%s1 + $0x5d8] sm:$0xff]
  %v263 = vld [vmem:[%s1 + $0x5e0] sm:$0xff]
  %v264 = vld [vmem:[%s1 + $0x5e8] sm:$0xff]
  %v265 = vld [vmem:[%s1 + $0x5f0] sm:$0xff]
  %v266 = vld [vmem:[%s1 + $0x5f8] sm:$0xff]
  %v267 = vld [vmem:[%s1 + $0x600] sm:$0xff]
  %v268 = vld [vmem:[%s1 + $0x608] sm:$0xff]
  %v269 = vld [vmem:[%s1 + $0x610] sm:$0xff]
  %v270 = vld [vmem:[%s1 + $0x618] sm:$0xff]
  %v271 = vld [vmem:[%s1 + $0x620] sm:$0xff]
  %v272 = vld [vmem:[%s1 + $0x628] sm:$0xff]
  %v273 = vld [vmem:[%s1 + $0x630] sm:$0xff]
  %v274 = vld [vmem:[%s1 + $0x638] sm:$0xff]
  %v275 = vld [vmem:[%s1 + $0x640] sm:$0xff]
  %v276 = vld [vmem:[%s1 + $0x648] sm:$0xff]
  %v277 = vld [vmem:[%s1 + $0x650] sm:$0xff]
  %v278 = vld [vmem:[%s1 + $0x658] sm:$0xff]
  %v279 = vld [vmem:[%s1 + $0x660] sm:$0xff]
  %v280 = vld [vmem:[%s1 + $0x668] sm:$0xff]
  %v281 = vld [vmem:[%s1 + $0x670] sm:$0xff]
  %v282 = vld [vmem:[%s1 + $0x678] sm:$0xff]
  %v283 = vld [vmem:[%s1 + $0x680] sm:$0xff]
  %v284 = vld [vmem:[%s1 + $0x688] sm:$0xff]
  %v285 = vld [vmem:[%s1 + $0x690] sm:$0xff]
  %v286 = vld [vmem:[%s1 + $0x698] sm:$0xff]
  %v287 = vld [vmem:[%s1 + $0x6a0] sm:$0xff]
  %v288 = vld [vmem:[%s1 + $0x6a8] sm:$0xff]
  %v289 = vld [vmem:[%s1 + $0x6b0] sm:$0xff]
  %v290 = vld [vmem:[%s1 + $0x6b8] sm:$0xff]
  %v291 = vld [vmem:[%s1 + $0x6c0] sm:$0xff]
  %v292 = vld [vmem:[%s1 + $0x6c8] sm:$0xff]
  %v293 = vld [vmem:[%s1 + $0x6d0] sm:$0xff]
  %v294 = vld [vmem:[%s1 + $0x6d8] sm:$0xff]
  %v295 = vld [vmem:[%s1 + $0x6e0] sm:$0xff]
  %v296 = vld [vmem:[%s1 + $0x6e8] sm:$0xff]
  %v297 = vld [vmem:[%s1 + $0x6f0] sm:$0xff]
  %v298 = vld [vmem:[%s1 + $0x6f8] sm:$0xff]
  %v299 = vld [vmem:[%s1 + $0x700] sm:$0xff]
  %v300 = vld [vmem:[%s1 + $0x708] sm:$0xff]
  %v301 = vld [vmem:[%s1 + $0x710] sm:$0xff]
  %v302 = vld [vmem:[%s1 + $0x718] sm:$0xff]
  %v303 = vld [vmem:[%s1 + $0x720] sm:$0xff]
  %v304 = vld [vmem:[%s1 + $0x728] sm:$0xff]
  %v305 = vld [vmem:[%s1 + $0x730] sm:$0xff]
  %v306 = vld [vmem:[%s1 + $0x738] sm:$0xff]
  %v307 = vld [vmem:[%s1 + $0x740] sm:$0xff]
  %v308 = vld [vmem:[%s1 + $0x748] sm:$0xff]
  %v309 = vld [vmem:[%s1 + $0x750] sm:$0xff]
  %v310 = vld [vmem:[%s1 + $0x758] sm:$0xff]
  %v311 = vld [vmem:[%s1 + $0x760] sm:$0xff]
  %v312 = vld [vmem:[%s1 + $0x768] sm:$0xff]
  %v313 = vld [vmem:[%s1 + $0x770] sm:$0xff]
  %v314 = vld [vmem:[%s1 + $0x778] sm:$0xff]
  %v315 = vld [vmem:[%s2] sm:$0xf]
  %v317 = vlaneseq
  %v318 = vshrl.u32 %v317, 7
  %v319 = vsub.s32 0, %v318
  %v320 = vrot.slane %v315, %v319
  %v321 = vlaneseq
  %v322 = vshrl.u32 %v321, 7
  %v323 = vsub.s32 1, %v322
  %v324 = vrot.slane %v315, %v323
  %v325 = vlaneseq
  %v326 = vshrl.u32 %v325, 7
  %v327 = vsub.s32 2, %v326
  %v328 = vrot.slane %v315, %v327
  %v329 = vlaneseq
  %v330 = vshrl.u32 %v329, 7
  %v331 = vsub.s32 3, %v330
  %v332 = vrot.slane %v315, %v331
  %v577 = vunpack.c.l.b16 %v75
  %v578 = vunpack.c.h.b16 %v75
  %v579 = vunpack.c.l.b16 %v76
  %v580 = vunpack.c.h.b16 %v76
  %v581 = vunpack.c.l.b16 %v77
  %v582 = vunpack.c.h.b16 %v77
  %v583 = vunpack.c.l.b16 %v78
  %v584 = vunpack.c.h.b16 %v78
  %v585 = vunpack.c.l.b16 %v79
  %v586 = vunpack.c.h.b16 %v79
  %v587 = vunpack.c.l.b16 %v80
  %v588 = vunpack.c.h.b16 %v80
  %v589 = vunpack.c.l.b16 %v81
  %v590 = vunpack.c.h.b16 %v81
  %v591 = vunpack.c.l.b16 %v82
  %v592 = vunpack.c.h.b16 %v82
  %v593 = vunpack.c.l.b16 %v83
  %v594 = vunpack.c.h.b16 %v83
  %v595 = vunpack.c.l.b16 %v84
  %v596 = vunpack.c.h.b16 %v84
  %v597 = vunpack.c.l.b16 %v85
  %v598 = vunpack.c.h.b16 %v85
  %v599 = vunpack.c.l.b16 %v86
  %v600 = vunpack.c.h.b16 %v86
  %v601 = vunpack.c.l.b16 %v87
  %v602 = vunpack.c.h.b16 %v87
  %v603 = vunpack.c.l.b16 %v88
  %v604 = vunpack.c.h.b16 %v88
  %v605 = vunpack.c.l.b16 %v89
  %v606 = vunpack.c.h.b16 %v89
  %v607 = vunpack.c.l.b16 %v90
  %v608 = vunpack.c.h.b16 %v90
  %v609 = vunpack.c.l.b16 %v91
  %v610 = vunpack.c.h.b16 %v91
  %v611 = vunpack.c.l.b16 %v92
  %v612 = vunpack.c.h.b16 %v92
  %v613 = vunpack.c.l.b16 %v93
  %v614 = vunpack.c.h.b16 %v93
  %v615 = vunpack.c.l.b16 %v94
  %v616 = vunpack.c.h.b16 %v94
  %v617 = vunpack.c.l.b16 %v95
  %v618 = vunpack.c.h.b16 %v95
  %v619 = vunpack.c.l.b16 %v96
  %v620 = vunpack.c.h.b16 %v96
  %v621 = vunpack.c.l.b16 %v97
  %v622 = vunpack.c.h.b16 %v97
  %v623 = vunpack.c.l.b16 %v98
  %v624 = vunpack.c.h.b16 %v98
  %v625 = vunpack.c.l.b16 %v99
  %v626 = vunpack.c.h.b16 %v99
  %v627 = vunpack.c.l.b16 %v100
  %v628 = vunpack.c.h.b16 %v100
  %v629 = vunpack.c.l.b16 %v101
  %v630 = vunpack.c.h.b16 %v101
  %v631 = vunpack.c.l.b16 %v102
  %v632 = vunpack.c.h.b16 %v102
  %v633 = vunpack.c.l.b16 %v103
  %v634 = vunpack.c.h.b16 %v103
  %v635 = vunpack.c.l.b16 %v104
  %v636 = vunpack.c.h.b16 %v104
  %v637 = vunpack.c.l.b16 %v105
  %v638 = vunpack.c.h.b16 %v105
  %v639 = vunpack.c.l.b16 %v106
  %v640 = vunpack.c.h.b16 %v106
  %v641 = vunpack.c.l.b16 %v107
  %v642 = vunpack.c.h.b16 %v107
  %v643 = vunpack.c.l.b16 %v108
  %v644 = vunpack.c.h.b16 %v108
  %v645 = vunpack.c.l.b16 %v109
  %v646 = vunpack.c.h.b16 %v109
  %v647 = vunpack.c.l.b16 %v110
  %v648 = vunpack.c.h.b16 %v110
  %v649 = vunpack.c.l.b16 %v111
  %v650 = vunpack.c.h.b16 %v111
  %v651 = vunpack.c.l.b16 %v112
  %v652 = vunpack.c.h.b16 %v112
  %v653 = vunpack.c.l.b16 %v113
  %v654 = vunpack.c.h.b16 %v113
  %v655 = vunpack.c.l.b16 %v114
  %v656 = vunpack.c.h.b16 %v114
  %v657 = vunpack.c.l.b16 %v115
  %v658 = vunpack.c.h.b16 %v115
  %v659 = vunpack.c.l.b16 %v116
  %v660 = vunpack.c.h.b16 %v116
  %v661 = vunpack.c.l.b16 %v117
  %v662 = vunpack.c.h.b16 %v117
  %v663 = vunpack.c.l.b16 %v118
  %v664 = vunpack.c.h.b16 %v118
  %v665 = vunpack.c.l.b16 %v119
  %v666 = vunpack.c.h.b16 %v119
  %v667 = vunpack.c.l.b16 %v120
  %v668 = vunpack.c.h.b16 %v120
  %v669 = vunpack.c.l.b16 %v121
  %v670 = vunpack.c.h.b16 %v121
  %v671 = vunpack.c.l.b16 %v122
  %v672 = vunpack.c.h.b16 %v122
  %v673 = vunpack.c.l.b16 %v123
  %v674 = vunpack.c.h.b16 %v123
  %v675 = vunpack.c.l.b16 %v124
  %v676 = vunpack.c.h.b16 %v124
  %v677 = vunpack.c.l.b16 %v125
  %v678 = vunpack.c.h.b16 %v125
  %v679 = vunpack.c.l.b16 %v126
  %v680 = vunpack.c.h.b16 %v126
  %v681 = vunpack.c.l.b16 %v127
  %v682 = vunpack.c.h.b16 %v127
  %v683 = vunpack.c.l.b16 %v128
  %v684 = vunpack.c.h.b16 %v128
  %v685 = vunpack.c.l.b16 %v129
  %v686 = vunpack.c.h.b16 %v129
  %v687 = vunpack.c.l.b16 %v130
  %v688 = vunpack.c.h.b16 %v130
  %v689 = vunpack.c.l.b16 %v131
  %v690 = vunpack.c.h.b16 %v131
  %v691 = vunpack.c.l.b16 %v132
  %v692 = vunpack.c.h.b16 %v132
  %v693 = vunpack.c.l.b16 %v133
  %v694 = vunpack.c.h.b16 %v133
  %v695 = vunpack.c.l.b16 %v134
  %v696 = vunpack.c.h.b16 %v134
  %v697 = vunpack.c.l.b16 %v135
  %v698 = vunpack.c.h.b16 %v135
  %v699 = vunpack.c.l.b16 %v136
  %v700 = vunpack.c.h.b16 %v136
  %v701 = vunpack.c.l.b16 %v137
  %v702 = vunpack.c.h.b16 %v137
  %v703 = vunpack.c.l.b16 %v138
  %v704 = vunpack.c.h.b16 %v138
  %v705 = vunpack.c.l.b16 %v139
  %v706 = vunpack.c.h.b16 %v139
  %v707 = vunpack.c.l.b16 %v140
  %v708 = vunpack.c.h.b16 %v140
  %v709 = vunpack.c.l.b16 %v141
  %v710 = vunpack.c.h.b16 %v141
  %v711 = vunpack.c.l.b16 %v142
  %v712 = vunpack.c.h.b16 %v142
  %v713 = vunpack.c.l.b16 %v143
  %v714 = vunpack.c.h.b16 %v143
  %v715 = vunpack.c.l.b16 %v144
  %v716 = vunpack.c.h.b16 %v144
  %v717 = vunpack.c.l.b16 %v145
  %v718 = vunpack.c.h.b16 %v145
  %v719 = vunpack.c.l.b16 %v146
  %v720 = vunpack.c.h.b16 %v146
  %v721 = vunpack.c.l.b16 %v147
  %v722 = vunpack.c.h.b16 %v147
  %v723 = vunpack.c.l.b16 %v148
  %v724 = vunpack.c.h.b16 %v148
  %v725 = vunpack.c.l.b16 %v149
  %v726 = vunpack.c.h.b16 %v149
  %v727 = vunpack.c.l.b16 %v150
  %v728 = vunpack.c.h.b16 %v150
  %v729 = vunpack.c.l.b16 %v151
  %v730 = vunpack.c.h.b16 %v151
  %v731 = vunpack.c.l.b16 %v152
  %v732 = vunpack.c.h.b16 %v152
  %v733 = vunpack.c.l.b16 %v153
  %v734 = vunpack.c.h.b16 %v153
  %v735 = vunpack.c.l.b16 %v154
  %v736 = vunpack.c.h.b16 %v154
  %v737 = vunpack.c.l.b16 %v155
  %v738 = vunpack.c.h.b16 %v155
  %v739 = vunpack.c.l.b16 %v156
  %v740 = vunpack.c.h.b16 %v156
  %v741 = vunpack.c.l.b16 %v157
  %v742 = vunpack.c.h.b16 %v157
  %v743 = vunpack.c.l.b16 %v158
  %v744 = vunpack.c.h.b16 %v158
  %v745 = vunpack.c.l.b16 %v159
  %v746 = vunpack.c.h.b16 %v159
  %v747 = vunpack.c.l.b16 %v160
  %v748 = vunpack.c.h.b16 %v160
  %v749 = vunpack.c.l.b16 %v161
  %v750 = vunpack.c.h.b16 %v161
  %v751 = vunpack.c.l.b16 %v162
  %v752 = vunpack.c.h.b16 %v162
  %v753 = vunpack.c.l.b16 %v163
  %v754 = vunpack.c.h.b16 %v163
  %v755 = vunpack.c.l.b16 %v164
  %v756 = vunpack.c.h.b16 %v164
  %v757 = vunpack.c.l.b16 %v165
  %v758 = vunpack.c.h.b16 %v165
  %v759 = vunpack.c.l.b16 %v166
  %v760 = vunpack.c.h.b16 %v166
  %v761 = vunpack.c.l.b16 %v167
  %v762 = vunpack.c.h.b16 %v167
  %v763 = vunpack.c.l.b16 %v168
  %v764 = vunpack.c.h.b16 %v168
  %v765 = vunpack.c.l.b16 %v169
  %v766 = vunpack.c.h.b16 %v169
  %v767 = vunpack.c.l.b16 %v170
  %v768 = vunpack.c.h.b16 %v170
  %v769 = vunpack.c.l.b16 %v171
  %v770 = vunpack.c.h.b16 %v171
  %v771 = vunpack.c.l.b16 %v172
  %v772 = vunpack.c.h.b16 %v172
  %v773 = vunpack.c.l.b16 %v173
  %v774 = vunpack.c.h.b16 %v173
  %v775 = vunpack.c.l.b16 %v174
  %v776 = vunpack.c.h.b16 %v174
  %v777 = vunpack.c.l.b16 %v175
  %v778 = vunpack.c.h.b16 %v175
  %v779 = vunpack.c.l.b16 %v176
  %v780 = vunpack.c.h.b16 %v176
  %v781 = vunpack.c.l.b16 %v177
  %v782 = vunpack.c.h.b16 %v177
  %v783 = vunpack.c.l.b16 %v178
  %v784 = vunpack.c.h.b16 %v178
  %v785 = vunpack.c.l.b16 %v179
  %v786 = vunpack.c.h.b16 %v179
  %v787 = vunpack.c.l.b16 %v180
  %v788 = vunpack.c.h.b16 %v180
  %v789 = vunpack.c.l.b16 %v181
  %v790 = vunpack.c.h.b16 %v181
  %v791 = vunpack.c.l.b16 %v182
  %v792 = vunpack.c.h.b16 %v182
  %v793 = vunpack.c.l.b16 %v183
  %v794 = vunpack.c.h.b16 %v183
  %v795 = vunpack.c.l.b16 %v184
  %v796 = vunpack.c.h.b16 %v184
  %v797 = vunpack.c.l.b16 %v185
  %v798 = vunpack.c.h.b16 %v185
  %v799 = vunpack.c.l.b16 %v186
  %v800 = vunpack.c.h.b16 %v186
  %v801 = vunpack.c.l.b16 %v187
  %v802 = vunpack.c.h.b16 %v187
  %v803 = vunpack.c.l.b16 %v188
  %v804 = vunpack.c.h.b16 %v188
  %v805 = vunpack.c.l.b16 %v189
  %v806 = vunpack.c.h.b16 %v189
  %v807 = vunpack.c.l.b16 %v190
  %v808 = vunpack.c.h.b16 %v190
  %v809 = vunpack.c.l.b16 %v191
  %v810 = vunpack.c.h.b16 %v191
  %v811 = vunpack.c.l.b16 %v192
  %v812 = vunpack.c.h.b16 %v192
  %v813 = vunpack.c.l.b16 %v193
  %v814 = vunpack.c.h.b16 %v193
  %v815 = vunpack.c.l.b16 %v194
  %v816 = vunpack.c.h.b16 %v194
  %v817 = vunpack.c.l.b16 %v195
  %v818 = vunpack.c.h.b16 %v195
  %v819 = vunpack.c.l.b16 %v196
  %v820 = vunpack.c.h.b16 %v196
  %v821 = vunpack.c.l.b16 %v197
  %v822 = vunpack.c.h.b16 %v197
  %v823 = vunpack.c.l.b16 %v198
  %v824 = vunpack.c.h.b16 %v198
  %v825 = vunpack.c.l.b16 %v199
  %v826 = vunpack.c.h.b16 %v199
  %v827 = vunpack.c.l.b16 %v200
  %v828 = vunpack.c.h.b16 %v200
  %v829 = vunpack.c.l.b16 %v201
  %v830 = vunpack.c.h.b16 %v201
  %v831 = vunpack.c.l.b16 %v202
  %v832 = vunpack.c.h.b16 %v202
  %v833 = vunpack.c.l.b16 %v203
  %v834 = vunpack.c.h.b16 %v203
  %v835 = vunpack.c.l.b16 %v204
  %v836 = vunpack.c.h.b16 %v204
  %v837 = vunpack.c.l.b16 %v205
  %v838 = vunpack.c.h.b16 %v205
  %v839 = vunpack.c.l.b16 %v206
  %v840 = vunpack.c.h.b16 %v206
  %v841 = vunpack.c.l.b16 %v207
  %v842 = vunpack.c.h.b16 %v207
  %v843 = vunpack.c.l.b16 %v208
  %v844 = vunpack.c.h.b16 %v208
  %v845 = vunpack.c.l.b16 %v209
  %v846 = vunpack.c.h.b16 %v209
  %v847 = vunpack.c.l.b16 %v210
  %v848 = vunpack.c.h.b16 %v210
  %v849 = vunpack.c.l.b16 %v211
  %v850 = vunpack.c.h.b16 %v211
  %v851 = vunpack.c.l.b16 %v212
  %v852 = vunpack.c.h.b16 %v212
  %v853 = vunpack.c.l.b16 %v213
  %v854 = vunpack.c.h.b16 %v213
  %v855 = vunpack.c.l.b16 %v214
  %v856 = vunpack.c.h.b16 %v214
  %v857 = vunpack.c.l.b16 %v215
  %v858 = vunpack.c.h.b16 %v215
  %v859 = vunpack.c.l.b16 %v216
  %v860 = vunpack.c.h.b16 %v216
  %v861 = vunpack.c.l.b16 %v217
  %v862 = vunpack.c.h.b16 %v217
  %v863 = vunpack.c.l.b16 %v218
  %v864 = vunpack.c.h.b16 %v218
  %v865 = vunpack.c.l.b16 %v219
  %v866 = vunpack.c.h.b16 %v219
  %v867 = vunpack.c.l.b16 %v220
  %v868 = vunpack.c.h.b16 %v220
  %v869 = vunpack.c.l.b16 %v221
  %v870 = vunpack.c.h.b16 %v221
  %v871 = vunpack.c.l.b16 %v222
  %v872 = vunpack.c.h.b16 %v222
  %v873 = vunpack.c.l.b16 %v223
  %v874 = vunpack.c.h.b16 %v223
  %v875 = vunpack.c.l.b16 %v224
  %v876 = vunpack.c.h.b16 %v224
  %v877 = vunpack.c.l.b16 %v225
  %v878 = vunpack.c.h.b16 %v225
  %v879 = vunpack.c.l.b16 %v226
  %v880 = vunpack.c.h.b16 %v226
  %v881 = vunpack.c.l.b16 %v227
  %v882 = vunpack.c.h.b16 %v227
  %v883 = vunpack.c.l.b16 %v228
  %v884 = vunpack.c.h.b16 %v228
  %v885 = vunpack.c.l.b16 %v229
  %v886 = vunpack.c.h.b16 %v229
  %v887 = vunpack.c.l.b16 %v230
  %v888 = vunpack.c.h.b16 %v230
  %v889 = vunpack.c.l.b16 %v231
  %v890 = vunpack.c.h.b16 %v231
  %v891 = vunpack.c.l.b16 %v232
  %v892 = vunpack.c.h.b16 %v232
  %v893 = vunpack.c.l.b16 %v233
  %v894 = vunpack.c.h.b16 %v233
  %v895 = vunpack.c.l.b16 %v234
  %v896 = vunpack.c.h.b16 %v234
  %v897 = vunpack.c.l.b16 %v235
  %v898 = vunpack.c.h.b16 %v235
  %v899 = vunpack.c.l.b16 %v236
  %v900 = vunpack.c.h.b16 %v236
  %v901 = vunpack.c.l.b16 %v237
  %v902 = vunpack.c.h.b16 %v237
  %v903 = vunpack.c.l.b16 %v238
  %v904 = vunpack.c.h.b16 %v238
  %v905 = vunpack.c.l.b16 %v239
  %v906 = vunpack.c.h.b16 %v239
  %v907 = vunpack.c.l.b16 %v240
  %v908 = vunpack.c.h.b16 %v240
  %v909 = vunpack.c.l.b16 %v241
  %v910 = vunpack.c.h.b16 %v241
  %v911 = vunpack.c.l.b16 %v242
  %v912 = vunpack.c.h.b16 %v242
  %v913 = vunpack.c.l.b16 %v243
  %v914 = vunpack.c.h.b16 %v243
  %v915 = vunpack.c.l.b16 %v244
  %v916 = vunpack.c.h.b16 %v244
  %v917 = vunpack.c.l.b16 %v245
  %v918 = vunpack.c.h.b16 %v245
  %v919 = vunpack.c.l.b16 %v246
  %v920 = vunpack.c.h.b16 %v246
  %v921 = vunpack.c.l.b16 %v247
  %v922 = vunpack.c.h.b16 %v247
  %v923 = vunpack.c.l.b16 %v248
  %v924 = vunpack.c.h.b16 %v248
  %v925 = vunpack.c.l.b16 %v249
  %v926 = vunpack.c.h.b16 %v249
  %v927 = vunpack.c.l.b16 %v250
  %v928 = vunpack.c.h.b16 %v250
  %v929 = vunpack.c.l.b16 %v251
  %v930 = vunpack.c.h.b16 %v251
  %v931 = vunpack.c.l.b16 %v252
  %v932 = vunpack.c.h.b16 %v252
  %v933 = vunpack.c.l.b16 %v253
  %v934 = vunpack.c.h.b16 %v253
  %v935 = vunpack.c.l.b16 %v254
  %v936 = vunpack.c.h.b16 %v254
  %v937 = vunpack.c.l.b16 %v255
  %v938 = vunpack.c.h.b16 %v255
  %v939 = vunpack.c.l.b16 %v256
  %v940 = vunpack.c.h.b16 %v256
  %v941 = vunpack.c.l.b16 %v257
  %v942 = vunpack.c.h.b16 %v257
  %v943 = vunpack.c.l.b16 %v258
  %v944 = vunpack.c.h.b16 %v258
  %v945 = vunpack.c.l.b16 %v259
  %v946 = vunpack.c.h.b16 %v259
  %v947 = vunpack.c.l.b16 %v260
  %v948 = vunpack.c.h.b16 %v260
  %v949 = vunpack.c.l.b16 %v261
  %v950 = vunpack.c.h.b16 %v261
  %v951 = vunpack.c.l.b16 %v262
  %v952 = vunpack.c.h.b16 %v262
  %v953 = vunpack.c.l.b16 %v263
  %v954 = vunpack.c.h.b16 %v263
  %v955 = vunpack.c.l.b16 %v264
  %v956 = vunpack.c.h.b16 %v264
  %v957 = vunpack.c.l.b16 %v265
  %v958 = vunpack.c.h.b16 %v265
  %v959 = vunpack.c.l.b16 %v266
  %v960 = vunpack.c.h.b16 %v266
  %v961 = vunpack.c.l.b16 %v267
  %v962 = vunpack.c.h.b16 %v267
  %v963 = vunpack.c.l.b16 %v268
  %v964 = vunpack.c.h.b16 %v268
  %v965 = vunpack.c.l.b16 %v269
  %v966 = vunpack.c.h.b16 %v269
  %v967 = vunpack.c.l.b16 %v270
  %v968 = vunpack.c.h.b16 %v270
  %v969 = vunpack.c.l.b16 %v271
  %v970 = vunpack.c.h.b16 %v271
  %v971 = vunpack.c.l.b16 %v272
  %v972 = vunpack.c.h.b16 %v272
  %v973 = vunpack.c.l.b16 %v273
  %v974 = vunpack.c.h.b16 %v273
  %v975 = vunpack.c.l.b16 %v274
  %v976 = vunpack.c.h.b16 %v274
  %v977 = vunpack.c.l.b16 %v275
  %v978 = vunpack.c.h.b16 %v275
  %v979 = vunpack.c.l.b16 %v276
  %v980 = vunpack.c.h.b16 %v276
  %v981 = vunpack.c.l.b16 %v277
  %v982 = vunpack.c.h.b16 %v277
  %v983 = vunpack.c.l.b16 %v278
  %v984 = vunpack.c.h.b16 %v278
  %v985 = vunpack.c.l.b16 %v279
  %v986 = vunpack.c.h.b16 %v279
  %v987 = vunpack.c.l.b16 %v280
  %v988 = vunpack.c.h.b16 %v280
  %v989 = vunpack.c.l.b16 %v281
  %v990 = vunpack.c.h.b16 %v281
  %v991 = vunpack.c.l.b16 %v282
  %v992 = vunpack.c.h.b16 %v282
  %v993 = vunpack.c.l.b16 %v283
  %v994 = vunpack.c.h.b16 %v283
  %v995 = vunpack.c.l.b16 %v284
  %v996 = vunpack.c.h.b16 %v284
  %v997 = vunpack.c.l.b16 %v285
  %v998 = vunpack.c.h.b16 %v285
  %v999 = vunpack.c.l.b16 %v286
  %v1000 = vunpack.c.h.b16 %v286
  %v1001 = vunpack.c.l.b16 %v287
  %v1002 = vunpack.c.h.b16 %v287
  %v1003 = vunpack.c.l.b16 %v288
  %v1004 = vunpack.c.h.b16 %v288
  %v1005 = vunpack.c.l.b16 %v289
  %v1006 = vunpack.c.h.b16 %v289
  %v1007 = vunpack.c.l.b16 %v290
  %v1008 = vunpack.c.h.b16 %v290
  %v1009 = vunpack.c.l.b16 %v291
  %v1010 = vunpack.c.h.b16 %v291
  %v1011 = vunpack.c.l.b16 %v292
  %v1012 = vunpack.c.h.b16 %v292
  %v1013 = vunpack.c.l.b16 %v293
  %v1014 = vunpack.c.h.b16 %v293
  %v1015 = vunpack.c.l.b16 %v294
  %v1016 = vunpack.c.h.b16 %v294
  %v1017 = vunpack.c.l.b16 %v295
  %v1018 = vunpack.c.h.b16 %v295
  %v1019 = vunpack.c.l.b16 %v296
  %v1020 = vunpack.c.h.b16 %v296
  %v1021 = vunpack.c.l.b16 %v297
  %v1022 = vunpack.c.h.b16 %v297
  %v1023 = vunpack.c.l.b16 %v298
  %v1024 = vunpack.c.h.b16 %v298
  %v1025 = vunpack.c.l.b16 %v299
  %v1026 = vunpack.c.h.b16 %v299
  %v1027 = vunpack.c.l.b16 %v300
  %v1028 = vunpack.c.h.b16 %v300
  %v1029 = vunpack.c.l.b16 %v301
  %v1030 = vunpack.c.h.b16 %v301
  %v1031 = vunpack.c.l.b16 %v302
  %v1032 = vunpack.c.h.b16 %v302
  %v1033 = vunpack.c.l.b16 %v303
  %v1034 = vunpack.c.h.b16 %v303
  %v1035 = vunpack.c.l.b16 %v304
  %v1036 = vunpack.c.h.b16 %v304
  %v1037 = vunpack.c.l.b16 %v305
  %v1038 = vunpack.c.h.b16 %v305
  %v1039 = vunpack.c.l.b16 %v306
  %v1040 = vunpack.c.h.b16 %v306
  %v1041 = vunpack.c.l.b16 %v307
  %v1042 = vunpack.c.h.b16 %v307
  %v1043 = vunpack.c.l.b16 %v308
  %v1044 = vunpack.c.h.b16 %v308
  %v1045 = vunpack.c.l.b16 %v309
  %v1046 = vunpack.c.h.b16 %v309
  %v1047 = vunpack.c.l.b16 %v310
  %v1048 = vunpack.c.h.b16 %v310
  %v1049 = vunpack.c.l.b16 %v311
  %v1050 = vunpack.c.h.b16 %v311
  %v1051 = vunpack.c.l.b16 %v312
  %v1052 = vunpack.c.h.b16 %v312
  %v1053 = vunpack.c.l.b16 %v313
  %v1054 = vunpack.c.h.b16 %v313
  %v1055 = vunpack.c.l.b16 %v314
  %v1056 = vunpack.c.h.b16 %v314
  %v1057 = vpack.c.b16 %v581, %v577
  %v1058 = vpack.c.b16 %v582, %v578
  %v1059 = vpack.c.b16 %v583, %v579
  %v1060 = vpack.c.b16 %v584, %v580
  %v1061 = vpack.c.b16 %v589, %v585
  %v1062 = vpack.c.b16 %v590, %v586
  %v1063 = vpack.c.b16 %v591, %v587
  %v1064 = vpack.c.b16 %v592, %v588
  %v1065 = vpack.c.b16 %v597, %v593
  %v1066 = vpack.c.b16 %v598, %v594
  %v1067 = vpack.c.b16 %v599, %v595
  %v1068 = vpack.c.b16 %v600, %v596
  %v1069 = vpack.c.b16 %v605, %v601
  %v1070 = vpack.c.b16 %v606, %v602
  %v1071 = vpack.c.b16 %v607, %v603
  %v1072 = vpack.c.b16 %v608, %v604
  %v1073 = vpack.c.b16 %v613, %v609
  %v1074 = vpack.c.b16 %v614, %v610
  %v1075 = vpack.c.b16 %v615, %v611
  %v1076 = vpack.c.b16 %v616, %v612
  %v1077 = vpack.c.b16 %v621, %v617
  %v1078 = vpack.c.b16 %v622, %v618
  %v1079 = vpack.c.b16 %v623, %v619
  %v1080 = vpack.c.b16 %v624, %v620
  %v1081 = vpack.c.b16 %v629, %v625
  %v1082 = vpack.c.b16 %v630, %v626
  %v1083 = vpack.c.b16 %v631, %v627
  %v1084 = vpack.c.b16 %v632, %v628
  %v1085 = vpack.c.b16 %v637, %v633
  %v1086 = vpack.c.b16 %v638, %v634
  %v1087 = vpack.c.b16 %v639, %v635
  %v1088 = vpack.c.b16 %v640, %v636
  %v1089 = vpack.c.b16 %v645, %v641
  %v1090 = vpack.c.b16 %v646, %v642
  %v1091 = vpack.c.b16 %v647, %v643
  %v1092 = vpack.c.b16 %v648, %v644
  %v1093 = vpack.c.b16 %v653, %v649
  %v1094 = vpack.c.b16 %v654, %v650
  %v1095 = vpack.c.b16 %v655, %v651
  %v1096 = vpack.c.b16 %v656, %v652
  %v1097 = vpack.c.b16 %v661, %v657
  %v1098 = vpack.c.b16 %v662, %v658
  %v1099 = vpack.c.b16 %v663, %v659
  %v1100 = vpack.c.b16 %v664, %v660
  %v1101 = vpack.c.b16 %v669, %v665
  %v1102 = vpack.c.b16 %v670, %v666
  %v1103 = vpack.c.b16 %v671, %v667
  %v1104 = vpack.c.b16 %v672, %v668
  %v1105 = vpack.c.b16 %v677, %v673
  %v1106 = vpack.c.b16 %v678, %v674
  %v1107 = vpack.c.b16 %v679, %v675
  %v1108 = vpack.c.b16 %v680, %v676
  %v1109 = vpack.c.b16 %v685, %v681
  %v1110 = vpack.c.b16 %v686, %v682
  %v1111 = vpack.c.b16 %v687, %v683
  %v1112 = vpack.c.b16 %v688, %v684
  %v1113 = vpack.c.b16 %v693, %v689
  %v1114 = vpack.c.b16 %v694, %v690
  %v1115 = vpack.c.b16 %v695, %v691
  %v1116 = vpack.c.b16 %v696, %v692
  %v1117 = vpack.c.b16 %v701, %v697
  %v1118 = vpack.c.b16 %v702, %v698
  %v1119 = vpack.c.b16 %v703, %v699
  %v1120 = vpack.c.b16 %v704, %v700
  %v1121 = vpack.c.b16 %v709, %v705
  %v1122 = vpack.c.b16 %v710, %v706
  %v1123 = vpack.c.b16 %v711, %v707
  %v1124 = vpack.c.b16 %v712, %v708
  %v1125 = vpack.c.b16 %v717, %v713
  %v1126 = vpack.c.b16 %v718, %v714
  %v1127 = vpack.c.b16 %v719, %v715
  %v1128 = vpack.c.b16 %v720, %v716
  %v1129 = vpack.c.b16 %v725, %v721
  %v1130 = vpack.c.b16 %v726, %v722
  %v1131 = vpack.c.b16 %v727, %v723
  %v1132 = vpack.c.b16 %v728, %v724
  %v1133 = vpack.c.b16 %v733, %v729
  %v1134 = vpack.c.b16 %v734, %v730
  %v1135 = vpack.c.b16 %v735, %v731
  %v1136 = vpack.c.b16 %v736, %v732
  %v1137 = vpack.c.b16 %v741, %v737
  %v1138 = vpack.c.b16 %v742, %v738
  %v1139 = vpack.c.b16 %v743, %v739
  %v1140 = vpack.c.b16 %v744, %v740
  %v1141 = vpack.c.b16 %v749, %v745
  %v1142 = vpack.c.b16 %v750, %v746
  %v1143 = vpack.c.b16 %v751, %v747
  %v1144 = vpack.c.b16 %v752, %v748
  %v1145 = vpack.c.b16 %v757, %v753
  %v1146 = vpack.c.b16 %v758, %v754
  %v1147 = vpack.c.b16 %v759, %v755
  %v1148 = vpack.c.b16 %v760, %v756
  %v1149 = vpack.c.b16 %v765, %v761
  %v1150 = vpack.c.b16 %v766, %v762
  %v1151 = vpack.c.b16 %v767, %v763
  %v1152 = vpack.c.b16 %v768, %v764
  %v1153 = vpack.c.b16 %v773, %v769
  %v1154 = vpack.c.b16 %v774, %v770
  %v1155 = vpack.c.b16 %v775, %v771
  %v1156 = vpack.c.b16 %v776, %v772
  %v1157 = vpack.c.b16 %v781, %v777
  %v1158 = vpack.c.b16 %v782, %v778
  %v1159 = vpack.c.b16 %v783, %v779
  %v1160 = vpack.c.b16 %v784, %v780
  %v1161 = vpack.c.b16 %v789, %v785
  %v1162 = vpack.c.b16 %v790, %v786
  %v1163 = vpack.c.b16 %v791, %v787
  %v1164 = vpack.c.b16 %v792, %v788
  %v1165 = vpack.c.b16 %v797, %v793
  %v1166 = vpack.c.b16 %v798, %v794
  %v1167 = vpack.c.b16 %v799, %v795
  %v1168 = vpack.c.b16 %v800, %v796
  %v1169 = vpack.c.b16 %v805, %v801
  %v1170 = vpack.c.b16 %v806, %v802
  %v1171 = vpack.c.b16 %v807, %v803
  %v1172 = vpack.c.b16 %v808, %v804
  %v1173 = vpack.c.b16 %v813, %v809
  %v1174 = vpack.c.b16 %v814, %v810
  %v1175 = vpack.c.b16 %v815, %v811
  %v1176 = vpack.c.b16 %v816, %v812
  %v1177 = vpack.c.b16 %v821, %v817
  %v1178 = vpack.c.b16 %v822, %v818
  %v1179 = vpack.c.b16 %v823, %v819
  %v1180 = vpack.c.b16 %v824, %v820
  %v1181 = vpack.c.b16 %v829, %v825
  %v1182 = vpack.c.b16 %v830, %v826
  %v1183 = vpack.c.b16 %v831, %v827
  %v1184 = vpack.c.b16 %v832, %v828
  %v1185 = vpack.c.b16 %v837, %v833
  %v1186 = vpack.c.b16 %v838, %v834
  %v1187 = vpack.c.b16 %v839, %v835
  %v1188 = vpack.c.b16 %v840, %v836
  %v1189 = vpack.c.b16 %v845, %v841
  %v1190 = vpack.c.b16 %v846, %v842
  %v1191 = vpack.c.b16 %v847, %v843
  %v1192 = vpack.c.b16 %v848, %v844
  %v1193 = vpack.c.b16 %v853, %v849
  %v1194 = vpack.c.b16 %v854, %v850
  %v1195 = vpack.c.b16 %v855, %v851
  %v1196 = vpack.c.b16 %v856, %v852
  %v1197 = vpack.c.b16 %v861, %v857
  %v1198 = vpack.c.b16 %v862, %v858
  %v1199 = vpack.c.b16 %v863, %v859
  %v1200 = vpack.c.b16 %v864, %v860
  %v1201 = vpack.c.b16 %v869, %v865
  %v1202 = vpack.c.b16 %v870, %v866
  %v1203 = vpack.c.b16 %v871, %v867
  %v1204 = vpack.c.b16 %v872, %v868
  %v1205 = vpack.c.b16 %v877, %v873
  %v1206 = vpack.c.b16 %v878, %v874
  %v1207 = vpack.c.b16 %v879, %v875
  %v1208 = vpack.c.b16 %v880, %v876
  %v1209 = vpack.c.b16 %v885, %v881
  %v1210 = vpack.c.b16 %v886, %v882
  %v1211 = vpack.c.b16 %v887, %v883
  %v1212 = vpack.c.b16 %v888, %v884
  %v1213 = vpack.c.b16 %v893, %v889
  %v1214 = vpack.c.b16 %v894, %v890
  %v1215 = vpack.c.b16 %v895, %v891
  %v1216 = vpack.c.b16 %v896, %v892
  %v1217 = vpack.c.b16 %v901, %v897
  %v1218 = vpack.c.b16 %v902, %v898
  %v1219 = vpack.c.b16 %v903, %v899
  %v1220 = vpack.c.b16 %v904, %v900
  %v1221 = vpack.c.b16 %v909, %v905
  %v1222 = vpack.c.b16 %v910, %v906
  %v1223 = vpack.c.b16 %v911, %v907
  %v1224 = vpack.c.b16 %v912, %v908
  %v1225 = vpack.c.b16 %v917, %v913
  %v1226 = vpack.c.b16 %v918, %v914
  %v1227 = vpack.c.b16 %v919, %v915
  %v1228 = vpack.c.b16 %v920, %v916
  %v1229 = vpack.c.b16 %v925, %v921
  %v1230 = vpack.c.b16 %v926, %v922
  %v1231 = vpack.c.b16 %v927, %v923
  %v1232 = vpack.c.b16 %v928, %v924
  %v1233 = vpack.c.b16 %v933, %v929
  %v1234 = vpack.c.b16 %v934, %v930
  %v1235 = vpack.c.b16 %v935, %v931
  %v1236 = vpack.c.b16 %v936, %v932
  %v1237 = vpack.c.b16 %v941, %v937
  %v1238 = vpack.c.b16 %v942, %v938
  %v1239 = vpack.c.b16 %v943, %v939
  %v1240 = vpack.c.b16 %v944, %v940
  %v1241 = vpack.c.b16 %v949, %v945
  %v1242 = vpack.c.b16 %v950, %v946
  %v1243 = vpack.c.b16 %v951, %v947
  %v1244 = vpack.c.b16 %v952, %v948
  %v1245 = vpack.c.b16 %v957, %v953
  %v1246 = vpack.c.b16 %v958, %v954
  %v1247 = vpack.c.b16 %v959, %v955
  %v1248 = vpack.c.b16 %v960, %v956
  %v1249 = vpack.c.b16 %v965, %v961
  %v1250 = vpack.c.b16 %v966, %v962
  %v1251 = vpack.c.b16 %v967, %v963
  %v1252 = vpack.c.b16 %v968, %v964
  %v1253 = vpack.c.b16 %v973, %v969
  %v1254 = vpack.c.b16 %v974, %v970
  %v1255 = vpack.c.b16 %v975, %v971
  %v1256 = vpack.c.b16 %v976, %v972
  %v1257 = vpack.c.b16 %v981, %v977
  %v1258 = vpack.c.b16 %v982, %v978
  %v1259 = vpack.c.b16 %v983, %v979
  %v1260 = vpack.c.b16 %v984, %v980
  %v1261 = vpack.c.b16 %v989, %v985
  %v1262 = vpack.c.b16 %v990, %v986
  %v1263 = vpack.c.b16 %v991, %v987
  %v1264 = vpack.c.b16 %v992, %v988
  %v1265 = vpack.c.b16 %v997, %v993
  %v1266 = vpack.c.b16 %v998, %v994
  %v1267 = vpack.c.b16 %v999, %v995
  %v1268 = vpack.c.b16 %v1000, %v996
  %v1269 = vpack.c.b16 %v1005, %v1001
  %v1270 = vpack.c.b16 %v1006, %v1002
  %v1271 = vpack.c.b16 %v1007, %v1003
  %v1272 = vpack.c.b16 %v1008, %v1004
  %v1273 = vpack.c.b16 %v1013, %v1009
  %v1274 = vpack.c.b16 %v1014, %v1010
  %v1275 = vpack.c.b16 %v1015, %v1011
  %v1276 = vpack.c.b16 %v1016, %v1012
  %v1277 = vpack.c.b16 %v1021, %v1017
  %v1278 = vpack.c.b16 %v1022, %v1018
  %v1279 = vpack.c.b16 %v1023, %v1019
  %v1280 = vpack.c.b16 %v1024, %v1020
  %v1281 = vpack.c.b16 %v1029, %v1025
  %v1282 = vpack.c.b16 %v1030, %v1026
  %v1283 = vpack.c.b16 %v1031, %v1027
  %v1284 = vpack.c.b16 %v1032, %v1028
  %v1285 = vpack.c.b16 %v1037, %v1033
  %v1286 = vpack.c.b16 %v1038, %v1034
  %v1287 = vpack.c.b16 %v1039, %v1035
  %v1288 = vpack.c.b16 %v1040, %v1036
  %v1289 = vpack.c.b16 %v1045, %v1041
  %v1290 = vpack.c.b16 %v1046, %v1042
  %v1291 = vpack.c.b16 %v1047, %v1043
  %v1292 = vpack.c.b16 %v1048, %v1044
  %v1293 = vpack.c.b16 %v1053, %v1049
  %v1294 = vpack.c.b16 %v1054, %v1050
  %v1295 = vpack.c.b16 %v1055, %v1051
  %v1296 = vpack.c.b16 %v1056, %v1052
  %vm1537 = vcmask 523264
  %v1539 = vsel %vm1537, %v74, 0
  %1541 = vmatprep.subr.bf16.mxu0 %v1086
  %1542 = vmatpush1.bf16.msra.mxu0 %v1085
  %1543 = vmatprep.subr.bf16.mxu0 %v1082
  %1544 = vmatpush1.bf16.msra.mxu0 %v1081
  %1545 = vmatprep.subr.bf16.mxu0 %v1078
  %1546 = vmatpush1.bf16.msra.mxu0 %v1077
  %1547 = vmatprep.subr.bf16.mxu0 %v1074
  %1548 = vmatpush1.bf16.msra.mxu0 %v1073
  %1549 = vmatprep.subr.bf16.mxu0 %v1070
  %1550 = vmatpush1.bf16.msra.mxu0 %v1069
  %1551 = vmatprep.subr.bf16.mxu0 %v1066
  %1552 = vmatpush1.bf16.msra.mxu0 %v1065
  %1553 = vmatprep.subr.bf16.mxu0 %v1062
  %1554 = vmatpush1.bf16.msra.mxu0 %v1061
  %1555 = vmatprep.subr.bf16.mxu0 %v1058
  %1556 = vmatpush1.bf16.msra.mxu0 %v1057
  %1557 = vmatprep.subr.bf16.mxu0 %v1118
  %1558 = vmatpush2.bf16.msra.mxu0 %v1117
  %1559 = vmatprep.subr.bf16.mxu0 %v1114
  %1560 = vmatpush2.bf16.msra.mxu0 %v1113
  %1561 = vmatprep.subr.bf16.mxu0 %v1110
  %1562 = vmatpush2.bf16.msra.mxu0 %v1109
  %1563 = vmatprep.subr.bf16.mxu0 %v1106
  %1564 = vmatpush2.bf16.msra.mxu0 %v1105
  %1565 = vmatprep.subr.bf16.mxu0 %v1102
  %1566 = vmatpush2.bf16.msra.mxu0 %v1101
  %1567 = vmatprep.subr.bf16.mxu0 %v1098
  %1568 = vmatpush2.bf16.msra.mxu0 %v1097
  %1569 = vmatprep.subr.bf16.mxu0 %v1094
  %1570 = vmatpush2.bf16.msra.mxu0 %v1093
  %1571 = vmatprep.subr.bf16.mxu0 %v1090
  %1572 = vmatpush2.bf16.msra.mxu0 %v1089
  %1573 = vmatprep.mubr.bf16.mxu0 %v68
  %1574 = vmatmul.mubr.bf16.gmra.mxu0 %v67
  %v1575 = vpop.f32.mrf.mxu0
  %v1576 = vadd.f32 %v320, %v1575
  %v1577 = vpop.f32.mrf.mxu0
  %v1578 = vadd.f32 %v324, %v1577
  %v1579 = vpop.f32.mrf.mxu0
  %v1580 = vpop.f32.mrf.mxu0
  %1581 = vdwg.mxu0
  %1582 = vmatprep.subr.bf16.mxu0 %v1150
  %1583 = vmatpush1.bf16.msra.mxu0 %v1149
  %1584 = vmatprep.subr.bf16.mxu0 %v1146
  %1585 = vmatpush1.bf16.msra.mxu0 %v1145
  %1586 = vmatprep.subr.bf16.mxu0 %v1142
  %1587 = vmatpush1.bf16.msra.mxu0 %v1141
  %1588 = vmatprep.subr.bf16.mxu0 %v1138
  %1589 = vmatpush1.bf16.msra.mxu0 %v1137
  %1590 = vmatprep.subr.bf16.mxu0 %v1134
  %1591 = vmatpush1.bf16.msra.mxu0 %v1133
  %1592 = vmatprep.subr.bf16.mxu0 %v1130
  %1593 = vmatpush1.bf16.msra.mxu0 %v1129
  %1594 = vmatprep.subr.bf16.mxu0 %v1126
  %1595 = vmatpush1.bf16.msra.mxu0 %v1125
  %1596 = vmatprep.subr.bf16.mxu0 %v1122
  %1597 = vmatpush1.bf16.msra.mxu0 %v1121
  %1598 = vmatprep.subr.bf16.mxu0 %v1182
  %1599 = vmatpush2.bf16.msra.mxu0 %v1181
  %1600 = vmatprep.subr.bf16.mxu0 %v1178
  %1601 = vmatpush2.bf16.msra.mxu0 %v1177
  %1602 = vmatprep.subr.bf16.mxu0 %v1174
  %1603 = vmatpush2.bf16.msra.mxu0 %v1173
  %1604 = vmatprep.subr.bf16.mxu0 %v1170
  %1605 = vmatpush2.bf16.msra.mxu0 %v1169
  %1606 = vmatprep.subr.bf16.mxu0 %v1166
  %1607 = vmatpush2.bf16.msra.mxu0 %v1165
  %1608 = vmatprep.subr.bf16.mxu0 %v1162
  %1609 = vmatpush2.bf16.msra.mxu0 %v1161
  %1610 = vmatprep.subr.bf16.mxu0 %v1158
  %1611 = vmatpush2.bf16.msra.mxu0 %v1157
  %1612 = vmatprep.subr.bf16.mxu0 %v1154
  %1613 = vmatpush2.bf16.msra.mxu0 %v1153
  %1614 = vmatprep.mubr.bf16.mxu0 %v70
  %1615 = vmatmul.mubr.bf16.gmra.mxu0 %v69
  %v1616 = vpop.f32.mrf.mxu0
  %v1617 = vadd.f32 %v1576, %v1616
  %v1618 = vpop.f32.mrf.mxu0
  %v1619 = vadd.f32 %v1578, %v1618
  %v1620 = vpop.f32.mrf.mxu0
  %v1621 = vpop.f32.mrf.mxu0
  %1622 = vdwg.mxu0
  %1623 = vmatprep.subr.bf16.mxu0 %v1214
  %1624 = vmatpush1.bf16.msra.mxu0 %v1213
  %1625 = vmatprep.subr.bf16.mxu0 %v1210
  %1626 = vmatpush1.bf16.msra.mxu0 %v1209
  %1627 = vmatprep.subr.bf16.mxu0 %v1206
  %1628 = vmatpush1.bf16.msra.mxu0 %v1205
  %1629 = vmatprep.subr.bf16.mxu0 %v1202
  %1630 = vmatpush1.bf16.msra.mxu0 %v1201
  %1631 = vmatprep.subr.bf16.mxu0 %v1198
  %1632 = vmatpush1.bf16.msra.mxu0 %v1197
  %1633 = vmatprep.subr.bf16.mxu0 %v1194
  %1634 = vmatpush1.bf16.msra.mxu0 %v1193
  %1635 = vmatprep.subr.bf16.mxu0 %v1190
  %1636 = vmatpush1.bf16.msra.mxu0 %v1189
  %1637 = vmatprep.subr.bf16.mxu0 %v1186
  %1638 = vmatpush1.bf16.msra.mxu0 %v1185
  %1639 = vmatprep.subr.bf16.mxu0 %v1246
  %1640 = vmatpush2.bf16.msra.mxu0 %v1245
  %1641 = vmatprep.subr.bf16.mxu0 %v1242
  %1642 = vmatpush2.bf16.msra.mxu0 %v1241
  %1643 = vmatprep.subr.bf16.mxu0 %v1238
  %1644 = vmatpush2.bf16.msra.mxu0 %v1237
  %1645 = vmatprep.subr.bf16.mxu0 %v1234
  %1646 = vmatpush2.bf16.msra.mxu0 %v1233
  %1647 = vmatprep.subr.bf16.mxu0 %v1230
  %1648 = vmatpush2.bf16.msra.mxu0 %v1229
  %1649 = vmatprep.subr.bf16.mxu0 %v1226
  %1650 = vmatpush2.bf16.msra.mxu0 %v1225
  %1651 = vmatprep.subr.bf16.mxu0 %v1222
  %1652 = vmatpush2.bf16.msra.mxu0 %v1221
  %1653 = vmatprep.subr.bf16.mxu0 %v1218
  %1654 = vmatpush2.bf16.msra.mxu0 %v1217
  %1655 = vmatprep.mubr.bf16.mxu0 %v72
  %1656 = vmatmul.mubr.bf16.gmra.mxu0 %v71
  %v1657 = vpop.f32.mrf.mxu0
  %v1658 = vadd.f32 %v1617, %v1657
  %v1659 = vpop.f32.mrf.mxu0
  %v1660 = vadd.f32 %v1619, %v1659
  %v1661 = vpop.f32.mrf.mxu0
  %v1662 = vpop.f32.mrf.mxu0
  %1663 = vdwg.mxu0
  %1664 = vmatprep.subr.bf16.mxu0 %v1278
  %1665 = vmatpush1.bf16.msra.mxu0 %v1277
  %1666 = vmatprep.subr.bf16.mxu0 %v1274
  %1667 = vmatpush1.bf16.msra.mxu0 %v1273
  %1668 = vmatprep.subr.bf16.mxu0 %v1270
  %1669 = vmatpush1.bf16.msra.mxu0 %v1269
  %1670 = vmatprep.subr.bf16.mxu0 %v1266
  %1671 = vmatpush1.bf16.msra.mxu0 %v1265
  %1672 = vmatprep.subr.bf16.mxu0 %v1262
  %1673 = vmatpush1.bf16.msra.mxu0 %v1261
  %1674 = vmatprep.subr.bf16.mxu0 %v1258
  %1675 = vmatpush1.bf16.msra.mxu0 %v1257
  %1676 = vmatprep.subr.bf16.mxu0 %v1254
  %1677 = vmatpush1.bf16.msra.mxu0 %v1253
  %1678 = vmatprep.subr.bf16.mxu0 %v1250
  %1679 = vmatpush1.bf16.msra.mxu0 %v1249
  %1680 = vmatprep.subr.bf16.mxu0 0
  %1681 = vmatpush2.bf16.msra.mxu0 0
  %1682 = vmatprep.subr.bf16.mxu0 0
  %1683 = vmatpush2.bf16.msra.mxu0 0
  %1684 = vmatprep.subr.bf16.mxu0 0
  %1685 = vmatpush2.bf16.msra.mxu0 0
  %1686 = vmatprep.subr.bf16.mxu0 0
  %1687 = vmatpush2.bf16.msra.mxu0 0
  %1688 = vmatprep.subr.bf16.mxu0 %v1294
  %1689 = vmatpush2.bf16.msra.mxu0 %v1293
  %1690 = vmatprep.subr.bf16.mxu0 %v1290
  %1691 = vmatpush2.bf16.msra.mxu0 %v1289
  %1692 = vmatprep.subr.bf16.mxu0 %v1286
  %1693 = vmatpush2.bf16.msra.mxu0 %v1285
  %1694 = vmatprep.subr.bf16.mxu0 %v1282
  %1695 = vmatpush2.bf16.msra.mxu0 %v1281
  %1696 = vmatprep.mubr.bf16.mxu0 %v1539
  %1697 = vmatmul.mubr.bf16.gmra.mxu0 %v73
  %v1698 = vpop.f32.mrf.mxu0
  %v1699 = vadd.f32 %v1658, %v1698
  %v1700 = vpop.f32.mrf.mxu0
  %v1701 = vadd.f32 %v1660, %v1700
  %v1702 = vpop.f32.mrf.mxu0
  %v1703 = vpop.f32.mrf.mxu0
  %1704 = vdwg.mxu0
  %1705 = vmatprep.subr.bf16.mxu0 %v1088
  %1706 = vmatpush1.bf16.msra.mxu0 %v1087
  %1707 = vmatprep.subr.bf16.mxu0 %v1084
  %1708 = vmatpush1.bf16.msra.mxu0 %v1083
  %1709 = vmatprep.subr.bf16.mxu0 %v1080
  %1710 = vmatpush1.bf16.msra.mxu0 %v1079
  %1711 = vmatprep.subr.bf16.mxu0 %v1076
  %1712 = vmatpush1.bf16.msra.mxu0 %v1075
  %1713 = vmatprep.subr.bf16.mxu0 %v1072
  %1714 = vmatpush1.bf16.msra.mxu0 %v1071
  %1715 = vmatprep.subr.bf16.mxu0 %v1068
  %1716 = vmatpush1.bf16.msra.mxu0 %v1067
  %1717 = vmatprep.subr.bf16.mxu0 %v1064
  %1718 = vmatpush1.bf16.msra.mxu0 %v1063
  %1719 = vmatprep.subr.bf16.mxu0 %v1060
  %1720 = vmatpush1.bf16.msra.mxu0 %v1059
  %1721 = vmatprep.subr.bf16.mxu0 %v1120
  %1722 = vmatpush2.bf16.msra.mxu0 %v1119
  %1723 = vmatprep.subr.bf16.mxu0 %v1116
  %1724 = vmatpush2.bf16.msra.mxu0 %v1115
  %1725 = vmatprep.subr.bf16.mxu0 %v1112
  %1726 = vmatpush2.bf16.msra.mxu0 %v1111
  %1727 = vmatprep.subr.bf16.mxu0 %v1108
  %1728 = vmatpush2.bf16.msra.mxu0 %v1107
  %1729 = vmatprep.subr.bf16.mxu0 %v1104
  %1730 = vmatpush2.bf16.msra.mxu0 %v1103
  %1731 = vmatprep.subr.bf16.mxu0 %v1100
  %1732 = vmatpush2.bf16.msra.mxu0 %v1099
  %1733 = vmatprep.subr.bf16.mxu0 %v1096
  %1734 = vmatpush2.bf16.msra.mxu0 %v1095
  %1735 = vmatprep.subr.bf16.mxu0 %v1092
  %1736 = vmatpush2.bf16.msra.mxu0 %v1091
  %1737 = vmatprep.mubr.bf16.mxu0 %v68
  %1738 = vmatmul.mubr.bf16.gmra.mxu0 %v67
  %v1739 = vpop.f32.mrf.mxu0
  %v1740 = vadd.f32 %v328, %v1739
  %v1741 = vpop.f32.mrf.mxu0
  %v1742 = vadd.f32 %v332, %v1741
  %v1743 = vpop.f32.mrf.mxu0
  %v1744 = vpop.f32.mrf.mxu0
  %1745 = vdwg.mxu0
  %1746 = vmatprep.subr.bf16.mxu0 %v1152
  %1747 = vmatpush1.bf16.msra.mxu0 %v1151
  %1748 = vmatprep.subr.bf16.mxu0 %v1148
  %1749 = vmatpush1.bf16.msra.mxu0 %v1147
  %1750 = vmatprep.subr.bf16.mxu0 %v1144
  %1751 = vmatpush1.bf16.msra.mxu0 %v1143
  %1752 = vmatprep.subr.bf16.mxu0 %v1140
  %1753 = vmatpush1.bf16.msra.mxu0 %v1139
  %1754 = vmatprep.subr.bf16.mxu0 %v1136
  %1755 = vmatpush1.bf16.msra.mxu0 %v1135
  %1756 = vmatprep.subr.bf16.mxu0 %v1132
  %1757 = vmatpush1.bf16.msra.mxu0 %v1131
  %1758 = vmatprep.subr.bf16.mxu0 %v1128
  %1759 = vmatpush1.bf16.msra.mxu0 %v1127
  %1760 = vmatprep.subr.bf16.mxu0 %v1124
  %1761 = vmatpush1.bf16.msra.mxu0 %v1123
  %1762 = vmatprep.subr.bf16.mxu0 %v1184
  %1763 = vmatpush2.bf16.msra.mxu0 %v1183
  %1764 = vmatprep.subr.bf16.mxu0 %v1180
  %1765 = vmatpush2.bf16.msra.mxu0 %v1179
  %1766 = vmatprep.subr.bf16.mxu0 %v1176
  %1767 = vmatpush2.bf16.msra.mxu0 %v1175
  %1768 = vmatprep.subr.bf16.mxu0 %v1172
  %1769 = vmatpush2.bf16.msra.mxu0 %v1171
  %1770 = vmatprep.subr.bf16.mxu0 %v1168
  %1771 = vmatpush2.bf16.msra.mxu0 %v1167
  %1772 = vmatprep.subr.bf16.mxu0 %v1164
  %1773 = vmatpush2.bf16.msra.mxu0 %v1163
  %1774 = vmatprep.subr.bf16.mxu0 %v1160
  %1775 = vmatpush2.bf16.msra.mxu0 %v1159
  %1776 = vmatprep.subr.bf16.mxu0 %v1156
  %1777 = vmatpush2.bf16.msra.mxu0 %v1155
  %1778 = vmatprep.mubr.bf16.mxu0 %v70
  %1779 = vmatmul.mubr.bf16.gmra.mxu0 %v69
  %v1780 = vpop.f32.mrf.mxu0
  %v1781 = vadd.f32 %v1740, %v1780
  %v1782 = vpop.f32.mrf.mxu0
  %v1783 = vadd.f32 %v1742, %v1782
  %v1784 = vpop.f32.mrf.mxu0
  %v1785 = vpop.f32.mrf.mxu0
  %1786 = vdwg.mxu0
  %1787 = vmatprep.subr.bf16.mxu0 %v1216
  %1788 = vmatpush1.bf16.msra.mxu0 %v1215
  %1789 = vmatprep.subr.bf16.mxu0 %v1212
  %1790 = vmatpush1.bf16.msra.mxu0 %v1211
  %1791 = vmatprep.subr.bf16.mxu0 %v1208
  %1792 = vmatpush1.bf16.msra.mxu0 %v1207
  %1793 = vmatprep.subr.bf16.mxu0 %v1204
  %1794 = vmatpush1.bf16.msra.mxu0 %v1203
  %1795 = vmatprep.subr.bf16.mxu0 %v1200
  %1796 = vmatpush1.bf16.msra.mxu0 %v1199
  %1797 = vmatprep.subr.bf16.mxu0 %v1196
  %1798 = vmatpush1.bf16.msra.mxu0 %v1195
  %1799 = vmatprep.subr.bf16.mxu0 %v1192
  %1800 = vmatpush1.bf16.msra.mxu0 %v1191
  %1801 = vmatprep.subr.bf16.mxu0 %v1188
  %1802 = vmatpush1.bf16.msra.mxu0 %v1187
  %1803 = vmatprep.subr.bf16.mxu0 %v1248
  %1804 = vmatpush2.bf16.msra.mxu0 %v1247
  %1805 = vmatprep.subr.bf16.mxu0 %v1244
  %1806 = vmatpush2.bf16.msra.mxu0 %v1243
  %1807 = vmatprep.subr.bf16.mxu0 %v1240
  %1808 = vmatpush2.bf16.msra.mxu0 %v1239
  %1809 = vmatprep.subr.bf16.mxu0 %v1236
  %1810 = vmatpush2.bf16.msra.mxu0 %v1235
  %1811 = vmatprep.subr.bf16.mxu0 %v1232
  %1812 = vmatpush2.bf16.msra.mxu0 %v1231
  %1813 = vmatprep.subr.bf16.mxu0 %v1228
  %1814 = vmatpush2.bf16.msra.mxu0 %v1227
  %1815 = vmatprep.subr.bf16.mxu0 %v1224
  %1816 = vmatpush2.bf16.msra.mxu0 %v1223
  %1817 = vmatprep.subr.bf16.mxu0 %v1220
  %1818 = vmatpush2.bf16.msra.mxu0 %v1219
  %1819 = vmatprep.mubr.bf16.mxu0 %v72
  %1820 = vmatmul.mubr.bf16.gmra.mxu0 %v71
  %v1821 = vpop.f32.mrf.mxu0
  %v1822 = vadd.f32 %v1781, %v1821
  %v1823 = vpop.f32.mrf.mxu0
  %v1824 = vadd.f32 %v1783, %v1823
  %v1825 = vpop.f32.mrf.mxu0
  %v1826 = vpop.f32.mrf.mxu0
  %1827 = vdwg.mxu0
  %1828 = vmatprep.subr.bf16.mxu0 %v1280
  %1829 = vmatpush1.bf16.msra.mxu0 %v1279
  %1830 = vmatprep.subr.bf16.mxu0 %v1276
  %1831 = vmatpush1.bf16.msra.mxu0 %v1275
  %1832 = vmatprep.subr.bf16.mxu0 %v1272
  %1833 = vmatpush1.bf16.msra.mxu0 %v1271
  %1834 = vmatprep.subr.bf16.mxu0 %v1268
  %1835 = vmatpush1.bf16.msra.mxu0 %v1267
  %1836 = vmatprep.subr.bf16.mxu0 %v1264
  %1837 = vmatpush1.bf16.msra.mxu0 %v1263
  %1838 = vmatprep.subr.bf16.mxu0 %v1260
  %1839 = vmatpush1.bf16.msra.mxu0 %v1259
  %1840 = vmatprep.subr.bf16.mxu0 %v1256
  %1841 = vmatpush1.bf16.msra.mxu0 %v1255
  %1842 = vmatprep.subr.bf16.mxu0 %v1252
  %1843 = vmatpush1.bf16.msra.mxu0 %v1251
  %1844 = vmatprep.subr.bf16.mxu0 0
  %1845 = vmatpush2.bf16.msra.mxu0 0
  %1846 = vmatprep.subr.bf16.mxu0 0
  %1847 = vmatpush2.bf16.msra.mxu0 0
  %1848 = vmatprep.subr.bf16.mxu0 0
  %1849 = vmatpush2.bf16.msra.mxu0 0
  %1850 = vmatprep.subr.bf16.mxu0 0
  %1851 = vmatpush2.bf16.msra.mxu0 0
  %1852 = vmatprep.subr.bf16.mxu0 %v1296
  %1853 = vmatpush2.bf16.msra.mxu0 %v1295
  %1854 = vmatprep.subr.bf16.mxu0 %v1292
  %1855 = vmatpush2.bf16.msra.mxu0 %v1291
  %1856 = vmatprep.subr.bf16.mxu0 %v1288
  %1857 = vmatpush2.bf16.msra.mxu0 %v1287
  %1858 = vmatprep.subr.bf16.mxu0 %v1284
  %1859 = vmatpush2.bf16.msra.mxu0 %v1283
  %1860 = vmatprep.mubr.bf16.mxu0 %v1539
  %1861 = vmatmul.mubr.bf16.gmra.mxu0 %v73
  %v1862 = vpop.f32.mrf.mxu0
  %v1863 = vadd.f32 %v1822, %v1862
  %v1864 = vpop.f32.mrf.mxu0
  %v1865 = vadd.f32 %v1824, %v1864
  %v1866 = vpop.f32.mrf.mxu0
  %v1867 = vpop.f32.mrf.mxu0
  %1868 = vdwg.mxu0
  %v1869 = vmax.f32 %v1699, 0.0
  %v1870 = vmax.f32 %v1701, 0.0
  %v1871 = vmax.f32 %v1863, 0.0
  %v1872 = vmax.f32 %v1865, 0.0
  %v1873 = vpack.c.bf16 %v1869, %v1869
  %v1874 = vpack.c.bf16 %v1870, %v1870
  %v1875 = vpack.c.bf16 %v1871, %v1871
  %v1876 = vpack.c.bf16 %v1872, %v1872
  %v1877 = vld [vmem:[%s3] sm:$0xf]
  %v1878 = vld [vmem:[%s3 + $0x4] sm:$0xf]
  %v1879 = vld [vmem:[%s3 + $0x8] sm:$0xf]
  %v1880 = vld [vmem:[%s3 + $0xc] sm:$0xf]
  %v1881 = vld [vmem:[%s3 + $0x10] sm:$0xf]
  %v1882 = vld [vmem:[%s3 + $0x14] sm:$0xf]
  %v1883 = vld [vmem:[%s3 + $0x18] sm:$0xf]
  %v1884 = vld [vmem:[%s3 + $0x1c] sm:$0xf]
  %v1885 = vld [vmem:[%s3 + $0x20] sm:$0xf]
  %v1886 = vld [vmem:[%s3 + $0x24] sm:$0xf]
  %v1887 = vld [vmem:[%s3 + $0x28] sm:$0xf]
  %v1888 = vld [vmem:[%s3 + $0x2c] sm:$0xf]
  %v1889 = vld [vmem:[%s3 + $0x30] sm:$0xf]
  %v1890 = vld [vmem:[%s3 + $0x34] sm:$0xf]
  %v1891 = vld [vmem:[%s3 + $0x38] sm:$0xf]
  %v1892 = vld [vmem:[%s3 + $0x3c] sm:$0xf]
  %v1893 = vld [vmem:[%s3 + $0x40] sm:$0xf]
  %v1894 = vld [vmem:[%s3 + $0x44] sm:$0xf]
  %v1895 = vld [vmem:[%s3 + $0x48] sm:$0xf]
  %v1896 = vld [vmem:[%s3 + $0x4c] sm:$0xf]
  %v1897 = vld [vmem:[%s3 + $0x50] sm:$0xf]
  %v1898 = vld [vmem:[%s3 + $0x54] sm:$0xf]
  %v1899 = vld [vmem:[%s3 + $0x58] sm:$0xf]
  %v1900 = vld [vmem:[%s3 + $0x5c] sm:$0xf]
  %v1901 = vld [vmem:[%s3 + $0x60] sm:$0xf]
  %v1902 = vld [vmem:[%s3 + $0x64] sm:$0xf]
  %v1903 = vld [vmem:[%s3 + $0x68] sm:$0xf]
  %v1904 = vld [vmem:[%s3 + $0x6c] sm:$0xf]
  %v1905 = vld [vmem:[%s3 + $0x70] sm:$0xf]
  %v1906 = vld [vmem:[%s3 + $0x74] sm:$0xf]
  %v1907 = vld [vmem:[%s3 + $0x78] sm:$0xf]
  %v1908 = vld [vmem:[%s3 + $0x7c] sm:$0xf]
  %v1909 = vld [vmem:[%s3 + $0x80] sm:$0xf]
  %v1910 = vld [vmem:[%s3 + $0x84] sm:$0xf]
  %v1911 = vld [vmem:[%s3 + $0x88] sm:$0xf]
  %v1912 = vld [vmem:[%s3 + $0x8c] sm:$0xf]
  %v1913 = vld [vmem:[%s3 + $0x90] sm:$0xf]
  %v1914 = vld [vmem:[%s3 + $0x94] sm:$0xf]
  %v1915 = vld [vmem:[%s3 + $0x98] sm:$0xf]
  %v1916 = vld [vmem:[%s3 + $0x9c] sm:$0xf]
  %v1917 = vld [vmem:[%s3 + $0xa0] sm:$0xf]
  %v1918 = vld [vmem:[%s3 + $0xa4] sm:$0xf]
  %v1919 = vld [vmem:[%s3 + $0xa8] sm:$0xf]
  %v1920 = vld [vmem:[%s3 + $0xac] sm:$0xf]
  %v1921 = vld [vmem:[%s3 + $0xb0] sm:$0xf]
  %v1922 = vld [vmem:[%s3 + $0xb4] sm:$0xf]
  %v1923 = vld [vmem:[%s3 + $0xb8] sm:$0xf]
  %v1924 = vld [vmem:[%s3 + $0xbc] sm:$0xf]
  %v1925 = vld [vmem:[%s3 + $0xc0] sm:$0xf]
  %v1926 = vld [vmem:[%s3 + $0xc4] sm:$0xf]
  %v1927 = vld [vmem:[%s3 + $0xc8] sm:$0xf]
  %v1928 = vld [vmem:[%s3 + $0xcc] sm:$0xf]
  %v1929 = vld [vmem:[%s3 + $0xd0] sm:$0xf]
  %v1930 = vld [vmem:[%s3 + $0xd4] sm:$0xf]
  %v1931 = vld [vmem:[%s3 + $0xd8] sm:$0xf]
  %v1932 = vld [vmem:[%s3 + $0xdc] sm:$0xf]
  %v1933 = vld [vmem:[%s3 + $0xe0] sm:$0xf]
  %v1934 = vld [vmem:[%s3 + $0xe4] sm:$0xf]
  %v1935 = vld [vmem:[%s3 + $0xe8] sm:$0xf]
  %v1936 = vld [vmem:[%s3 + $0xec] sm:$0xf]
  %v1937 = vld [vmem:[%s3 + $0xf0] sm:$0xf]
  %v1938 = vld [vmem:[%s3 + $0xf4] sm:$0xf]
  %v1939 = vld [vmem:[%s3 + $0xf8] sm:$0xf]
  %v1940 = vld [vmem:[%s3 + $0xfc] sm:$0xf]
  %v1941 = vld [vmem:[%s4] sm:$0x1]
  %v1943 = vlaneseq
  %v1944 = vshrl.u32 %v1943, 7
  %v1945 = vsub.s32 0, %v1944
  %v1946 = vrot.slane %v1941, %v1945
  %v2012 = vunpack.c.l.b16 %v1877
  %v2013 = vunpack.c.l.b16 %v1878
  %v2014 = vunpack.c.l.b16 %v1879
  %v2015 = vunpack.c.l.b16 %v1880
  %v2016 = vunpack.c.l.b16 %v1881
  %v2017 = vunpack.c.l.b16 %v1882
  %v2018 = vunpack.c.l.b16 %v1883
  %v2019 = vunpack.c.l.b16 %v1884
  %v2020 = vunpack.c.l.b16 %v1885
  %v2021 = vunpack.c.l.b16 %v1886
  %v2022 = vunpack.c.l.b16 %v1887
  %v2023 = vunpack.c.l.b16 %v1888
  %v2024 = vunpack.c.l.b16 %v1889
  %v2025 = vunpack.c.l.b16 %v1890
  %v2026 = vunpack.c.l.b16 %v1891
  %v2027 = vunpack.c.l.b16 %v1892
  %v2028 = vunpack.c.l.b16 %v1893
  %v2029 = vunpack.c.l.b16 %v1894
  %v2030 = vunpack.c.l.b16 %v1895
  %v2031 = vunpack.c.l.b16 %v1896
  %v2032 = vunpack.c.l.b16 %v1897
  %v2033 = vunpack.c.l.b16 %v1898
  %v2034 = vunpack.c.l.b16 %v1899
  %v2035 = vunpack.c.l.b16 %v1900
  %v2036 = vunpack.c.l.b16 %v1901
  %v2037 = vunpack.c.l.b16 %v1902
  %v2038 = vunpack.c.l.b16 %v1903
  %v2039 = vunpack.c.l.b16 %v1904
  %v2040 = vunpack.c.l.b16 %v1905
  %v2041 = vunpack.c.l.b16 %v1906
  %v2042 = vunpack.c.l.b16 %v1907
  %v2043 = vunpack.c.l.b16 %v1908
  %v2044 = vunpack.c.l.b16 %v1909
  %v2045 = vunpack.c.l.b16 %v1910
  %v2046 = vunpack.c.l.b16 %v1911
  %v2047 = vunpack.c.l.b16 %v1912
  %v2048 = vunpack.c.l.b16 %v1913
  %v2049 = vunpack.c.l.b16 %v1914
  %v2050 = vunpack.c.l.b16 %v1915
  %v2051 = vunpack.c.l.b16 %v1916
  %v2052 = vunpack.c.l.b16 %v1917
  %v2053 = vunpack.c.l.b16 %v1918
  %v2054 = vunpack.c.l.b16 %v1919
  %v2055 = vunpack.c.l.b16 %v1920
  %v2056 = vunpack.c.l.b16 %v1921
  %v2057 = vunpack.c.l.b16 %v1922
  %v2058 = vunpack.c.l.b16 %v1923
  %v2059 = vunpack.c.l.b16 %v1924
  %v2060 = vunpack.c.l.b16 %v1925
  %v2061 = vunpack.c.l.b16 %v1926
  %v2062 = vunpack.c.l.b16 %v1927
  %v2063 = vunpack.c.l.b16 %v1928
  %v2064 = vunpack.c.l.b16 %v1929
  %v2065 = vunpack.c.l.b16 %v1930
  %v2066 = vunpack.c.l.b16 %v1931
  %v2067 = vunpack.c.l.b16 %v1932
  %v2068 = vunpack.c.l.b16 %v1933
  %v2069 = vunpack.c.l.b16 %v1934
  %v2070 = vunpack.c.l.b16 %v1935
  %v2071 = vunpack.c.l.b16 %v1936
  %v2072 = vunpack.c.l.b16 %v1937
  %v2073 = vunpack.c.l.b16 %v1938
  %v2074 = vunpack.c.l.b16 %v1939
  %v2075 = vunpack.c.l.b16 %v1940
  %v2076 = vpack.c.b16 %v2013, %v2012
  %v2077 = vpack.c.b16 %v2015, %v2014
  %v2078 = vpack.c.b16 %v2017, %v2016
  %v2079 = vpack.c.b16 %v2019, %v2018
  %v2080 = vpack.c.b16 %v2021, %v2020
  %v2081 = vpack.c.b16 %v2023, %v2022
  %v2082 = vpack.c.b16 %v2025, %v2024
  %v2083 = vpack.c.b16 %v2027, %v2026
  %v2084 = vpack.c.b16 %v2029, %v2028
  %v2085 = vpack.c.b16 %v2031, %v2030
  %v2086 = vpack.c.b16 %v2033, %v2032
  %v2087 = vpack.c.b16 %v2035, %v2034
  %v2088 = vpack.c.b16 %v2037, %v2036
  %v2089 = vpack.c.b16 %v2039, %v2038
  %v2090 = vpack.c.b16 %v2041, %v2040
  %v2091 = vpack.c.b16 %v2043, %v2042
  %v2092 = vpack.c.b16 %v2045, %v2044
  %v2093 = vpack.c.b16 %v2047, %v2046
  %v2094 = vpack.c.b16 %v2049, %v2048
  %v2095 = vpack.c.b16 %v2051, %v2050
  %v2096 = vpack.c.b16 %v2053, %v2052
  %v2097 = vpack.c.b16 %v2055, %v2054
  %v2098 = vpack.c.b16 %v2057, %v2056
  %v2099 = vpack.c.b16 %v2059, %v2058
  %v2100 = vpack.c.b16 %v2061, %v2060
  %v2101 = vpack.c.b16 %v2063, %v2062
  %v2102 = vpack.c.b16 %v2065, %v2064
  %v2103 = vpack.c.b16 %v2067, %v2066
  %v2104 = vpack.c.b16 %v2069, %v2068
  %v2105 = vpack.c.b16 %v2071, %v2070
  %v2106 = vpack.c.b16 %v2073, %v2072
  %v2107 = vpack.c.b16 %v2075, %v2074
  %2140 = vmatprep.subr.bf16.mxu0 0
  %2141 = vmatpush1.bf16.msra.mxu0 %v2083
  %2142 = vmatprep.subr.bf16.mxu0 0
  %2143 = vmatpush1.bf16.msra.mxu0 %v2082
  %2144 = vmatprep.subr.bf16.mxu0 0
  %2145 = vmatpush1.bf16.msra.mxu0 %v2081
  %2146 = vmatprep.subr.bf16.mxu0 0
  %2147 = vmatpush1.bf16.msra.mxu0 %v2080
  %2148 = vmatprep.subr.bf16.mxu0 0
  %2149 = vmatpush1.bf16.msra.mxu0 %v2079
  %2150 = vmatprep.subr.bf16.mxu0 0
  %2151 = vmatpush1.bf16.msra.mxu0 %v2078
  %2152 = vmatprep.subr.bf16.mxu0 0
  %2153 = vmatpush1.bf16.msra.mxu0 %v2077
  %2154 = vmatprep.subr.bf16.mxu0 0
  %2155 = vmatpush1.bf16.msra.mxu0 %v2076
  %2156 = vmatprep.subr.bf16.mxu0 0
  %2157 = vmatpush2.bf16.msra.mxu0 %v2091
  %2158 = vmatprep.subr.bf16.mxu0 0
  %2159 = vmatpush2.bf16.msra.mxu0 %v2090
  %2160 = vmatprep.subr.bf16.mxu0 0
  %2161 = vmatpush2.bf16.msra.mxu0 %v2089
  %2162 = vmatprep.subr.bf16.mxu0 0
  %2163 = vmatpush2.bf16.msra.mxu0 %v2088
  %2164 = vmatprep.subr.bf16.mxu0 0
  %2165 = vmatpush2.bf16.msra.mxu0 %v2087
  %2166 = vmatprep.subr.bf16.mxu0 0
  %2167 = vmatpush2.bf16.msra.mxu0 %v2086
  %2168 = vmatprep.subr.bf16.mxu0 0
  %2169 = vmatpush2.bf16.msra.mxu0 %v2085
  %2170 = vmatprep.subr.bf16.mxu0 0
  %2171 = vmatpush2.bf16.msra.mxu0 %v2084
  %2172 = vmatprep.mubr.bf16.mxu0 %v1874
  %2173 = vmatmul.mubr.bf16.gmra.mxu0 %v1873
  %v2174 = vpop.f32.mrf.mxu0
  %v2175 = vadd.f32 %v1946, %v2174
  %v2176 = vpop.f32.mrf.mxu0
  %v2177 = vpop.f32.mrf.mxu0
  %v2178 = vpop.f32.mrf.mxu0
  %2179 = vdwg.mxu0
  %2180 = vmatprep.subr.bf16.mxu0 0
  %2181 = vmatpush1.bf16.msra.mxu0 %v2099
  %2182 = vmatprep.subr.bf16.mxu0 0
  %2183 = vmatpush1.bf16.msra.mxu0 %v2098
  %2184 = vmatprep.subr.bf16.mxu0 0
  %2185 = vmatpush1.bf16.msra.mxu0 %v2097
  %2186 = vmatprep.subr.bf16.mxu0 0
  %2187 = vmatpush1.bf16.msra.mxu0 %v2096
  %2188 = vmatprep.subr.bf16.mxu0 0
  %2189 = vmatpush1.bf16.msra.mxu0 %v2095
  %2190 = vmatprep.subr.bf16.mxu0 0
  %2191 = vmatpush1.bf16.msra.mxu0 %v2094
  %2192 = vmatprep.subr.bf16.mxu0 0
  %2193 = vmatpush1.bf16.msra.mxu0 %v2093
  %2194 = vmatprep.subr.bf16.mxu0 0
  %2195 = vmatpush1.bf16.msra.mxu0 %v2092
  %2196 = vmatprep.subr.bf16.mxu0 0
  %2197 = vmatpush2.bf16.msra.mxu0 %v2107
  %2198 = vmatprep.subr.bf16.mxu0 0
  %2199 = vmatpush2.bf16.msra.mxu0 %v2106
  %2200 = vmatprep.subr.bf16.mxu0 0
  %2201 = vmatpush2.bf16.msra.mxu0 %v2105
  %2202 = vmatprep.subr.bf16.mxu0 0
  %2203 = vmatpush2.bf16.msra.mxu0 %v2104
  %2204 = vmatprep.subr.bf16.mxu0 0
  %2205 = vmatpush2.bf16.msra.mxu0 %v2103
  %2206 = vmatprep.subr.bf16.mxu0 0
  %2207 = vmatpush2.bf16.msra.mxu0 %v2102
  %2208 = vmatprep.subr.bf16.mxu0 0
  %2209 = vmatpush2.bf16.msra.mxu0 %v2101
  %2210 = vmatprep.subr.bf16.mxu0 0
  %2211 = vmatpush2.bf16.msra.mxu0 %v2100
  %2212 = vmatprep.mubr.bf16.mxu0 %v1876
  %2213 = vmatmul.mubr.bf16.gmra.mxu0 %v1875
  %v2214 = vpop.f32.mrf.mxu0
  %v2215 = vadd.f32 %v2175, %v2214
  %v2216 = vpop.f32.mrf.mxu0
  %v2217 = vpop.f32.mrf.mxu0
  %v2218 = vpop.f32.mrf.mxu0
  %2219 = vdwg.mxu0
  %vm2220 = vcmask 58368
  %2221 = vst.msk [vmem:[%s5] sm:$0x3] %vm2220, %v2215
  // Predicated region
  $region22: #{bounding_box_mobilenet_forward.3} parent=0 // pred_check
    _
  $region23: #{bounding_box_mobilenet_forward.3} parent=0 // pred_check_branch
    %2223 = sbr.rel (0) target = $region25
  $region24: #{bounding_box_mobilenet_forward.3} parent=0 // pred_region
    _
  $region25: #{bounding_box_mobilenet_forward.3} parent=0 // pred_fallthru
    _
  // Predicated region
  $region26: #{bounding_box_mobilenet_forward.3} parent=0 // pred_check
    _
  $region27: #{bounding_box_mobilenet_forward.3} parent=0 // pred_check_branch
    %2225 = sbr.rel (0) target = $region29
  $region28: #{bounding_box_mobilenet_forward.3} parent=0 // pred_region
    _
  $region29: #{bounding_box_mobilenet_forward.3} parent=0 // pred_fallthru
    _

// kernel: bounding_box_mobilenet_forward.2
$region0: #{bounding_box_mobilenet_forward.2}
  #allocation0 [shape = 'u32[]', space=smem, size = 0x4, offset = 0x4, fixed_abs, tag = 'smem constant byte address 0x4 - core index']
  #allocation1 [shape = 'u32[144,128]{1,0:T(1,128)}', space=vmem, size = 0x12000, scoped, tag = 'internal scratch']
  %s0 = inlined_call_operand.vmem [shape: bf16[2,256,32], index: 0, kind: input, shape index: {}]
  %s1 = inlined_call_operand.vmem [shape: bf16[32,16], index: 1, kind: input, shape index: {}]
  %s2 = inlined_call_operand.vmem [shape: f32[1,16], index: 2, kind: input, shape index: {}, may-alias: {2,8}]
  %s3 = inlined_call_operand.vmem [shape: bf16[16,64], index: 3, kind: input, shape index: {}]
  %s4 = inlined_call_operand.vmem [shape: f32[1,64], index: 4, kind: input, shape index: {}, may-alias: {4,6,10}]
  %s5 = inlined_call_operand.vmem [shape: f32[9,1,64], index: 5, kind: input, shape index: {}]
  %s6 = inlined_call_operand.vmem [shape: f32[1,64], index: 6, kind: input, shape index: {}, may-alias: {4,6,10}]
  %s7 = inlined_call_operand.vmem [shape: bf16[64,16], index: 7, kind: input, shape index: {}]
  %s8 = inlined_call_operand.vmem [shape: f32[1,16], index: 8, kind: input, shape index: {}, may-alias: {2,8}]
  %s9 = inlined_call_operand.vmem [shape: bf16[16,64], index: 9, kind: input, shape index: {}]
  %s10 = inlined_call_operand.vmem [shape: f32[1,64], index: 10, kind: input, shape index: {}, may-alias: {4,6,10}]
  %s11 = inlined_call_operand.vmem [shape: bf16[64,960], index: 11, kind: input, shape index: {}]
  %s12 = inlined_call_operand.vmem [shape: f32[1,960], index: 12, kind: input, shape index: {}]
  %s13 = inlined_call_operand.vmem [shape: f32[2,1,960], index: 13, kind: output, shape index: {}]
  %s14 = sld [smem:[#allocation0]]
  $region85: #{bounding_box_mobilenet_forward.2} parent=0
    _
  %s16 = ssub.s32 1, %s14
  %s17 = scalar_select 0, %s16, %s14
  loop: start=0, step=1, limit=4
  $region2: #{bounding_box_mobilenet_forward.2} parent=0 // loop_pre_header
    _
  $region3: #{bounding_box_mobilenet_forward.2} parent=0 // loop_header
    %s19 = sphi 0, %s23
    %p20 = scmp.ge.s32.totalorder %s19, 4
    %s29 = sphi 0, %s31
    %s32 = sphi 0, %s29
    %s33 = sphi 0, %s32
    %s49 = sphi 0, %s33
    %s53 = sphi 0, %s53
    %s55 = sphi 0, %s53
    %s56 = sphi 0, %s55
    %s70 = sphi 0, %s56
    %s74 = sphi 0, %s74
    %s76 = sphi 0, %s74
    %s77 = sphi 0, %s76
    %s91 = sphi 0, %s77
    %s95 = sphi 0, %s95
    %s97 = sphi 0, %s95
    %s98 = sphi 0, %s97
    %s112 = sphi 0, %s98
    %s116 = sphi 0, %s116
    %s118 = sphi 0, %s116
    %s119 = sphi 0, %s118
    %s133 = sphi 0, %s119
    %s137 = sphi 0, %s137
    %s139 = sphi 0, %s137
    %s140 = sphi 0, %s139
    %s154 = sphi 0, %s140
    %s158 = sphi 0, %s158
    %s160 = sphi 0, %s158
    %s161 = sphi 0, %s160
    %s175 = sphi 0, %s161
    %s179 = sphi 0, %s179
    %s181 = sphi 0, %s179
    %s182 = sphi 0, %s181
    %s196 = sphi 0, %s182
    %s200 = sphi 0, %s200
    %s202 = sphi 0, %s200
    %s203 = sphi 0, %s202
    %s217 = sphi 0, %s203
    %s221 = sphi 0, %s221
    %s223 = sphi 0, %s221
    %s224 = sphi 0, %s223
    %s238 = sphi 0, %s224
    %s242 = sphi 0, %s242
    %s244 = sphi 0, %s242
    %s245 = sphi 0, %s244
    %s259 = sphi 0, %s245
    %s263 = sphi 0, %s263
    %s265 = sphi 0, %s263
    %s266 = sphi 0, %s265
    %s280 = sphi 0, %s266
    %s284 = sphi 0, %s284
    %s286 = sphi 0, %s284
    %s287 = sphi 0, %s286
    %s301 = sphi 0, %s287
    %s307 = sphi 0, %s309
    %s310 = sphi 0, %s307
    %s311 = sphi 0, %s310
    %s327 = sphi 0, %s311
  $region4: #{bounding_box_mobilenet_forward.2} parent=0 // loop_header_branch
    %22 = sbr.rel (%p20) target = $region8
  $region5: #{bounding_box_mobilenet_forward.2} parent=0 // loop_body
    %s24 = ssub.s32 %s19, 1
    %s25 = ssub.s32 %s19, 2
    %s26 = sadd.s32 %s19, 1
    %s27 = ssub.s32 %s19, %s26
    %p28 = scmp.eq.s32.totalorder %s27, 0
    %s30 = sadd.s32 %s29, 1
    %s31 = scalar_select %p28, %s29, %s30
    %p34 = pneg %p28
    %p35 = scmp.eq.s32.totalorder %s19, 1
    %p36 = por %p34, %p35
    %p37 = scmp.ne.s32.totalorder %s29, %s32
    %p38 = scmp.eq.s32.totalorder %s19, 0
    %p39 = por %p37, %p38
    %p40 = scmp.ne.s32.totalorder %s29, %s32
    %p41 = scmp.eq.s32.totalorder %s24, 1
    %p42 = por %p40, %p41
    %p43 = scmp.ne.s32.totalorder %s32, %s33
    %p44 = scmp.eq.s32.totalorder %s24, 0
    %p45 = por %p43, %p44
    %p46 = scmp.ne.s32.totalorder %s32, %s33
    %p47 = scmp.eq.s32.totalorder %s25, 1
    %p48 = por %p46, %p47
    %p50 = scmp.ne.s32.totalorder %s33, %s49
    %p51 = scmp.eq.s32.totalorder %s25, 0
    %p52 = por %p50, %p51
    %s54 = sadd.s32 %s53, 1
    %p57 = scmp.eq.s32.totalorder %s19, 1
    %p58 = scmp.ne.s32.totalorder %s53, %s55
    %p59 = scmp.eq.s32.totalorder %s19, 0
    %p60 = por %p58, %p59
    %p61 = scmp.ne.s32.totalorder %s53, %s55
    %p62 = scmp.eq.s32.totalorder %s24, 1
    %p63 = por %p61, %p62
    %p64 = scmp.ne.s32.totalorder %s55, %s56
    %p65 = scmp.eq.s32.totalorder %s24, 0
    %p66 = por %p64, %p65
    %p67 = scmp.ne.s32.totalorder %s55, %s56
    %p68 = scmp.eq.s32.totalorder %s25, 1
    %p69 = por %p67, %p68
    %p71 = scmp.ne.s32.totalorder %s56, %s70
    %p72 = scmp.eq.s32.totalorder %s25, 0
    %p73 = por %p71, %p72
    %s75 = sadd.s32 %s74, 1
    %p78 = scmp.eq.s32.totalorder %s19, 1
    %p79 = scmp.ne.s32.totalorder %s74, %s76
    %p80 = scmp.eq.s32.totalorder %s19, 0
    %p81 = por %p79, %p80
    %p82 = scmp.ne.s32.totalorder %s74, %s76
    %p83 = scmp.eq.s32.totalorder %s24, 1
    %p84 = por %p82, %p83
    %p85 = scmp.ne.s32.totalorder %s76, %s77
    %p86 = scmp.eq.s32.totalorder %s24, 0
    %p87 = por %p85, %p86
    %p88 = scmp.ne.s32.totalorder %s76, %s77
    %p89 = scmp.eq.s32.totalorder %s25, 1
    %p90 = por %p88, %p89
    %p92 = scmp.ne.s32.totalorder %s77, %s91
    %p93 = scmp.eq.s32.totalorder %s25, 0
    %p94 = por %p92, %p93
    %s96 = sadd.s32 %s95, 1
    %p99 = scmp.eq.s32.totalorder %s19, 1
    %p100 = scmp.ne.s32.totalorder %s95, %s97
    %p101 = scmp.eq.s32.totalorder %s19, 0
    %p102 = por %p100, %p101
    %p103 = scmp.ne.s32.totalorder %s95, %s97
    %p104 = scmp.eq.s32.totalorder %s24, 1
    %p105 = por %p103, %p104
    %p106 = scmp.ne.s32.totalorder %s97, %s98
    %p107 = scmp.eq.s32.totalorder %s24, 0
    %p108 = por %p106, %p107
    %p109 = scmp.ne.s32.totalorder %s97, %s98
    %p110 = scmp.eq.s32.totalorder %s25, 1
    %p111 = por %p109, %p110
    %p113 = scmp.ne.s32.totalorder %s98, %s112
    %p114 = scmp.eq.s32.totalorder %s25, 0
    %p115 = por %p113, %p114
    %s117 = sadd.s32 %s116, 1
    %p120 = scmp.eq.s32.totalorder %s19, 1
    %p121 = scmp.ne.s32.totalorder %s116, %s118
    %p122 = scmp.eq.s32.totalorder %s19, 0
    %p123 = por %p121, %p122
    %p124 = scmp.ne.s32.totalorder %s116, %s118
    %p125 = scmp.eq.s32.totalorder %s24, 1
    %p126 = por %p124, %p125
    %p127 = scmp.ne.s32.totalorder %s118, %s119
    %p128 = scmp.eq.s32.totalorder %s24, 0
    %p129 = por %p127, %p128
    %p130 = scmp.ne.s32.totalorder %s118, %s119
    %p131 = scmp.eq.s32.totalorder %s25, 1
    %p132 = por %p130, %p131
    %p134 = scmp.ne.s32.totalorder %s119, %s133
    %p135 = scmp.eq.s32.totalorder %s25, 0
    %p136 = por %p134, %p135
    %s138 = sadd.s32 %s137, 1
    %p141 = scmp.eq.s32.totalorder %s19, 1
    %p142 = scmp.ne.s32.totalorder %s137, %s139
    %p143 = scmp.eq.s32.totalorder %s19, 0
    %p144 = por %p142, %p143
    %p145 = scmp.ne.s32.totalorder %s137, %s139
    %p146 = scmp.eq.s32.totalorder %s24, 1
    %p147 = por %p145, %p146
    %p148 = scmp.ne.s32.totalorder %s139, %s140
    %p149 = scmp.eq.s32.totalorder %s24, 0
    %p150 = por %p148, %p149
    %p151 = scmp.ne.s32.totalorder %s139, %s140
    %p152 = scmp.eq.s32.totalorder %s25, 1
    %p153 = por %p151, %p152
    %p155 = scmp.ne.s32.totalorder %s140, %s154
    %p156 = scmp.eq.s32.totalorder %s25, 0
    %p157 = por %p155, %p156
    %s159 = sadd.s32 %s158, 1
    %p162 = scmp.eq.s32.totalorder %s19, 1
    %p163 = scmp.ne.s32.totalorder %s158, %s160
    %p164 = scmp.eq.s32.totalorder %s19, 0
    %p165 = por %p163, %p164
    %p166 = scmp.ne.s32.totalorder %s158, %s160
    %p167 = scmp.eq.s32.totalorder %s24, 1
    %p168 = por %p166, %p167
    %p169 = scmp.ne.s32.totalorder %s160, %s161
    %p170 = scmp.eq.s32.totalorder %s24, 0
    %p171 = por %p169, %p170
    %p172 = scmp.ne.s32.totalorder %s160, %s161
    %p173 = scmp.eq.s32.totalorder %s25, 1
    %p174 = por %p172, %p173
    %p176 = scmp.ne.s32.totalorder %s161, %s175
    %p177 = scmp.eq.s32.totalorder %s25, 0
    %p178 = por %p176, %p177
    %s180 = sadd.s32 %s179, 1
    %p183 = scmp.eq.s32.totalorder %s19, 1
    %p184 = scmp.ne.s32.totalorder %s179, %s181
    %p185 = scmp.eq.s32.totalorder %s19, 0
    %p186 = por %p184, %p185
    %p187 = scmp.ne.s32.totalorder %s179, %s181
    %p188 = scmp.eq.s32.totalorder %s24, 1
    %p189 = por %p187, %p188
    %p190 = scmp.ne.s32.totalorder %s181, %s182
    %p191 = scmp.eq.s32.totalorder %s24, 0
    %p192 = por %p190, %p191
    %p193 = scmp.ne.s32.totalorder %s181, %s182
    %p194 = scmp.eq.s32.totalorder %s25, 1
    %p195 = por %p193, %p194
    %p197 = scmp.ne.s32.totalorder %s182, %s196
    %p198 = scmp.eq.s32.totalorder %s25, 0
    %p199 = por %p197, %p198
    %s201 = sadd.s32 %s200, 1
    %p204 = scmp.eq.s32.totalorder %s19, 1
    %p205 = scmp.ne.s32.totalorder %s200, %s202
    %p206 = scmp.eq.s32.totalorder %s19, 0
    %p207 = por %p205, %p206
    %p208 = scmp.ne.s32.totalorder %s200, %s202
    %p209 = scmp.eq.s32.totalorder %s24, 1
    %p210 = por %p208, %p209
    %p211 = scmp.ne.s32.totalorder %s202, %s203
    %p212 = scmp.eq.s32.totalorder %s24, 0
    %p213 = por %p211, %p212
    %p214 = scmp.ne.s32.totalorder %s202, %s203
    %p215 = scmp.eq.s32.totalorder %s25, 1
    %p216 = por %p214, %p215
    %p218 = scmp.ne.s32.totalorder %s203, %s217
    %p219 = scmp.eq.s32.totalorder %s25, 0
    %p220 = por %p218, %p219
    %s222 = sadd.s32 %s221, 1
    %p225 = scmp.eq.s32.totalorder %s19, 1
    %p226 = scmp.ne.s32.totalorder %s221, %s223
    %p227 = scmp.eq.s32.totalorder %s19, 0
    %p228 = por %p226, %p227
    %p229 = scmp.ne.s32.totalorder %s221, %s223
    %p230 = scmp.eq.s32.totalorder %s24, 1
    %p231 = por %p229, %p230
    %p232 = scmp.ne.s32.totalorder %s223, %s224
    %p233 = scmp.eq.s32.totalorder %s24, 0
    %p234 = por %p232, %p233
    %p235 = scmp.ne.s32.totalorder %s223, %s224
    %p236 = scmp.eq.s32.totalorder %s25, 1
    %p237 = por %p235, %p236
    %p239 = scmp.ne.s32.totalorder %s224, %s238
    %p240 = scmp.eq.s32.totalorder %s25, 0
    %p241 = por %p239, %p240
    %s243 = sadd.s32 %s242, 1
    %p246 = scmp.eq.s32.totalorder %s19, 1
    %p247 = scmp.ne.s32.totalorder %s242, %s244
    %p248 = scmp.eq.s32.totalorder %s19, 0
    %p249 = por %p247, %p248
    %p250 = scmp.ne.s32.totalorder %s242, %s244
    %p251 = scmp.eq.s32.totalorder %s24, 1
    %p252 = por %p250, %p251
    %p253 = scmp.ne.s32.totalorder %s244, %s245
    %p254 = scmp.eq.s32.totalorder %s24, 0
    %p255 = por %p253, %p254
    %p256 = scmp.ne.s32.totalorder %s244, %s245
    %p257 = scmp.eq.s32.totalorder %s25, 1
    %p258 = por %p256, %p257
    %p260 = scmp.ne.s32.totalorder %s245, %s259
    %p261 = scmp.eq.s32.totalorder %s25, 0
    %p262 = por %p260, %p261
    %s264 = sadd.s32 %s263, 1
    %p267 = scmp.eq.s32.totalorder %s19, 1
    %p268 = scmp.ne.s32.totalorder %s263, %s265
    %p269 = scmp.eq.s32.totalorder %s19, 0
    %p270 = por %p268, %p269
    %p271 = scmp.ne.s32.totalorder %s263, %s265
    %p272 = scmp.eq.s32.totalorder %s24, 1
    %p273 = por %p271, %p272
    %p274 = scmp.ne.s32.totalorder %s265, %s266
    %p275 = scmp.eq.s32.totalorder %s24, 0
    %p276 = por %p274, %p275
    %p277 = scmp.ne.s32.totalorder %s265, %s266
    %p278 = scmp.eq.s32.totalorder %s25, 1
    %p279 = por %p277, %p278
    %p281 = scmp.ne.s32.totalorder %s266, %s280
    %p282 = scmp.eq.s32.totalorder %s25, 0
    %p283 = por %p281, %p282
    %s285 = sadd.s32 %s284, 1
    %p288 = scmp.eq.s32.totalorder %s19, 1
    %p289 = scmp.ne.s32.totalorder %s284, %s286
    %p290 = scmp.eq.s32.totalorder %s19, 0
    %p291 = por %p289, %p290
    %p292 = scmp.ne.s32.totalorder %s284, %s286
    %p293 = scmp.eq.s32.totalorder %s24, 1
    %p294 = por %p292, %p293
    %p295 = scmp.ne.s32.totalorder %s286, %s287
    %p296 = scmp.eq.s32.totalorder %s24, 0
    %p297 = por %p295, %p296
    %p298 = scmp.ne.s32.totalorder %s286, %s287
    %p299 = scmp.eq.s32.totalorder %s25, 1
    %p300 = por %p298, %p299
    %p302 = scmp.ne.s32.totalorder %s287, %s301
    %p303 = scmp.eq.s32.totalorder %s25, 0
    %p304 = por %p302, %p303
    %s305 = ssub.s32 %s19, %s26
    %p306 = scmp.eq.s32.totalorder %s305, 0
    %s308 = sadd.s32 %s307, 1
    %s309 = scalar_select %p306, %s307, %s308
    %p312 = pneg %p306
    %p313 = scmp.eq.s32.totalorder %s19, 1
    %p314 = por %p312, %p313
    %p315 = scmp.ne.s32.totalorder %s307, %s310
    %p316 = scmp.eq.s32.totalorder %s19, 0
    %p317 = por %p315, %p316
    %p318 = scmp.ne.s32.totalorder %s307, %s310
    %p319 = scmp.eq.s32.totalorder %s24, 1
    %p320 = por %p318, %p319
    %p321 = scmp.ne.s32.totalorder %s310, %s311
    %p322 = scmp.eq.s32.totalorder %s24, 0
    %p323 = por %p321, %p322
    %p324 = scmp.ne.s32.totalorder %s310, %s311
    %p325 = scmp.eq.s32.totalorder %s25, 1
    %p326 = por %p324, %p325
    %p328 = scmp.ne.s32.totalorder %s311, %s327
    %p329 = scmp.eq.s32.totalorder %s25, 0
    %p330 = por %p328, %p329
    %p331 = scmp.le.s32.totalorder 1, %s19
    %p332 = scmp.lt.s32.totalorder %s19, 3
    %p333 = pnand %p331, %p332
    %p334 = pneg %p333
    // Predicated region
    $region9: #{bounding_box_mobilenet_forward.2} parent=5 // pred_check
      _
    $region10: #{bounding_box_mobilenet_forward.2} parent=5 // pred_check_branch
      %336 = sbr.rel (%p333) target = $region12
    $region11: #{bounding_box_mobilenet_forward.2} parent=5 // pred_region
      %s337 = ssub.s32 %s19, 1
      // Predicated region
      $region13: #{bounding_box_mobilenet_forward.2} parent=11 // pred_check
        %p338 = pneg %p66
      $region14: #{bounding_box_mobilenet_forward.2} parent=11 // pred_check_branch
        %340 = sbr.rel (%p338) target = $region16
      $region15: #{bounding_box_mobilenet_forward.2} parent=11 // pred_region
        _
      $region16: #{bounding_box_mobilenet_forward.2} parent=11 // pred_fallthru
        _
      // Predicated region
      $region17: #{bounding_box_mobilenet_forward.2} parent=11 // pred_check
        %p341 = pneg %p87
      $region18: #{bounding_box_mobilenet_forward.2} parent=11 // pred_check_branch
        %343 = sbr.rel (%p341) target = $region20
      $region19: #{bounding_box_mobilenet_forward.2} parent=11 // pred_region
        _
      $region20: #{bounding_box_mobilenet_forward.2} parent=11 // pred_fallthru
        _
      // Predicated region
      $region21: #{bounding_box_mobilenet_forward.2} parent=11 // pred_check
        %p344 = pneg %p108
      $region22: #{bounding_box_mobilenet_forward.2} parent=11 // pred_check_branch
        %346 = sbr.rel (%p344) target = $region24
      $region23: #{bounding_box_mobilenet_forward.2} parent=11 // pred_region
        _
      $region24: #{bounding_box_mobilenet_forward.2} parent=11 // pred_fallthru
        _
      // Predicated region
      $region25: #{bounding_box_mobilenet_forward.2} parent=11 // pred_check
        %p347 = pneg %p129
      $region26: #{bounding_box_mobilenet_forward.2} parent=11 // pred_check_branch
        %349 = sbr.rel (%p347) target = $region28
      $region27: #{bounding_box_mobilenet_forward.2} parent=11 // pred_region
        _
      $region28: #{bounding_box_mobilenet_forward.2} parent=11 // pred_fallthru
        _
      // Predicated region
      $region29: #{bounding_box_mobilenet_forward.2} parent=11 // pred_check
        %p350 = pneg %p150
      $region30: #{bounding_box_mobilenet_forward.2} parent=11 // pred_check_branch
        %352 = sbr.rel (%p350) target = $region32
      $region31: #{bounding_box_mobilenet_forward.2} parent=11 // pred_region
        _
      $region32: #{bounding_box_mobilenet_forward.2} parent=11 // pred_fallthru
        _
      // Predicated region
      $region33: #{bounding_box_mobilenet_forward.2} parent=11 // pred_check
        %p353 = pneg %p171
      $region34: #{bounding_box_mobilenet_forward.2} parent=11 // pred_check_branch
        %355 = sbr.rel (%p353) target = $region36
      $region35: #{bounding_box_mobilenet_forward.2} parent=11 // pred_region
        _
      $region36: #{bounding_box_mobilenet_forward.2} parent=11 // pred_fallthru
        _
      // Predicated region
      $region37: #{bounding_box_mobilenet_forward.2} parent=11 // pred_check
        %p356 = pneg %p192
      $region38: #{bounding_box_mobilenet_forward.2} parent=11 // pred_check_branch
        %358 = sbr.rel (%p356) target = $region40
      $region39: #{bounding_box_mobilenet_forward.2} parent=11 // pred_region
        _
      $region40: #{bounding_box_mobilenet_forward.2} parent=11 // pred_fallthru
        _
      // Predicated region
      $region41: #{bounding_box_mobilenet_forward.2} parent=11 // pred_check
        %p359 = pneg %p213
      $region42: #{bounding_box_mobilenet_forward.2} parent=11 // pred_check_branch
        %361 = sbr.rel (%p359) target = $region44
      $region43: #{bounding_box_mobilenet_forward.2} parent=11 // pred_region
        _
      $region44: #{bounding_box_mobilenet_forward.2} parent=11 // pred_fallthru
        _
      // Predicated region
      $region45: #{bounding_box_mobilenet_forward.2} parent=11 // pred_check
        %p362 = pneg %p234
      $region46: #{bounding_box_mobilenet_forward.2} parent=11 // pred_check_branch
        %364 = sbr.rel (%p362) target = $region48
      $region47: #{bounding_box_mobilenet_forward.2} parent=11 // pred_region
        _
      $region48: #{bounding_box_mobilenet_forward.2} parent=11 // pred_fallthru
        _
      // Predicated region
      $region49: #{bounding_box_mobilenet_forward.2} parent=11 // pred_check
        %p365 = pneg %p255
      $region50: #{bounding_box_mobilenet_forward.2} parent=11 // pred_check_branch
        %367 = sbr.rel (%p365) target = $region52
      $region51: #{bounding_box_mobilenet_forward.2} parent=11 // pred_region
        _
      $region52: #{bounding_box_mobilenet_forward.2} parent=11 // pred_fallthru
        _
      // Predicated region
      $region53: #{bounding_box_mobilenet_forward.2} parent=11 // pred_check
        %p368 = pneg %p276
      $region54: #{bounding_box_mobilenet_forward.2} parent=11 // pred_check_branch
        %370 = sbr.rel (%p368) target = $region56
      $region55: #{bounding_box_mobilenet_forward.2} parent=11 // pred_region
        _
      $region56: #{bounding_box_mobilenet_forward.2} parent=11 // pred_fallthru
        _
      // Predicated region
      $region57: #{bounding_box_mobilenet_forward.2} parent=11 // pred_check
        %p371 = pneg %p297
      $region58: #{bounding_box_mobilenet_forward.2} parent=11 // pred_check_branch
        %373 = sbr.rel (%p371) target = $region60
      $region59: #{bounding_box_mobilenet_forward.2} parent=11 // pred_region
        _
      $region60: #{bounding_box_mobilenet_forward.2} parent=11 // pred_fallthru
        _
    $region12: #{bounding_box_mobilenet_forward.2} parent=5 // pred_fallthru
      _
    %p374 = scmp.lt.s32.totalorder %s19, 2
    // Predicated region
    $region61: #{bounding_box_mobilenet_forward.2} parent=5 // pred_check
      %p375 = pneg %p374
    $region62: #{bounding_box_mobilenet_forward.2} parent=5 // pred_check_branch
      %377 = sbr.rel (%p375) target = $region64
    $region63: #{bounding_box_mobilenet_forward.2} parent=5 // pred_region
      // Predicated region
      $region65: #{bounding_box_mobilenet_forward.2} parent=63 // pred_check
        %p378 = pneg %p39
      $region66: #{bounding_box_mobilenet_forward.2} parent=63 // pred_check_branch
        %380 = sbr.rel (%p378) target = $region68
      $region67: #{bounding_box_mobilenet_forward.2} parent=63 // pred_region
        %p381 = scmp.lt.s32.totalorder %s19, 1
        %s382 = scalar_select %p381, %s19, 1
        %s383 = smul.addr %s382, 32
        %s384 = smul.addr %s383, 4
        %s385 = scalar_lea.vmem %s0, %s384
      $region68: #{bounding_box_mobilenet_forward.2} parent=63 // pred_fallthru
        _
    $region64: #{bounding_box_mobilenet_forward.2} parent=5 // pred_fallthru
      _
    %p386 = scmp.le.s32.totalorder 1, %s19
    %p387 = scmp.lt.s32.totalorder %s19, 3
    %p388 = pnand %p386, %p387
    %p389 = pneg %p388
    // Predicated region
    $region69: #{bounding_box_mobilenet_forward.2} parent=5 // pred_check
      _
    $region70: #{bounding_box_mobilenet_forward.2} parent=5 // pred_check_branch
      %391 = sbr.rel (%p388) target = $region72
    $region71: #{bounding_box_mobilenet_forward.2} parent=5 // pred_region
      %s392 = ssub.s32 %s19, 1
      %p393 = scmp.lt.s32.totalorder %s24, 1
      %s394 = scalar_select %p393, %s24, 1
      %s395 = smul.addr %s394, 32
      %s396 = smul.addr %s395, 4
      %s397 = scalar_lea.vmem %s0, %s396
      %p398 = pneg %p45
      %p399 = pneg %p42
      %p400 = pneg %p66
      %p401 = pneg %p63
      %p402 = pneg %p87
      %p403 = pneg %p84
      %p404 = pneg %p108
      %p405 = pneg %p105
      %p406 = pneg %p129
      %p407 = pneg %p126
      %p408 = pneg %p150
      %p409 = pneg %p147
      %p410 = pneg %p171
      %p411 = pneg %p168
      %p412 = pneg %p192
      %p413 = pneg %p189
      %p414 = pneg %p213
      %p415 = pneg %p210
      %p416 = pneg %p234
      %p417 = pneg %p231
      %p418 = pneg %p255
      %p419 = pneg %p252
      %p420 = pneg %p276
      %p421 = pneg %p273
      %p422 = pneg %p297
      %p423 = pneg %p294
      %p424 = pneg %p323
      %p425 = pneg %p320
      %p426 = scmp.lt.s32.totalorder %s24, 1
      %s427 = scalar_select %p426, %s24, 1
      %s428 = smul.addr %s427, 8
      %s429 = scalar_lea.vmem %s13, %s428
      %p430 = scmp.lt.s32.totalorder %s24, 1
      %s431 = scalar_select %p430, %s24, 1
      %s432 = smul.addr %s431, 32
      %s433 = smul.addr %s432, 4
      %s434 = scalar_lea.vmem %s0, %s433
      %p435 = scmp.lt.s32.totalorder %s24, 1
      %s436 = scalar_select %p435, %s24, 1
      %s437 = smul.addr %s436, 8
      %s438 = scalar_lea.vmem %s13, %s437
      %v440 = vld [vmem:[%s434] sm:$0xf]
      %v441 = vld [vmem:[%s434 + $0x4] sm:$0xf]
      %v442 = vld [vmem:[%s434 + $0x8] sm:$0xf]
      %v443 = vld [vmem:[%s434 + $0xc] sm:$0xf]
      %v444 = vld [vmem:[%s434 + $0x10] sm:$0xf]
      %v445 = vld [vmem:[%s434 + $0x14] sm:$0xf]
      %v446 = vld [vmem:[%s434 + $0x18] sm:$0xf]
      %v447 = vld [vmem:[%s434 + $0x1c] sm:$0xf]
      %v448 = vld [vmem:[%s434 + $0x20] sm:$0xf]
      %v449 = vld [vmem:[%s434 + $0x24] sm:$0xf]
      %v450 = vld [vmem:[%s434 + $0x28] sm:$0xf]
      %v451 = vld [vmem:[%s434 + $0x2c] sm:$0xf]
      %v452 = vld [vmem:[%s434 + $0x30] sm:$0xf]
      %v453 = vld [vmem:[%s434 + $0x34] sm:$0xf]
      %v454 = vld [vmem:[%s434 + $0x38] sm:$0xf]
      %v455 = vld [vmem:[%s434 + $0x3c] sm:$0xf]
      %v456 = vld [vmem:[%s434 + $0x40] sm:$0xf]
      %v457 = vld [vmem:[%s434 + $0x44] sm:$0xf]
      %v458 = vld [vmem:[%s434 + $0x48] sm:$0xf]
      %v459 = vld [vmem:[%s434 + $0x4c] sm:$0xf]
      %v460 = vld [vmem:[%s434 + $0x50] sm:$0xf]
      %v461 = vld [vmem:[%s434 + $0x54] sm:$0xf]
      %v462 = vld [vmem:[%s434 + $0x58] sm:$0xf]
      %v463 = vld [vmem:[%s434 + $0x5c] sm:$0xf]
      %v464 = vld [vmem:[%s434 + $0x60] sm:$0xf]
      %v465 = vld [vmem:[%s434 + $0x64] sm:$0xf]
      %v466 = vld [vmem:[%s434 + $0x68] sm:$0xf]
      %v467 = vld [vmem:[%s434 + $0x6c] sm:$0xf]
      %v468 = vld [vmem:[%s434 + $0x70] sm:$0xf]
      %v469 = vld [vmem:[%s434 + $0x74] sm:$0xf]
      %v470 = vld [vmem:[%s434 + $0x78] sm:$0xf]
      %v471 = vld [vmem:[%s434 + $0x7c] sm:$0xf]
      %v472 = vld [vmem:[%s1] sm:$0xf]
      %v473 = vld [vmem:[%s1 + $0x4] sm:$0xf]
      %v474 = vld [vmem:[%s1 + $0x8] sm:$0xf]
      %v475 = vld [vmem:[%s1 + $0xc] sm:$0xf]
      %v476 = vld [vmem:[%s2] sm:$0x1]
      %v478 = vlaneseq
      %v479 = vshrl.u32 %v478, 7
      %v480 = vsub.s32 0, %v479
      %v481 = vrot.slane %v476, %v480
      %v515 = vunpack.c.l.b16 %v440
      %v516 = vunpack.c.l.b16 %v441
      %v517 = vunpack.c.l.b16 %v442
      %v518 = vunpack.c.l.b16 %v443
      %v519 = vunpack.c.l.b16 %v444
      %v520 = vunpack.c.l.b16 %v445
      %v521 = vunpack.c.l.b16 %v446
      %v522 = vunpack.c.l.b16 %v447
      %v523 = vunpack.c.l.b16 %v448
      %v524 = vunpack.c.l.b16 %v449
      %v525 = vunpack.c.l.b16 %v450
      %v526 = vunpack.c.l.b16 %v451
      %v527 = vunpack.c.l.b16 %v452
      %v528 = vunpack.c.l.b16 %v453
      %v529 = vunpack.c.l.b16 %v454
      %v530 = vunpack.c.l.b16 %v455
      %v531 = vunpack.c.l.b16 %v456
      %v532 = vunpack.c.l.b16 %v457
      %v533 = vunpack.c.l.b16 %v458
      %v534 = vunpack.c.l.b16 %v459
      %v535 = vunpack.c.l.b16 %v460
      %v536 = vunpack.c.l.b16 %v461
      %v537 = vunpack.c.l.b16 %v462
      %v538 = vunpack.c.l.b16 %v463
      %v539 = vunpack.c.l.b16 %v464
      %v540 = vunpack.c.l.b16 %v465
      %v541 = vunpack.c.l.b16 %v466
      %v542 = vunpack.c.l.b16 %v467
      %v543 = vunpack.c.l.b16 %v468
      %v544 = vunpack.c.l.b16 %v469
      %v545 = vunpack.c.l.b16 %v470
      %v546 = vunpack.c.l.b16 %v471
      %v547 = vpack.c.b16 %v516, %v515
      %v548 = vpack.c.b16 %v518, %v517
      %v549 = vpack.c.b16 %v520, %v519
      %v550 = vpack.c.b16 %v522, %v521
      %v551 = vpack.c.b16 %v524, %v523
      %v552 = vpack.c.b16 %v526, %v525
      %v553 = vpack.c.b16 %v528, %v527
      %v554 = vpack.c.b16 %v530, %v529
      %v555 = vpack.c.b16 %v532, %v531
      %v556 = vpack.c.b16 %v534, %v533
      %v557 = vpack.c.b16 %v536, %v535
      %v558 = vpack.c.b16 %v538, %v537
      %v559 = vpack.c.b16 %v540, %v539
      %v560 = vpack.c.b16 %v542, %v541
      %v561 = vpack.c.b16 %v544, %v543
      %v562 = vpack.c.b16 %v546, %v545
      %v567 = vunpack.c.l.b16 %v472
      %v568 = vunpack.c.l.b16 %v473
      %v569 = vunpack.c.l.b16 %v474
      %v570 = vunpack.c.l.b16 %v475
      %v571 = vpack.c.b16 %v568, %v567
      %v572 = vpack.c.b16 %v570, %v569
      %vm575 = vcmask 261120
      %v577 = vsel %vm575, %v547, 0
      %v580 = vsel %vm575, %v548, 0
      %v583 = vsel %vm575, %v549, 0
      %v586 = vsel %vm575, %v550, 0
      %v589 = vsel %vm575, %v551, 0
      %v592 = vsel %vm575, %v552, 0
      %v595 = vsel %vm575, %v553, 0
      %v598 = vsel %vm575, %v554, 0
      %v601 = vsel %vm575, %v555, 0
      %v604 = vsel %vm575, %v556, 0
      %v607 = vsel %vm575, %v557, 0
      %v610 = vsel %vm575, %v558, 0
      %v613 = vsel %vm575, %v559, 0
      %v616 = vsel %vm575, %v560, 0
      %v619 = vsel %vm575, %v561, 0
      %v622 = vsel %vm575, %v562, 0
      %624 = vmatprep.subr.bf16.mxu0 0
      %625 = vmatpush1.bf16.msra.mxu0 0
      %626 = vmatprep.subr.bf16.mxu0 0
      %627 = vmatpush1.bf16.msra.mxu0 0
      %628 = vmatprep.subr.bf16.mxu0 0
      %629 = vmatpush1.bf16.msra.mxu0 0
      %630 = vmatprep.subr.bf16.mxu0 0
      %631 = vmatpush1.bf16.msra.mxu0 0
      %632 = vmatprep.subr.bf16.mxu0 0
      %633 = vmatpush1.bf16.msra.mxu0 0
      %634 = vmatprep.subr.bf16.mxu0 0
      %635 = vmatpush1.bf16.msra.mxu0 0
      %636 = vmatprep.subr.bf16.mxu0 0
      %637 = vmatpush1.bf16.msra.mxu0 %v572
      %638 = vmatprep.subr.bf16.mxu0 0
      %639 = vmatpush1.bf16.msra.mxu0 %v571
      %640 = vmatprep.subr.bf16.mxu0 0
      %641 = vmatpush2.bf16.msra.mxu0 0
      %642 = vmatprep.subr.bf16.mxu0 0
      %643 = vmatpush2.bf16.msra.mxu0 0
      %644 = vmatprep.subr.bf16.mxu0 0
      %645 = vmatpush2.bf16.msra.mxu0 0
      %646 = vmatprep.subr.bf16.mxu0 0
      %647 = vmatpush2.bf16.msra.mxu0 0
      %648 = vmatprep.subr.bf16.mxu0 0
      %649 = vmatpush2.bf16.msra.mxu0 0
      %650 = vmatprep.subr.bf16.mxu0 0
      %651 = vmatpush2.bf16.msra.mxu0 0
      %652 = vmatprep.subr.bf16.mxu0 0
      %653 = vmatpush2.bf16.msra.mxu0 0
      %654 = vmatprep.subr.bf16.mxu0 0
      %655 = vmatpush2.bf16.msra.mxu0 0
      %656 = vmatprep.mubr.bf16.mxu0 0
      %657 = vmatmul.mubr.bf16.gmra.mxu0 %v577
      %v658 = vpop.f32.mrf.mxu0
      %v659 = vadd.f32 %v481, %v658
      %v660 = vpop.f32.mrf.mxu0
      %v661 = vpop.f32.mrf.mxu0
      %v662 = vadd.f32 %v481, %v661
      %v663 = vpop.f32.mrf.mxu0
      %664 = vmatprep.mubr.bf16.mxu0 0
      %665 = vmatmul.mubr.bf16.gmra.mxu0 %v580
      %v666 = vpop.f32.mrf.mxu0
      %v667 = vadd.f32 %v481, %v666
      %v668 = vpop.f32.mrf.mxu0
      %v669 = vpop.f32.mrf.mxu0
      %v670 = vadd.f32 %v481, %v669
      %v671 = vpop.f32.mrf.mxu0
      %672 = vmatprep.mubr.bf16.mxu0 0
      %673 = vmatmul.mubr.bf16.gmra.mxu0 %v583
      %v674 = vpop.f32.mrf.mxu0
      %v675 = vadd.f32 %v481, %v674
      %v676 = vpop.f32.mrf.mxu0
      %v677 = vpop.f32.mrf.mxu0
      %v678 = vadd.f32 %v481, %v677
      %v679 = vpop.f32.mrf.mxu0
      %680 = vmatprep.mubr.bf16.mxu0 0
      %681 = vmatmul.mubr.bf16.gmra.mxu0 %v586
      %v682 = vpop.f32.mrf.mxu0
      %v683 = vadd.f32 %v481, %v682
      %v684 = vpop.f32.mrf.mxu0
      %v685 = vpop.f32.mrf.mxu0
      %v686 = vadd.f32 %v481, %v685
      %v687 = vpop.f32.mrf.mxu0
      %688 = vmatprep.mubr.bf16.mxu0 0
      %689 = vmatmul.mubr.bf16.gmra.mxu0 %v589
      %v690 = vpop.f32.mrf.mxu0
      %v691 = vadd.f32 %v481, %v690
      %v692 = vpop.f32.mrf.mxu0
      %v693 = vpop.f32.mrf.mxu0
      %v694 = vadd.f32 %v481, %v693
      %v695 = vpop.f32.mrf.mxu0
      %696 = vmatprep.mubr.bf16.mxu0 0
      %697 = vmatmul.mubr.bf16.gmra.mxu0 %v592
      %v698 = vpop.f32.mrf.mxu0
      %v699 = vadd.f32 %v481, %v698
      %v700 = vpop.f32.mrf.mxu0
      %v701 = vpop.f32.mrf.mxu0
      %v702 = vadd.f32 %v481, %v701
      %v703 = vpop.f32.mrf.mxu0
      %704 = vmatprep.mubr.bf16.mxu0 0
      %705 = vmatmul.mubr.bf16.gmra.mxu0 %v595
      %v706 = vpop.f32.mrf.mxu0
      %v707 = vadd.f32 %v481, %v706
      %v708 = vpop.f32.mrf.mxu0
      %v709 = vpop.f32.mrf.mxu0
      %v710 = vadd.f32 %v481, %v709
      %v711 = vpop.f32.mrf.mxu0
      %712 = vmatprep.mubr.bf16.mxu0 0
      %713 = vmatmul.mubr.bf16.gmra.mxu0 %v598
      %v714 = vpop.f32.mrf.mxu0
      %v715 = vadd.f32 %v481, %v714
      %v716 = vpop.f32.mrf.mxu0
      %v717 = vpop.f32.mrf.mxu0
      %v718 = vadd.f32 %v481, %v717
      %v719 = vpop.f32.mrf.mxu0
      %720 = vmatprep.mubr.bf16.mxu0 0
      %721 = vmatmul.mubr.bf16.gmra.mxu0 %v601
      %v722 = vpop.f32.mrf.mxu0
      %v723 = vadd.f32 %v481, %v722
      %v724 = vpop.f32.mrf.mxu0
      %v725 = vpop.f32.mrf.mxu0
      %v726 = vadd.f32 %v481, %v725
      %v727 = vpop.f32.mrf.mxu0
      %728 = vmatprep.mubr.bf16.mxu0 0
      %729 = vmatmul.mubr.bf16.gmra.mxu0 %v604
      %v730 = vpop.f32.mrf.mxu0
      %v731 = vadd.f32 %v481, %v730
      %v732 = vpop.f32.mrf.mxu0
      %v733 = vpop.f32.mrf.mxu0
      %v734 = vadd.f32 %v481, %v733
      %v735 = vpop.f32.mrf.mxu0
      %736 = vmatprep.mubr.bf16.mxu0 0
      %737 = vmatmul.mubr.bf16.gmra.mxu0 %v607
      %v738 = vpop.f32.mrf.mxu0
      %v739 = vadd.f32 %v481, %v738
      %v740 = vpop.f32.mrf.mxu0
      %v741 = vpop.f32.mrf.mxu0
      %v742 = vadd.f32 %v481, %v741
      %v743 = vpop.f32.mrf.mxu0
      %744 = vmatprep.mubr.bf16.mxu0 0
      %745 = vmatmul.mubr.bf16.gmra.mxu0 %v610
      %v746 = vpop.f32.mrf.mxu0
      %v747 = vadd.f32 %v481, %v746
      %v748 = vpop.f32.mrf.mxu0
      %v749 = vpop.f32.mrf.mxu0
      %v750 = vadd.f32 %v481, %v749
      %v751 = vpop.f32.mrf.mxu0
      %752 = vmatprep.mubr.bf16.mxu0 0
      %753 = vmatmul.mubr.bf16.gmra.mxu0 %v613
      %v754 = vpop.f32.mrf.mxu0
      %v755 = vadd.f32 %v481, %v754
      %v756 = vpop.f32.mrf.mxu0
      %v757 = vpop.f32.mrf.mxu0
      %v758 = vadd.f32 %v481, %v757
      %v759 = vpop.f32.mrf.mxu0
      %760 = vmatprep.mubr.bf16.mxu0 0
      %761 = vmatmul.mubr.bf16.gmra.mxu0 %v616
      %v762 = vpop.f32.mrf.mxu0
      %v763 = vadd.f32 %v481, %v762
      %v764 = vpop.f32.mrf.mxu0
      %v765 = vpop.f32.mrf.mxu0
      %v766 = vadd.f32 %v481, %v765
      %v767 = vpop.f32.mrf.mxu0
      %768 = vmatprep.mubr.bf16.mxu0 0
      %769 = vmatmul.mubr.bf16.gmra.mxu0 %v619
      %v770 = vpop.f32.mrf.mxu0
      %v771 = vadd.f32 %v481, %v770
      %v772 = vpop.f32.mrf.mxu0
      %v773 = vpop.f32.mrf.mxu0
      %v774 = vadd.f32 %v481, %v773
      %v775 = vpop.f32.mrf.mxu0
      %776 = vmatprep.mubr.bf16.mxu0 0
      %777 = vmatmul.mubr.bf16.gmra.mxu0 %v622
      %v778 = vpop.f32.mrf.mxu0
      %v779 = vadd.f32 %v481, %v778
      %v780 = vpop.f32.mrf.mxu0
      %v781 = vpop.f32.mrf.mxu0
      %v782 = vadd.f32 %v481, %v781
      %v783 = vpop.f32.mrf.mxu0
      %784 = vdwg.mxu0
      %v785 = vadd.f32 %v659, 3.0
      %v786 = vadd.f32 %v662, 3.0
      %v787 = vadd.f32 %v667, 3.0
      %v788 = vadd.f32 %v670, 3.0
      %v789 = vadd.f32 %v675, 3.0
      %v790 = vadd.f32 %v678, 3.0
      %v791 = vadd.f32 %v683, 3.0
      %v792 = vadd.f32 %v686, 3.0
      %v793 = vadd.f32 %v691, 3.0
      %v794 = vadd.f32 %v694, 3.0
      %v795 = vadd.f32 %v699, 3.0
      %v796 = vadd.f32 %v702, 3.0
      %v797 = vadd.f32 %v707, 3.0
      %v798 = vadd.f32 %v710, 3.0
      %v799 = vadd.f32 %v715, 3.0
      %v800 = vadd.f32 %v718, 3.0
      %v801 = vadd.f32 %v723, 3.0
      %v802 = vadd.f32 %v726, 3.0
      %v803 = vadd.f32 %v731, 3.0
      %v804 = vadd.f32 %v734, 3.0
      %v805 = vadd.f32 %v739, 3.0
      %v806 = vadd.f32 %v742, 3.0
      %v807 = vadd.f32 %v747, 3.0
      %v808 = vadd.f32 %v750, 3.0
      %v809 = vadd.f32 %v755, 3.0
      %v810 = vadd.f32 %v758, 3.0
      %v811 = vadd.f32 %v763, 3.0
      %v812 = vadd.f32 %v766, 3.0
      %v813 = vadd.f32 %v771, 3.0
      %v814 = vadd.f32 %v774, 3.0
      %v815 = vadd.f32 %v779, 3.0
      %v816 = vadd.f32 %v782, 3.0
      %v817 = vmax.f32 %v785, 0.0
      %v818 = vmax.f32 %v786, 0.0
      %v819 = vmax.f32 %v787, 0.0
      %v820 = vmax.f32 %v788, 0.0
      %v821 = vmax.f32 %v789, 0.0
      %v822 = vmax.f32 %v790, 0.0
      %v823 = vmax.f32 %v791, 0.0
      %v824 = vmax.f32 %v792, 0.0
      %v825 = vmax.f32 %v793, 0.0
      %v826 = vmax.f32 %v794, 0.0
      %v827 = vmax.f32 %v795, 0.0
      %v828 = vmax.f32 %v796, 0.0
      %v829 = vmax.f32 %v797, 0.0
      %v830 = vmax.f32 %v798, 0.0
      %v831 = vmax.f32 %v799, 0.0
      %v832 = vmax.f32 %v800, 0.0
      %v833 = vmax.f32 %v801, 0.0
      %v834 = vmax.f32 %v802, 0.0
      %v835 = vmax.f32 %v803, 0.0
      %v836 = vmax.f32 %v804, 0.0
      %v837 = vmax.f32 %v805, 0.0
      %v838 = vmax.f32 %v806, 0.0
      %v839 = vmax.f32 %v807, 0.0
      %v840 = vmax.f32 %v808, 0.0
      %v841 = vmax.f32 %v809, 0.0
      %v842 = vmax.f32 %v810, 0.0
      %v843 = vmax.f32 %v811, 0.0
      %v844 = vmax.f32 %v812, 0.0
      %v845 = vmax.f32 %v813, 0.0
      %v846 = vmax.f32 %v814, 0.0
      %v847 = vmax.f32 %v815, 0.0
      %v848 = vmax.f32 %v816, 0.0
      %v849 = vmin.f32 %v817, 6.0
      %v850 = vmin.f32 %v818, 6.0
      %v851 = vmin.f32 %v819, 6.0
      %v852 = vmin.f32 %v820, 6.0
      %v853 = vmin.f32 %v821, 6.0
      %v854 = vmin.f32 %v822, 6.0
      %v855 = vmin.f32 %v823, 6.0
      %v856 = vmin.f32 %v824, 6.0
      %v857 = vmin.f32 %v825, 6.0
      %v858 = vmin.f32 %v826, 6.0
      %v859 = vmin.f32 %v827, 6.0
      %v860 = vmin.f32 %v828, 6.0
      %v861 = vmin.f32 %v829, 6.0
      %v862 = vmin.f32 %v830, 6.0
      %v863 = vmin.f32 %v831, 6.0
      %v864 = vmin.f32 %v832, 6.0
      %v865 = vmin.f32 %v833, 6.0
      %v866 = vmin.f32 %v834, 6.0
      %v867 = vmin.f32 %v835, 6.0
      %v868 = vmin.f32 %v836, 6.0
      %v869 = vmin.f32 %v837, 6.0
      %v870 = vmin.f32 %v838, 6.0
      %v871 = vmin.f32 %v839, 6.0
      %v872 = vmin.f32 %v840, 6.0
      %v873 = vmin.f32 %v841, 6.0
      %v874 = vmin.f32 %v842, 6.0
      %v875 = vmin.f32 %v843, 6.0
      %v876 = vmin.f32 %v844, 6.0
      %v877 = vmin.f32 %v845, 6.0
      %v878 = vmin.f32 %v846, 6.0
      %v879 = vmin.f32 %v847, 6.0
      %v880 = vmin.f32 %v848, 6.0
      %v881 = vmul.f32 %v849, 0.16666667
      %v882 = vmul.f32 %v850, 0.16666667
      %v883 = vmul.f32 %v851, 0.16666667
      %v884 = vmul.f32 %v852, 0.16666667
      %v885 = vmul.f32 %v853, 0.16666667
      %v886 = vmul.f32 %v854, 0.16666667
      %v887 = vmul.f32 %v855, 0.16666667
      %v888 = vmul.f32 %v856, 0.16666667
      %v889 = vmul.f32 %v857, 0.16666667
      %v890 = vmul.f32 %v858, 0.16666667
      %v891 = vmul.f32 %v859, 0.16666667
      %v892 = vmul.f32 %v860, 0.16666667
      %v893 = vmul.f32 %v861, 0.16666667
      %v894 = vmul.f32 %v862, 0.16666667
      %v895 = vmul.f32 %v863, 0.16666667
      %v896 = vmul.f32 %v864, 0.16666667
      %v897 = vmul.f32 %v865, 0.16666667
      %v898 = vmul.f32 %v866, 0.16666667
      %v899 = vmul.f32 %v867, 0.16666667
      %v900 = vmul.f32 %v868, 0.16666667
      %v901 = vmul.f32 %v869, 0.16666667
      %v902 = vmul.f32 %v870, 0.16666667
      %v903 = vmul.f32 %v871, 0.16666667
      %v904 = vmul.f32 %v872, 0.16666667
      %v905 = vmul.f32 %v873, 0.16666667
      %v906 = vmul.f32 %v874, 0.16666667
      %v907 = vmul.f32 %v875, 0.16666667
      %v908 = vmul.f32 %v876, 0.16666667
      %v909 = vmul.f32 %v877, 0.16666667
      %v910 = vmul.f32 %v878, 0.16666667
      %v911 = vmul.f32 %v879, 0.16666667
      %v912 = vmul.f32 %v880, 0.16666667
      %v913 = vmul.f32 %v659, %v881
      %v914 = vmul.f32 %v662, %v882
      %v915 = vmul.f32 %v667, %v883
      %v916 = vmul.f32 %v670, %v884
      %v917 = vmul.f32 %v675, %v885
      %v918 = vmul.f32 %v678, %v886
      %v919 = vmul.f32 %v683, %v887
      %v920 = vmul.f32 %v686, %v888
      %v921 = vmul.f32 %v691, %v889
      %v922 = vmul.f32 %v694, %v890
      %v923 = vmul.f32 %v699, %v891
      %v924 = vmul.f32 %v702, %v892
      %v925 = vmul.f32 %v707, %v893
      %v926 = vmul.f32 %v710, %v894
      %v927 = vmul.f32 %v715, %v895
      %v928 = vmul.f32 %v718, %v896
      %v929 = vmul.f32 %v723, %v897
      %v930 = vmul.f32 %v726, %v898
      %v931 = vmul.f32 %v731, %v899
      %v932 = vmul.f32 %v734, %v900
      %v933 = vmul.f32 %v739, %v901
      %v934 = vmul.f32 %v742, %v902
      %v935 = vmul.f32 %v747, %v903
      %v936 = vmul.f32 %v750, %v904
      %v937 = vmul.f32 %v755, %v905
      %v938 = vmul.f32 %v758, %v906
      %v939 = vmul.f32 %v763, %v907
      %v940 = vmul.f32 %v766, %v908
      %v941 = vmul.f32 %v771, %v909
      %v942 = vmul.f32 %v774, %v910
      %v943 = vmul.f32 %v779, %v911
      %v944 = vmul.f32 %v782, %v912
      %v945 = vpack.c.bf16 %v914, %v913
      %v946 = vpack.c.bf16 %v916, %v915
      %v947 = vpack.c.bf16 %v918, %v917
      %v948 = vpack.c.bf16 %v920, %v919
      %v949 = vpack.c.bf16 %v922, %v921
      %v950 = vpack.c.bf16 %v924, %v923
      %v951 = vpack.c.bf16 %v926, %v925
      %v952 = vpack.c.bf16 %v928, %v927
      %v953 = vpack.c.bf16 %v930, %v929
      %v954 = vpack.c.bf16 %v932, %v931
      %v955 = vpack.c.bf16 %v934, %v933
      %v956 = vpack.c.bf16 %v936, %v935
      %v957 = vpack.c.bf16 %v938, %v937
      %v958 = vpack.c.bf16 %v940, %v939
      %v959 = vpack.c.bf16 %v942, %v941
      %v960 = vpack.c.bf16 %v944, %v943
      %v961 = vld [vmem:[%s3] sm:$0xf]
      %v962 = vld [vmem:[%s3 + $0x4] sm:$0xf]
      %v963 = vld [vmem:[%s4] sm:$0x1]
      %v965 = vlaneseq
      %v966 = vshrl.u32 %v965, 7
      %v967 = vsub.s32 0, %v966
      %v968 = vrot.slane %v963, %v967
      %v972 = vunpack.c.l.b16 %v961
      %v973 = vunpack.c.l.b16 %v962
      %v974 = vpack.c.b16 %v973, %v972
      %vm976 = vcmask 130048
      %v978 = vsel %vm976, %v945, 0
      %v981 = vsel %vm976, %v946, 0
      %v984 = vsel %vm976, %v947, 0
      %v987 = vsel %vm976, %v948, 0
      %v990 = vsel %vm976, %v949, 0
      %v993 = vsel %vm976, %v950, 0
      %v996 = vsel %vm976, %v951, 0
      %v999 = vsel %vm976, %v952, 0
      %v1002 = vsel %vm976, %v953, 0
      %v1005 = vsel %vm976, %v954, 0
      %v1008 = vsel %vm976, %v955, 0
      %v1011 = vsel %vm976, %v956, 0
      %v1014 = vsel %vm976, %v957, 0
      %v1017 = vsel %vm976, %v958, 0
      %v1020 = vsel %vm976, %v959, 0
      %v1023 = vsel %vm976, %v960, 0
      %1025 = vmatprep.subr.bf16.mxu0 0
      %1026 = vmatpush1.bf16.msra.mxu0 0
      %1027 = vmatprep.subr.bf16.mxu0 0
      %1028 = vmatpush1.bf16.msra.mxu0 0
      %1029 = vmatprep.subr.bf16.mxu0 0
      %1030 = vmatpush1.bf16.msra.mxu0 0
      %1031 = vmatprep.subr.bf16.mxu0 0
      %1032 = vmatpush1.bf16.msra.mxu0 0
      %1033 = vmatprep.subr.bf16.mxu0 0
      %1034 = vmatpush1.bf16.msra.mxu0 0
      %1035 = vmatprep.subr.bf16.mxu0 0
      %1036 = vmatpush1.bf16.msra.mxu0 0
      %1037 = vmatprep.subr.bf16.mxu0 0
      %1038 = vmatpush1.bf16.msra.mxu0 0
      %1039 = vmatprep.subr.bf16.mxu0 0
      %1040 = vmatpush1.bf16.msra.mxu0 %v974
      %1041 = vmatprep.subr.bf16.mxu0 0
      %1042 = vmatpush2.bf16.msra.mxu0 0
      %1043 = vmatprep.subr.bf16.mxu0 0
      %1044 = vmatpush2.bf16.msra.mxu0 0
      %1045 = vmatprep.subr.bf16.mxu0 0
      %1046 = vmatpush2.bf16.msra.mxu0 0
      %1047 = vmatprep.subr.bf16.mxu0 0
      %1048 = vmatpush2.bf16.msra.mxu0 0
      %1049 = vmatprep.subr.bf16.mxu0 0
      %1050 = vmatpush2.bf16.msra.mxu0 0
      %1051 = vmatprep.subr.bf16.mxu0 0
      %1052 = vmatpush2.bf16.msra.mxu0 0
      %1053 = vmatprep.subr.bf16.mxu0 0
      %1054 = vmatpush2.bf16.msra.mxu0 0
      %1055 = vmatprep.subr.bf16.mxu0 0
      %1056 = vmatpush2.bf16.msra.mxu0 0
      %1057 = vmatprep.mubr.bf16.mxu0 0
      %1058 = vmatmul.mubr.bf16.gmra.mxu0 %v978
      %v1059 = vpop.f32.mrf.mxu0
      %v1060 = vadd.f32 %v968, %v1059
      %v1061 = vpop.f32.mrf.mxu0
      %v1062 = vpop.f32.mrf.mxu0
      %v1063 = vadd.f32 %v968, %v1062
      %v1064 = vpop.f32.mrf.mxu0
      %1065 = vmatprep.mubr.bf16.mxu0 0
      %1066 = vmatmul.mubr.bf16.gmra.mxu0 %v981
      %v1067 = vpop.f32.mrf.mxu0
      %v1068 = vadd.f32 %v968, %v1067
      %v1069 = vpop.f32.mrf.mxu0
      %v1070 = vpop.f32.mrf.mxu0
      %v1071 = vadd.f32 %v968, %v1070
      %v1072 = vpop.f32.mrf.mxu0
      %1073 = vmatprep.mubr.bf16.mxu0 0
      %1074 = vmatmul.mubr.bf16.gmra.mxu0 %v984
      %v1075 = vpop.f32.mrf.mxu0
      %v1076 = vadd.f32 %v968, %v1075
      %v1077 = vpop.f32.mrf.mxu0
      %v1078 = vpop.f32.mrf.mxu0
      %v1079 = vadd.f32 %v968, %v1078
      %v1080 = vpop.f32.mrf.mxu0
      %1081 = vmatprep.mubr.bf16.mxu0 0
      %1082 = vmatmul.mubr.bf16.gmra.mxu0 %v987
      %v1083 = vpop.f32.mrf.mxu0
      %v1084 = vadd.f32 %v968, %v1083
      %v1085 = vpop.f32.mrf.mxu0
      %v1086 = vpop.f32.mrf.mxu0
      %v1087 = vadd.f32 %v968, %v1086
      %v1088 = vpop.f32.mrf.mxu0
      %1089 = vmatprep.mubr.bf16.mxu0 0
      %1090 = vmatmul.mubr.bf16.gmra.mxu0 %v990
      %v1091 = vpop.f32.mrf.mxu0
      %v1092 = vadd.f32 %v968, %v1091
      %v1093 = vpop.f32.mrf.mxu0
      %v1094 = vpop.f32.mrf.mxu0
      %v1095 = vadd.f32 %v968, %v1094
      %v1096 = vpop.f32.mrf.mxu0
      %1097 = vmatprep.mubr.bf16.mxu0 0
      %1098 = vmatmul.mubr.bf16.gmra.mxu0 %v993
      %v1099 = vpop.f32.mrf.mxu0
      %v1100 = vadd.f32 %v968, %v1099
      %v1101 = vpop.f32.mrf.mxu0
      %v1102 = vpop.f32.mrf.mxu0
      %v1103 = vadd.f32 %v968, %v1102
      %v1104 = vpop.f32.mrf.mxu0
      %1105 = vmatprep.mubr.bf16.mxu0 0
      %1106 = vmatmul.mubr.bf16.gmra.mxu0 %v996
      %v1107 = vpop.f32.mrf.mxu0
      %v1108 = vadd.f32 %v968, %v1107
      %v1109 = vpop.f32.mrf.mxu0
      %v1110 = vpop.f32.mrf.mxu0
      %v1111 = vadd.f32 %v968, %v1110
      %v1112 = vpop.f32.mrf.mxu0
      %1113 = vmatprep.mubr.bf16.mxu0 0
      %1114 = vmatmul.mubr.bf16.gmra.mxu0 %v999
      %v1115 = vpop.f32.mrf.mxu0
      %v1116 = vadd.f32 %v968, %v1115
      %v1117 = vpop.f32.mrf.mxu0
      %v1118 = vpop.f32.mrf.mxu0
      %v1119 = vadd.f32 %v968, %v1118
      %v1120 = vpop.f32.mrf.mxu0
      %1121 = vmatprep.mubr.bf16.mxu0 0
      %1122 = vmatmul.mubr.bf16.gmra.mxu0 %v1002
      %v1123 = vpop.f32.mrf.mxu0
      %v1124 = vadd.f32 %v968, %v1123
      %v1125 = vpop.f32.mrf.mxu0
      %v1126 = vpop.f32.mrf.mxu0
      %v1127 = vadd.f32 %v968, %v1126
      %v1128 = vpop.f32.mrf.mxu0
      %1129 = vmatprep.mubr.bf16.mxu0 0
      %1130 = vmatmul.mubr.bf16.gmra.mxu0 %v1005
      %v1131 = vpop.f32.mrf.mxu0
      %v1132 = vadd.f32 %v968, %v1131
      %v1133 = vpop.f32.mrf.mxu0
      %v1134 = vpop.f32.mrf.mxu0
      %v1135 = vadd.f32 %v968, %v1134
      %v1136 = vpop.f32.mrf.mxu0
      %1137 = vmatprep.mubr.bf16.mxu0 0
      %1138 = vmatmul.mubr.bf16.gmra.mxu0 %v1008
      %v1139 = vpop.f32.mrf.mxu0
      %v1140 = vadd.f32 %v968, %v1139
      %v1141 = vpop.f32.mrf.mxu0
      %v1142 = vpop.f32.mrf.mxu0
      %v1143 = vadd.f32 %v968, %v1142
      %v1144 = vpop.f32.mrf.mxu0
      %1145 = vmatprep.mubr.bf16.mxu0 0
      %1146 = vmatmul.mubr.bf16.gmra.mxu0 %v1011
      %v1147 = vpop.f32.mrf.mxu0
      %v1148 = vadd.f32 %v968, %v1147
      %v1149 = vpop.f32.mrf.mxu0
      %v1150 = vpop.f32.mrf.mxu0
      %v1151 = vadd.f32 %v968, %v1150
      %v1152 = vpop.f32.mrf.mxu0
      %1153 = vmatprep.mubr.bf16.mxu0 0
      %1154 = vmatmul.mubr.bf16.gmra.mxu0 %v1014
      %v1155 = vpop.f32.mrf.mxu0
      %v1156 = vadd.f32 %v968, %v1155
      %v1157 = vpop.f32.mrf.mxu0
      %v1158 = vpop.f32.mrf.mxu0
      %v1159 = vadd.f32 %v968, %v1158
      %v1160 = vpop.f32.mrf.mxu0
      %1161 = vmatprep.mubr.bf16.mxu0 0
      %1162 = vmatmul.mubr.bf16.gmra.mxu0 %v1017
      %v1163 = vpop.f32.mrf.mxu0
      %v1164 = vadd.f32 %v968, %v1163
      %v1165 = vpop.f32.mrf.mxu0
      %v1166 = vpop.f32.mrf.mxu0
      %v1167 = vadd.f32 %v968, %v1166
      %v1168 = vpop.f32.mrf.mxu0
      %1169 = vmatprep.mubr.bf16.mxu0 0
      %1170 = vmatmul.mubr.bf16.gmra.mxu0 %v1020
      %v1171 = vpop.f32.mrf.mxu0
      %v1172 = vadd.f32 %v968, %v1171
      %v1173 = vpop.f32.mrf.mxu0
      %v1174 = vpop.f32.mrf.mxu0
      %v1175 = vadd.f32 %v968, %v1174
      %v1176 = vpop.f32.mrf.mxu0
      %1177 = vmatprep.mubr.bf16.mxu0 0
      %1178 = vmatmul.mubr.bf16.gmra.mxu0 %v1023
      %v1179 = vpop.f32.mrf.mxu0
      %v1180 = vadd.f32 %v968, %v1179
      %v1181 = vpop.f32.mrf.mxu0
      %v1182 = vpop.f32.mrf.mxu0
      %v1183 = vadd.f32 %v968, %v1182
      %v1184 = vpop.f32.mrf.mxu0
      %1185 = vdwg.mxu0
      %v1186 = vmax.f32 %v1060, 0.0
      %v1187 = vmax.f32 %v1063, 0.0
      %v1188 = vmax.f32 %v1068, 0.0
      %v1189 = vmax.f32 %v1071, 0.0
      %v1190 = vmax.f32 %v1076, 0.0
      %v1191 = vmax.f32 %v1079, 0.0
      %v1192 = vmax.f32 %v1084, 0.0
      %v1193 = vmax.f32 %v1087, 0.0
      %v1194 = vmax.f32 %v1092, 0.0
      %v1195 = vmax.f32 %v1095, 0.0
      %v1196 = vmax.f32 %v1100, 0.0
      %v1197 = vmax.f32 %v1103, 0.0
      %v1198 = vmax.f32 %v1108, 0.0
      %v1199 = vmax.f32 %v1111, 0.0
      %v1200 = vmax.f32 %v1116, 0.0
      %v1201 = vmax.f32 %v1119, 0.0
      %v1202 = vmax.f32 %v1124, 0.0
      %v1203 = vmax.f32 %v1127, 0.0
      %v1204 = vmax.f32 %v1132, 0.0
      %v1205 = vmax.f32 %v1135, 0.0
      %v1206 = vmax.f32 %v1140, 0.0
      %v1207 = vmax.f32 %v1143, 0.0
      %v1208 = vmax.f32 %v1148, 0.0
      %v1209 = vmax.f32 %v1151, 0.0
      %v1210 = vmax.f32 %v1156, 0.0
      %v1211 = vmax.f32 %v1159, 0.0
      %v1212 = vmax.f32 %v1164, 0.0
      %v1213 = vmax.f32 %v1167, 0.0
      %v1214 = vmax.f32 %v1172, 0.0
      %v1215 = vmax.f32 %v1175, 0.0
      %v1216 = vmax.f32 %v1180, 0.0
      %v1217 = vmax.f32 %v1183, 0.0
      %vm1251 = vcmask 1040384
      %v1252 = vrot.slane 0.0, 7
      %v1253 = vsel %vm1251, %v1252, %v1252
      %v1254 = vrot.slane %v1186, 7
      %v1255 = vrot.slane %v1187, 7
      %v1256 = vsel %vm1251, %v1254, %v1255
      %v1257 = vrot.slane %v1188, 7
      %v1258 = vrot.slane %v1189, 7
      %v1259 = vsel %vm1251, %v1257, %v1258
      %v1260 = vrot.slane %v1190, 7
      %v1261 = vrot.slane %v1191, 7
      %v1262 = vsel %vm1251, %v1260, %v1261
      %v1263 = vrot.slane %v1192, 7
      %v1264 = vrot.slane %v1193, 7
      %v1265 = vsel %vm1251, %v1263, %v1264
      %v1266 = vrot.slane %v1194, 7
      %v1267 = vrot.slane %v1195, 7
      %v1268 = vsel %vm1251, %v1266, %v1267
      %v1269 = vrot.slane %v1196, 7
      %v1270 = vrot.slane %v1197, 7
      %v1271 = vsel %vm1251, %v1269, %v1270
      %v1272 = vrot.slane %v1198, 7
      %v1273 = vrot.slane %v1199, 7
      %v1274 = vsel %vm1251, %v1272, %v1273
      %v1275 = vrot.slane %v1200, 7
      %v1276 = vrot.slane %v1201, 7
      %v1277 = vsel %vm1251, %v1275, %v1276
      %v1278 = vrot.slane %v1202, 7
      %v1279 = vrot.slane %v1203, 7
      %v1280 = vsel %vm1251, %v1278, %v1279
      %v1281 = vrot.slane %v1204, 7
      %v1282 = vrot.slane %v1205, 7
      %v1283 = vsel %vm1251, %v1281, %v1282
      %v1284 = vrot.slane %v1206, 7
      %v1285 = vrot.slane %v1207, 7
      %v1286 = vsel %vm1251, %v1284, %v1285
      %v1287 = vrot.slane %v1208, 7
      %v1288 = vrot.slane %v1209, 7
      %v1289 = vsel %vm1251, %v1287, %v1288
      %v1290 = vrot.slane %v1210, 7
      %v1291 = vrot.slane %v1211, 7
      %v1292 = vsel %vm1251, %v1290, %v1291
      %v1293 = vrot.slane %v1212, 7
      %v1294 = vrot.slane %v1213, 7
      %v1295 = vsel %vm1251, %v1293, %v1294
      %v1296 = vrot.slane %v1214, 7
      %v1297 = vrot.slane %v1215, 7
      %v1298 = vsel %vm1251, %v1296, %v1297
      %v1299 = vrot.slane %v1216, 7
      %v1300 = vrot.slane %v1217, 7
      %v1301 = vsel %vm1251, %v1299, %v1300
      %v1352 = vsel %vm1251, 0.0, %v1252
      %v1353 = vsel %vm1251, 0.0, %v1254
      %v1354 = vsel %vm1251, 0.0, %v1257
      %v1355 = vsel %vm1251, 0.0, %v1260
      %v1356 = vsel %vm1251, 0.0, %v1263
      %v1357 = vsel %vm1251, 0.0, %v1266
      %v1358 = vsel %vm1251, 0.0, %v1269
      %v1359 = vsel %vm1251, 0.0, %v1272
      %v1360 = vsel %vm1251, 0.0, %v1275
      %v1361 = vsel %vm1251, 0.0, %v1278
      %v1362 = vsel %vm1251, 0.0, %v1281
      %v1363 = vsel %vm1251, 0.0, %v1284
      %v1364 = vsel %vm1251, 0.0, %v1287
      %v1365 = vsel %vm1251, 0.0, %v1290
      %v1366 = vsel %vm1251, 0.0, %v1293
      %v1367 = vsel %vm1251, 0.0, %v1296
      %v1368 = vsel %vm1251, 0.0, %v1299
      %v1369 = vsel %vm1251, %v1252, 0.0
      %v1370 = vsel %vm1251, %v1255, 0.0
      %v1371 = vsel %vm1251, %v1258, 0.0
      %v1372 = vsel %vm1251, %v1261, 0.0
      %v1373 = vsel %vm1251, %v1264, 0.0
      %v1374 = vsel %vm1251, %v1267, 0.0
      %v1375 = vsel %vm1251, %v1270, 0.0
      %v1376 = vsel %vm1251, %v1273, 0.0
      %v1377 = vsel %vm1251, %v1276, 0.0
      %v1378 = vsel %vm1251, %v1279, 0.0
      %v1379 = vsel %vm1251, %v1282, 0.0
      %v1380 = vsel %vm1251, %v1285, 0.0
      %v1381 = vsel %vm1251, %v1288, 0.0
      %v1382 = vsel %vm1251, %v1291, 0.0
      %v1383 = vsel %vm1251, %v1294, 0.0
      %v1384 = vsel %vm1251, %v1297, 0.0
      %v1385 = vsel %vm1251, %v1300, 0.0
      %v1386 = vld [vmem:[%s5] sm:$0x1]
      %v1388 = vlaneseq
      %v1389 = vshrl.u32 %v1388, 7
      %v1390 = vsub.s32 0, %v1389
      %v1391 = vrot.slane %v1386, %v1390
      %v1393 = vmul.f32 %v1352, %v1391
      %v1394 = vmul.f32 %v1253, %v1391
      %v1395 = vmul.f32 %v1353, %v1391
      %v1396 = vmul.f32 %v1256, %v1391
      %v1397 = vmul.f32 %v1354, %v1391
      %v1398 = vmul.f32 %v1259, %v1391
      %v1399 = vmul.f32 %v1355, %v1391
      %v1400 = vmul.f32 %v1262, %v1391
      %v1401 = vmul.f32 %v1356, %v1391
      %v1402 = vmul.f32 %v1265, %v1391
      %v1403 = vmul.f32 %v1357, %v1391
      %v1404 = vmul.f32 %v1268, %v1391
      %v1405 = vmul.f32 %v1358, %v1391
      %v1406 = vmul.f32 %v1271, %v1391
      %v1407 = vmul.f32 %v1359, %v1391
      %v1408 = vmul.f32 %v1274, %v1391
      %v1409 = vmul.f32 %v1360, %v1391
      %v1410 = vmul.f32 %v1277, %v1391
      %v1411 = vmul.f32 %v1361, %v1391
      %v1412 = vmul.f32 %v1280, %v1391
      %v1413 = vmul.f32 %v1362, %v1391
      %v1414 = vmul.f32 %v1283, %v1391
      %v1415 = vmul.f32 %v1363, %v1391
      %v1416 = vmul.f32 %v1286, %v1391
      %v1417 = vmul.f32 %v1364, %v1391
      %v1418 = vmul.f32 %v1289, %v1391
      %v1419 = vmul.f32 %v1365, %v1391
      %v1420 = vmul.f32 %v1292, %v1391
      %v1421 = vmul.f32 %v1366, %v1391
      %v1422 = vmul.f32 %v1295, %v1391
      %v1423 = vmul.f32 %v1367, %v1391
      %v1424 = vmul.f32 %v1298, %v1391
      %v1425 = vadd.f32 %v1393, 0.0
      %v1426 = vadd.f32 %v1394, 0.0
      %v1427 = vadd.f32 %v1395, 0.0
      %v1428 = vadd.f32 %v1396, 0.0
      %v1429 = vadd.f32 %v1397, 0.0
      %v1430 = vadd.f32 %v1398, 0.0
      %v1431 = vadd.f32 %v1399, 0.0
      %v1432 = vadd.f32 %v1400, 0.0
      %v1433 = vadd.f32 %v1401, 0.0
      %v1434 = vadd.f32 %v1402, 0.0
      %v1435 = vadd.f32 %v1403, 0.0
      %v1436 = vadd.f32 %v1404, 0.0
      %v1437 = vadd.f32 %v1405, 0.0
      %v1438 = vadd.f32 %v1406, 0.0
      %v1439 = vadd.f32 %v1407, 0.0
      %v1440 = vadd.f32 %v1408, 0.0
      %v1441 = vadd.f32 %v1409, 0.0
      %v1442 = vadd.f32 %v1410, 0.0
      %v1443 = vadd.f32 %v1411, 0.0
      %v1444 = vadd.f32 %v1412, 0.0
      %v1445 = vadd.f32 %v1413, 0.0
      %v1446 = vadd.f32 %v1414, 0.0
      %v1447 = vadd.f32 %v1415, 0.0
      %v1448 = vadd.f32 %v1416, 0.0
      %v1449 = vadd.f32 %v1417, 0.0
      %v1450 = vadd.f32 %v1418, 0.0
      %v1451 = vadd.f32 %v1419, 0.0
      %v1452 = vadd.f32 %v1420, 0.0
      %v1453 = vadd.f32 %v1421, 0.0
      %v1454 = vadd.f32 %v1422, 0.0
      %v1455 = vadd.f32 %v1423, 0.0
      %v1456 = vadd.f32 %v1424, 0.0
      %s1457 = scalar_lea.vmem %s5, 1
      %v1458 = vld [vmem:[%s1457] sm:$0x1]
      %v1460 = vlaneseq
      %v1461 = vshrl.u32 %v1460, 7
      %v1462 = vsub.s32 0, %v1461
      %v1463 = vrot.slane %v1458, %v1462
      %v1465 = vmul.f32 %v1352, %v1463
      %v1466 = vmul.f32 %v1253, %v1463
      %v1467 = vmul.f32 %v1369, %v1463
      %v1468 = vmul.f32 %v1353, %v1463
      %v1469 = vmul.f32 %v1256, %v1463
      %v1470 = vmul.f32 %v1370, %v1463
      %v1471 = vmul.f32 %v1354, %v1463
      %v1472 = vmul.f32 %v1259, %v1463
      %v1473 = vmul.f32 %v1371, %v1463
      %v1474 = vmul.f32 %v1355, %v1463
      %v1475 = vmul.f32 %v1262, %v1463
      %v1476 = vmul.f32 %v1372, %v1463
      %v1477 = vmul.f32 %v1356, %v1463
      %v1478 = vmul.f32 %v1265, %v1463
      %v1479 = vmul.f32 %v1373, %v1463
      %v1480 = vmul.f32 %v1357, %v1463
      %v1481 = vmul.f32 %v1268, %v1463
      %v1482 = vmul.f32 %v1374, %v1463
      %v1483 = vmul.f32 %v1358, %v1463
      %v1484 = vmul.f32 %v1271, %v1463
      %v1485 = vmul.f32 %v1375, %v1463
      %v1486 = vmul.f32 %v1359, %v1463
      %v1487 = vmul.f32 %v1274, %v1463
      %v1488 = vmul.f32 %v1376, %v1463
      %v1489 = vmul.f32 %v1360, %v1463
      %v1490 = vmul.f32 %v1277, %v1463
      %v1491 = vmul.f32 %v1377, %v1463
      %v1492 = vmul.f32 %v1361, %v1463
      %v1493 = vmul.f32 %v1280, %v1463
      %v1494 = vmul.f32 %v1378, %v1463
      %v1495 = vmul.f32 %v1362, %v1463
      %v1496 = vmul.f32 %v1283, %v1463
      %v1497 = vmul.f32 %v1379, %v1463
      %v1498 = vmul.f32 %v1363, %v1463
      %v1499 = vmul.f32 %v1286, %v1463
      %v1500 = vmul.f32 %v1380, %v1463
      %v1501 = vmul.f32 %v1364, %v1463
      %v1502 = vmul.f32 %v1289, %v1463
      %v1503 = vmul.f32 %v1381, %v1463
      %v1504 = vmul.f32 %v1365, %v1463
      %v1505 = vmul.f32 %v1292, %v1463
      %v1506 = vmul.f32 %v1382, %v1463
      %v1507 = vmul.f32 %v1366, %v1463
      %v1508 = vmul.f32 %v1295, %v1463
      %v1509 = vmul.f32 %v1383, %v1463
      %v1510 = vmul.f32 %v1367, %v1463
      %v1511 = vmul.f32 %v1298, %v1463
      %v1512 = vmul.f32 %v1384, %v1463
      %vm1561 = vcmask 1046528
      %v1562 = vrot.slane %v1465, 1
      %v1563 = vrot.slane %v1466, 1
      %v1564 = vsel %vm1561, %v1562, %v1563
      %v1565 = vrot.slane %v1467, 1
      %v1566 = vsel %vm1561, %v1563, %v1565
      %v1567 = vrot.slane %v1468, 1
      %v1568 = vrot.slane %v1469, 1
      %v1569 = vsel %vm1561, %v1567, %v1568
      %v1570 = vrot.slane %v1470, 1
      %v1571 = vsel %vm1561, %v1568, %v1570
      %v1572 = vrot.slane %v1471, 1
      %v1573 = vrot.slane %v1472, 1
      %v1574 = vsel %vm1561, %v1572, %v1573
      %v1575 = vrot.slane %v1473, 1
      %v1576 = vsel %vm1561, %v1573, %v1575
      %v1577 = vrot.slane %v1474, 1
      %v1578 = vrot.slane %v1475, 1
      %v1579 = vsel %vm1561, %v1577, %v1578
      %v1580 = vrot.slane %v1476, 1
      %v1581 = vsel %vm1561, %v1578, %v1580
      %v1582 = vrot.slane %v1477, 1
      %v1583 = vrot.slane %v1478, 1
      %v1584 = vsel %vm1561, %v1582, %v1583
      %v1585 = vrot.slane %v1479, 1
      %v1586 = vsel %vm1561, %v1583, %v1585
      %v1587 = vrot.slane %v1480, 1
      %v1588 = vrot.slane %v1481, 1
      %v1589 = vsel %vm1561, %v1587, %v1588
      %v1590 = vrot.slane %v1482, 1
      %v1591 = vsel %vm1561, %v1588, %v1590
      %v1592 = vrot.slane %v1483, 1
      %v1593 = vrot.slane %v1484, 1
      %v1594 = vsel %vm1561, %v1592, %v1593
      %v1595 = vrot.slane %v1485, 1
      %v1596 = vsel %vm1561, %v1593, %v1595
      %v1597 = vrot.slane %v1486, 1
      %v1598 = vrot.slane %v1487, 1
      %v1599 = vsel %vm1561, %v1597, %v1598
      %v1600 = vrot.slane %v1488, 1
      %v1601 = vsel %vm1561, %v1598, %v1600
      %v1602 = vrot.slane %v1489, 1
      %v1603 = vrot.slane %v1490, 1
      %v1604 = vsel %vm1561, %v1602, %v1603
      %v1605 = vrot.slane %v1491, 1
      %v1606 = vsel %vm1561, %v1603, %v1605
      %v1607 = vrot.slane %v1492, 1
      %v1608 = vrot.slane %v1493, 1
      %v1609 = vsel %vm1561, %v1607, %v1608
      %v1610 = vrot.slane %v1494, 1
      %v1611 = vsel %vm1561, %v1608, %v1610
      %v1612 = vrot.slane %v1495, 1
      %v1613 = vrot.slane %v1496, 1
      %v1614 = vsel %vm1561, %v1612, %v1613
      %v1615 = vrot.slane %v1497, 1
      %v1616 = vsel %vm1561, %v1613, %v1615
      %v1617 = vrot.slane %v1498, 1
      %v1618 = vrot.slane %v1499, 1
      %v1619 = vsel %vm1561, %v1617, %v1618
      %v1620 = vrot.slane %v1500, 1
      %v1621 = vsel %vm1561, %v1618, %v1620
      %v1622 = vrot.slane %v1501, 1
      %v1623 = vrot.slane %v1502, 1
      %v1624 = vsel %vm1561, %v1622, %v1623
      %v1625 = vrot.slane %v1503, 1
      %v1626 = vsel %vm1561, %v1623, %v1625
      %v1627 = vrot.slane %v1504, 1
      %v1628 = vrot.slane %v1505, 1
      %v1629 = vsel %vm1561, %v1627, %v1628
      %v1630 = vrot.slane %v1506, 1
      %v1631 = vsel %vm1561, %v1628, %v1630
      %v1632 = vrot.slane %v1507, 1
      %v1633 = vrot.slane %v1508, 1
      %v1634 = vsel %vm1561, %v1632, %v1633
      %v1635 = vrot.slane %v1509, 1
      %v1636 = vsel %vm1561, %v1633, %v1635
      %v1637 = vrot.slane %v1510, 1
      %v1638 = vrot.slane %v1511, 1
      %v1639 = vsel %vm1561, %v1637, %v1638
      %v1640 = vrot.slane %v1512, 1
      %v1641 = vsel %vm1561, %v1638, %v1640
      %v1674 = vadd.f32 %v1425, %v1564
      %v1675 = vadd.f32 %v1426, %v1566
      %v1676 = vadd.f32 %v1427, %v1569
      %v1677 = vadd.f32 %v1428, %v1571
      %v1678 = vadd.f32 %v1429, %v1574
      %v1679 = vadd.f32 %v1430, %v1576
      %v1680 = vadd.f32 %v1431, %v1579
      %v1681 = vadd.f32 %v1432, %v1581
      %v1682 = vadd.f32 %v1433, %v1584
      %v1683 = vadd.f32 %v1434, %v1586
      %v1684 = vadd.f32 %v1435, %v1589
      %v1685 = vadd.f32 %v1436, %v1591
      %v1686 = vadd.f32 %v1437, %v1594
      %v1687 = vadd.f32 %v1438, %v1596
      %v1688 = vadd.f32 %v1439, %v1599
      %v1689 = vadd.f32 %v1440, %v1601
      %v1690 = vadd.f32 %v1441, %v1604
      %v1691 = vadd.f32 %v1442, %v1606
      %v1692 = vadd.f32 %v1443, %v1609
      %v1693 = vadd.f32 %v1444, %v1611
      %v1694 = vadd.f32 %v1445, %v1614
      %v1695 = vadd.f32 %v1446, %v1616
      %v1696 = vadd.f32 %v1447, %v1619
      %v1697 = vadd.f32 %v1448, %v1621
      %v1698 = vadd.f32 %v1449, %v1624
      %v1699 = vadd.f32 %v1450, %v1626
      %v1700 = vadd.f32 %v1451, %v1629
      %v1701 = vadd.f32 %v1452, %v1631
      %v1702 = vadd.f32 %v1453, %v1634
      %v1703 = vadd.f32 %v1454, %v1636
      %v1704 = vadd.f32 %v1455, %v1639
      %v1705 = vadd.f32 %v1456, %v1641
      %s1706 = scalar_lea.vmem %s5, 2
      %v1707 = vld [vmem:[%s1706] sm:$0x1]
      %v1709 = vlaneseq
      %v1710 = vshrl.u32 %v1709, 7
      %v1711 = vsub.s32 0, %v1710
      %v1712 = vrot.slane %v1707, %v1711
      %v1714 = vmul.f32 %v1352, %v1712
      %v1715 = vmul.f32 %v1253, %v1712
      %v1716 = vmul.f32 %v1369, %v1712
      %v1717 = vmul.f32 %v1353, %v1712
      %v1718 = vmul.f32 %v1256, %v1712
      %v1719 = vmul.f32 %v1370, %v1712
      %v1720 = vmul.f32 %v1354, %v1712
      %v1721 = vmul.f32 %v1259, %v1712
      %v1722 = vmul.f32 %v1371, %v1712
      %v1723 = vmul.f32 %v1355, %v1712
      %v1724 = vmul.f32 %v1262, %v1712
      %v1725 = vmul.f32 %v1372, %v1712
      %v1726 = vmul.f32 %v1356, %v1712
      %v1727 = vmul.f32 %v1265, %v1712
      %v1728 = vmul.f32 %v1373, %v1712
      %v1729 = vmul.f32 %v1357, %v1712
      %v1730 = vmul.f32 %v1268, %v1712
      %v1731 = vmul.f32 %v1374, %v1712
      %v1732 = vmul.f32 %v1358, %v1712
      %v1733 = vmul.f32 %v1271, %v1712
      %v1734 = vmul.f32 %v1375, %v1712
      %v1735 = vmul.f32 %v1359, %v1712
      %v1736 = vmul.f32 %v1274, %v1712
      %v1737 = vmul.f32 %v1376, %v1712
      %v1738 = vmul.f32 %v1360, %v1712
      %v1739 = vmul.f32 %v1277, %v1712
      %v1740 = vmul.f32 %v1377, %v1712
      %v1741 = vmul.f32 %v1361, %v1712
      %v1742 = vmul.f32 %v1280, %v1712
      %v1743 = vmul.f32 %v1378, %v1712
      %v1744 = vmul.f32 %v1362, %v1712
      %v1745 = vmul.f32 %v1283, %v1712
      %v1746 = vmul.f32 %v1379, %v1712
      %v1747 = vmul.f32 %v1363, %v1712
      %v1748 = vmul.f32 %v1286, %v1712
      %v1749 = vmul.f32 %v1380, %v1712
      %v1750 = vmul.f32 %v1364, %v1712
      %v1751 = vmul.f32 %v1289, %v1712
      %v1752 = vmul.f32 %v1381, %v1712
      %v1753 = vmul.f32 %v1365, %v1712
      %v1754 = vmul.f32 %v1292, %v1712
      %v1755 = vmul.f32 %v1382, %v1712
      %v1756 = vmul.f32 %v1366, %v1712
      %v1757 = vmul.f32 %v1295, %v1712
      %v1758 = vmul.f32 %v1383, %v1712
      %v1759 = vmul.f32 %v1367, %v1712
      %v1760 = vmul.f32 %v1298, %v1712
      %v1761 = vmul.f32 %v1384, %v1712
      %vm1810 = vcmask 1045504
      %v1811 = vrot.slane %v1714, 2
      %v1812 = vrot.slane %v1715, 2
      %v1813 = vsel %vm1810, %v1811, %v1812
      %v1814 = vrot.slane %v1716, 2
      %v1815 = vsel %vm1810, %v1812, %v1814
      %v1816 = vrot.slane %v1717, 2
      %v1817 = vrot.slane %v1718, 2
      %v1818 = vsel %vm1810, %v1816, %v1817
      %v1819 = vrot.slane %v1719, 2
      %v1820 = vsel %vm1810, %v1817, %v1819
      %v1821 = vrot.slane %v1720, 2
      %v1822 = vrot.slane %v1721, 2
      %v1823 = vsel %vm1810, %v1821, %v1822
      %v1824 = vrot.slane %v1722, 2
      %v1825 = vsel %vm1810, %v1822, %v1824
      %v1826 = vrot.slane %v1723, 2
      %v1827 = vrot.slane %v1724, 2
      %v1828 = vsel %vm1810, %v1826, %v1827
      %v1829 = vrot.slane %v1725, 2
      %v1830 = vsel %vm1810, %v1827, %v1829
      %v1831 = vrot.slane %v1726, 2
      %v1832 = vrot.slane %v1727, 2
      %v1833 = vsel %vm1810, %v1831, %v1832
      %v1834 = vrot.slane %v1728, 2
      %v1835 = vsel %vm1810, %v1832, %v1834
      %v1836 = vrot.slane %v1729, 2
      %v1837 = vrot.slane %v1730, 2
      %v1838 = vsel %vm1810, %v1836, %v1837
      %v1839 = vrot.slane %v1731, 2
      %v1840 = vsel %vm1810, %v1837, %v1839
      %v1841 = vrot.slane %v1732, 2
      %v1842 = vrot.slane %v1733, 2
      %v1843 = vsel %vm1810, %v1841, %v1842
      %v1844 = vrot.slane %v1734, 2
      %v1845 = vsel %vm1810, %v1842, %v1844
      %v1846 = vrot.slane %v1735, 2
      %v1847 = vrot.slane %v1736, 2
      %v1848 = vsel %vm1810, %v1846, %v1847
      %v1849 = vrot.slane %v1737, 2
      %v1850 = vsel %vm1810, %v1847, %v1849
      %v1851 = vrot.slane %v1738, 2
      %v1852 = vrot.slane %v1739, 2
      %v1853 = vsel %vm1810, %v1851, %v1852
      %v1854 = vrot.slane %v1740, 2
      %v1855 = vsel %vm1810, %v1852, %v1854
      %v1856 = vrot.slane %v1741, 2
      %v1857 = vrot.slane %v1742, 2
      %v1858 = vsel %vm1810, %v1856, %v1857
      %v1859 = vrot.slane %v1743, 2
      %v1860 = vsel %vm1810, %v1857, %v1859
      %v1861 = vrot.slane %v1744, 2
      %v1862 = vrot.slane %v1745, 2
      %v1863 = vsel %vm1810, %v1861, %v1862
      %v1864 = vrot.slane %v1746, 2
      %v1865 = vsel %vm1810, %v1862, %v1864
      %v1866 = vrot.slane %v1747, 2
      %v1867 = vrot.slane %v1748, 2
      %v1868 = vsel %vm1810, %v1866, %v1867
      %v1869 = vrot.slane %v1749, 2
      %v1870 = vsel %vm1810, %v1867, %v1869
      %v1871 = vrot.slane %v1750, 2
      %v1872 = vrot.slane %v1751, 2
      %v1873 = vsel %vm1810, %v1871, %v1872
      %v1874 = vrot.slane %v1752, 2
      %v1875 = vsel %vm1810, %v1872, %v1874
      %v1876 = vrot.slane %v1753, 2
      %v1877 = vrot.slane %v1754, 2
      %v1878 = vsel %vm1810, %v1876, %v1877
      %v1879 = vrot.slane %v1755, 2
      %v1880 = vsel %vm1810, %v1877, %v1879
      %v1881 = vrot.slane %v1756, 2
      %v1882 = vrot.slane %v1757, 2
      %v1883 = vsel %vm1810, %v1881, %v1882
      %v1884 = vrot.slane %v1758, 2
      %v1885 = vsel %vm1810, %v1882, %v1884
      %v1886 = vrot.slane %v1759, 2
      %v1887 = vrot.slane %v1760, 2
      %v1888 = vsel %vm1810, %v1886, %v1887
      %v1889 = vrot.slane %v1761, 2
      %v1890 = vsel %vm1810, %v1887, %v1889
      %v1923 = vadd.f32 %v1674, %v1813
      %v1924 = vadd.f32 %v1675, %v1815
      %v1925 = vadd.f32 %v1676, %v1818
      %v1926 = vadd.f32 %v1677, %v1820
      %v1927 = vadd.f32 %v1678, %v1823
      %v1928 = vadd.f32 %v1679, %v1825
      %v1929 = vadd.f32 %v1680, %v1828
      %v1930 = vadd.f32 %v1681, %v1830
      %v1931 = vadd.f32 %v1682, %v1833
      %v1932 = vadd.f32 %v1683, %v1835
      %v1933 = vadd.f32 %v1684, %v1838
      %v1934 = vadd.f32 %v1685, %v1840
      %v1935 = vadd.f32 %v1686, %v1843
      %v1936 = vadd.f32 %v1687, %v1845
      %v1937 = vadd.f32 %v1688, %v1848
      %v1938 = vadd.f32 %v1689, %v1850
      %v1939 = vadd.f32 %v1690, %v1853
      %v1940 = vadd.f32 %v1691, %v1855
      %v1941 = vadd.f32 %v1692, %v1858
      %v1942 = vadd.f32 %v1693, %v1860
      %v1943 = vadd.f32 %v1694, %v1863
      %v1944 = vadd.f32 %v1695, %v1865
      %v1945 = vadd.f32 %v1696, %v1868
      %v1946 = vadd.f32 %v1697, %v1870
      %v1947 = vadd.f32 %v1698, %v1873
      %v1948 = vadd.f32 %v1699, %v1875
      %v1949 = vadd.f32 %v1700, %v1878
      %v1950 = vadd.f32 %v1701, %v1880
      %v1951 = vadd.f32 %v1702, %v1883
      %v1952 = vadd.f32 %v1703, %v1885
      %v1953 = vadd.f32 %v1704, %v1888
      %v1954 = vadd.f32 %v1705, %v1890
      %s1955 = scalar_lea.vmem %s5, 3
      %v1956 = vld [vmem:[%s1955] sm:$0x1]
      %v1958 = vlaneseq
      %v1959 = vshrl.u32 %v1958, 7
      %v1960 = vsub.s32 0, %v1959
      %v1961 = vrot.slane %v1956, %v1960
      %v1963 = vmul.f32 %v1353, %v1961
      %v1964 = vmul.f32 %v1256, %v1961
      %v1965 = vmul.f32 %v1354, %v1961
      %v1966 = vmul.f32 %v1259, %v1961
      %v1967 = vmul.f32 %v1355, %v1961
      %v1968 = vmul.f32 %v1262, %v1961
      %v1969 = vmul.f32 %v1356, %v1961
      %v1970 = vmul.f32 %v1265, %v1961
      %v1971 = vmul.f32 %v1357, %v1961
      %v1972 = vmul.f32 %v1268, %v1961
      %v1973 = vmul.f32 %v1358, %v1961
      %v1974 = vmul.f32 %v1271, %v1961
      %v1975 = vmul.f32 %v1359, %v1961
      %v1976 = vmul.f32 %v1274, %v1961
      %v1977 = vmul.f32 %v1360, %v1961
      %v1978 = vmul.f32 %v1277, %v1961
      %v1979 = vmul.f32 %v1361, %v1961
      %v1980 = vmul.f32 %v1280, %v1961
      %v1981 = vmul.f32 %v1362, %v1961
      %v1982 = vmul.f32 %v1283, %v1961
      %v1983 = vmul.f32 %v1363, %v1961
      %v1984 = vmul.f32 %v1286, %v1961
      %v1985 = vmul.f32 %v1364, %v1961
      %v1986 = vmul.f32 %v1289, %v1961
      %v1987 = vmul.f32 %v1365, %v1961
      %v1988 = vmul.f32 %v1292, %v1961
      %v1989 = vmul.f32 %v1366, %v1961
      %v1990 = vmul.f32 %v1295, %v1961
      %v1991 = vmul.f32 %v1367, %v1961
      %v1992 = vmul.f32 %v1298, %v1961
      %v1993 = vmul.f32 %v1368, %v1961
      %v1994 = vmul.f32 %v1301, %v1961
      %v1995 = vadd.f32 %v1923, %v1963
      %v1996 = vadd.f32 %v1924, %v1964
      %v1997 = vadd.f32 %v1925, %v1965
      %v1998 = vadd.f32 %v1926, %v1966
      %v1999 = vadd.f32 %v1927, %v1967
      %v2000 = vadd.f32 %v1928, %v1968
      %v2001 = vadd.f32 %v1929, %v1969
      %v2002 = vadd.f32 %v1930, %v1970
      %v2003 = vadd.f32 %v1931, %v1971
      %v2004 = vadd.f32 %v1932, %v1972
      %v2005 = vadd.f32 %v1933, %v1973
      %v2006 = vadd.f32 %v1934, %v1974
      %v2007 = vadd.f32 %v1935, %v1975
      %v2008 = vadd.f32 %v1936, %v1976
      %v2009 = vadd.f32 %v1937, %v1977
      %v2010 = vadd.f32 %v1938, %v1978
      %v2011 = vadd.f32 %v1939, %v1979
      %v2012 = vadd.f32 %v1940, %v1980
      %v2013 = vadd.f32 %v1941, %v1981
      %v2014 = vadd.f32 %v1942, %v1982
      %v2015 = vadd.f32 %v1943, %v1983
      %v2016 = vadd.f32 %v1944, %v1984
      %v2017 = vadd.f32 %v1945, %v1985
      %v2018 = vadd.f32 %v1946, %v1986
      %v2019 = vadd.f32 %v1947, %v1987
      %v2020 = vadd.f32 %v1948, %v1988
      %v2021 = vadd.f32 %v1949, %v1989
      %v2022 = vadd.f32 %v1950, %v1990
      %v2023 = vadd.f32 %v1951, %v1991
      %v2024 = vadd.f32 %v1952, %v1992
      %v2025 = vadd.f32 %v1953, %v1993
      %v2026 = vadd.f32 %v1954, %v1994
      %s2027 = scalar_lea.vmem %s5, 4
      %v2028 = vld [vmem:[%s2027] sm:$0x1]
      %v2030 = vlaneseq
      %v2031 = vshrl.u32 %v2030, 7
      %v2032 = vsub.s32 0, %v2031
      %v2033 = vrot.slane %v2028, %v2032
      %v2035 = vmul.f32 %v1353, %v2033
      %v2036 = vmul.f32 %v1256, %v2033
      %v2037 = vmul.f32 %v1370, %v2033
      %v2038 = vmul.f32 %v1354, %v2033
      %v2039 = vmul.f32 %v1259, %v2033
      %v2040 = vmul.f32 %v1371, %v2033
      %v2041 = vmul.f32 %v1355, %v2033
      %v2042 = vmul.f32 %v1262, %v2033
      %v2043 = vmul.f32 %v1372, %v2033
      %v2044 = vmul.f32 %v1356, %v2033
      %v2045 = vmul.f32 %v1265, %v2033
      %v2046 = vmul.f32 %v1373, %v2033
      %v2047 = vmul.f32 %v1357, %v2033
      %v2048 = vmul.f32 %v1268, %v2033
      %v2049 = vmul.f32 %v1374, %v2033
      %v2050 = vmul.f32 %v1358, %v2033
      %v2051 = vmul.f32 %v1271, %v2033
      %v2052 = vmul.f32 %v1375, %v2033
      %v2053 = vmul.f32 %v1359, %v2033
      %v2054 = vmul.f32 %v1274, %v2033
      %v2055 = vmul.f32 %v1376, %v2033
      %v2056 = vmul.f32 %v1360, %v2033
      %v2057 = vmul.f32 %v1277, %v2033
      %v2058 = vmul.f32 %v1377, %v2033
      %v2059 = vmul.f32 %v1361, %v2033
      %v2060 = vmul.f32 %v1280, %v2033
      %v2061 = vmul.f32 %v1378, %v2033
      %v2062 = vmul.f32 %v1362, %v2033
      %v2063 = vmul.f32 %v1283, %v2033
      %v2064 = vmul.f32 %v1379, %v2033
      %v2065 = vmul.f32 %v1363, %v2033
      %v2066 = vmul.f32 %v1286, %v2033
      %v2067 = vmul.f32 %v1380, %v2033
      %v2068 = vmul.f32 %v1364, %v2033
      %v2069 = vmul.f32 %v1289, %v2033
      %v2070 = vmul.f32 %v1381, %v2033
      %v2071 = vmul.f32 %v1365, %v2033
      %v2072 = vmul.f32 %v1292, %v2033
      %v2073 = vmul.f32 %v1382, %v2033
      %v2074 = vmul.f32 %v1366, %v2033
      %v2075 = vmul.f32 %v1295, %v2033
      %v2076 = vmul.f32 %v1383, %v2033
      %v2077 = vmul.f32 %v1367, %v2033
      %v2078 = vmul.f32 %v1298, %v2033
      %v2079 = vmul.f32 %v1384, %v2033
      %v2080 = vmul.f32 %v1368, %v2033
      %v2081 = vmul.f32 %v1301, %v2033
      %v2082 = vmul.f32 %v1385, %v2033
      %v2131 = vrot.slane %v2035, 1
      %v2132 = vrot.slane %v2036, 1
      %v2133 = vsel %vm1561, %v2131, %v2132
      %v2134 = vrot.slane %v2037, 1
      %v2135 = vsel %vm1561, %v2132, %v2134
      %v2136 = vrot.slane %v2038, 1
      %v2137 = vrot.slane %v2039, 1
      %v2138 = vsel %vm1561, %v2136, %v2137
      %v2139 = vrot.slane %v2040, 1
      %v2140 = vsel %vm1561, %v2137, %v2139
      %v2141 = vrot.slane %v2041, 1
      %v2142 = vrot.slane %v2042, 1
      %v2143 = vsel %vm1561, %v2141, %v2142
      %v2144 = vrot.slane %v2043, 1
      %v2145 = vsel %vm1561, %v2142, %v2144
      %v2146 = vrot.slane %v2044, 1
      %v2147 = vrot.slane %v2045, 1
      %v2148 = vsel %vm1561, %v2146, %v2147
      %v2149 = vrot.slane %v2046, 1
      %v2150 = vsel %vm1561, %v2147, %v2149
      %v2151 = vrot.slane %v2047, 1
      %v2152 = vrot.slane %v2048, 1
      %v2153 = vsel %vm1561, %v2151, %v2152
      %v2154 = vrot.slane %v2049, 1
      %v2155 = vsel %vm1561, %v2152, %v2154
      %v2156 = vrot.slane %v2050, 1
      %v2157 = vrot.slane %v2051, 1
      %v2158 = vsel %vm1561, %v2156, %v2157
      %v2159 = vrot.slane %v2052, 1
      %v2160 = vsel %vm1561, %v2157, %v2159
      %v2161 = vrot.slane %v2053, 1
      %v2162 = vrot.slane %v2054, 1
      %v2163 = vsel %vm1561, %v2161, %v2162
      %v2164 = vrot.slane %v2055, 1
      %v2165 = vsel %vm1561, %v2162, %v2164
      %v2166 = vrot.slane %v2056, 1
      %v2167 = vrot.slane %v2057, 1
      %v2168 = vsel %vm1561, %v2166, %v2167
      %v2169 = vrot.slane %v2058, 1
      %v2170 = vsel %vm1561, %v2167, %v2169
      %v2171 = vrot.slane %v2059, 1
      %v2172 = vrot.slane %v2060, 1
      %v2173 = vsel %vm1561, %v2171, %v2172
      %v2174 = vrot.slane %v2061, 1
      %v2175 = vsel %vm1561, %v2172, %v2174
      %v2176 = vrot.slane %v2062, 1
      %v2177 = vrot.slane %v2063, 1
      %v2178 = vsel %vm1561, %v2176, %v2177
      %v2179 = vrot.slane %v2064, 1
      %v2180 = vsel %vm1561, %v2177, %v2179
      %v2181 = vrot.slane %v2065, 1
      %v2182 = vrot.slane %v2066, 1
      %v2183 = vsel %vm1561, %v2181, %v2182
      %v2184 = vrot.slane %v2067, 1
      %v2185 = vsel %vm1561, %v2182, %v2184
      %v2186 = vrot.slane %v2068, 1
      %v2187 = vrot.slane %v2069, 1
      %v2188 = vsel %vm1561, %v2186, %v2187
      %v2189 = vrot.slane %v2070, 1
      %v2190 = vsel %vm1561, %v2187, %v2189
      %v2191 = vrot.slane %v2071, 1
      %v2192 = vrot.slane %v2072, 1
      %v2193 = vsel %vm1561, %v2191, %v2192
      %v2194 = vrot.slane %v2073, 1
      %v2195 = vsel %vm1561, %v2192, %v2194
      %v2196 = vrot.slane %v2074, 1
      %v2197 = vrot.slane %v2075, 1
      %v2198 = vsel %vm1561, %v2196, %v2197
      %v2199 = vrot.slane %v2076, 1
      %v2200 = vsel %vm1561, %v2197, %v2199
      %v2201 = vrot.slane %v2077, 1
      %v2202 = vrot.slane %v2078, 1
      %v2203 = vsel %vm1561, %v2201, %v2202
      %v2204 = vrot.slane %v2079, 1
      %v2205 = vsel %vm1561, %v2202, %v2204
      %v2206 = vrot.slane %v2080, 1
      %v2207 = vrot.slane %v2081, 1
      %v2208 = vsel %vm1561, %v2206, %v2207
      %v2209 = vrot.slane %v2082, 1
      %v2210 = vsel %vm1561, %v2207, %v2209
      %v2243 = vadd.f32 %v1995, %v2133
      %v2244 = vadd.f32 %v1996, %v2135
      %v2245 = vadd.f32 %v1997, %v2138
      %v2246 = vadd.f32 %v1998, %v2140
      %v2247 = vadd.f32 %v1999, %v2143
      %v2248 = vadd.f32 %v2000, %v2145
      %v2249 = vadd.f32 %v2001, %v2148
      %v2250 = vadd.f32 %v2002, %v2150
      %v2251 = vadd.f32 %v2003, %v2153
      %v2252 = vadd.f32 %v2004, %v2155
      %v2253 = vadd.f32 %v2005, %v2158
      %v2254 = vadd.f32 %v2006, %v2160
      %v2255 = vadd.f32 %v2007, %v2163
      %v2256 = vadd.f32 %v2008, %v2165
      %v2257 = vadd.f32 %v2009, %v2168
      %v2258 = vadd.f32 %v2010, %v2170
      %v2259 = vadd.f32 %v2011, %v2173
      %v2260 = vadd.f32 %v2012, %v2175
      %v2261 = vadd.f32 %v2013, %v2178
      %v2262 = vadd.f32 %v2014, %v2180
      %v2263 = vadd.f32 %v2015, %v2183
      %v2264 = vadd.f32 %v2016, %v2185
      %v2265 = vadd.f32 %v2017, %v2188
      %v2266 = vadd.f32 %v2018, %v2190
      %v2267 = vadd.f32 %v2019, %v2193
      %v2268 = vadd.f32 %v2020, %v2195
      %v2269 = vadd.f32 %v2021, %v2198
      %v2270 = vadd.f32 %v2022, %v2200
      %v2271 = vadd.f32 %v2023, %v2203
      %v2272 = vadd.f32 %v2024, %v2205
      %v2273 = vadd.f32 %v2025, %v2208
      %v2274 = vadd.f32 %v2026, %v2210
      %s2275 = scalar_lea.vmem %s5, 5
      %v2276 = vld [vmem:[%s2275] sm:$0x1]
      %v2278 = vlaneseq
      %v2279 = vshrl.u32 %v2278, 7
      %v2280 = vsub.s32 0, %v2279
      %v2281 = vrot.slane %v2276, %v2280
      %v2283 = vmul.f32 %v1353, %v2281
      %v2284 = vmul.f32 %v1256, %v2281
      %v2285 = vmul.f32 %v1370, %v2281
      %v2286 = vmul.f32 %v1354, %v2281
      %v2287 = vmul.f32 %v1259, %v2281
      %v2288 = vmul.f32 %v1371, %v2281
      %v2289 = vmul.f32 %v1355, %v2281
      %v2290 = vmul.f32 %v1262, %v2281
      %v2291 = vmul.f32 %v1372, %v2281
      %v2292 = vmul.f32 %v1356, %v2281
      %v2293 = vmul.f32 %v1265, %v2281
      %v2294 = vmul.f32 %v1373, %v2281
      %v2295 = vmul.f32 %v1357, %v2281
      %v2296 = vmul.f32 %v1268, %v2281
      %v2297 = vmul.f32 %v1374, %v2281
      %v2298 = vmul.f32 %v1358, %v2281
      %v2299 = vmul.f32 %v1271, %v2281
      %v2300 = vmul.f32 %v1375, %v2281
      %v2301 = vmul.f32 %v1359, %v2281
      %v2302 = vmul.f32 %v1274, %v2281
      %v2303 = vmul.f32 %v1376, %v2281
      %v2304 = vmul.f32 %v1360, %v2281
      %v2305 = vmul.f32 %v1277, %v2281
      %v2306 = vmul.f32 %v1377, %v2281
      %v2307 = vmul.f32 %v1361, %v2281
      %v2308 = vmul.f32 %v1280, %v2281
      %v2309 = vmul.f32 %v1378, %v2281
      %v2310 = vmul.f32 %v1362, %v2281
      %v2311 = vmul.f32 %v1283, %v2281
      %v2312 = vmul.f32 %v1379, %v2281
      %v2313 = vmul.f32 %v1363, %v2281
      %v2314 = vmul.f32 %v1286, %v2281
      %v2315 = vmul.f32 %v1380, %v2281
      %v2316 = vmul.f32 %v1364, %v2281
      %v2317 = vmul.f32 %v1289, %v2281
      %v2318 = vmul.f32 %v1381, %v2281
      %v2319 = vmul.f32 %v1365, %v2281
      %v2320 = vmul.f32 %v1292, %v2281
      %v2321 = vmul.f32 %v1382, %v2281
      %v2322 = vmul.f32 %v1366, %v2281
      %v2323 = vmul.f32 %v1295, %v2281
      %v2324 = vmul.f32 %v1383, %v2281
      %v2325 = vmul.f32 %v1367, %v2281
      %v2326 = vmul.f32 %v1298, %v2281
      %v2327 = vmul.f32 %v1384, %v2281
      %v2328 = vmul.f32 %v1368, %v2281
      %v2329 = vmul.f32 %v1301, %v2281
      %v2330 = vmul.f32 %v1385, %v2281
      %v2379 = vrot.slane %v2283, 2
      %v2380 = vrot.slane %v2284, 2
      %v2381 = vsel %vm1810, %v2379, %v2380
      %v2382 = vrot.slane %v2285, 2
      %v2383 = vsel %vm1810, %v2380, %v2382
      %v2384 = vrot.slane %v2286, 2
      %v2385 = vrot.slane %v2287, 2
      %v2386 = vsel %vm1810, %v2384, %v2385
      %v2387 = vrot.slane %v2288, 2
      %v2388 = vsel %vm1810, %v2385, %v2387
      %v2389 = vrot.slane %v2289, 2
      %v2390 = vrot.slane %v2290, 2
      %v2391 = vsel %vm1810, %v2389, %v2390
      %v2392 = vrot.slane %v2291, 2
      %v2393 = vsel %vm1810, %v2390, %v2392
      %v2394 = vrot.slane %v2292, 2
      %v2395 = vrot.slane %v2293, 2
      %v2396 = vsel %vm1810, %v2394, %v2395
      %v2397 = vrot.slane %v2294, 2
      %v2398 = vsel %vm1810, %v2395, %v2397
      %v2399 = vrot.slane %v2295, 2
      %v2400 = vrot.slane %v2296, 2
      %v2401 = vsel %vm1810, %v2399, %v2400
      %v2402 = vrot.slane %v2297, 2
      %v2403 = vsel %vm1810, %v2400, %v2402
      %v2404 = vrot.slane %v2298, 2
      %v2405 = vrot.slane %v2299, 2
      %v2406 = vsel %vm1810, %v2404, %v2405
      %v2407 = vrot.slane %v2300, 2
      %v2408 = vsel %vm1810, %v2405, %v2407
      %v2409 = vrot.slane %v2301, 2
      %v2410 = vrot.slane %v2302, 2
      %v2411 = vsel %vm1810, %v2409, %v2410
      %v2412 = vrot.slane %v2303, 2
      %v2413 = vsel %vm1810, %v2410, %v2412
      %v2414 = vrot.slane %v2304, 2
      %v2415 = vrot.slane %v2305, 2
      %v2416 = vsel %vm1810, %v2414, %v2415
      %v2417 = vrot.slane %v2306, 2
      %v2418 = vsel %vm1810, %v2415, %v2417
      %v2419 = vrot.slane %v2307, 2
      %v2420 = vrot.slane %v2308, 2
      %v2421 = vsel %vm1810, %v2419, %v2420
      %v2422 = vrot.slane %v2309, 2
      %v2423 = vsel %vm1810, %v2420, %v2422
      %v2424 = vrot.slane %v2310, 2
      %v2425 = vrot.slane %v2311, 2
      %v2426 = vsel %vm1810, %v2424, %v2425
      %v2427 = vrot.slane %v2312, 2
      %v2428 = vsel %vm1810, %v2425, %v2427
      %v2429 = vrot.slane %v2313, 2
      %v2430 = vrot.slane %v2314, 2
      %v2431 = vsel %vm1810, %v2429, %v2430
      %v2432 = vrot.slane %v2315, 2
      %v2433 = vsel %vm1810, %v2430, %v2432
      %v2434 = vrot.slane %v2316, 2
      %v2435 = vrot.slane %v2317, 2
      %v2436 = vsel %vm1810, %v2434, %v2435
      %v2437 = vrot.slane %v2318, 2
      %v2438 = vsel %vm1810, %v2435, %v2437
      %v2439 = vrot.slane %v2319, 2
      %v2440 = vrot.slane %v2320, 2
      %v2441 = vsel %vm1810, %v2439, %v2440
      %v2442 = vrot.slane %v2321, 2
      %v2443 = vsel %vm1810, %v2440, %v2442
      %v2444 = vrot.slane %v2322, 2
      %v2445 = vrot.slane %v2323, 2
      %v2446 = vsel %vm1810, %v2444, %v2445
      %v2447 = vrot.slane %v2324, 2
      %v2448 = vsel %vm1810, %v2445, %v2447
      %v2449 = vrot.slane %v2325, 2
      %v2450 = vrot.slane %v2326, 2
      %v2451 = vsel %vm1810, %v2449, %v2450
      %v2452 = vrot.slane %v2327, 2
      %v2453 = vsel %vm1810, %v2450, %v2452
      %v2454 = vrot.slane %v2328, 2
      %v2455 = vrot.slane %v2329, 2
      %v2456 = vsel %vm1810, %v2454, %v2455
      %v2457 = vrot.slane %v2330, 2
      %v2458 = vsel %vm1810, %v2455, %v2457
      %v2491 = vadd.f32 %v2243, %v2381
      %v2492 = vadd.f32 %v2244, %v2383
      %v2493 = vadd.f32 %v2245, %v2386
      %v2494 = vadd.f32 %v2246, %v2388
      %v2495 = vadd.f32 %v2247, %v2391
      %v2496 = vadd.f32 %v2248, %v2393
      %v2497 = vadd.f32 %v2249, %v2396
      %v2498 = vadd.f32 %v2250, %v2398
      %v2499 = vadd.f32 %v2251, %v2401
      %v2500 = vadd.f32 %v2252, %v2403
      %v2501 = vadd.f32 %v2253, %v2406
      %v2502 = vadd.f32 %v2254, %v2408
      %v2503 = vadd.f32 %v2255, %v2411
      %v2504 = vadd.f32 %v2256, %v2413
      %v2505 = vadd.f32 %v2257, %v2416
      %v2506 = vadd.f32 %v2258, %v2418
      %v2507 = vadd.f32 %v2259, %v2421
      %v2508 = vadd.f32 %v2260, %v2423
      %v2509 = vadd.f32 %v2261, %v2426
      %v2510 = vadd.f32 %v2262, %v2428
      %v2511 = vadd.f32 %v2263, %v2431
      %v2512 = vadd.f32 %v2264, %v2433
      %v2513 = vadd.f32 %v2265, %v2436
      %v2514 = vadd.f32 %v2266, %v2438
      %v2515 = vadd.f32 %v2267, %v2441
      %v2516 = vadd.f32 %v2268, %v2443
      %v2517 = vadd.f32 %v2269, %v2446
      %v2518 = vadd.f32 %v2270, %v2448
      %v2519 = vadd.f32 %v2271, %v2451
      %v2520 = vadd.f32 %v2272, %v2453
      %v2521 = vadd.f32 %v2273, %v2456
      %v2522 = vadd.f32 %v2274, %v2458
      %s2523 = scalar_lea.vmem %s5, 6
      %v2524 = vld [vmem:[%s2523] sm:$0x1]
      %v2526 = vlaneseq
      %v2527 = vshrl.u32 %v2526, 7
      %v2528 = vsub.s32 0, %v2527
      %v2529 = vrot.slane %v2524, %v2528
      %v2531 = vmul.f32 %v1354, %v2529
      %v2532 = vmul.f32 %v1259, %v2529
      %v2533 = vmul.f32 %v1355, %v2529
      %v2534 = vmul.f32 %v1262, %v2529
      %v2535 = vmul.f32 %v1356, %v2529
      %v2536 = vmul.f32 %v1265, %v2529
      %v2537 = vmul.f32 %v1357, %v2529
      %v2538 = vmul.f32 %v1268, %v2529
      %v2539 = vmul.f32 %v1358, %v2529
      %v2540 = vmul.f32 %v1271, %v2529
      %v2541 = vmul.f32 %v1359, %v2529
      %v2542 = vmul.f32 %v1274, %v2529
      %v2543 = vmul.f32 %v1360, %v2529
      %v2544 = vmul.f32 %v1277, %v2529
      %v2545 = vmul.f32 %v1361, %v2529
      %v2546 = vmul.f32 %v1280, %v2529
      %v2547 = vmul.f32 %v1362, %v2529
      %v2548 = vmul.f32 %v1283, %v2529
      %v2549 = vmul.f32 %v1363, %v2529
      %v2550 = vmul.f32 %v1286, %v2529
      %v2551 = vmul.f32 %v1364, %v2529
      %v2552 = vmul.f32 %v1289, %v2529
      %v2553 = vmul.f32 %v1365, %v2529
      %v2554 = vmul.f32 %v1292, %v2529
      %v2555 = vmul.f32 %v1366, %v2529
      %v2556 = vmul.f32 %v1295, %v2529
      %v2557 = vmul.f32 %v1367, %v2529
      %v2558 = vmul.f32 %v1298, %v2529
      %v2559 = vmul.f32 %v1368, %v2529
      %v2560 = vmul.f32 %v1301, %v2529
      %v2561 = vmul.f32 %v1352, %v2529
      %v2562 = vmul.f32 %v1253, %v2529
      %v2563 = vadd.f32 %v2491, %v2531
      %v2564 = vadd.f32 %v2492, %v2532
      %v2565 = vadd.f32 %v2493, %v2533
      %v2566 = vadd.f32 %v2494, %v2534
      %v2567 = vadd.f32 %v2495, %v2535
      %v2568 = vadd.f32 %v2496, %v2536
      %v2569 = vadd.f32 %v2497, %v2537
      %v2570 = vadd.f32 %v2498, %v2538
      %v2571 = vadd.f32 %v2499, %v2539
      %v2572 = vadd.f32 %v2500, %v2540
      %v2573 = vadd.f32 %v2501, %v2541
      %v2574 = vadd.f32 %v2502, %v2542
      %v2575 = vadd.f32 %v2503, %v2543
      %v2576 = vadd.f32 %v2504, %v2544
      %v2577 = vadd.f32 %v2505, %v2545
      %v2578 = vadd.f32 %v2506, %v2546
      %v2579 = vadd.f32 %v2507, %v2547
      %v2580 = vadd.f32 %v2508, %v2548
      %v2581 = vadd.f32 %v2509, %v2549
      %v2582 = vadd.f32 %v2510, %v2550
      %v2583 = vadd.f32 %v2511, %v2551
      %v2584 = vadd.f32 %v2512, %v2552
      %v2585 = vadd.f32 %v2513, %v2553
      %v2586 = vadd.f32 %v2514, %v2554
      %v2587 = vadd.f32 %v2515, %v2555
      %v2588 = vadd.f32 %v2516, %v2556
      %v2589 = vadd.f32 %v2517, %v2557
      %v2590 = vadd.f32 %v2518, %v2558
      %v2591 = vadd.f32 %v2519, %v2559
      %v2592 = vadd.f32 %v2520, %v2560
      %v2593 = vadd.f32 %v2521, %v2561
      %v2594 = vadd.f32 %v2522, %v2562
      %s2595 = scalar_lea.vmem %s5, 7
      %v2596 = vld [vmem:[%s2595] sm:$0x1]
      %v2598 = vlaneseq
      %v2599 = vshrl.u32 %v2598, 7
      %v2600 = vsub.s32 0, %v2599
      %v2601 = vrot.slane %v2596, %v2600
      %v2603 = vmul.f32 %v1354, %v2601
      %v2604 = vmul.f32 %v1259, %v2601
      %v2605 = vmul.f32 %v1371, %v2601
      %v2606 = vmul.f32 %v1355, %v2601
      %v2607 = vmul.f32 %v1262, %v2601
      %v2608 = vmul.f32 %v1372, %v2601
      %v2609 = vmul.f32 %v1356, %v2601
      %v2610 = vmul.f32 %v1265, %v2601
      %v2611 = vmul.f32 %v1373, %v2601
      %v2612 = vmul.f32 %v1357, %v2601
      %v2613 = vmul.f32 %v1268, %v2601
      %v2614 = vmul.f32 %v1374, %v2601
      %v2615 = vmul.f32 %v1358, %v2601
      %v2616 = vmul.f32 %v1271, %v2601
      %v2617 = vmul.f32 %v1375, %v2601
      %v2618 = vmul.f32 %v1359, %v2601
      %v2619 = vmul.f32 %v1274, %v2601
      %v2620 = vmul.f32 %v1376, %v2601
      %v2621 = vmul.f32 %v1360, %v2601
      %v2622 = vmul.f32 %v1277, %v2601
      %v2623 = vmul.f32 %v1377, %v2601
      %v2624 = vmul.f32 %v1361, %v2601
      %v2625 = vmul.f32 %v1280, %v2601
      %v2626 = vmul.f32 %v1378, %v2601
      %v2627 = vmul.f32 %v1362, %v2601
      %v2628 = vmul.f32 %v1283, %v2601
      %v2629 = vmul.f32 %v1379, %v2601
      %v2630 = vmul.f32 %v1363, %v2601
      %v2631 = vmul.f32 %v1286, %v2601
      %v2632 = vmul.f32 %v1380, %v2601
      %v2633 = vmul.f32 %v1364, %v2601
      %v2634 = vmul.f32 %v1289, %v2601
      %v2635 = vmul.f32 %v1381, %v2601
      %v2636 = vmul.f32 %v1365, %v2601
      %v2637 = vmul.f32 %v1292, %v2601
      %v2638 = vmul.f32 %v1382, %v2601
      %v2639 = vmul.f32 %v1366, %v2601
      %v2640 = vmul.f32 %v1295, %v2601
      %v2641 = vmul.f32 %v1383, %v2601
      %v2642 = vmul.f32 %v1367, %v2601
      %v2643 = vmul.f32 %v1298, %v2601
      %v2644 = vmul.f32 %v1384, %v2601
      %v2645 = vmul.f32 %v1368, %v2601
      %v2646 = vmul.f32 %v1301, %v2601
      %v2647 = vmul.f32 %v1385, %v2601
      %v2648 = vmul.f32 %v1352, %v2601
      %v2649 = vmul.f32 %v1253, %v2601
      %v2650 = vmul.f32 %v1369, %v2601
      %v2699 = vrot.slane %v2603, 1
      %v2700 = vrot.slane %v2604, 1
      %v2701 = vsel %vm1561, %v2699, %v2700
      %v2702 = vrot.slane %v2605, 1
      %v2703 = vsel %vm1561, %v2700, %v2702
      %v2704 = vrot.slane %v2606, 1
      %v2705 = vrot.slane %v2607, 1
      %v2706 = vsel %vm1561, %v2704, %v2705
      %v2707 = vrot.slane %v2608, 1
      %v2708 = vsel %vm1561, %v2705, %v2707
      %v2709 = vrot.slane %v2609, 1
      %v2710 = vrot.slane %v2610, 1
      %v2711 = vsel %vm1561, %v2709, %v2710
      %v2712 = vrot.slane %v2611, 1
      %v2713 = vsel %vm1561, %v2710, %v2712
      %v2714 = vrot.slane %v2612, 1
      %v2715 = vrot.slane %v2613, 1
      %v2716 = vsel %vm1561, %v2714, %v2715
      %v2717 = vrot.slane %v2614, 1
      %v2718 = vsel %vm1561, %v2715, %v2717
      %v2719 = vrot.slane %v2615, 1
      %v2720 = vrot.slane %v2616, 1
      %v2721 = vsel %vm1561, %v2719, %v2720
      %v2722 = vrot.slane %v2617, 1
      %v2723 = vsel %vm1561, %v2720, %v2722
      %v2724 = vrot.slane %v2618, 1
      %v2725 = vrot.slane %v2619, 1
      %v2726 = vsel %vm1561, %v2724, %v2725
      %v2727 = vrot.slane %v2620, 1
      %v2728 = vsel %vm1561, %v2725, %v2727
      %v2729 = vrot.slane %v2621, 1
      %v2730 = vrot.slane %v2622, 1
      %v2731 = vsel %vm1561, %v2729, %v2730
      %v2732 = vrot.slane %v2623, 1
      %v2733 = vsel %vm1561, %v2730, %v2732
      %v2734 = vrot.slane %v2624, 1
      %v2735 = vrot.slane %v2625, 1
      %v2736 = vsel %vm1561, %v2734, %v2735
      %v2737 = vrot.slane %v2626, 1
      %v2738 = vsel %vm1561, %v2735, %v2737
      %v2739 = vrot.slane %v2627, 1
      %v2740 = vrot.slane %v2628, 1
      %v2741 = vsel %vm1561, %v2739, %v2740
      %v2742 = vrot.slane %v2629, 1
      %v2743 = vsel %vm1561, %v2740, %v2742
      %v2744 = vrot.slane %v2630, 1
      %v2745 = vrot.slane %v2631, 1
      %v2746 = vsel %vm1561, %v2744, %v2745
      %v2747 = vrot.slane %v2632, 1
      %v2748 = vsel %vm1561, %v2745, %v2747
      %v2749 = vrot.slane %v2633, 1
      %v2750 = vrot.slane %v2634, 1
      %v2751 = vsel %vm1561, %v2749, %v2750
      %v2752 = vrot.slane %v2635, 1
      %v2753 = vsel %vm1561, %v2750, %v2752
      %v2754 = vrot.slane %v2636, 1
      %v2755 = vrot.slane %v2637, 1
      %v2756 = vsel %vm1561, %v2754, %v2755
      %v2757 = vrot.slane %v2638, 1
      %v2758 = vsel %vm1561, %v2755, %v2757
      %v2759 = vrot.slane %v2639, 1
      %v2760 = vrot.slane %v2640, 1
      %v2761 = vsel %vm1561, %v2759, %v2760
      %v2762 = vrot.slane %v2641, 1
      %v2763 = vsel %vm1561, %v2760, %v2762
      %v2764 = vrot.slane %v2642, 1
      %v2765 = vrot.slane %v2643, 1
      %v2766 = vsel %vm1561, %v2764, %v2765
      %v2767 = vrot.slane %v2644, 1
      %v2768 = vsel %vm1561, %v2765, %v2767
      %v2769 = vrot.slane %v2645, 1
      %v2770 = vrot.slane %v2646, 1
      %v2771 = vsel %vm1561, %v2769, %v2770
      %v2772 = vrot.slane %v2647, 1
      %v2773 = vsel %vm1561, %v2770, %v2772
      %v2774 = vrot.slane %v2648, 1
      %v2775 = vrot.slane %v2649, 1
      %v2776 = vsel %vm1561, %v2774, %v2775
      %v2777 = vrot.slane %v2650, 1
      %v2778 = vsel %vm1561, %v2775, %v2777
      %v2811 = vadd.f32 %v2563, %v2701
      %v2812 = vadd.f32 %v2564, %v2703
      %v2813 = vadd.f32 %v2565, %v2706
      %v2814 = vadd.f32 %v2566, %v2708
      %v2815 = vadd.f32 %v2567, %v2711
      %v2816 = vadd.f32 %v2568, %v2713
      %v2817 = vadd.f32 %v2569, %v2716
      %v2818 = vadd.f32 %v2570, %v2718
      %v2819 = vadd.f32 %v2571, %v2721
      %v2820 = vadd.f32 %v2572, %v2723
      %v2821 = vadd.f32 %v2573, %v2726
      %v2822 = vadd.f32 %v2574, %v2728
      %v2823 = vadd.f32 %v2575, %v2731
      %v2824 = vadd.f32 %v2576, %v2733
      %v2825 = vadd.f32 %v2577, %v2736
      %v2826 = vadd.f32 %v2578, %v2738
      %v2827 = vadd.f32 %v2579, %v2741
      %v2828 = vadd.f32 %v2580, %v2743
      %v2829 = vadd.f32 %v2581, %v2746
      %v2830 = vadd.f32 %v2582, %v2748
      %v2831 = vadd.f32 %v2583, %v2751
      %v2832 = vadd.f32 %v2584, %v2753
      %v2833 = vadd.f32 %v2585, %v2756
      %v2834 = vadd.f32 %v2586, %v2758
      %v2835 = vadd.f32 %v2587, %v2761
      %v2836 = vadd.f32 %v2588, %v2763
      %v2837 = vadd.f32 %v2589, %v2766
      %v2838 = vadd.f32 %v2590, %v2768
      %v2839 = vadd.f32 %v2591, %v2771
      %v2840 = vadd.f32 %v2592, %v2773
      %v2841 = vadd.f32 %v2593, %v2776
      %v2842 = vadd.f32 %v2594, %v2778
      %s2843 = scalar_lea.vmem %s5, 8
      %v2844 = vld [vmem:[%s2843] sm:$0x1]
      %v2846 = vlaneseq
      %v2847 = vshrl.u32 %v2846, 7
      %v2848 = vsub.s32 0, %v2847
      %v2849 = vrot.slane %v2844, %v2848
      %v2851 = vmul.f32 %v1354, %v2849
      %v2852 = vmul.f32 %v1259, %v2849
      %v2853 = vmul.f32 %v1371, %v2849
      %v2854 = vmul.f32 %v1355, %v2849
      %v2855 = vmul.f32 %v1262, %v2849
      %v2856 = vmul.f32 %v1372, %v2849
      %v2857 = vmul.f32 %v1356, %v2849
      %v2858 = vmul.f32 %v1265, %v2849
      %v2859 = vmul.f32 %v1373, %v2849
      %v2860 = vmul.f32 %v1357, %v2849
      %v2861 = vmul.f32 %v1268, %v2849
      %v2862 = vmul.f32 %v1374, %v2849
      %v2863 = vmul.f32 %v1358, %v2849
      %v2864 = vmul.f32 %v1271, %v2849
      %v2865 = vmul.f32 %v1375, %v2849
      %v2866 = vmul.f32 %v1359, %v2849
      %v2867 = vmul.f32 %v1274, %v2849
      %v2868 = vmul.f32 %v1376, %v2849
      %v2869 = vmul.f32 %v1360, %v2849
      %v2870 = vmul.f32 %v1277, %v2849
      %v2871 = vmul.f32 %v1377, %v2849
      %v2872 = vmul.f32 %v1361, %v2849
      %v2873 = vmul.f32 %v1280, %v2849
      %v2874 = vmul.f32 %v1378, %v2849
      %v2875 = vmul.f32 %v1362, %v2849
      %v2876 = vmul.f32 %v1283, %v2849
      %v2877 = vmul.f32 %v1379, %v2849
      %v2878 = vmul.f32 %v1363, %v2849
      %v2879 = vmul.f32 %v1286, %v2849
      %v2880 = vmul.f32 %v1380, %v2849
      %v2881 = vmul.f32 %v1364, %v2849
      %v2882 = vmul.f32 %v1289, %v2849
      %v2883 = vmul.f32 %v1381, %v2849
      %v2884 = vmul.f32 %v1365, %v2849
      %v2885 = vmul.f32 %v1292, %v2849
      %v2886 = vmul.f32 %v1382, %v2849
      %v2887 = vmul.f32 %v1366, %v2849
      %v2888 = vmul.f32 %v1295, %v2849
      %v2889 = vmul.f32 %v1383, %v2849
      %v2890 = vmul.f32 %v1367, %v2849
      %v2891 = vmul.f32 %v1298, %v2849
      %v2892 = vmul.f32 %v1384, %v2849
      %v2893 = vmul.f32 %v1368, %v2849
      %v2894 = vmul.f32 %v1301, %v2849
      %v2895 = vmul.f32 %v1385, %v2849
      %v2896 = vmul.f32 %v1352, %v2849
      %v2897 = vmul.f32 %v1253, %v2849
      %v2898 = vmul.f32 %v1369, %v2849
      %v2947 = vrot.slane %v2851, 2
      %v2948 = vrot.slane %v2852, 2
      %v2949 = vsel %vm1810, %v2947, %v2948
      %v2950 = vrot.slane %v2853, 2
      %v2951 = vsel %vm1810, %v2948, %v2950
      %v2952 = vrot.slane %v2854, 2
      %v2953 = vrot.slane %v2855, 2
      %v2954 = vsel %vm1810, %v2952, %v2953
      %v2955 = vrot.slane %v2856, 2
      %v2956 = vsel %vm1810, %v2953, %v2955
      %v2957 = vrot.slane %v2857, 2
      %v2958 = vrot.slane %v2858, 2
      %v2959 = vsel %vm1810, %v2957, %v2958
      %v2960 = vrot.slane %v2859, 2
      %v2961 = vsel %vm1810, %v2958, %v2960
      %v2962 = vrot.slane %v2860, 2
      %v2963 = vrot.slane %v2861, 2
      %v2964 = vsel %vm1810, %v2962, %v2963
      %v2965 = vrot.slane %v2862, 2
      %v2966 = vsel %vm1810, %v2963, %v2965
      %v2967 = vrot.slane %v2863, 2
      %v2968 = vrot.slane %v2864, 2
      %v2969 = vsel %vm1810, %v2967, %v2968
      %v2970 = vrot.slane %v2865, 2
      %v2971 = vsel %vm1810, %v2968, %v2970
      %v2972 = vrot.slane %v2866, 2
      %v2973 = vrot.slane %v2867, 2
      %v2974 = vsel %vm1810, %v2972, %v2973
      %v2975 = vrot.slane %v2868, 2
      %v2976 = vsel %vm1810, %v2973, %v2975
      %v2977 = vrot.slane %v2869, 2
      %v2978 = vrot.slane %v2870, 2
      %v2979 = vsel %vm1810, %v2977, %v2978
      %v2980 = vrot.slane %v2871, 2
      %v2981 = vsel %vm1810, %v2978, %v2980
      %v2982 = vrot.slane %v2872, 2
      %v2983 = vrot.slane %v2873, 2
      %v2984 = vsel %vm1810, %v2982, %v2983
      %v2985 = vrot.slane %v2874, 2
      %v2986 = vsel %vm1810, %v2983, %v2985
      %v2987 = vrot.slane %v2875, 2
      %v2988 = vrot.slane %v2876, 2
      %v2989 = vsel %vm1810, %v2987, %v2988
      %v2990 = vrot.slane %v2877, 2
      %v2991 = vsel %vm1810, %v2988, %v2990
      %v2992 = vrot.slane %v2878, 2
      %v2993 = vrot.slane %v2879, 2
      %v2994 = vsel %vm1810, %v2992, %v2993
      %v2995 = vrot.slane %v2880, 2
      %v2996 = vsel %vm1810, %v2993, %v2995
      %v2997 = vrot.slane %v2881, 2
      %v2998 = vrot.slane %v2882, 2
      %v2999 = vsel %vm1810, %v2997, %v2998
      %v3000 = vrot.slane %v2883, 2
      %v3001 = vsel %vm1810, %v2998, %v3000
      %v3002 = vrot.slane %v2884, 2
      %v3003 = vrot.slane %v2885, 2
      %v3004 = vsel %vm1810, %v3002, %v3003
      %v3005 = vrot.slane %v2886, 2
      %v3006 = vsel %vm1810, %v3003, %v3005
      %v3007 = vrot.slane %v2887, 2
      %v3008 = vrot.slane %v2888, 2
      %v3009 = vsel %vm1810, %v3007, %v3008
      %v3010 = vrot.slane %v2889, 2
      %v3011 = vsel %vm1810, %v3008, %v3010
      %v3012 = vrot.slane %v2890, 2
      %v3013 = vrot.slane %v2891, 2
      %v3014 = vsel %vm1810, %v3012, %v3013
      %v3015 = vrot.slane %v2892, 2
      %v3016 = vsel %vm1810, %v3013, %v3015
      %v3017 = vrot.slane %v2893, 2
      %v3018 = vrot.slane %v2894, 2
      %v3019 = vsel %vm1810, %v3017, %v3018
      %v3020 = vrot.slane %v2895, 2
      %v3021 = vsel %vm1810, %v3018, %v3020
      %v3022 = vrot.slane %v2896, 2
      %v3023 = vrot.slane %v2897, 2
      %v3024 = vsel %vm1810, %v3022, %v3023
      %v3025 = vrot.slane %v2898, 2
      %v3026 = vsel %vm1810, %v3023, %v3025
      %v3059 = vadd.f32 %v2811, %v2949
      %v3060 = vadd.f32 %v2812, %v2951
      %v3061 = vadd.f32 %v2813, %v2954
      %v3062 = vadd.f32 %v2814, %v2956
      %v3063 = vadd.f32 %v2815, %v2959
      %v3064 = vadd.f32 %v2816, %v2961
      %v3065 = vadd.f32 %v2817, %v2964
      %v3066 = vadd.f32 %v2818, %v2966
      %v3067 = vadd.f32 %v2819, %v2969
      %v3068 = vadd.f32 %v2820, %v2971
      %v3069 = vadd.f32 %v2821, %v2974
      %v3070 = vadd.f32 %v2822, %v2976
      %v3071 = vadd.f32 %v2823, %v2979
      %v3072 = vadd.f32 %v2824, %v2981
      %v3073 = vadd.f32 %v2825, %v2984
      %v3074 = vadd.f32 %v2826, %v2986
      %v3075 = vadd.f32 %v2827, %v2989
      %v3076 = vadd.f32 %v2828, %v2991
      %v3077 = vadd.f32 %v2829, %v2994
      %v3078 = vadd.f32 %v2830, %v2996
      %v3079 = vadd.f32 %v2831, %v2999
      %v3080 = vadd.f32 %v2832, %v3001
      %v3081 = vadd.f32 %v2833, %v3004
      %v3082 = vadd.f32 %v2834, %v3006
      %v3083 = vadd.f32 %v2835, %v3009
      %v3084 = vadd.f32 %v2836, %v3011
      %v3085 = vadd.f32 %v2837, %v3014
      %v3086 = vadd.f32 %v2838, %v3016
      %v3087 = vadd.f32 %v2839, %v3019
      %v3088 = vadd.f32 %v2840, %v3021
      %v3089 = vadd.f32 %v2841, %v3024
      %v3090 = vadd.f32 %v2842, %v3026
      %v3091 = vld [vmem:[%s6] sm:$0x1]
      %v3093 = vlaneseq
      %v3094 = vshrl.u32 %v3093, 7
      %v3095 = vsub.s32 0, %v3094
      %v3096 = vrot.slane %v3091, %v3095
      %v3098 = vadd.f32 %v3059, %v3096
      %v3099 = vadd.f32 %v3060, %v3096
      %v3100 = vadd.f32 %v3061, %v3096
      %v3101 = vadd.f32 %v3062, %v3096
      %v3102 = vadd.f32 %v3063, %v3096
      %v3103 = vadd.f32 %v3064, %v3096
      %v3104 = vadd.f32 %v3065, %v3096
      %v3105 = vadd.f32 %v3066, %v3096
      %v3106 = vadd.f32 %v3067, %v3096
      %v3107 = vadd.f32 %v3068, %v3096
      %v3108 = vadd.f32 %v3069, %v3096
      %v3109 = vadd.f32 %v3070, %v3096
      %v3110 = vadd.f32 %v3071, %v3096
      %v3111 = vadd.f32 %v3072, %v3096
      %v3112 = vadd.f32 %v3073, %v3096
      %v3113 = vadd.f32 %v3074, %v3096
      %v3114 = vadd.f32 %v3075, %v3096
      %v3115 = vadd.f32 %v3076, %v3096
      %v3116 = vadd.f32 %v3077, %v3096
      %v3117 = vadd.f32 %v3078, %v3096
      %v3118 = vadd.f32 %v3079, %v3096
      %v3119 = vadd.f32 %v3080, %v3096
      %v3120 = vadd.f32 %v3081, %v3096
      %v3121 = vadd.f32 %v3082, %v3096
      %v3122 = vadd.f32 %v3083, %v3096
      %v3123 = vadd.f32 %v3084, %v3096
      %v3124 = vadd.f32 %v3085, %v3096
      %v3125 = vadd.f32 %v3086, %v3096
      %v3126 = vadd.f32 %v3087, %v3096
      %v3127 = vadd.f32 %v3088, %v3096
      %v3128 = vadd.f32 %v3089, %v3096
      %v3129 = vadd.f32 %v3090, %v3096
      %v3130 = vmax.f32 %v3098, 0.0
      %v3131 = vmax.f32 %v3099, 0.0
      %v3132 = vmax.f32 %v3100, 0.0
      %v3133 = vmax.f32 %v3101, 0.0
      %v3134 = vmax.f32 %v3102, 0.0
      %v3135 = vmax.f32 %v3103, 0.0
      %v3136 = vmax.f32 %v3104, 0.0
      %v3137 = vmax.f32 %v3105, 0.0
      %v3138 = vmax.f32 %v3106, 0.0
      %v3139 = vmax.f32 %v3107, 0.0
      %v3140 = vmax.f32 %v3108, 0.0
      %v3141 = vmax.f32 %v3109, 0.0
      %v3142 = vmax.f32 %v3110, 0.0
      %v3143 = vmax.f32 %v3111, 0.0
      %v3144 = vmax.f32 %v3112, 0.0
      %v3145 = vmax.f32 %v3113, 0.0
      %v3146 = vmax.f32 %v3114, 0.0
      %v3147 = vmax.f32 %v3115, 0.0
      %v3148 = vmax.f32 %v3116, 0.0
      %v3149 = vmax.f32 %v3117, 0.0
      %v3150 = vmax.f32 %v3118, 0.0
      %v3151 = vmax.f32 %v3119, 0.0
      %v3152 = vmax.f32 %v3120, 0.0
      %v3153 = vmax.f32 %v3121, 0.0
      %v3154 = vmax.f32 %v3122, 0.0
      %v3155 = vmax.f32 %v3123, 0.0
      %v3156 = vmax.f32 %v3124, 0.0
      %v3157 = vmax.f32 %v3125, 0.0
      %v3158 = vmax.f32 %v3126, 0.0
      %v3159 = vmax.f32 %v3127, 0.0
      %v3160 = vmax.f32 %v3128, 0.0
      %v3161 = vmax.f32 %v3129, 0.0
      %vm3162 = vcmask 523264
      %v3163 = vsel %vm3162, %v3130, 0.0
      %v3164 = vsel %vm3162, %v3131, 0.0
      %v3165 = vadd.f32 %v3163, %v3164
      %v3166 = vsel %vm3162, %v3132, 0.0
      %v3167 = vadd.f32 %v3165, %v3166
      %v3168 = vsel %vm3162, %v3133, 0.0
      %v3169 = vadd.f32 %v3167, %v3168
      %v3170 = vsel %vm3162, %v3134, 0.0
      %v3171 = vadd.f32 %v3169, %v3170
      %v3172 = vsel %vm3162, %v3135, 0.0
      %v3173 = vadd.f32 %v3171, %v3172
      %v3174 = vsel %vm3162, %v3136, 0.0
      %v3175 = vadd.f32 %v3173, %v3174
      %v3176 = vsel %vm3162, %v3137, 0.0
      %v3177 = vadd.f32 %v3175, %v3176
      %v3178 = vsel %vm3162, %v3138, 0.0
      %v3179 = vadd.f32 %v3177, %v3178
      %v3180 = vsel %vm3162, %v3139, 0.0
      %v3181 = vadd.f32 %v3179, %v3180
      %v3182 = vsel %vm3162, %v3140, 0.0
      %v3183 = vadd.f32 %v3181, %v3182
      %v3184 = vsel %vm3162, %v3141, 0.0
      %v3185 = vadd.f32 %v3183, %v3184
      %v3186 = vsel %vm3162, %v3142, 0.0
      %v3187 = vadd.f32 %v3185, %v3186
      %v3188 = vsel %vm3162, %v3143, 0.0
      %v3189 = vadd.f32 %v3187, %v3188
      %v3190 = vsel %vm3162, %v3144, 0.0
      %v3191 = vadd.f32 %v3189, %v3190
      %v3192 = vsel %vm3162, %v3145, 0.0
      %v3193 = vadd.f32 %v3191, %v3192
      %v3194 = vsel %vm3162, %v3146, 0.0
      %v3195 = vadd.f32 %v3193, %v3194
      %v3196 = vsel %vm3162, %v3147, 0.0
      %v3197 = vadd.f32 %v3195, %v3196
      %v3198 = vsel %vm3162, %v3148, 0.0
      %v3199 = vadd.f32 %v3197, %v3198
      %v3200 = vsel %vm3162, %v3149, 0.0
      %v3201 = vadd.f32 %v3199, %v3200
      %v3202 = vsel %vm3162, %v3150, 0.0
      %v3203 = vadd.f32 %v3201, %v3202
      %v3204 = vsel %vm3162, %v3151, 0.0
      %v3205 = vadd.f32 %v3203, %v3204
      %v3206 = vsel %vm3162, %v3152, 0.0
      %v3207 = vadd.f32 %v3205, %v3206
      %v3208 = vsel %vm3162, %v3153, 0.0
      %v3209 = vadd.f32 %v3207, %v3208
      %v3210 = vsel %vm3162, %v3154, 0.0
      %v3211 = vadd.f32 %v3209, %v3210
      %v3212 = vsel %vm3162, %v3155, 0.0
      %v3213 = vadd.f32 %v3211, %v3212
      %v3214 = vsel %vm3162, %v3156, 0.0
      %v3215 = vadd.f32 %v3213, %v3214
      %v3216 = vsel %vm3162, %v3157, 0.0
      %v3217 = vadd.f32 %v3215, %v3216
      %v3218 = vsel %vm3162, %v3158, 0.0
      %v3219 = vadd.f32 %v3217, %v3218
      %v3220 = vsel %vm3162, %v3159, 0.0
      %v3221 = vadd.f32 %v3219, %v3220
      %v3222 = vsel %vm3162, %v3160, 0.0
      %v3223 = vadd.f32 %v3221, %v3222
      %v3224 = vsel %vm3162, %v3161, 0.0
      %v3225 = vadd.f32 %v3223, %v3224
      %v3226 = vrot.slane %v3225, 4
      %v3227 = vadd.f32 %v3225, %v3226
      %v3228 = vrot.slane %v3227, 2
      %v3229 = vadd.f32 %v3227, %v3228
      %v3230 = vrot.slane %v3229, 1
      %v3231 = vadd.f32 %v3229, %v3230
      %v3232 = vmul.f32 %v3231, 0.00390625
      %v3233 = vpack.c.bf16 %v3232, %v3232
      %v3234 = vld [vmem:[%s7] sm:$0xf]
      %v3235 = vld [vmem:[%s7 + $0x4] sm:$0xf]
      %v3236 = vld [vmem:[%s7 + $0x8] sm:$0xf]
      %v3237 = vld [vmem:[%s7 + $0xc] sm:$0xf]
      %v3238 = vld [vmem:[%s7 + $0x10] sm:$0xf]
      %v3239 = vld [vmem:[%s7 + $0x14] sm:$0xf]
      %v3240 = vld [vmem:[%s7 + $0x18] sm:$0xf]
      %v3241 = vld [vmem:[%s7 + $0x1c] sm:$0xf]
      %v3242 = vld [vmem:[%s8] sm:$0x1]
      %v3251 = vunpack.c.l.b16 %v3234
      %v3252 = vunpack.c.l.b16 %v3235
      %v3253 = vunpack.c.l.b16 %v3236
      %v3254 = vunpack.c.l.b16 %v3237
      %v3255 = vunpack.c.l.b16 %v3238
      %v3256 = vunpack.c.l.b16 %v3239
      %v3257 = vunpack.c.l.b16 %v3240
      %v3258 = vunpack.c.l.b16 %v3241
      %v3259 = vpack.c.b16 %v3252, %v3251
      %v3260 = vpack.c.b16 %v3254, %v3253
      %v3261 = vpack.c.b16 %v3256, %v3255
      %v3262 = vpack.c.b16 %v3258, %v3257
      %v3268 = vsel %vm3162, %v3233, 0
      %3270 = vmatprep.subr.bf16.mxu0 0
      %3271 = vmatpush1.bf16.msra.mxu0 0
      %3272 = vmatprep.subr.bf16.mxu0 0
      %3273 = vmatpush1.bf16.msra.mxu0 0
      %3274 = vmatprep.subr.bf16.mxu0 0
      %3275 = vmatpush1.bf16.msra.mxu0 0
      %3276 = vmatprep.subr.bf16.mxu0 0
      %3277 = vmatpush1.bf16.msra.mxu0 0
      %3278 = vmatprep.subr.bf16.mxu0 0
      %3279 = vmatpush1.bf16.msra.mxu0 %v3262
      %3280 = vmatprep.subr.bf16.mxu0 0
      %3281 = vmatpush1.bf16.msra.mxu0 %v3261
      %3282 = vmatprep.subr.bf16.mxu0 0
      %3283 = vmatpush1.bf16.msra.mxu0 %v3260
      %3284 = vmatprep.subr.bf16.mxu0 0
      %3285 = vmatpush1.bf16.msra.mxu0 %v3259
      %3286 = vmatprep.subr.bf16.mxu0 0
      %3287 = vmatpush2.bf16.msra.mxu0 0
      %3288 = vmatprep.subr.bf16.mxu0 0
      %3289 = vmatpush2.bf16.msra.mxu0 0
      %3290 = vmatprep.subr.bf16.mxu0 0
      %3291 = vmatpush2.bf16.msra.mxu0 0
      %3292 = vmatprep.subr.bf16.mxu0 0
      %3293 = vmatpush2.bf16.msra.mxu0 0
      %3294 = vmatprep.subr.bf16.mxu0 0
      %3295 = vmatpush2.bf16.msra.mxu0 0
      %3296 = vmatprep.subr.bf16.mxu0 0
      %3297 = vmatpush2.bf16.msra.mxu0 0
      %3298 = vmatprep.subr.bf16.mxu0 0
      %3299 = vmatpush2.bf16.msra.mxu0 0
      %3300 = vmatprep.subr.bf16.mxu0 0
      %3301 = vmatpush2.bf16.msra.mxu0 0
      %3302 = vmatprep.mubr.bf16.mxu0 0
      %3303 = vmatmul.mubr.bf16.gmra.mxu0 %v3268
      %v3304 = vpop.f32.mrf.mxu0
      %v3305 = vadd.f32 %v3242, %v3304
      %v3306 = vpop.f32.mrf.mxu0
      %v3307 = vpop.f32.mrf.mxu0
      %v3308 = vpop.f32.mrf.mxu0
      %3309 = vdwg.mxu0
      %v3310 = vmax.f32 %v3305, 0.0
      %v3311 = vpack.c.bf16 %v3310, %v3310
      %v3312 = vld [vmem:[%s9] sm:$0xf]
      %v3313 = vld [vmem:[%s9 + $0x4] sm:$0xf]
      %v3314 = vld [vmem:[%s10] sm:$0x1]
      %v3317 = vunpack.c.l.b16 %v3312
      %v3318 = vunpack.c.l.b16 %v3313
      %v3319 = vpack.c.b16 %v3318, %v3317
      %v3322 = vsel %vm976, %v3311, 0
      %3324 = vmatprep.subr.bf16.mxu0 0
      %3325 = vmatpush1.bf16.msra.mxu0 0
      %3326 = vmatprep.subr.bf16.mxu0 0
      %3327 = vmatpush1.bf16.msra.mxu0 0
      %3328 = vmatprep.subr.bf16.mxu0 0
      %3329 = vmatpush1.bf16.msra.mxu0 0
      %3330 = vmatprep.subr.bf16.mxu0 0
      %3331 = vmatpush1.bf16.msra.mxu0 0
      %3332 = vmatprep.subr.bf16.mxu0 0
      %3333 = vmatpush1.bf16.msra.mxu0 0
      %3334 = vmatprep.subr.bf16.mxu0 0
      %3335 = vmatpush1.bf16.msra.mxu0 0
      %3336 = vmatprep.subr.bf16.mxu0 0
      %3337 = vmatpush1.bf16.msra.mxu0 0
      %3338 = vmatprep.subr.bf16.mxu0 0
      %3339 = vmatpush1.bf16.msra.mxu0 %v3319
      %3340 = vmatprep.subr.bf16.mxu0 0
      %3341 = vmatpush2.bf16.msra.mxu0 0
      %3342 = vmatprep.subr.bf16.mxu0 0
      %3343 = vmatpush2.bf16.msra.mxu0 0
      %3344 = vmatprep.subr.bf16.mxu0 0
      %3345 = vmatpush2.bf16.msra.mxu0 0
      %3346 = vmatprep.subr.bf16.mxu0 0
      %3347 = vmatpush2.bf16.msra.mxu0 0
      %3348 = vmatprep.subr.bf16.mxu0 0
      %3349 = vmatpush2.bf16.msra.mxu0 0
      %3350 = vmatprep.subr.bf16.mxu0 0
      %3351 = vmatpush2.bf16.msra.mxu0 0
      %3352 = vmatprep.subr.bf16.mxu0 0
      %3353 = vmatpush2.bf16.msra.mxu0 0
      %3354 = vmatprep.subr.bf16.mxu0 0
      %3355 = vmatpush2.bf16.msra.mxu0 0
      %3356 = vmatprep.mubr.bf16.mxu0 0
      %3357 = vmatmul.mubr.bf16.gmra.mxu0 %v3322
      %v3358 = vpop.f32.mrf.mxu0
      %v3359 = vadd.f32 %v3314, %v3358
      %v3360 = vpop.f32.mrf.mxu0
      %v3361 = vpop.f32.mrf.mxu0
      %v3362 = vpop.f32.mrf.mxu0
      %3363 = vdwg.mxu0
      %v3364 = vadd.f32 %v3359, 3.0
      %v3365 = vmax.f32 %v3364, 0.0
      %v3366 = vmin.f32 %v3365, 6.0
      %v3367 = vmul.f32 %v3366, 0.16666667
      %v3368 = vlaneseq
      %v3369 = vshrl.u32 %v3368, 7
      %v3370 = vsub.s32 0, %v3369
      %v3371 = vrot.slane %v3367, %v3370
      %v3372 = vmul.f32 %v3130, %v3371
      %v3373 = vmul.f32 %v3131, %v3371
      %v3374 = vmul.f32 %v3132, %v3371
      %v3375 = vmul.f32 %v3133, %v3371
      %v3376 = vmul.f32 %v3134, %v3371
      %v3377 = vmul.f32 %v3135, %v3371
      %v3378 = vmul.f32 %v3136, %v3371
      %v3379 = vmul.f32 %v3137, %v3371
      %v3380 = vmul.f32 %v3138, %v3371
      %v3381 = vmul.f32 %v3139, %v3371
      %v3382 = vmul.f32 %v3140, %v3371
      %v3383 = vmul.f32 %v3141, %v3371
      %v3384 = vmul.f32 %v3142, %v3371
      %v3385 = vmul.f32 %v3143, %v3371
      %v3386 = vmul.f32 %v3144, %v3371
      %v3387 = vmul.f32 %v3145, %v3371
      %v3388 = vmul.f32 %v3146, %v3371
      %v3389 = vmul.f32 %v3147, %v3371
      %v3390 = vmul.f32 %v3148, %v3371
      %v3391 = vmul.f32 %v3149, %v3371
      %v3392 = vmul.f32 %v3150, %v3371
      %v3393 = vmul.f32 %v3151, %v3371
      %v3394 = vmul.f32 %v3152, %v3371
      %v3395 = vmul.f32 %v3153, %v3371
      %v3396 = vmul.f32 %v3154, %v3371
      %v3397 = vmul.f32 %v3155, %v3371
      %v3398 = vmul.f32 %v3156, %v3371
      %v3399 = vmul.f32 %v3157, %v3371
      %v3400 = vmul.f32 %v3158, %v3371
      %v3401 = vmul.f32 %v3159, %v3371
      %v3402 = vmul.f32 %v3160, %v3371
      %v3403 = vmul.f32 %v3161, %v3371
      %v3404 = vpack.c.bf16 %v3373, %v3372
      %v3405 = vpack.c.bf16 %v3375, %v3374
      %v3406 = vpack.c.bf16 %v3377, %v3376
      %v3407 = vpack.c.bf16 %v3379, %v3378
      %v3408 = vpack.c.bf16 %v3381, %v3380
      %v3409 = vpack.c.bf16 %v3383, %v3382
      %v3410 = vpack.c.bf16 %v3385, %v3384
      %v3411 = vpack.c.bf16 %v3387, %v3386
      %v3412 = vpack.c.bf16 %v3389, %v3388
      %v3413 = vpack.c.bf16 %v3391, %v3390
      %v3414 = vpack.c.bf16 %v3393, %v3392
      %v3415 = vpack.c.bf16 %v3395, %v3394
      %v3416 = vpack.c.bf16 %v3397, %v3396
      %v3417 = vpack.c.bf16 %v3399, %v3398
      %v3418 = vpack.c.bf16 %v3401, %v3400
      %v3419 = vpack.c.bf16 %v3403, %v3402
      %v3420 = vld [vmem:[%s11] sm:$0xff]
      %v3421 = vld [vmem:[%s11 + $0x8] sm:$0xff]
      %v3422 = vld [vmem:[%s11 + $0x10] sm:$0xff]
      %v3423 = vld [vmem:[%s11 + $0x18] sm:$0xff]
      %v3424 = vld [vmem:[%s11 + $0x20] sm:$0xff]
      %v3425 = vld [vmem:[%s11 + $0x28] sm:$0xff]
      %v3426 = vld [vmem:[%s11 + $0x30] sm:$0xff]
      %v3427 = vld [vmem:[%s11 + $0x38] sm:$0xff]
      %v3428 = vld [vmem:[%s11 + $0x40] sm:$0xff]
      %v3429 = vld [vmem:[%s11 + $0x48] sm:$0xff]
      %v3430 = vld [vmem:[%s11 + $0x50] sm:$0xff]
      %v3431 = vld [vmem:[%s11 + $0x58] sm:$0xff]
      %v3432 = vld [vmem:[%s11 + $0x60] sm:$0xff]
      %v3433 = vld [vmem:[%s11 + $0x68] sm:$0xff]
      %v3434 = vld [vmem:[%s11 + $0x70] sm:$0xff]
      %v3435 = vld [vmem:[%s11 + $0x78] sm:$0xff]
      %v3436 = vld [vmem:[%s11 + $0x80] sm:$0xff]
      %v3437 = vld [vmem:[%s11 + $0x88] sm:$0xff]
      %v3438 = vld [vmem:[%s11 + $0x90] sm:$0xff]
      %v3439 = vld [vmem:[%s11 + $0x98] sm:$0xff]
      %v3440 = vld [vmem:[%s11 + $0xa0] sm:$0xff]
      %v3441 = vld [vmem:[%s11 + $0xa8] sm:$0xff]
      %v3442 = vld [vmem:[%s11 + $0xb0] sm:$0xff]
      %v3443 = vld [vmem:[%s11 + $0xb8] sm:$0xff]
      %v3444 = vld [vmem:[%s11 + $0xc0] sm:$0xff]
      %v3445 = vld [vmem:[%s11 + $0xc8] sm:$0xff]
      %v3446 = vld [vmem:[%s11 + $0xd0] sm:$0xff]
      %v3447 = vld [vmem:[%s11 + $0xd8] sm:$0xff]
      %v3448 = vld [vmem:[%s11 + $0xe0] sm:$0xff]
      %v3449 = vld [vmem:[%s11 + $0xe8] sm:$0xff]
      %v3450 = vld [vmem:[%s11 + $0xf0] sm:$0xff]
      %v3451 = vld [vmem:[%s11 + $0xf8] sm:$0xff]
      %v3452 = vld [vmem:[%s12] sm:$0xff]
      %v3454 = vlaneseq
      %v3455 = vshrl.u32 %v3454, 7
      %v3456 = vsub.s32 0, %v3455
      %v3457 = vrot.slane %v3452, %v3456
      %v3458 = vlaneseq
      %v3459 = vshrl.u32 %v3458, 7
      %v3460 = vsub.s32 1, %v3459
      %v3461 = vrot.slane %v3452, %v3460
      %v3462 = vlaneseq
      %v3463 = vshrl.u32 %v3462, 7
      %v3464 = vsub.s32 2, %v3463
      %v3465 = vrot.slane %v3452, %v3464
      %v3466 = vlaneseq
      %v3467 = vshrl.u32 %v3466, 7
      %v3468 = vsub.s32 3, %v3467
      %v3469 = vrot.slane %v3452, %v3468
      %v3470 = vlaneseq
      %v3471 = vshrl.u32 %v3470, 7
      %v3472 = vsub.s32 4, %v3471
      %v3473 = vrot.slane %v3452, %v3472
      %v3474 = vlaneseq
      %v3475 = vshrl.u32 %v3474, 7
      %v3476 = vsub.s32 5, %v3475
      %v3477 = vrot.slane %v3452, %v3476
      %v3478 = vlaneseq
      %v3479 = vshrl.u32 %v3478, 7
      %v3480 = vsub.s32 6, %v3479
      %v3481 = vrot.slane %v3452, %v3480
      %v3482 = vlaneseq
      %v3483 = vshrl.u32 %v3482, 7
      %v3484 = vsub.s32 7, %v3483
      %v3485 = vrot.slane %v3452, %v3484
      %v3526 = vunpack.c.l.b16 %v3420
      %v3527 = vunpack.c.h.b16 %v3420
      %v3528 = vunpack.c.l.b16 %v3421
      %v3529 = vunpack.c.h.b16 %v3421
      %v3530 = vunpack.c.l.b16 %v3422
      %v3531 = vunpack.c.h.b16 %v3422
      %v3532 = vunpack.c.l.b16 %v3423
      %v3533 = vunpack.c.h.b16 %v3423
      %v3534 = vunpack.c.l.b16 %v3424
      %v3535 = vunpack.c.h.b16 %v3424
      %v3536 = vunpack.c.l.b16 %v3425
      %v3537 = vunpack.c.h.b16 %v3425
      %v3538 = vunpack.c.l.b16 %v3426
      %v3539 = vunpack.c.h.b16 %v3426
      %v3540 = vunpack.c.l.b16 %v3427
      %v3541 = vunpack.c.h.b16 %v3427
      %v3542 = vunpack.c.l.b16 %v3428
      %v3543 = vunpack.c.h.b16 %v3428
      %v3544 = vunpack.c.l.b16 %v3429
      %v3545 = vunpack.c.h.b16 %v3429
      %v3546 = vunpack.c.l.b16 %v3430
      %v3547 = vunpack.c.h.b16 %v3430
      %v3548 = vunpack.c.l.b16 %v3431
      %v3549 = vunpack.c.h.b16 %v3431
      %v3550 = vunpack.c.l.b16 %v3432
      %v3551 = vunpack.c.h.b16 %v3432
      %v3552 = vunpack.c.l.b16 %v3433
      %v3553 = vunpack.c.h.b16 %v3433
      %v3554 = vunpack.c.l.b16 %v3434
      %v3555 = vunpack.c.h.b16 %v3434
      %v3556 = vunpack.c.l.b16 %v3435
      %v3557 = vunpack.c.h.b16 %v3435
      %v3558 = vunpack.c.l.b16 %v3436
      %v3559 = vunpack.c.h.b16 %v3436
      %v3560 = vunpack.c.l.b16 %v3437
      %v3561 = vunpack.c.h.b16 %v3437
      %v3562 = vunpack.c.l.b16 %v3438
      %v3563 = vunpack.c.h.b16 %v3438
      %v3564 = vunpack.c.l.b16 %v3439
      %v3565 = vunpack.c.h.b16 %v3439
      %v3566 = vunpack.c.l.b16 %v3440
      %v3567 = vunpack.c.h.b16 %v3440
      %v3568 = vunpack.c.l.b16 %v3441
      %v3569 = vunpack.c.h.b16 %v3441
      %v3570 = vunpack.c.l.b16 %v3442
      %v3571 = vunpack.c.h.b16 %v3442
      %v3572 = vunpack.c.l.b16 %v3443
      %v3573 = vunpack.c.h.b16 %v3443
      %v3574 = vunpack.c.l.b16 %v3444
      %v3575 = vunpack.c.h.b16 %v3444
      %v3576 = vunpack.c.l.b16 %v3445
      %v3577 = vunpack.c.h.b16 %v3445
      %v3578 = vunpack.c.l.b16 %v3446
      %v3579 = vunpack.c.h.b16 %v3446
      %v3580 = vunpack.c.l.b16 %v3447
      %v3581 = vunpack.c.h.b16 %v3447
      %v3582 = vunpack.c.l.b16 %v3448
      %v3583 = vunpack.c.h.b16 %v3448
      %v3584 = vunpack.c.l.b16 %v3449
      %v3585 = vunpack.c.h.b16 %v3449
      %v3586 = vunpack.c.l.b16 %v3450
      %v3587 = vunpack.c.h.b16 %v3450
      %v3588 = vunpack.c.l.b16 %v3451
      %v3589 = vunpack.c.h.b16 %v3451
      %v3590 = vpack.c.b16 %v3534, %v3526
      %v3591 = vpack.c.b16 %v3535, %v3527
      %v3592 = vpack.c.b16 %v3536, %v3528
      %v3593 = vpack.c.b16 %v3537, %v3529
      %v3594 = vpack.c.b16 %v3538, %v3530
      %v3595 = vpack.c.b16 %v3539, %v3531
      %v3596 = vpack.c.b16 %v3540, %v3532
      %v3597 = vpack.c.b16 %v3541, %v3533
      %v3598 = vpack.c.b16 %v3550, %v3542
      %v3599 = vpack.c.b16 %v3551, %v3543
      %v3600 = vpack.c.b16 %v3552, %v3544
      %v3601 = vpack.c.b16 %v3553, %v3545
      %v3602 = vpack.c.b16 %v3554, %v3546
      %v3603 = vpack.c.b16 %v3555, %v3547
      %v3604 = vpack.c.b16 %v3556, %v3548
      %v3605 = vpack.c.b16 %v3557, %v3549
      %v3606 = vpack.c.b16 %v3566, %v3558
      %v3607 = vpack.c.b16 %v3567, %v3559
      %v3608 = vpack.c.b16 %v3568, %v3560
      %v3609 = vpack.c.b16 %v3569, %v3561
      %v3610 = vpack.c.b16 %v3570, %v3562
      %v3611 = vpack.c.b16 %v3571, %v3563
      %v3612 = vpack.c.b16 %v3572, %v3564
      %v3613 = vpack.c.b16 %v3573, %v3565
      %v3614 = vpack.c.b16 %v3582, %v3574
      %v3615 = vpack.c.b16 %v3583, %v3575
      %v3616 = vpack.c.b16 %v3584, %v3576
      %v3617 = vpack.c.b16 %v3585, %v3577
      %v3618 = vpack.c.b16 %v3586, %v3578
      %v3619 = vpack.c.b16 %v3587, %v3579
      %v3620 = vpack.c.b16 %v3588, %v3580
      %v3621 = vpack.c.b16 %v3589, %v3581
      %v3655 = vsel %vm3162, %v3404, 0
      %v3658 = vsel %vm3162, %v3405, 0
      %v3661 = vsel %vm3162, %v3406, 0
      %v3664 = vsel %vm3162, %v3407, 0
      %v3667 = vsel %vm3162, %v3408, 0
      %v3670 = vsel %vm3162, %v3409, 0
      %v3673 = vsel %vm3162, %v3410, 0
      %v3676 = vsel %vm3162, %v3411, 0
      %v3679 = vsel %vm3162, %v3412, 0
      %v3682 = vsel %vm3162, %v3413, 0
      %v3685 = vsel %vm3162, %v3414, 0
      %v3688 = vsel %vm3162, %v3415, 0
      %v3691 = vsel %vm3162, %v3416, 0
      %v3694 = vsel %vm3162, %v3417, 0
      %v3697 = vsel %vm3162, %v3418, 0
      %v3700 = vsel %vm3162, %v3419, 0
      %3702 = vmatprep.subr.bf16.mxu0 0
      %3703 = vmatpush1.bf16.msra.mxu0 0
      %3704 = vmatprep.subr.bf16.mxu0 0
      %3705 = vmatpush1.bf16.msra.mxu0 0
      %3706 = vmatprep.subr.bf16.mxu0 0
      %3707 = vmatpush1.bf16.msra.mxu0 0
      %3708 = vmatprep.subr.bf16.mxu0 0
      %3709 = vmatpush1.bf16.msra.mxu0 0
      %3710 = vmatprep.subr.bf16.mxu0 %v3615
      %3711 = vmatpush1.bf16.msra.mxu0 %v3614
      %3712 = vmatprep.subr.bf16.mxu0 %v3607
      %3713 = vmatpush1.bf16.msra.mxu0 %v3606
      %3714 = vmatprep.subr.bf16.mxu0 %v3599
      %3715 = vmatpush1.bf16.msra.mxu0 %v3598
      %3716 = vmatprep.subr.bf16.mxu0 %v3591
      %3717 = vmatpush1.bf16.msra.mxu0 %v3590
      %3718 = vmatprep.subr.bf16.mxu0 0
      %3719 = vmatpush2.bf16.msra.mxu0 0
      %3720 = vmatprep.subr.bf16.mxu0 0
      %3721 = vmatpush2.bf16.msra.mxu0 0
      %3722 = vmatprep.subr.bf16.mxu0 0
      %3723 = vmatpush2.bf16.msra.mxu0 0
      %3724 = vmatprep.subr.bf16.mxu0 0
      %3725 = vmatpush2.bf16.msra.mxu0 0
      %3726 = vmatprep.subr.bf16.mxu0 0
      %3727 = vmatpush2.bf16.msra.mxu0 0
      %3728 = vmatprep.subr.bf16.mxu0 0
      %3729 = vmatpush2.bf16.msra.mxu0 0
      %3730 = vmatprep.subr.bf16.mxu0 0
      %3731 = vmatpush2.bf16.msra.mxu0 0
      %3732 = vmatprep.subr.bf16.mxu0 0
      %3733 = vmatpush2.bf16.msra.mxu0 0
      %3734 = vmatprep.mubr.bf16.mxu0 0
      %3735 = vmatmul.mubr.bf16.gmra.mxu0 %v3655
      %v3736 = vpop.f32.mrf.mxu0
      %v3737 = vadd.f32 %v3457, %v3736
      %v3738 = vpop.f32.mrf.mxu0
      %v3739 = vadd.f32 %v3461, %v3738
      %v3740 = vpop.f32.mrf.mxu0
      %v3741 = vadd.f32 %v3457, %v3740
      %v3742 = vpop.f32.mrf.mxu0
      %v3743 = vadd.f32 %v3461, %v3742
      %3744 = vmatprep.mubr.bf16.mxu0 0
      %3745 = vmatmul.mubr.bf16.gmra.mxu0 %v3658
      %v3746 = vpop.f32.mrf.mxu0
      %v3747 = vadd.f32 %v3457, %v3746
      %v3748 = vpop.f32.mrf.mxu0
      %v3749 = vadd.f32 %v3461, %v3748
      %v3750 = vpop.f32.mrf.mxu0
      %v3751 = vadd.f32 %v3457, %v3750
      %v3752 = vpop.f32.mrf.mxu0
      %v3753 = vadd.f32 %v3461, %v3752
      %3754 = vmatprep.mubr.bf16.mxu0 0
      %3755 = vmatmul.mubr.bf16.gmra.mxu0 %v3661
      %v3756 = vpop.f32.mrf.mxu0
      %v3757 = vadd.f32 %v3457, %v3756
      %v3758 = vpop.f32.mrf.mxu0
      %v3759 = vadd.f32 %v3461, %v3758
      %v3760 = vpop.f32.mrf.mxu0
      %v3761 = vadd.f32 %v3457, %v3760
      %v3762 = vpop.f32.mrf.mxu0
      %v3763 = vadd.f32 %v3461, %v3762
      %3764 = vmatprep.mubr.bf16.mxu0 0
      %3765 = vmatmul.mubr.bf16.gmra.mxu0 %v3664
      %v3766 = vpop.f32.mrf.mxu0
      %v3767 = vadd.f32 %v3457, %v3766
      %v3768 = vpop.f32.mrf.mxu0
      %v3769 = vadd.f32 %v3461, %v3768
      %v3770 = vpop.f32.mrf.mxu0
      %v3771 = vadd.f32 %v3457, %v3770
      %v3772 = vpop.f32.mrf.mxu0
      %v3773 = vadd.f32 %v3461, %v3772
      %3774 = vmatprep.mubr.bf16.mxu0 0
      %3775 = vmatmul.mubr.bf16.gmra.mxu0 %v3667
      %v3776 = vpop.f32.mrf.mxu0
      %v3777 = vadd.f32 %v3457, %v3776
      %v3778 = vpop.f32.mrf.mxu0
      %v3779 = vadd.f32 %v3461, %v3778
      %v3780 = vpop.f32.mrf.mxu0
      %v3781 = vadd.f32 %v3457, %v3780
      %v3782 = vpop.f32.mrf.mxu0
      %v3783 = vadd.f32 %v3461, %v3782
      %3784 = vmatprep.mubr.bf16.mxu0 0
      %3785 = vmatmul.mubr.bf16.gmra.mxu0 %v3670
      %v3786 = vpop.f32.mrf.mxu0
      %v3787 = vadd.f32 %v3457, %v3786
      %v3788 = vpop.f32.mrf.mxu0
      %v3789 = vadd.f32 %v3461, %v3788
      %v3790 = vpop.f32.mrf.mxu0
      %v3791 = vadd.f32 %v3457, %v3790
      %v3792 = vpop.f32.mrf.mxu0
      %v3793 = vadd.f32 %v3461, %v3792
      %3794 = vmatprep.mubr.bf16.mxu0 0
      %3795 = vmatmul.mubr.bf16.gmra.mxu0 %v3673
      %v3796 = vpop.f32.mrf.mxu0
      %v3797 = vadd.f32 %v3457, %v3796
      %v3798 = vpop.f32.mrf.mxu0
      %v3799 = vadd.f32 %v3461, %v3798
      %v3800 = vpop.f32.mrf.mxu0
      %v3801 = vadd.f32 %v3457, %v3800
      %v3802 = vpop.f32.mrf.mxu0
      %v3803 = vadd.f32 %v3461, %v3802
      %3804 = vmatprep.mubr.bf16.mxu0 0
      %3805 = vmatmul.mubr.bf16.gmra.mxu0 %v3676
      %v3806 = vpop.f32.mrf.mxu0
      %v3807 = vadd.f32 %v3457, %v3806
      %v3808 = vpop.f32.mrf.mxu0
      %v3809 = vadd.f32 %v3461, %v3808
      %v3810 = vpop.f32.mrf.mxu0
      %v3811 = vadd.f32 %v3457, %v3810
      %v3812 = vpop.f32.mrf.mxu0
      %v3813 = vadd.f32 %v3461, %v3812
      %3814 = vmatprep.mubr.bf16.mxu0 0
      %3815 = vmatmul.mubr.bf16.gmra.mxu0 %v3679
      %v3816 = vpop.f32.mrf.mxu0
      %v3817 = vadd.f32 %v3457, %v3816
      %v3818 = vpop.f32.mrf.mxu0
      %v3819 = vadd.f32 %v3461, %v3818
      %v3820 = vpop.f32.mrf.mxu0
      %v3821 = vadd.f32 %v3457, %v3820
      %v3822 = vpop.f32.mrf.mxu0
      %v3823 = vadd.f32 %v3461, %v3822
      %3824 = vmatprep.mubr.bf16.mxu0 0
      %3825 = vmatmul.mubr.bf16.gmra.mxu0 %v3682
      %v3826 = vpop.f32.mrf.mxu0
      %v3827 = vadd.f32 %v3457, %v3826
      %v3828 = vpop.f32.mrf.mxu0
      %v3829 = vadd.f32 %v3461, %v3828
      %v3830 = vpop.f32.mrf.mxu0
      %v3831 = vadd.f32 %v3457, %v3830
      %v3832 = vpop.f32.mrf.mxu0
      %v3833 = vadd.f32 %v3461, %v3832
      %3834 = vmatprep.mubr.bf16.mxu0 0
      %3835 = vmatmul.mubr.bf16.gmra.mxu0 %v3685
      %v3836 = vpop.f32.mrf.mxu0
      %v3837 = vadd.f32 %v3457, %v3836
      %v3838 = vpop.f32.mrf.mxu0
      %v3839 = vadd.f32 %v3461, %v3838
      %v3840 = vpop.f32.mrf.mxu0
      %v3841 = vadd.f32 %v3457, %v3840
      %v3842 = vpop.f32.mrf.mxu0
      %v3843 = vadd.f32 %v3461, %v3842
      %3844 = vmatprep.mubr.bf16.mxu0 0
      %3845 = vmatmul.mubr.bf16.gmra.mxu0 %v3688
      %v3846 = vpop.f32.mrf.mxu0
      %v3847 = vadd.f32 %v3457, %v3846
      %v3848 = vpop.f32.mrf.mxu0
      %v3849 = vadd.f32 %v3461, %v3848
      %v3850 = vpop.f32.mrf.mxu0
      %v3851 = vadd.f32 %v3457, %v3850
      %v3852 = vpop.f32.mrf.mxu0
      %v3853 = vadd.f32 %v3461, %v3852
      %3854 = vmatprep.mubr.bf16.mxu0 0
      %3855 = vmatmul.mubr.bf16.gmra.mxu0 %v3691
      %v3856 = vpop.f32.mrf.mxu0
      %v3857 = vadd.f32 %v3457, %v3856
      %v3858 = vpop.f32.mrf.mxu0
      %v3859 = vadd.f32 %v3461, %v3858
      %v3860 = vpop.f32.mrf.mxu0
      %v3861 = vadd.f32 %v3457, %v3860
      %v3862 = vpop.f32.mrf.mxu0
      %v3863 = vadd.f32 %v3461, %v3862
      %3864 = vmatprep.mubr.bf16.mxu0 0
      %3865 = vmatmul.mubr.bf16.gmra.mxu0 %v3694
      %v3866 = vpop.f32.mrf.mxu0
      %v3867 = vadd.f32 %v3457, %v3866
      %v3868 = vpop.f32.mrf.mxu0
      %v3869 = vadd.f32 %v3461, %v3868
      %v3870 = vpop.f32.mrf.mxu0
      %v3871 = vadd.f32 %v3457, %v3870
      %v3872 = vpop.f32.mrf.mxu0
      %v3873 = vadd.f32 %v3461, %v3872
      %3874 = vmatprep.mubr.bf16.mxu0 0
      %3875 = vmatmul.mubr.bf16.gmra.mxu0 %v3697
      %v3876 = vpop.f32.mrf.mxu0
      %v3877 = vadd.f32 %v3457, %v3876
      %v3878 = vpop.f32.mrf.mxu0
      %v3879 = vadd.f32 %v3461, %v3878
      %v3880 = vpop.f32.mrf.mxu0
      %v3881 = vadd.f32 %v3457, %v3880
      %v3882 = vpop.f32.mrf.mxu0
      %v3883 = vadd.f32 %v3461, %v3882
      %3884 = vmatprep.mubr.bf16.mxu0 0
      %3885 = vmatmul.mubr.bf16.gmra.mxu0 %v3700
      %v3886 = vpop.f32.mrf.mxu0
      %v3887 = vadd.f32 %v3457, %v3886
      %v3888 = vpop.f32.mrf.mxu0
      %v3889 = vadd.f32 %v3461, %v3888
      %v3890 = vpop.f32.mrf.mxu0
      %v3891 = vadd.f32 %v3457, %v3890
      %v3892 = vpop.f32.mrf.mxu0
      %v3893 = vadd.f32 %v3461, %v3892
      %3894 = vdwg.mxu0
      %3895 = vmatprep.subr.bf16.mxu0 0
      %3896 = vmatpush1.bf16.msra.mxu0 0
      %3897 = vmatprep.subr.bf16.mxu0 0
      %3898 = vmatpush1.bf16.msra.mxu0 0
      %3899 = vmatprep.subr.bf16.mxu0 0
      %3900 = vmatpush1.bf16.msra.mxu0 0
      %3901 = vmatprep.subr.bf16.mxu0 0
      %3902 = vmatpush1.bf16.msra.mxu0 0
      %3903 = vmatprep.subr.bf16.mxu0 %v3617
      %3904 = vmatpush1.bf16.msra.mxu0 %v3616
      %3905 = vmatprep.subr.bf16.mxu0 %v3609
      %3906 = vmatpush1.bf16.msra.mxu0 %v3608
      %3907 = vmatprep.subr.bf16.mxu0 %v3601
      %3908 = vmatpush1.bf16.msra.mxu0 %v3600
      %3909 = vmatprep.subr.bf16.mxu0 %v3593
      %3910 = vmatpush1.bf16.msra.mxu0 %v3592
      %3911 = vmatprep.subr.bf16.mxu0 0
      %3912 = vmatpush2.bf16.msra.mxu0 0
      %3913 = vmatprep.subr.bf16.mxu0 0
      %3914 = vmatpush2.bf16.msra.mxu0 0
      %3915 = vmatprep.subr.bf16.mxu0 0
      %3916 = vmatpush2.bf16.msra.mxu0 0
      %3917 = vmatprep.subr.bf16.mxu0 0
      %3918 = vmatpush2.bf16.msra.mxu0 0
      %3919 = vmatprep.subr.bf16.mxu0 0
      %3920 = vmatpush2.bf16.msra.mxu0 0
      %3921 = vmatprep.subr.bf16.mxu0 0
      %3922 = vmatpush2.bf16.msra.mxu0 0
      %3923 = vmatprep.subr.bf16.mxu0 0
      %3924 = vmatpush2.bf16.msra.mxu0 0
      %3925 = vmatprep.subr.bf16.mxu0 0
      %3926 = vmatpush2.bf16.msra.mxu0 0
      %3927 = vmatprep.mubr.bf16.mxu0 0
      %3928 = vmatmul.mubr.bf16.gmra.mxu0 %v3655
      %v3929 = vpop.f32.mrf.mxu0
      %v3930 = vadd.f32 %v3465, %v3929
      %v3931 = vpop.f32.mrf.mxu0
      %v3932 = vadd.f32 %v3469, %v3931
      %v3933 = vpop.f32.mrf.mxu0
      %v3934 = vadd.f32 %v3465, %v3933
      %v3935 = vpop.f32.mrf.mxu0
      %v3936 = vadd.f32 %v3469, %v3935
      %3937 = vmatprep.mubr.bf16.mxu0 0
      %3938 = vmatmul.mubr.bf16.gmra.mxu0 %v3658
      %v3939 = vpop.f32.mrf.mxu0
      %v3940 = vadd.f32 %v3465, %v3939
      %v3941 = vpop.f32.mrf.mxu0
      %v3942 = vadd.f32 %v3469, %v3941
      %v3943 = vpop.f32.mrf.mxu0
      %v3944 = vadd.f32 %v3465, %v3943
      %v3945 = vpop.f32.mrf.mxu0
      %v3946 = vadd.f32 %v3469, %v3945
      %3947 = vmatprep.mubr.bf16.mxu0 0
      %3948 = vmatmul.mubr.bf16.gmra.mxu0 %v3661
      %v3949 = vpop.f32.mrf.mxu0
      %v3950 = vadd.f32 %v3465, %v3949
      %v3951 = vpop.f32.mrf.mxu0
      %v3952 = vadd.f32 %v3469, %v3951
      %v3953 = vpop.f32.mrf.mxu0
      %v3954 = vadd.f32 %v3465, %v3953
      %v3955 = vpop.f32.mrf.mxu0
      %v3956 = vadd.f32 %v3469, %v3955
      %3957 = vmatprep.mubr.bf16.mxu0 0
      %3958 = vmatmul.mubr.bf16.gmra.mxu0 %v3664
      %v3959 = vpop.f32.mrf.mxu0
      %v3960 = vadd.f32 %v3465, %v3959
      %v3961 = vpop.f32.mrf.mxu0
      %v3962 = vadd.f32 %v3469, %v3961
      %v3963 = vpop.f32.mrf.mxu0
      %v3964 = vadd.f32 %v3465, %v3963
      %v3965 = vpop.f32.mrf.mxu0
      %v3966 = vadd.f32 %v3469, %v3965
      %3967 = vmatprep.mubr.bf16.mxu0 0
      %3968 = vmatmul.mubr.bf16.gmra.mxu0 %v3667
      %v3969 = vpop.f32.mrf.mxu0
      %v3970 = vadd.f32 %v3465, %v3969
      %v3971 = vpop.f32.mrf.mxu0
      %v3972 = vadd.f32 %v3469, %v3971
      %v3973 = vpop.f32.mrf.mxu0
      %v3974 = vadd.f32 %v3465, %v3973
      %v3975 = vpop.f32.mrf.mxu0
      %v3976 = vadd.f32 %v3469, %v3975
      %3977 = vmatprep.mubr.bf16.mxu0 0
      %3978 = vmatmul.mubr.bf16.gmra.mxu0 %v3670
      %v3979 = vpop.f32.mrf.mxu0
      %v3980 = vadd.f32 %v3465, %v3979
      %v3981 = vpop.f32.mrf.mxu0
      %v3982 = vadd.f32 %v3469, %v3981
      %v3983 = vpop.f32.mrf.mxu0
      %v3984 = vadd.f32 %v3465, %v3983
      %v3985 = vpop.f32.mrf.mxu0
      %v3986 = vadd.f32 %v3469, %v3985
      %3987 = vmatprep.mubr.bf16.mxu0 0
      %3988 = vmatmul.mubr.bf16.gmra.mxu0 %v3673
      %v3989 = vpop.f32.mrf.mxu0
      %v3990 = vadd.f32 %v3465, %v3989
      %v3991 = vpop.f32.mrf.mxu0
      %v3992 = vadd.f32 %v3469, %v3991
      %v3993 = vpop.f32.mrf.mxu0
      %v3994 = vadd.f32 %v3465, %v3993
      %v3995 = vpop.f32.mrf.mxu0
      %v3996 = vadd.f32 %v3469, %v3995
      %3997 = vmatprep.mubr.bf16.mxu0 0
      %3998 = vmatmul.mubr.bf16.gmra.mxu0 %v3676
      %v3999 = vpop.f32.mrf.mxu0
      %v4000 = vadd.f32 %v3465, %v3999
      %v4001 = vpop.f32.mrf.mxu0
      %v4002 = vadd.f32 %v3469, %v4001
      %v4003 = vpop.f32.mrf.mxu0
      %v4004 = vadd.f32 %v3465, %v4003
      %v4005 = vpop.f32.mrf.mxu0
      %v4006 = vadd.f32 %v3469, %v4005
      %4007 = vmatprep.mubr.bf16.mxu0 0
      %4008 = vmatmul.mubr.bf16.gmra.mxu0 %v3679
      %v4009 = vpop.f32.mrf.mxu0
      %v4010 = vadd.f32 %v3465, %v4009
      %v4011 = vpop.f32.mrf.mxu0
      %v4012 = vadd.f32 %v3469, %v4011
      %v4013 = vpop.f32.mrf.mxu0
      %v4014 = vadd.f32 %v3465, %v4013
      %v4015 = vpop.f32.mrf.mxu0
      %v4016 = vadd.f32 %v3469, %v4015
      %4017 = vmatprep.mubr.bf16.mxu0 0
      %4018 = vmatmul.mubr.bf16.gmra.mxu0 %v3682
      %v4019 = vpop.f32.mrf.mxu0
      %v4020 = vadd.f32 %v3465, %v4019
      %v4021 = vpop.f32.mrf.mxu0
      %v4022 = vadd.f32 %v3469, %v4021
      %v4023 = vpop.f32.mrf.mxu0
      %v4024 = vadd.f32 %v3465, %v4023
      %v4025 = vpop.f32.mrf.mxu0
      %v4026 = vadd.f32 %v3469, %v4025
      %4027 = vmatprep.mubr.bf16.mxu0 0
      %4028 = vmatmul.mubr.bf16.gmra.mxu0 %v3685
      %v4029 = vpop.f32.mrf.mxu0
      %v4030 = vadd.f32 %v3465, %v4029
      %v4031 = vpop.f32.mrf.mxu0
      %v4032 = vadd.f32 %v3469, %v4031
      %v4033 = vpop.f32.mrf.mxu0
      %v4034 = vadd.f32 %v3465, %v4033
      %v4035 = vpop.f32.mrf.mxu0
      %v4036 = vadd.f32 %v3469, %v4035
      %4037 = vmatprep.mubr.bf16.mxu0 0
      %4038 = vmatmul.mubr.bf16.gmra.mxu0 %v3688
      %v4039 = vpop.f32.mrf.mxu0
      %v4040 = vadd.f32 %v3465, %v4039
      %v4041 = vpop.f32.mrf.mxu0
      %v4042 = vadd.f32 %v3469, %v4041
      %v4043 = vpop.f32.mrf.mxu0
      %v4044 = vadd.f32 %v3465, %v4043
      %v4045 = vpop.f32.mrf.mxu0
      %v4046 = vadd.f32 %v3469, %v4045
      %4047 = vmatprep.mubr.bf16.mxu0 0
      %4048 = vmatmul.mubr.bf16.gmra.mxu0 %v3691
      %v4049 = vpop.f32.mrf.mxu0
      %v4050 = vadd.f32 %v3465, %v4049
      %v4051 = vpop.f32.mrf.mxu0
      %v4052 = vadd.f32 %v3469, %v4051
      %v4053 = vpop.f32.mrf.mxu0
      %v4054 = vadd.f32 %v3465, %v4053
      %v4055 = vpop.f32.mrf.mxu0
      %v4056 = vadd.f32 %v3469, %v4055
      %4057 = vmatprep.mubr.bf16.mxu0 0
      %4058 = vmatmul.mubr.bf16.gmra.mxu0 %v3694
      %v4059 = vpop.f32.mrf.mxu0
      %v4060 = vadd.f32 %v3465, %v4059
      %v4061 = vpop.f32.mrf.mxu0
      %v4062 = vadd.f32 %v3469, %v4061
      %v4063 = vpop.f32.mrf.mxu0
      %v4064 = vadd.f32 %v3465, %v4063
      %v4065 = vpop.f32.mrf.mxu0
      %v4066 = vadd.f32 %v3469, %v4065
      %4067 = vmatprep.mubr.bf16.mxu0 0
      %4068 = vmatmul.mubr.bf16.gmra.mxu0 %v3697
      %v4069 = vpop.f32.mrf.mxu0
      %v4070 = vadd.f32 %v3465, %v4069
      %v4071 = vpop.f32.mrf.mxu0
      %v4072 = vadd.f32 %v3469, %v4071
      %v4073 = vpop.f32.mrf.mxu0
      %v4074 = vadd.f32 %v3465, %v4073
      %v4075 = vpop.f32.mrf.mxu0
      %v4076 = vadd.f32 %v3469, %v4075
      %4077 = vmatprep.mubr.bf16.mxu0 0
      %4078 = vmatmul.mubr.bf16.gmra.mxu0 %v3700
      %v4079 = vpop.f32.mrf.mxu0
      %v4080 = vadd.f32 %v3465, %v4079
      %v4081 = vpop.f32.mrf.mxu0
      %v4082 = vadd.f32 %v3469, %v4081
      %v4083 = vpop.f32.mrf.mxu0
      %v4084 = vadd.f32 %v3465, %v4083
      %v4085 = vpop.f32.mrf.mxu0
      %v4086 = vadd.f32 %v3469, %v4085
      %4087 = vdwg.mxu0
      %4088 = vmatprep.subr.bf16.mxu0 0
      %4089 = vmatpush1.bf16.msra.mxu0 0
      %4090 = vmatprep.subr.bf16.mxu0 0
      %4091 = vmatpush1.bf16.msra.mxu0 0
      %4092 = vmatprep.subr.bf16.mxu0 0
      %4093 = vmatpush1.bf16.msra.mxu0 0
      %4094 = vmatprep.subr.bf16.mxu0 0
      %4095 = vmatpush1.bf16.msra.mxu0 0
      %4096 = vmatprep.subr.bf16.mxu0 %v3619
      %4097 = vmatpush1.bf16.msra.mxu0 %v3618
      %4098 = vmatprep.subr.bf16.mxu0 %v3611
      %4099 = vmatpush1.bf16.msra.mxu0 %v3610
      %4100 = vmatprep.subr.bf16.mxu0 %v3603
      %4101 = vmatpush1.bf16.msra.mxu0 %v3602
      %4102 = vmatprep.subr.bf16.mxu0 %v3595
      %4103 = vmatpush1.bf16.msra.mxu0 %v3594
      %4104 = vmatprep.subr.bf16.mxu0 0
      %4105 = vmatpush2.bf16.msra.mxu0 0
      %4106 = vmatprep.subr.bf16.mxu0 0
      %4107 = vmatpush2.bf16.msra.mxu0 0
      %4108 = vmatprep.subr.bf16.mxu0 0
      %4109 = vmatpush2.bf16.msra.mxu0 0
      %4110 = vmatprep.subr.bf16.mxu0 0
      %4111 = vmatpush2.bf16.msra.mxu0 0
      %4112 = vmatprep.subr.bf16.mxu0 0
      %4113 = vmatpush2.bf16.msra.mxu0 0
      %4114 = vmatprep.subr.bf16.mxu0 0
      %4115 = vmatpush2.bf16.msra.mxu0 0
      %4116 = vmatprep.subr.bf16.mxu0 0
      %4117 = vmatpush2.bf16.msra.mxu0 0
      %4118 = vmatprep.subr.bf16.mxu0 0
      %4119 = vmatpush2.bf16.msra.mxu0 0
      %4120 = vmatprep.mubr.bf16.mxu0 0
      %4121 = vmatmul.mubr.bf16.gmra.mxu0 %v3655
      %v4122 = vpop.f32.mrf.mxu0
      %v4123 = vadd.f32 %v3473, %v4122
      %v4124 = vpop.f32.mrf.mxu0
      %v4125 = vadd.f32 %v3477, %v4124
      %v4126 = vpop.f32.mrf.mxu0
      %v4127 = vadd.f32 %v3473, %v4126
      %v4128 = vpop.f32.mrf.mxu0
      %v4129 = vadd.f32 %v3477, %v4128
      %4130 = vmatprep.mubr.bf16.mxu0 0
      %4131 = vmatmul.mubr.bf16.gmra.mxu0 %v3658
      %v4132 = vpop.f32.mrf.mxu0
      %v4133 = vadd.f32 %v3473, %v4132
      %v4134 = vpop.f32.mrf.mxu0
      %v4135 = vadd.f32 %v3477, %v4134
      %v4136 = vpop.f32.mrf.mxu0
      %v4137 = vadd.f32 %v3473, %v4136
      %v4138 = vpop.f32.mrf.mxu0
      %v4139 = vadd.f32 %v3477, %v4138
      %4140 = vmatprep.mubr.bf16.mxu0 0
      %4141 = vmatmul.mubr.bf16.gmra.mxu0 %v3661
      %v4142 = vpop.f32.mrf.mxu0
      %v4143 = vadd.f32 %v3473, %v4142
      %v4144 = vpop.f32.mrf.mxu0
      %v4145 = vadd.f32 %v3477, %v4144
      %v4146 = vpop.f32.mrf.mxu0
      %v4147 = vadd.f32 %v3473, %v4146
      %v4148 = vpop.f32.mrf.mxu0
      %v4149 = vadd.f32 %v3477, %v4148
      %4150 = vmatprep.mubr.bf16.mxu0 0
      %4151 = vmatmul.mubr.bf16.gmra.mxu0 %v3664
      %v4152 = vpop.f32.mrf.mxu0
      %v4153 = vadd.f32 %v3473, %v4152
      %v4154 = vpop.f32.mrf.mxu0
      %v4155 = vadd.f32 %v3477, %v4154
      %v4156 = vpop.f32.mrf.mxu0
      %v4157 = vadd.f32 %v3473, %v4156
      %v4158 = vpop.f32.mrf.mxu0
      %v4159 = vadd.f32 %v3477, %v4158
      %4160 = vmatprep.mubr.bf16.mxu0 0
      %4161 = vmatmul.mubr.bf16.gmra.mxu0 %v3667
      %v4162 = vpop.f32.mrf.mxu0
      %v4163 = vadd.f32 %v3473, %v4162
      %v4164 = vpop.f32.mrf.mxu0
      %v4165 = vadd.f32 %v3477, %v4164
      %v4166 = vpop.f32.mrf.mxu0
      %v4167 = vadd.f32 %v3473, %v4166
      %v4168 = vpop.f32.mrf.mxu0
      %v4169 = vadd.f32 %v3477, %v4168
      %4170 = vmatprep.mubr.bf16.mxu0 0
      %4171 = vmatmul.mubr.bf16.gmra.mxu0 %v3670
      %v4172 = vpop.f32.mrf.mxu0
      %v4173 = vadd.f32 %v3473, %v4172
      %v4174 = vpop.f32.mrf.mxu0
      %v4175 = vadd.f32 %v3477, %v4174
      %v4176 = vpop.f32.mrf.mxu0
      %v4177 = vadd.f32 %v3473, %v4176
      %v4178 = vpop.f32.mrf.mxu0
      %v4179 = vadd.f32 %v3477, %v4178
      %4180 = vmatprep.mubr.bf16.mxu0 0
      %4181 = vmatmul.mubr.bf16.gmra.mxu0 %v3673
      %v4182 = vpop.f32.mrf.mxu0
      %v4183 = vadd.f32 %v3473, %v4182
      %v4184 = vpop.f32.mrf.mxu0
      %v4185 = vadd.f32 %v3477, %v4184
      %v4186 = vpop.f32.mrf.mxu0
      %v4187 = vadd.f32 %v3473, %v4186
      %v4188 = vpop.f32.mrf.mxu0
      %v4189 = vadd.f32 %v3477, %v4188
      %4190 = vmatprep.mubr.bf16.mxu0 0
      %4191 = vmatmul.mubr.bf16.gmra.mxu0 %v3676
      %v4192 = vpop.f32.mrf.mxu0
      %v4193 = vadd.f32 %v3473, %v4192
      %v4194 = vpop.f32.mrf.mxu0
      %v4195 = vadd.f32 %v3477, %v4194
      %v4196 = vpop.f32.mrf.mxu0
      %v4197 = vadd.f32 %v3473, %v4196
      %v4198 = vpop.f32.mrf.mxu0
      %v4199 = vadd.f32 %v3477, %v4198
      %4200 = vmatprep.mubr.bf16.mxu0 0
      %4201 = vmatmul.mubr.bf16.gmra.mxu0 %v3679
      %v4202 = vpop.f32.mrf.mxu0
      %v4203 = vadd.f32 %v3473, %v4202
      %v4204 = vpop.f32.mrf.mxu0
      %v4205 = vadd.f32 %v3477, %v4204
      %v4206 = vpop.f32.mrf.mxu0
      %v4207 = vadd.f32 %v3473, %v4206
      %v4208 = vpop.f32.mrf.mxu0
      %v4209 = vadd.f32 %v3477, %v4208
      %4210 = vmatprep.mubr.bf16.mxu0 0
      %4211 = vmatmul.mubr.bf16.gmra.mxu0 %v3682
      %v4212 = vpop.f32.mrf.mxu0
      %v4213 = vadd.f32 %v3473, %v4212
      %v4214 = vpop.f32.mrf.mxu0
      %v4215 = vadd.f32 %v3477, %v4214
      %v4216 = vpop.f32.mrf.mxu0
      %v4217 = vadd.f32 %v3473, %v4216
      %v4218 = vpop.f32.mrf.mxu0
      %v4219 = vadd.f32 %v3477, %v4218
      %4220 = vmatprep.mubr.bf16.mxu0 0
      %4221 = vmatmul.mubr.bf16.gmra.mxu0 %v3685
      %v4222 = vpop.f32.mrf.mxu0
      %v4223 = vadd.f32 %v3473, %v4222
      %v4224 = vpop.f32.mrf.mxu0
      %v4225 = vadd.f32 %v3477, %v4224
      %v4226 = vpop.f32.mrf.mxu0
      %v4227 = vadd.f32 %v3473, %v4226
      %v4228 = vpop.f32.mrf.mxu0
      %v4229 = vadd.f32 %v3477, %v4228
      %4230 = vmatprep.mubr.bf16.mxu0 0
      %4231 = vmatmul.mubr.bf16.gmra.mxu0 %v3688
      %v4232 = vpop.f32.mrf.mxu0
      %v4233 = vadd.f32 %v3473, %v4232
      %v4234 = vpop.f32.mrf.mxu0
      %v4235 = vadd.f32 %v3477, %v4234
      %v4236 = vpop.f32.mrf.mxu0
      %v4237 = vadd.f32 %v3473, %v4236
      %v4238 = vpop.f32.mrf.mxu0
      %v4239 = vadd.f32 %v3477, %v4238
      %4240 = vmatprep.mubr.bf16.mxu0 0
      %4241 = vmatmul.mubr.bf16.gmra.mxu0 %v3691
      %v4242 = vpop.f32.mrf.mxu0
      %v4243 = vadd.f32 %v3473, %v4242
      %v4244 = vpop.f32.mrf.mxu0
      %v4245 = vadd.f32 %v3477, %v4244
      %v4246 = vpop.f32.mrf.mxu0
      %v4247 = vadd.f32 %v3473, %v4246
      %v4248 = vpop.f32.mrf.mxu0
      %v4249 = vadd.f32 %v3477, %v4248
      %4250 = vmatprep.mubr.bf16.mxu0 0
      %4251 = vmatmul.mubr.bf16.gmra.mxu0 %v3694
      %v4252 = vpop.f32.mrf.mxu0
      %v4253 = vadd.f32 %v3473, %v4252
      %v4254 = vpop.f32.mrf.mxu0
      %v4255 = vadd.f32 %v3477, %v4254
      %v4256 = vpop.f32.mrf.mxu0
      %v4257 = vadd.f32 %v3473, %v4256
      %v4258 = vpop.f32.mrf.mxu0
      %v4259 = vadd.f32 %v3477, %v4258
      %4260 = vmatprep.mubr.bf16.mxu0 0
      %4261 = vmatmul.mubr.bf16.gmra.mxu0 %v3697
      %v4262 = vpop.f32.mrf.mxu0
      %v4263 = vadd.f32 %v3473, %v4262
      %v4264 = vpop.f32.mrf.mxu0
      %v4265 = vadd.f32 %v3477, %v4264
      %v4266 = vpop.f32.mrf.mxu0
      %v4267 = vadd.f32 %v3473, %v4266
      %v4268 = vpop.f32.mrf.mxu0
      %v4269 = vadd.f32 %v3477, %v4268
      %4270 = vmatprep.mubr.bf16.mxu0 0
      %4271 = vmatmul.mubr.bf16.gmra.mxu0 %v3700
      %v4272 = vpop.f32.mrf.mxu0
      %v4273 = vadd.f32 %v3473, %v4272
      %v4274 = vpop.f32.mrf.mxu0
      %v4275 = vadd.f32 %v3477, %v4274
      %v4276 = vpop.f32.mrf.mxu0
      %v4277 = vadd.f32 %v3473, %v4276
      %v4278 = vpop.f32.mrf.mxu0
      %v4279 = vadd.f32 %v3477, %v4278
      %4280 = vdwg.mxu0
      %4281 = vmatprep.subr.bf16.mxu0 0
      %4282 = vmatpush1.bf16.msra.mxu0 0
      %4283 = vmatprep.subr.bf16.mxu0 0
      %4284 = vmatpush1.bf16.msra.mxu0 0
      %4285 = vmatprep.subr.bf16.mxu0 0
      %4286 = vmatpush1.bf16.msra.mxu0 0
      %4287 = vmatprep.subr.bf16.mxu0 0
      %4288 = vmatpush1.bf16.msra.mxu0 0
      %4289 = vmatprep.subr.bf16.mxu0 %v3621
      %4290 = vmatpush1.bf16.msra.mxu0 %v3620
      %4291 = vmatprep.subr.bf16.mxu0 %v3613
      %4292 = vmatpush1.bf16.msra.mxu0 %v3612
      %4293 = vmatprep.subr.bf16.mxu0 %v3605
      %4294 = vmatpush1.bf16.msra.mxu0 %v3604
      %4295 = vmatprep.subr.bf16.mxu0 %v3597
      %4296 = vmatpush1.bf16.msra.mxu0 %v3596
      %4297 = vmatprep.subr.bf16.mxu0 0
      %4298 = vmatpush2.bf16.msra.mxu0 0
      %4299 = vmatprep.subr.bf16.mxu0 0
      %4300 = vmatpush2.bf16.msra.mxu0 0
      %4301 = vmatprep.subr.bf16.mxu0 0
      %4302 = vmatpush2.bf16.msra.mxu0 0
      %4303 = vmatprep.subr.bf16.mxu0 0
      %4304 = vmatpush2.bf16.msra.mxu0 0
      %4305 = vmatprep.subr.bf16.mxu0 0
      %4306 = vmatpush2.bf16.msra.mxu0 0
      %4307 = vmatprep.subr.bf16.mxu0 0
      %4308 = vmatpush2.bf16.msra.mxu0 0
      %4309 = vmatprep.subr.bf16.mxu0 0
      %4310 = vmatpush2.bf16.msra.mxu0 0
      %4311 = vmatprep.subr.bf16.mxu0 0
      %4312 = vmatpush2.bf16.msra.mxu0 0
      %4313 = vmatprep.mubr.bf16.mxu0 0
      %4314 = vmatmul.mubr.bf16.gmra.mxu0 %v3655
      %v4315 = vpop.f32.mrf.mxu0
      %v4316 = vadd.f32 %v3481, %v4315
      %v4317 = vpop.f32.mrf.mxu0
      %v4318 = vadd.f32 %v3485, %v4317
      %v4319 = vpop.f32.mrf.mxu0
      %v4320 = vadd.f32 %v3481, %v4319
      %v4321 = vpop.f32.mrf.mxu0
      %v4322 = vadd.f32 %v3485, %v4321
      %4323 = vmatprep.mubr.bf16.mxu0 0
      %4324 = vmatmul.mubr.bf16.gmra.mxu0 %v3658
      %v4325 = vpop.f32.mrf.mxu0
      %v4326 = vadd.f32 %v3481, %v4325
      %v4327 = vpop.f32.mrf.mxu0
      %v4328 = vadd.f32 %v3485, %v4327
      %v4329 = vpop.f32.mrf.mxu0
      %v4330 = vadd.f32 %v3481, %v4329
      %v4331 = vpop.f32.mrf.mxu0
      %v4332 = vadd.f32 %v3485, %v4331
      %4333 = vmatprep.mubr.bf16.mxu0 0
      %4334 = vmatmul.mubr.bf16.gmra.mxu0 %v3661
      %v4335 = vpop.f32.mrf.mxu0
      %v4336 = vadd.f32 %v3481, %v4335
      %v4337 = vpop.f32.mrf.mxu0
      %v4338 = vadd.f32 %v3485, %v4337
      %v4339 = vpop.f32.mrf.mxu0
      %v4340 = vadd.f32 %v3481, %v4339
      %v4341 = vpop.f32.mrf.mxu0
      %v4342 = vadd.f32 %v3485, %v4341
      %4343 = vmatprep.mubr.bf16.mxu0 0
      %4344 = vmatmul.mubr.bf16.gmra.mxu0 %v3664
      %v4345 = vpop.f32.mrf.mxu0
      %v4346 = vadd.f32 %v3481, %v4345
      %v4347 = vpop.f32.mrf.mxu0
      %v4348 = vadd.f32 %v3485, %v4347
      %v4349 = vpop.f32.mrf.mxu0
      %v4350 = vadd.f32 %v3481, %v4349
      %v4351 = vpop.f32.mrf.mxu0
      %v4352 = vadd.f32 %v3485, %v4351
      %4353 = vmatprep.mubr.bf16.mxu0 0
      %4354 = vmatmul.mubr.bf16.gmra.mxu0 %v3667
      %v4355 = vpop.f32.mrf.mxu0
      %v4356 = vadd.f32 %v3481, %v4355
      %v4357 = vpop.f32.mrf.mxu0
      %v4358 = vadd.f32 %v3485, %v4357
      %v4359 = vpop.f32.mrf.mxu0
      %v4360 = vadd.f32 %v3481, %v4359
      %v4361 = vpop.f32.mrf.mxu0
      %v4362 = vadd.f32 %v3485, %v4361
      %4363 = vmatprep.mubr.bf16.mxu0 0
      %4364 = vmatmul.mubr.bf16.gmra.mxu0 %v3670
      %v4365 = vpop.f32.mrf.mxu0
      %v4366 = vadd.f32 %v3481, %v4365
      %v4367 = vpop.f32.mrf.mxu0
      %v4368 = vadd.f32 %v3485, %v4367
      %v4369 = vpop.f32.mrf.mxu0
      %v4370 = vadd.f32 %v3481, %v4369
      %v4371 = vpop.f32.mrf.mxu0
      %v4372 = vadd.f32 %v3485, %v4371
      %4373 = vmatprep.mubr.bf16.mxu0 0
      %4374 = vmatmul.mubr.bf16.gmra.mxu0 %v3673
      %v4375 = vpop.f32.mrf.mxu0
      %v4376 = vadd.f32 %v3481, %v4375
      %v4377 = vpop.f32.mrf.mxu0
      %v4378 = vadd.f32 %v3485, %v4377
      %v4379 = vpop.f32.mrf.mxu0
      %v4380 = vadd.f32 %v3481, %v4379
      %v4381 = vpop.f32.mrf.mxu0
      %v4382 = vadd.f32 %v3485, %v4381
      %4383 = vmatprep.mubr.bf16.mxu0 0
      %4384 = vmatmul.mubr.bf16.gmra.mxu0 %v3676
      %v4385 = vpop.f32.mrf.mxu0
      %v4386 = vadd.f32 %v3481, %v4385
      %v4387 = vpop.f32.mrf.mxu0
      %v4388 = vadd.f32 %v3485, %v4387
      %v4389 = vpop.f32.mrf.mxu0
      %v4390 = vadd.f32 %v3481, %v4389
      %v4391 = vpop.f32.mrf.mxu0
      %v4392 = vadd.f32 %v3485, %v4391
      %4393 = vmatprep.mubr.bf16.mxu0 0
      %4394 = vmatmul.mubr.bf16.gmra.mxu0 %v3679
      %v4395 = vpop.f32.mrf.mxu0
      %v4396 = vadd.f32 %v3481, %v4395
      %v4397 = vpop.f32.mrf.mxu0
      %v4398 = vadd.f32 %v3485, %v4397
      %v4399 = vpop.f32.mrf.mxu0
      %v4400 = vadd.f32 %v3481, %v4399
      %v4401 = vpop.f32.mrf.mxu0
      %v4402 = vadd.f32 %v3485, %v4401
      %4403 = vmatprep.mubr.bf16.mxu0 0
      %4404 = vmatmul.mubr.bf16.gmra.mxu0 %v3682
      %v4405 = vpop.f32.mrf.mxu0
      %v4406 = vadd.f32 %v3481, %v4405
      %v4407 = vpop.f32.mrf.mxu0
      %v4408 = vadd.f32 %v3485, %v4407
      %v4409 = vpop.f32.mrf.mxu0
      %v4410 = vadd.f32 %v3481, %v4409
      %v4411 = vpop.f32.mrf.mxu0
      %v4412 = vadd.f32 %v3485, %v4411
      %4413 = vmatprep.mubr.bf16.mxu0 0
      %4414 = vmatmul.mubr.bf16.gmra.mxu0 %v3685
      %v4415 = vpop.f32.mrf.mxu0
      %v4416 = vadd.f32 %v3481, %v4415
      %v4417 = vpop.f32.mrf.mxu0
      %v4418 = vadd.f32 %v3485, %v4417
      %v4419 = vpop.f32.mrf.mxu0
      %v4420 = vadd.f32 %v3481, %v4419
      %v4421 = vpop.f32.mrf.mxu0
      %v4422 = vadd.f32 %v3485, %v4421
      %4423 = vmatprep.mubr.bf16.mxu0 0
      %4424 = vmatmul.mubr.bf16.gmra.mxu0 %v3688
      %v4425 = vpop.f32.mrf.mxu0
      %v4426 = vadd.f32 %v3481, %v4425
      %v4427 = vpop.f32.mrf.mxu0
      %v4428 = vadd.f32 %v3485, %v4427
      %v4429 = vpop.f32.mrf.mxu0
      %v4430 = vadd.f32 %v3481, %v4429
      %v4431 = vpop.f32.mrf.mxu0
      %v4432 = vadd.f32 %v3485, %v4431
      %4433 = vmatprep.mubr.bf16.mxu0 0
      %4434 = vmatmul.mubr.bf16.gmra.mxu0 %v3691
      %v4435 = vpop.f32.mrf.mxu0
      %v4436 = vadd.f32 %v3481, %v4435
      %v4437 = vpop.f32.mrf.mxu0
      %v4438 = vadd.f32 %v3485, %v4437
      %v4439 = vpop.f32.mrf.mxu0
      %v4440 = vadd.f32 %v3481, %v4439
      %v4441 = vpop.f32.mrf.mxu0
      %v4442 = vadd.f32 %v3485, %v4441
      %4443 = vmatprep.mubr.bf16.mxu0 0
      %4444 = vmatmul.mubr.bf16.gmra.mxu0 %v3694
      %v4445 = vpop.f32.mrf.mxu0
      %v4446 = vadd.f32 %v3481, %v4445
      %v4447 = vpop.f32.mrf.mxu0
      %v4448 = vadd.f32 %v3485, %v4447
      %v4449 = vpop.f32.mrf.mxu0
      %v4450 = vadd.f32 %v3481, %v4449
      %v4451 = vpop.f32.mrf.mxu0
      %v4452 = vadd.f32 %v3485, %v4451
      %4453 = vmatprep.mubr.bf16.mxu0 0
      %4454 = vmatmul.mubr.bf16.gmra.mxu0 %v3697
      %v4455 = vpop.f32.mrf.mxu0
      %v4456 = vadd.f32 %v3481, %v4455
      %v4457 = vpop.f32.mrf.mxu0
      %v4458 = vadd.f32 %v3485, %v4457
      %v4459 = vpop.f32.mrf.mxu0
      %v4460 = vadd.f32 %v3481, %v4459
      %v4461 = vpop.f32.mrf.mxu0
      %v4462 = vadd.f32 %v3485, %v4461
      %4463 = vmatprep.mubr.bf16.mxu0 0
      %4464 = vmatmul.mubr.bf16.gmra.mxu0 %v3700
      %v4465 = vpop.f32.mrf.mxu0
      %v4466 = vadd.f32 %v3481, %v4465
      %v4467 = vpop.f32.mrf.mxu0
      %v4468 = vadd.f32 %v3485, %v4467
      %v4469 = vpop.f32.mrf.mxu0
      %v4470 = vadd.f32 %v3481, %v4469
      %v4471 = vpop.f32.mrf.mxu0
      %v4472 = vadd.f32 %v3485, %v4471
      %4473 = vdwg.mxu0
      %v4474 = vadd.f32 %v3737, 3.0
      %v4475 = vadd.f32 %v3739, 3.0
      %v4476 = vadd.f32 %v3930, 3.0
      %v4477 = vadd.f32 %v3932, 3.0
      %v4478 = vadd.f32 %v4123, 3.0
      %v4479 = vadd.f32 %v4125, 3.0
      %v4480 = vadd.f32 %v4316, 3.0
      %v4481 = vadd.f32 %v4318, 3.0
      %v4482 = vadd.f32 %v3741, 3.0
      %v4483 = vadd.f32 %v3743, 3.0
      %v4484 = vadd.f32 %v3934, 3.0
      %v4485 = vadd.f32 %v3936, 3.0
      %v4486 = vadd.f32 %v4127, 3.0
      %v4487 = vadd.f32 %v4129, 3.0
      %v4488 = vadd.f32 %v4320, 3.0
      %v4489 = vadd.f32 %v4322, 3.0
      %v4490 = vadd.f32 %v3747, 3.0
      %v4491 = vadd.f32 %v3749, 3.0
      %v4492 = vadd.f32 %v3940, 3.0
      %v4493 = vadd.f32 %v3942, 3.0
      %v4494 = vadd.f32 %v4133, 3.0
      %v4495 = vadd.f32 %v4135, 3.0
      %v4496 = vadd.f32 %v4326, 3.0
      %v4497 = vadd.f32 %v4328, 3.0
      %v4498 = vadd.f32 %v3751, 3.0
      %v4499 = vadd.f32 %v3753, 3.0
      %v4500 = vadd.f32 %v3944, 3.0
      %v4501 = vadd.f32 %v3946, 3.0
      %v4502 = vadd.f32 %v4137, 3.0
      %v4503 = vadd.f32 %v4139, 3.0
      %v4504 = vadd.f32 %v4330, 3.0
      %v4505 = vadd.f32 %v4332, 3.0
      %v4506 = vadd.f32 %v3757, 3.0
      %v4507 = vadd.f32 %v3759, 3.0
      %v4508 = vadd.f32 %v3950, 3.0
      %v4509 = vadd.f32 %v3952, 3.0
      %v4510 = vadd.f32 %v4143, 3.0
      %v4511 = vadd.f32 %v4145, 3.0
      %v4512 = vadd.f32 %v4336, 3.0
      %v4513 = vadd.f32 %v4338, 3.0
      %v4514 = vadd.f32 %v3761, 3.0
      %v4515 = vadd.f32 %v3763, 3.0
      %v4516 = vadd.f32 %v3954, 3.0
      %v4517 = vadd.f32 %v3956, 3.0
      %v4518 = vadd.f32 %v4147, 3.0
      %v4519 = vadd.f32 %v4149, 3.0
      %v4520 = vadd.f32 %v4340, 3.0
      %v4521 = vadd.f32 %v4342, 3.0
      %v4522 = vadd.f32 %v3767, 3.0
      %v4523 = vadd.f32 %v3769, 3.0
      %v4524 = vadd.f32 %v3960, 3.0
      %v4525 = vadd.f32 %v3962, 3.0
      %v4526 = vadd.f32 %v4153, 3.0
      %v4527 = vadd.f32 %v4155, 3.0
      %v4528 = vadd.f32 %v4346, 3.0
      %v4529 = vadd.f32 %v4348, 3.0
      %v4530 = vadd.f32 %v3771, 3.0
      %v4531 = vadd.f32 %v3773, 3.0
      %v4532 = vadd.f32 %v3964, 3.0
      %v4533 = vadd.f32 %v3966, 3.0
      %v4534 = vadd.f32 %v4157, 3.0
      %v4535 = vadd.f32 %v4159, 3.0
      %v4536 = vadd.f32 %v4350, 3.0
      %v4537 = vadd.f32 %v4352, 3.0
      %v4538 = vadd.f32 %v3777, 3.0
      %v4539 = vadd.f32 %v3779, 3.0
      %v4540 = vadd.f32 %v3970, 3.0
      %v4541 = vadd.f32 %v3972, 3.0
      %v4542 = vadd.f32 %v4163, 3.0
      %v4543 = vadd.f32 %v4165, 3.0
      %v4544 = vadd.f32 %v4356, 3.0
      %v4545 = vadd.f32 %v4358, 3.0
      %v4546 = vadd.f32 %v3781, 3.0
      %v4547 = vadd.f32 %v3783, 3.0
      %v4548 = vadd.f32 %v3974, 3.0
      %v4549 = vadd.f32 %v3976, 3.0
      %v4550 = vadd.f32 %v4167, 3.0
      %v4551 = vadd.f32 %v4169, 3.0
      %v4552 = vadd.f32 %v4360, 3.0
      %v4553 = vadd.f32 %v4362, 3.0
      %v4554 = vadd.f32 %v3787, 3.0
      %v4555 = vadd.f32 %v3789, 3.0
      %v4556 = vadd.f32 %v3980, 3.0
      %v4557 = vadd.f32 %v3982, 3.0
      %v4558 = vadd.f32 %v4173, 3.0
      %v4559 = vadd.f32 %v4175, 3.0
      %v4560 = vadd.f32 %v4366, 3.0
      %v4561 = vadd.f32 %v4368, 3.0
      %v4562 = vadd.f32 %v3791, 3.0
      %v4563 = vadd.f32 %v3793, 3.0
      %v4564 = vadd.f32 %v3984, 3.0
      %v4565 = vadd.f32 %v3986, 3.0
      %v4566 = vadd.f32 %v4177, 3.0
      %v4567 = vadd.f32 %v4179, 3.0
      %v4568 = vadd.f32 %v4370, 3.0
      %v4569 = vadd.f32 %v4372, 3.0
      %v4570 = vadd.f32 %v3797, 3.0
      %v4571 = vadd.f32 %v3799, 3.0
      %v4572 = vadd.f32 %v3990, 3.0
      %v4573 = vadd.f32 %v3992, 3.0
      %v4574 = vadd.f32 %v4183, 3.0
      %v4575 = vadd.f32 %v4185, 3.0
      %v4576 = vadd.f32 %v4376, 3.0
      %v4577 = vadd.f32 %v4378, 3.0
      %v4578 = vadd.f32 %v3801, 3.0
      %v4579 = vadd.f32 %v3803, 3.0
      %v4580 = vadd.f32 %v3994, 3.0
      %v4581 = vadd.f32 %v3996, 3.0
      %v4582 = vadd.f32 %v4187, 3.0
      %v4583 = vadd.f32 %v4189, 3.0
      %v4584 = vadd.f32 %v4380, 3.0
      %v4585 = vadd.f32 %v4382, 3.0
      %v4586 = vadd.f32 %v3807, 3.0
      %v4587 = vadd.f32 %v3809, 3.0
      %v4588 = vadd.f32 %v4000, 3.0
      %v4589 = vadd.f32 %v4002, 3.0
      %v4590 = vadd.f32 %v4193, 3.0
      %v4591 = vadd.f32 %v4195, 3.0
      %v4592 = vadd.f32 %v4386, 3.0
      %v4593 = vadd.f32 %v4388, 3.0
      %v4594 = vadd.f32 %v3811, 3.0
      %v4595 = vadd.f32 %v3813, 3.0
      %v4596 = vadd.f32 %v4004, 3.0
      %v4597 = vadd.f32 %v4006, 3.0
      %v4598 = vadd.f32 %v4197, 3.0
      %v4599 = vadd.f32 %v4199, 3.0
      %v4600 = vadd.f32 %v4390, 3.0
      %v4601 = vadd.f32 %v4392, 3.0
      %v4602 = vadd.f32 %v3817, 3.0
      %v4603 = vadd.f32 %v3819, 3.0
      %v4604 = vadd.f32 %v4010, 3.0
      %v4605 = vadd.f32 %v4012, 3.0
      %v4606 = vadd.f32 %v4203, 3.0
      %v4607 = vadd.f32 %v4205, 3.0
      %v4608 = vadd.f32 %v4396, 3.0
      %v4609 = vadd.f32 %v4398, 3.0
      %v4610 = vadd.f32 %v3821, 3.0
      %v4611 = vadd.f32 %v3823, 3.0
      %v4612 = vadd.f32 %v4014, 3.0
      %v4613 = vadd.f32 %v4016, 3.0
      %v4614 = vadd.f32 %v4207, 3.0
      %v4615 = vadd.f32 %v4209, 3.0
      %v4616 = vadd.f32 %v4400, 3.0
      %v4617 = vadd.f32 %v4402, 3.0
      %v4618 = vadd.f32 %v3827, 3.0
      %v4619 = vadd.f32 %v3829, 3.0
      %v4620 = vadd.f32 %v4020, 3.0
      %v4621 = vadd.f32 %v4022, 3.0
      %v4622 = vadd.f32 %v4213, 3.0
      %v4623 = vadd.f32 %v4215, 3.0
      %v4624 = vadd.f32 %v4406, 3.0
      %v4625 = vadd.f32 %v4408, 3.0
      %v4626 = vadd.f32 %v3831, 3.0
      %v4627 = vadd.f32 %v3833, 3.0
      %v4628 = vadd.f32 %v4024, 3.0
      %v4629 = vadd.f32 %v4026, 3.0
      %v4630 = vadd.f32 %v4217, 3.0
      %v4631 = vadd.f32 %v4219, 3.0
      %v4632 = vadd.f32 %v4410, 3.0
      %v4633 = vadd.f32 %v4412, 3.0
      %v4634 = vadd.f32 %v3837, 3.0
      %v4635 = vadd.f32 %v3839, 3.0
      %v4636 = vadd.f32 %v4030, 3.0
      %v4637 = vadd.f32 %v4032, 3.0
      %v4638 = vadd.f32 %v4223, 3.0
      %v4639 = vadd.f32 %v4225, 3.0
      %v4640 = vadd.f32 %v4416, 3.0
      %v4641 = vadd.f32 %v4418, 3.0
      %v4642 = vadd.f32 %v3841, 3.0
      %v4643 = vadd.f32 %v3843, 3.0
      %v4644 = vadd.f32 %v4034, 3.0
      %v4645 = vadd.f32 %v4036, 3.0
      %v4646 = vadd.f32 %v4227, 3.0
      %v4647 = vadd.f32 %v4229, 3.0
      %v4648 = vadd.f32 %v4420, 3.0
      %v4649 = vadd.f32 %v4422, 3.0
      %v4650 = vadd.f32 %v3847, 3.0
      %v4651 = vadd.f32 %v3849, 3.0
      %v4652 = vadd.f32 %v4040, 3.0
      %v4653 = vadd.f32 %v4042, 3.0
      %v4654 = vadd.f32 %v4233, 3.0
      %v4655 = vadd.f32 %v4235, 3.0
      %v4656 = vadd.f32 %v4426, 3.0
      %v4657 = vadd.f32 %v4428, 3.0
      %v4658 = vadd.f32 %v3851, 3.0
      %v4659 = vadd.f32 %v3853, 3.0
      %v4660 = vadd.f32 %v4044, 3.0
      %v4661 = vadd.f32 %v4046, 3.0
      %v4662 = vadd.f32 %v4237, 3.0
      %v4663 = vadd.f32 %v4239, 3.0
      %v4664 = vadd.f32 %v4430, 3.0
      %v4665 = vadd.f32 %v4432, 3.0
      %v4666 = vadd.f32 %v3857, 3.0
      %v4667 = vadd.f32 %v3859, 3.0
      %v4668 = vadd.f32 %v4050, 3.0
      %v4669 = vadd.f32 %v4052, 3.0
      %v4670 = vadd.f32 %v4243, 3.0
      %v4671 = vadd.f32 %v4245, 3.0
      %v4672 = vadd.f32 %v4436, 3.0
      %v4673 = vadd.f32 %v4438, 3.0
      %v4674 = vadd.f32 %v3861, 3.0
      %v4675 = vadd.f32 %v3863, 3.0
      %v4676 = vadd.f32 %v4054, 3.0
      %v4677 = vadd.f32 %v4056, 3.0
      %v4678 = vadd.f32 %v4247, 3.0
      %v4679 = vadd.f32 %v4249, 3.0
      %v4680 = vadd.f32 %v4440, 3.0
      %v4681 = vadd.f32 %v4442, 3.0
      %v4682 = vadd.f32 %v3867, 3.0
      %v4683 = vadd.f32 %v3869, 3.0
      %v4684 = vadd.f32 %v4060, 3.0
      %v4685 = vadd.f32 %v4062, 3.0
      %v4686 = vadd.f32 %v4253, 3.0
      %v4687 = vadd.f32 %v4255, 3.0
      %v4688 = vadd.f32 %v4446, 3.0
      %v4689 = vadd.f32 %v4448, 3.0
      %v4690 = vadd.f32 %v3871, 3.0
      %v4691 = vadd.f32 %v3873, 3.0
      %v4692 = vadd.f32 %v4064, 3.0
      %v4693 = vadd.f32 %v4066, 3.0
      %v4694 = vadd.f32 %v4257, 3.0
      %v4695 = vadd.f32 %v4259, 3.0
      %v4696 = vadd.f32 %v4450, 3.0
      %v4697 = vadd.f32 %v4452, 3.0
      %v4698 = vadd.f32 %v3877, 3.0
      %v4699 = vadd.f32 %v3879, 3.0
      %v4700 = vadd.f32 %v4070, 3.0
      %v4701 = vadd.f32 %v4072, 3.0
      %v4702 = vadd.f32 %v4263, 3.0
      %v4703 = vadd.f32 %v4265, 3.0
      %v4704 = vadd.f32 %v4456, 3.0
      %v4705 = vadd.f32 %v4458, 3.0
      %v4706 = vadd.f32 %v3881, 3.0
      %v4707 = vadd.f32 %v3883, 3.0
      %v4708 = vadd.f32 %v4074, 3.0
      %v4709 = vadd.f32 %v4076, 3.0
      %v4710 = vadd.f32 %v4267, 3.0
      %v4711 = vadd.f32 %v4269, 3.0
      %v4712 = vadd.f32 %v4460, 3.0
      %v4713 = vadd.f32 %v4462, 3.0
      %v4714 = vadd.f32 %v3887, 3.0
      %v4715 = vadd.f32 %v3889, 3.0
      %v4716 = vadd.f32 %v4080, 3.0
      %v4717 = vadd.f32 %v4082, 3.0
      %v4718 = vadd.f32 %v4273, 3.0
      %v4719 = vadd.f32 %v4275, 3.0
      %v4720 = vadd.f32 %v4466, 3.0
      %v4721 = vadd.f32 %v4468, 3.0
      %v4722 = vadd.f32 %v3891, 3.0
      %v4723 = vadd.f32 %v3893, 3.0
      %v4724 = vadd.f32 %v4084, 3.0
      %v4725 = vadd.f32 %v4086, 3.0
      %v4726 = vadd.f32 %v4277, 3.0
      %v4727 = vadd.f32 %v4279, 3.0
      %v4728 = vadd.f32 %v4470, 3.0
      %v4729 = vadd.f32 %v4472, 3.0
      %v4730 = vmax.f32 %v4474, 0.0
      %v4731 = vmax.f32 %v4475, 0.0
      %v4732 = vmax.f32 %v4476, 0.0
      %v4733 = vmax.f32 %v4477, 0.0
      %v4734 = vmax.f32 %v4478, 0.0
      %v4735 = vmax.f32 %v4479, 0.0
      %v4736 = vmax.f32 %v4480, 0.0
      %v4737 = vmax.f32 %v4481, 0.0
      %v4738 = vmax.f32 %v4482, 0.0
      %v4739 = vmax.f32 %v4483, 0.0
      %v4740 = vmax.f32 %v4484, 0.0
      %v4741 = vmax.f32 %v4485, 0.0
      %v4742 = vmax.f32 %v4486, 0.0
      %v4743 = vmax.f32 %v4487, 0.0
      %v4744 = vmax.f32 %v4488, 0.0
      %v4745 = vmax.f32 %v4489, 0.0
      %v4746 = vmax.f32 %v4490, 0.0
      %v4747 = vmax.f32 %v4491, 0.0
      %v4748 = vmax.f32 %v4492, 0.0
      %v4749 = vmax.f32 %v4493, 0.0
      %v4750 = vmax.f32 %v4494, 0.0
      %v4751 = vmax.f32 %v4495, 0.0
      %v4752 = vmax.f32 %v4496, 0.0
      %v4753 = vmax.f32 %v4497, 0.0
      %v4754 = vmax.f32 %v4498, 0.0
      %v4755 = vmax.f32 %v4499, 0.0
      %v4756 = vmax.f32 %v4500, 0.0
      %v4757 = vmax.f32 %v4501, 0.0
      %v4758 = vmax.f32 %v4502, 0.0
      %v4759 = vmax.f32 %v4503, 0.0
      %v4760 = vmax.f32 %v4504, 0.0
      %v4761 = vmax.f32 %v4505, 0.0
      %v4762 = vmax.f32 %v4506, 0.0
      %v4763 = vmax.f32 %v4507, 0.0
      %v4764 = vmax.f32 %v4508, 0.0
      %v4765 = vmax.f32 %v4509, 0.0
      %v4766 = vmax.f32 %v4510, 0.0
      %v4767 = vmax.f32 %v4511, 0.0
      %v4768 = vmax.f32 %v4512, 0.0
      %v4769 = vmax.f32 %v4513, 0.0
      %v4770 = vmax.f32 %v4514, 0.0
      %v4771 = vmax.f32 %v4515, 0.0
      %v4772 = vmax.f32 %v4516, 0.0
      %v4773 = vmax.f32 %v4517, 0.0
      %v4774 = vmax.f32 %v4518, 0.0
      %v4775 = vmax.f32 %v4519, 0.0
      %v4776 = vmax.f32 %v4520, 0.0
      %v4777 = vmax.f32 %v4521, 0.0
      %v4778 = vmax.f32 %v4522, 0.0
      %v4779 = vmax.f32 %v4523, 0.0
      %v4780 = vmax.f32 %v4524, 0.0
      %v4781 = vmax.f32 %v4525, 0.0
      %v4782 = vmax.f32 %v4526, 0.0
      %v4783 = vmax.f32 %v4527, 0.0
      %v4784 = vmax.f32 %v4528, 0.0
      %v4785 = vmax.f32 %v4529, 0.0
      %v4786 = vmax.f32 %v4530, 0.0
      %v4787 = vmax.f32 %v4531, 0.0
      %v4788 = vmax.f32 %v4532, 0.0
      %v4789 = vmax.f32 %v4533, 0.0
      %v4790 = vmax.f32 %v4534, 0.0
      %v4791 = vmax.f32 %v4535, 0.0
      %v4792 = vmax.f32 %v4536, 0.0
      %v4793 = vmax.f32 %v4537, 0.0
      %v4794 = vmax.f32 %v4538, 0.0
      %v4795 = vmax.f32 %v4539, 0.0
      %v4796 = vmax.f32 %v4540, 0.0
      %v4797 = vmax.f32 %v4541, 0.0
      %v4798 = vmax.f32 %v4542, 0.0
      %v4799 = vmax.f32 %v4543, 0.0
      %v4800 = vmax.f32 %v4544, 0.0
      %v4801 = vmax.f32 %v4545, 0.0
      %v4802 = vmax.f32 %v4546, 0.0
      %v4803 = vmax.f32 %v4547, 0.0
      %v4804 = vmax.f32 %v4548, 0.0
      %v4805 = vmax.f32 %v4549, 0.0
      %v4806 = vmax.f32 %v4550, 0.0
      %v4807 = vmax.f32 %v4551, 0.0
      %v4808 = vmax.f32 %v4552, 0.0
      %v4809 = vmax.f32 %v4553, 0.0
      %v4810 = vmax.f32 %v4554, 0.0
      %v4811 = vmax.f32 %v4555, 0.0
      %v4812 = vmax.f32 %v4556, 0.0
      %v4813 = vmax.f32 %v4557, 0.0
      %v4814 = vmax.f32 %v4558, 0.0
      %v4815 = vmax.f32 %v4559, 0.0
      %v4816 = vmax.f32 %v4560, 0.0
      %v4817 = vmax.f32 %v4561, 0.0
      %v4818 = vmax.f32 %v4562, 0.0
      %v4819 = vmax.f32 %v4563, 0.0
      %v4820 = vmax.f32 %v4564, 0.0
      %v4821 = vmax.f32 %v4565, 0.0
      %v4822 = vmax.f32 %v4566, 0.0
      %v4823 = vmax.f32 %v4567, 0.0
      %v4824 = vmax.f32 %v4568, 0.0
      %v4825 = vmax.f32 %v4569, 0.0
      %v4826 = vmax.f32 %v4570, 0.0
      %v4827 = vmax.f32 %v4571, 0.0
      %v4828 = vmax.f32 %v4572, 0.0
      %v4829 = vmax.f32 %v4573, 0.0
      %v4830 = vmax.f32 %v4574, 0.0
      %v4831 = vmax.f32 %v4575, 0.0
      %v4832 = vmax.f32 %v4576, 0.0
      %v4833 = vmax.f32 %v4577, 0.0
      %v4834 = vmax.f32 %v4578, 0.0
      %v4835 = vmax.f32 %v4579, 0.0
      %v4836 = vmax.f32 %v4580, 0.0
      %v4837 = vmax.f32 %v4581, 0.0
      %v4838 = vmax.f32 %v4582, 0.0
      %v4839 = vmax.f32 %v4583, 0.0
      %v4840 = vmax.f32 %v4584, 0.0
      %v4841 = vmax.f32 %v4585, 0.0
      %v4842 = vmax.f32 %v4586, 0.0
      %v4843 = vmax.f32 %v4587, 0.0
      %v4844 = vmax.f32 %v4588, 0.0
      %v4845 = vmax.f32 %v4589, 0.0
      %v4846 = vmax.f32 %v4590, 0.0
      %v4847 = vmax.f32 %v4591, 0.0
      %v4848 = vmax.f32 %v4592, 0.0
      %v4849 = vmax.f32 %v4593, 0.0
      %v4850 = vmax.f32 %v4594, 0.0
      %v4851 = vmax.f32 %v4595, 0.0
      %v4852 = vmax.f32 %v4596, 0.0
      %v4853 = vmax.f32 %v4597, 0.0
      %v4854 = vmax.f32 %v4598, 0.0
      %v4855 = vmax.f32 %v4599, 0.0
      %v4856 = vmax.f32 %v4600, 0.0
      %v4857 = vmax.f32 %v4601, 0.0
      %v4858 = vmax.f32 %v4602, 0.0
      %v4859 = vmax.f32 %v4603, 0.0
      %v4860 = vmax.f32 %v4604, 0.0
      %v4861 = vmax.f32 %v4605, 0.0
      %v4862 = vmax.f32 %v4606, 0.0
      %v4863 = vmax.f32 %v4607, 0.0
      %v4864 = vmax.f32 %v4608, 0.0
      %v4865 = vmax.f32 %v4609, 0.0
      %v4866 = vmax.f32 %v4610, 0.0
      %v4867 = vmax.f32 %v4611, 0.0
      %v4868 = vmax.f32 %v4612, 0.0
      %v4869 = vmax.f32 %v4613, 0.0
      %v4870 = vmax.f32 %v4614, 0.0
      %v4871 = vmax.f32 %v4615, 0.0
      %v4872 = vmax.f32 %v4616, 0.0
      %v4873 = vmax.f32 %v4617, 0.0
      %v4874 = vmax.f32 %v4618, 0.0
      %v4875 = vmax.f32 %v4619, 0.0
      %v4876 = vmax.f32 %v4620, 0.0
      %v4877 = vmax.f32 %v4621, 0.0
      %v4878 = vmax.f32 %v4622, 0.0
      %v4879 = vmax.f32 %v4623, 0.0
      %v4880 = vmax.f32 %v4624, 0.0
      %v4881 = vmax.f32 %v4625, 0.0
      %v4882 = vmax.f32 %v4626, 0.0
      %v4883 = vmax.f32 %v4627, 0.0
      %v4884 = vmax.f32 %v4628, 0.0
      %v4885 = vmax.f32 %v4629, 0.0
      %v4886 = vmax.f32 %v4630, 0.0
      %v4887 = vmax.f32 %v4631, 0.0
      %v4888 = vmax.f32 %v4632, 0.0
      %v4889 = vmax.f32 %v4633, 0.0
      %v4890 = vmax.f32 %v4634, 0.0
      %v4891 = vmax.f32 %v4635, 0.0
      %v4892 = vmax.f32 %v4636, 0.0
      %v4893 = vmax.f32 %v4637, 0.0
      %v4894 = vmax.f32 %v4638, 0.0
      %v4895 = vmax.f32 %v4639, 0.0
      %v4896 = vmax.f32 %v4640, 0.0
      %v4897 = vmax.f32 %v4641, 0.0
      %v4898 = vmax.f32 %v4642, 0.0
      %v4899 = vmax.f32 %v4643, 0.0
      %v4900 = vmax.f32 %v4644, 0.0
      %v4901 = vmax.f32 %v4645, 0.0
      %v4902 = vmax.f32 %v4646, 0.0
      %v4903 = vmax.f32 %v4647, 0.0
      %v4904 = vmax.f32 %v4648, 0.0
      %v4905 = vmax.f32 %v4649, 0.0
      %v4906 = vmax.f32 %v4650, 0.0
      %v4907 = vmax.f32 %v4651, 0.0
      %v4908 = vmax.f32 %v4652, 0.0
      %v4909 = vmax.f32 %v4653, 0.0
      %v4910 = vmax.f32 %v4654, 0.0
      %v4911 = vmax.f32 %v4655, 0.0
      %v4912 = vmax.f32 %v4656, 0.0
      %v4913 = vmax.f32 %v4657, 0.0
      %v4914 = vmax.f32 %v4658, 0.0
      %v4915 = vmax.f32 %v4659, 0.0
      %v4916 = vmax.f32 %v4660, 0.0
      %v4917 = vmax.f32 %v4661, 0.0
      %v4918 = vmax.f32 %v4662, 0.0
      %v4919 = vmax.f32 %v4663, 0.0
      %v4920 = vmax.f32 %v4664, 0.0
      %v4921 = vmax.f32 %v4665, 0.0
      %v4922 = vmax.f32 %v4666, 0.0
      %v4923 = vmax.f32 %v4667, 0.0
      %v4924 = vmax.f32 %v4668, 0.0
      %v4925 = vmax.f32 %v4669, 0.0
      %v4926 = vmax.f32 %v4670, 0.0
      %v4927 = vmax.f32 %v4671, 0.0
      %v4928 = vmax.f32 %v4672, 0.0
      %v4929 = vmax.f32 %v4673, 0.0
      %v4930 = vmax.f32 %v4674, 0.0
      %v4931 = vmax.f32 %v4675, 0.0
      %v4932 = vmax.f32 %v4676, 0.0
      %v4933 = vmax.f32 %v4677, 0.0
      %v4934 = vmax.f32 %v4678, 0.0
      %v4935 = vmax.f32 %v4679, 0.0
      %v4936 = vmax.f32 %v4680, 0.0
      %v4937 = vmax.f32 %v4681, 0.0
      %v4938 = vmax.f32 %v4682, 0.0
      %v4939 = vmax.f32 %v4683, 0.0
      %v4940 = vmax.f32 %v4684, 0.0
      %v4941 = vmax.f32 %v4685, 0.0
      %v4942 = vmax.f32 %v4686, 0.0
      %v4943 = vmax.f32 %v4687, 0.0
      %v4944 = vmax.f32 %v4688, 0.0
      %v4945 = vmax.f32 %v4689, 0.0
      %v4946 = vmax.f32 %v4690, 0.0
      %v4947 = vmax.f32 %v4691, 0.0
      %v4948 = vmax.f32 %v4692, 0.0
      %v4949 = vmax.f32 %v4693, 0.0
      %v4950 = vmax.f32 %v4694, 0.0
      %v4951 = vmax.f32 %v4695, 0.0
      %v4952 = vmax.f32 %v4696, 0.0
      %v4953 = vmax.f32 %v4697, 0.0
      %v4954 = vmax.f32 %v4698, 0.0
      %v4955 = vmax.f32 %v4699, 0.0
      %v4956 = vmax.f32 %v4700, 0.0
      %v4957 = vmax.f32 %v4701, 0.0
      %v4958 = vmax.f32 %v4702, 0.0
      %v4959 = vmax.f32 %v4703, 0.0
      %v4960 = vmax.f32 %v4704, 0.0
      %v4961 = vmax.f32 %v4705, 0.0
      %v4962 = vmax.f32 %v4706, 0.0
      %v4963 = vmax.f32 %v4707, 0.0
      %v4964 = vmax.f32 %v4708, 0.0
      %v4965 = vmax.f32 %v4709, 0.0
      %v4966 = vmax.f32 %v4710, 0.0
      %v4967 = vmax.f32 %v4711, 0.0
      %v4968 = vmax.f32 %v4712, 0.0
      %v4969 = vmax.f32 %v4713, 0.0
      %v4970 = vmax.f32 %v4714, 0.0
      %v4971 = vmax.f32 %v4715, 0.0
      %v4972 = vmax.f32 %v4716, 0.0
      %v4973 = vmax.f32 %v4717, 0.0
      %v4974 = vmax.f32 %v4718, 0.0
      %v4975 = vmax.f32 %v4719, 0.0
      %v4976 = vmax.f32 %v4720, 0.0
      %v4977 = vmax.f32 %v4721, 0.0
      %v4978 = vmax.f32 %v4722, 0.0
      %v4979 = vmax.f32 %v4723, 0.0
      %v4980 = vmax.f32 %v4724, 0.0
      %v4981 = vmax.f32 %v4725, 0.0
      %v4982 = vmax.f32 %v4726, 0.0
      %v4983 = vmax.f32 %v4727, 0.0
      %v4984 = vmax.f32 %v4728, 0.0
      %v4985 = vmax.f32 %v4729, 0.0
      %v4986 = vmin.f32 %v4730, 6.0
      %v4987 = vmin.f32 %v4731, 6.0
      %v4988 = vmin.f32 %v4732, 6.0
      %v4989 = vmin.f32 %v4733, 6.0
      %v4990 = vmin.f32 %v4734, 6.0
      %v4991 = vmin.f32 %v4735, 6.0
      %v4992 = vmin.f32 %v4736, 6.0
      %v4993 = vmin.f32 %v4737, 6.0
      %v4994 = vmin.f32 %v4738, 6.0
      %v4995 = vmin.f32 %v4739, 6.0
      %v4996 = vmin.f32 %v4740, 6.0
      %v4997 = vmin.f32 %v4741, 6.0
      %v4998 = vmin.f32 %v4742, 6.0
      %v4999 = vmin.f32 %v4743, 6.0
      %v5000 = vmin.f32 %v4744, 6.0
      %v5001 = vmin.f32 %v4745, 6.0
      %v5002 = vmin.f32 %v4746, 6.0
      %v5003 = vmin.f32 %v4747, 6.0
      %v5004 = vmin.f32 %v4748, 6.0
      %v5005 = vmin.f32 %v4749, 6.0
      %v5006 = vmin.f32 %v4750, 6.0
      %v5007 = vmin.f32 %v4751, 6.0
      %v5008 = vmin.f32 %v4752, 6.0
      %v5009 = vmin.f32 %v4753, 6.0
      %v5010 = vmin.f32 %v4754, 6.0
      %v5011 = vmin.f32 %v4755, 6.0
      %v5012 = vmin.f32 %v4756, 6.0
      %v5013 = vmin.f32 %v4757, 6.0
      %v5014 = vmin.f32 %v4758, 6.0
      %v5015 = vmin.f32 %v4759, 6.0
      %v5016 = vmin.f32 %v4760, 6.0
      %v5017 = vmin.f32 %v4761, 6.0
      %v5018 = vmin.f32 %v4762, 6.0
      %v5019 = vmin.f32 %v4763, 6.0
      %v5020 = vmin.f32 %v4764, 6.0
      %v5021 = vmin.f32 %v4765, 6.0
      %v5022 = vmin.f32 %v4766, 6.0
      %v5023 = vmin.f32 %v4767, 6.0
      %v5024 = vmin.f32 %v4768, 6.0
      %v5025 = vmin.f32 %v4769, 6.0
      %v5026 = vmin.f32 %v4770, 6.0
      %v5027 = vmin.f32 %v4771, 6.0
      %v5028 = vmin.f32 %v4772, 6.0
      %v5029 = vmin.f32 %v4773, 6.0
      %v5030 = vmin.f32 %v4774, 6.0
      %v5031 = vmin.f32 %v4775, 6.0
      %v5032 = vmin.f32 %v4776, 6.0
      %v5033 = vmin.f32 %v4777, 6.0
      %v5034 = vmin.f32 %v4778, 6.0
      %v5035 = vmin.f32 %v4779, 6.0
      %v5036 = vmin.f32 %v4780, 6.0
      %v5037 = vmin.f32 %v4781, 6.0
      %v5038 = vmin.f32 %v4782, 6.0
      %v5039 = vmin.f32 %v4783, 6.0
      %v5040 = vmin.f32 %v4784, 6.0
      %v5041 = vmin.f32 %v4785, 6.0
      %v5042 = vmin.f32 %v4786, 6.0
      %v5043 = vmin.f32 %v4787, 6.0
      %v5044 = vmin.f32 %v4788, 6.0
      %v5045 = vmin.f32 %v4789, 6.0
      %v5046 = vmin.f32 %v4790, 6.0
      %v5047 = vmin.f32 %v4791, 6.0
      %v5048 = vmin.f32 %v4792, 6.0
      %v5049 = vmin.f32 %v4793, 6.0
      %v5050 = vmin.f32 %v4794, 6.0
      %v5051 = vmin.f32 %v4795, 6.0
      %v5052 = vmin.f32 %v4796, 6.0
      %v5053 = vmin.f32 %v4797, 6.0
      %v5054 = vmin.f32 %v4798, 6.0
      %v5055 = vmin.f32 %v4799, 6.0
      %v5056 = vmin.f32 %v4800, 6.0
      %v5057 = vmin.f32 %v4801, 6.0
      %v5058 = vmin.f32 %v4802, 6.0
      %v5059 = vmin.f32 %v4803, 6.0
      %v5060 = vmin.f32 %v4804, 6.0
      %v5061 = vmin.f32 %v4805, 6.0
      %v5062 = vmin.f32 %v4806, 6.0
      %v5063 = vmin.f32 %v4807, 6.0
      %v5064 = vmin.f32 %v4808, 6.0
      %v5065 = vmin.f32 %v4809, 6.0
      %v5066 = vmin.f32 %v4810, 6.0
      %v5067 = vmin.f32 %v4811, 6.0
      %v5068 = vmin.f32 %v4812, 6.0
      %v5069 = vmin.f32 %v4813, 6.0
      %v5070 = vmin.f32 %v4814, 6.0
      %v5071 = vmin.f32 %v4815, 6.0
      %v5072 = vmin.f32 %v4816, 6.0
      %v5073 = vmin.f32 %v4817, 6.0
      %v5074 = vmin.f32 %v4818, 6.0
      %v5075 = vmin.f32 %v4819, 6.0
      %v5076 = vmin.f32 %v4820, 6.0
      %v5077 = vmin.f32 %v4821, 6.0
      %v5078 = vmin.f32 %v4822, 6.0
      %v5079 = vmin.f32 %v4823, 6.0
      %v5080 = vmin.f32 %v4824, 6.0
      %v5081 = vmin.f32 %v4825, 6.0
      %v5082 = vmin.f32 %v4826, 6.0
      %v5083 = vmin.f32 %v4827, 6.0
      %v5084 = vmin.f32 %v4828, 6.0
      %v5085 = vmin.f32 %v4829, 6.0
      %v5086 = vmin.f32 %v4830, 6.0
      %v5087 = vmin.f32 %v4831, 6.0
      %v5088 = vmin.f32 %v4832, 6.0
      %v5089 = vmin.f32 %v4833, 6.0
      %v5090 = vmin.f32 %v4834, 6.0
      %v5091 = vmin.f32 %v4835, 6.0
      %v5092 = vmin.f32 %v4836, 6.0
      %v5093 = vmin.f32 %v4837, 6.0
      %v5094 = vmin.f32 %v4838, 6.0
      %v5095 = vmin.f32 %v4839, 6.0
      %v5096 = vmin.f32 %v4840, 6.0
      %v5097 = vmin.f32 %v4841, 6.0
      %v5098 = vmin.f32 %v4842, 6.0
      %v5099 = vmin.f32 %v4843, 6.0
      %v5100 = vmin.f32 %v4844, 6.0
      %v5101 = vmin.f32 %v4845, 6.0
      %v5102 = vmin.f32 %v4846, 6.0
      %v5103 = vmin.f32 %v4847, 6.0
      %v5104 = vmin.f32 %v4848, 6.0
      %v5105 = vmin.f32 %v4849, 6.0
      %v5106 = vmin.f32 %v4850, 6.0
      %v5107 = vmin.f32 %v4851, 6.0
      %v5108 = vmin.f32 %v4852, 6.0
      %v5109 = vmin.f32 %v4853, 6.0
      %v5110 = vmin.f32 %v4854, 6.0
      %v5111 = vmin.f32 %v4855, 6.0
      %v5112 = vmin.f32 %v4856, 6.0
      %v5113 = vmin.f32 %v4857, 6.0
      %v5114 = vmin.f32 %v4858, 6.0
      %v5115 = vmin.f32 %v4859, 6.0
      %v5116 = vmin.f32 %v4860, 6.0
      %v5117 = vmin.f32 %v4861, 6.0
      %v5118 = vmin.f32 %v4862, 6.0
      %v5119 = vmin.f32 %v4863, 6.0
      %v5120 = vmin.f32 %v4864, 6.0
      %v5121 = vmin.f32 %v4865, 6.0
      %v5122 = vmin.f32 %v4866, 6.0
      %v5123 = vmin.f32 %v4867, 6.0
      %v5124 = vmin.f32 %v4868, 6.0
      %v5125 = vmin.f32 %v4869, 6.0
      %v5126 = vmin.f32 %v4870, 6.0
      %v5127 = vmin.f32 %v4871, 6.0
      %v5128 = vmin.f32 %v4872, 6.0
      %v5129 = vmin.f32 %v4873, 6.0
      %v5130 = vmin.f32 %v4874, 6.0
      %v5131 = vmin.f32 %v4875, 6.0
      %v5132 = vmin.f32 %v4876, 6.0
      %v5133 = vmin.f32 %v4877, 6.0
      %v5134 = vmin.f32 %v4878, 6.0
      %v5135 = vmin.f32 %v4879, 6.0
      %v5136 = vmin.f32 %v4880, 6.0
      %v5137 = vmin.f32 %v4881, 6.0
      %v5138 = vmin.f32 %v4882, 6.0
      %v5139 = vmin.f32 %v4883, 6.0
      %v5140 = vmin.f32 %v4884, 6.0
      %v5141 = vmin.f32 %v4885, 6.0
      %v5142 = vmin.f32 %v4886, 6.0
      %v5143 = vmin.f32 %v4887, 6.0
      %v5144 = vmin.f32 %v4888, 6.0
      %v5145 = vmin.f32 %v4889, 6.0
      %v5146 = vmin.f32 %v4890, 6.0
      %v5147 = vmin.f32 %v4891, 6.0
      %v5148 = vmin.f32 %v4892, 6.0
      %v5149 = vmin.f32 %v4893, 6.0
      %v5150 = vmin.f32 %v4894, 6.0
      %v5151 = vmin.f32 %v4895, 6.0
      %v5152 = vmin.f32 %v4896, 6.0
      %v5153 = vmin.f32 %v4897, 6.0
      %v5154 = vmin.f32 %v4898, 6.0
      %v5155 = vmin.f32 %v4899, 6.0
      %v5156 = vmin.f32 %v4900, 6.0
      %v5157 = vmin.f32 %v4901, 6.0
      %v5158 = vmin.f32 %v4902, 6.0
      %v5159 = vmin.f32 %v4903, 6.0
      %v5160 = vmin.f32 %v4904, 6.0
      %v5161 = vmin.f32 %v4905, 6.0
      %v5162 = vmin.f32 %v4906, 6.0
      %v5163 = vmin.f32 %v4907, 6.0
      %v5164 = vmin.f32 %v4908, 6.0
      %v5165 = vmin.f32 %v4909, 6.0
      %v5166 = vmin.f32 %v4910, 6.0
      %v5167 = vmin.f32 %v4911, 6.0
      %v5168 = vmin.f32 %v4912, 6.0
      %v5169 = vmin.f32 %v4913, 6.0
      %v5170 = vmin.f32 %v4914, 6.0
      %v5171 = vmin.f32 %v4915, 6.0
      %v5172 = vmin.f32 %v4916, 6.0
      %v5173 = vmin.f32 %v4917, 6.0
      %v5174 = vmin.f32 %v4918, 6.0
      %v5175 = vmin.f32 %v4919, 6.0
      %v5176 = vmin.f32 %v4920, 6.0
      %v5177 = vmin.f32 %v4921, 6.0
      %v5178 = vmin.f32 %v4922, 6.0
      %v5179 = vmin.f32 %v4923, 6.0
      %v5180 = vmin.f32 %v4924, 6.0
      %v5181 = vmin.f32 %v4925, 6.0
      %v5182 = vmin.f32 %v4926, 6.0
      %v5183 = vmin.f32 %v4927, 6.0
      %v5184 = vmin.f32 %v4928, 6.0
      %v5185 = vmin.f32 %v4929, 6.0
      %v5186 = vmin.f32 %v4930, 6.0
      %v5187 = vmin.f32 %v4931, 6.0
      %v5188 = vmin.f32 %v4932, 6.0
      %v5189 = vmin.f32 %v4933, 6.0
      %v5190 = vmin.f32 %v4934, 6.0
      %v5191 = vmin.f32 %v4935, 6.0
      %v5192 = vmin.f32 %v4936, 6.0
      %v5193 = vmin.f32 %v4937, 6.0
      %v5194 = vmin.f32 %v4938, 6.0
      %v5195 = vmin.f32 %v4939, 6.0
      %v5196 = vmin.f32 %v4940, 6.0
      %v5197 = vmin.f32 %v4941, 6.0
      %v5198 = vmin.f32 %v4942, 6.0
      %v5199 = vmin.f32 %v4943, 6.0
      %v5200 = vmin.f32 %v4944, 6.0
      %v5201 = vmin.f32 %v4945, 6.0
      %v5202 = vmin.f32 %v4946, 6.0
      %v5203 = vmin.f32 %v4947, 6.0
      %v5204 = vmin.f32 %v4948, 6.0
      %v5205 = vmin.f32 %v4949, 6.0
      %v5206 = vmin.f32 %v4950, 6.0
      %v5207 = vmin.f32 %v4951, 6.0
      %v5208 = vmin.f32 %v4952, 6.0
      %v5209 = vmin.f32 %v4953, 6.0
      %v5210 = vmin.f32 %v4954, 6.0
      %v5211 = vmin.f32 %v4955, 6.0
      %v5212 = vmin.f32 %v4956, 6.0
      %v5213 = vmin.f32 %v4957, 6.0
      %v5214 = vmin.f32 %v4958, 6.0
      %v5215 = vmin.f32 %v4959, 6.0
      %v5216 = vmin.f32 %v4960, 6.0
      %v5217 = vmin.f32 %v4961, 6.0
      %v5218 = vmin.f32 %v4962, 6.0
      %v5219 = vmin.f32 %v4963, 6.0
      %v5220 = vmin.f32 %v4964, 6.0
      %v5221 = vmin.f32 %v4965, 6.0
      %v5222 = vmin.f32 %v4966, 6.0
      %v5223 = vmin.f32 %v4967, 6.0
      %v5224 = vmin.f32 %v4968, 6.0
      %v5225 = vmin.f32 %v4969, 6.0
      %v5226 = vmin.f32 %v4970, 6.0
      %v5227 = vmin.f32 %v4971, 6.0
      %v5228 = vmin.f32 %v4972, 6.0
      %v5229 = vmin.f32 %v4973, 6.0
      %v5230 = vmin.f32 %v4974, 6.0
      %v5231 = vmin.f32 %v4975, 6.0
      %v5232 = vmin.f32 %v4976, 6.0
      %v5233 = vmin.f32 %v4977, 6.0
      %v5234 = vmin.f32 %v4978, 6.0
      %v5235 = vmin.f32 %v4979, 6.0
      %v5236 = vmin.f32 %v4980, 6.0
      %v5237 = vmin.f32 %v4981, 6.0
      %v5238 = vmin.f32 %v4982, 6.0
      %v5239 = vmin.f32 %v4983, 6.0
      %v5240 = vmin.f32 %v4984, 6.0
      %v5241 = vmin.f32 %v4985, 6.0
      %v5242 = vmul.f32 %v4986, 0.16666667
      %v5243 = vmul.f32 %v4987, 0.16666667
      %v5244 = vmul.f32 %v4988, 0.16666667
      %v5245 = vmul.f32 %v4989, 0.16666667
      %v5246 = vmul.f32 %v4990, 0.16666667
      %v5247 = vmul.f32 %v4991, 0.16666667
      %v5248 = vmul.f32 %v4992, 0.16666667
      %v5249 = vmul.f32 %v4993, 0.16666667
      %v5250 = vmul.f32 %v4994, 0.16666667
      %v5251 = vmul.f32 %v4995, 0.16666667
      %v5252 = vmul.f32 %v4996, 0.16666667
      %v5253 = vmul.f32 %v4997, 0.16666667
      %v5254 = vmul.f32 %v4998, 0.16666667
      %v5255 = vmul.f32 %v4999, 0.16666667
      %v5256 = vmul.f32 %v5000, 0.16666667
      %v5257 = vmul.f32 %v5001, 0.16666667
      %v5258 = vmul.f32 %v5002, 0.16666667
      %v5259 = vmul.f32 %v5003, 0.16666667
      %v5260 = vmul.f32 %v5004, 0.16666667
      %v5261 = vmul.f32 %v5005, 0.16666667
      %v5262 = vmul.f32 %v5006, 0.16666667
      %v5263 = vmul.f32 %v5007, 0.16666667
      %v5264 = vmul.f32 %v5008, 0.16666667
      %v5265 = vmul.f32 %v5009, 0.16666667
      %v5266 = vmul.f32 %v5010, 0.16666667
      %v5267 = vmul.f32 %v5011, 0.16666667
      %v5268 = vmul.f32 %v5012, 0.16666667
      %v5269 = vmul.f32 %v5013, 0.16666667
      %v5270 = vmul.f32 %v5014, 0.16666667
      %v5271 = vmul.f32 %v5015, 0.16666667
      %v5272 = vmul.f32 %v5016, 0.16666667
      %v5273 = vmul.f32 %v5017, 0.16666667
      %v5274 = vmul.f32 %v5018, 0.16666667
      %v5275 = vmul.f32 %v5019, 0.16666667
      %v5276 = vmul.f32 %v5020, 0.16666667
      %v5277 = vmul.f32 %v5021, 0.16666667
      %v5278 = vmul.f32 %v5022, 0.16666667
      %v5279 = vmul.f32 %v5023, 0.16666667
      %v5280 = vmul.f32 %v5024, 0.16666667
      %v5281 = vmul.f32 %v5025, 0.16666667
      %v5282 = vmul.f32 %v5026, 0.16666667
      %v5283 = vmul.f32 %v5027, 0.16666667
      %v5284 = vmul.f32 %v5028, 0.16666667
      %v5285 = vmul.f32 %v5029, 0.16666667
      %v5286 = vmul.f32 %v5030, 0.16666667
      %v5287 = vmul.f32 %v5031, 0.16666667
      %v5288 = vmul.f32 %v5032, 0.16666667
      %v5289 = vmul.f32 %v5033, 0.16666667
      %v5290 = vmul.f32 %v5034, 0.16666667
      %v5291 = vmul.f32 %v5035, 0.16666667
      %v5292 = vmul.f32 %v5036, 0.16666667
      %v5293 = vmul.f32 %v5037, 0.16666667
      %v5294 = vmul.f32 %v5038, 0.16666667
      %v5295 = vmul.f32 %v5039, 0.16666667
      %v5296 = vmul.f32 %v5040, 0.16666667
      %v5297 = vmul.f32 %v5041, 0.16666667
      %v5298 = vmul.f32 %v5042, 0.16666667
      %v5299 = vmul.f32 %v5043, 0.16666667
      %v5300 = vmul.f32 %v5044, 0.16666667
      %v5301 = vmul.f32 %v5045, 0.16666667
      %v5302 = vmul.f32 %v5046, 0.16666667
      %v5303 = vmul.f32 %v5047, 0.16666667
      %v5304 = vmul.f32 %v5048, 0.16666667
      %v5305 = vmul.f32 %v5049, 0.16666667
      %v5306 = vmul.f32 %v5050, 0.16666667
      %v5307 = vmul.f32 %v5051, 0.16666667
      %v5308 = vmul.f32 %v5052, 0.16666667
      %v5309 = vmul.f32 %v5053, 0.16666667
      %v5310 = vmul.f32 %v5054, 0.16666667
      %v5311 = vmul.f32 %v5055, 0.16666667
      %v5312 = vmul.f32 %v5056, 0.16666667
      %v5313 = vmul.f32 %v5057, 0.16666667
      %v5314 = vmul.f32 %v5058, 0.16666667
      %v5315 = vmul.f32 %v5059, 0.16666667
      %v5316 = vmul.f32 %v5060, 0.16666667
      %v5317 = vmul.f32 %v5061, 0.16666667
      %v5318 = vmul.f32 %v5062, 0.16666667
      %v5319 = vmul.f32 %v5063, 0.16666667
      %v5320 = vmul.f32 %v5064, 0.16666667
      %v5321 = vmul.f32 %v5065, 0.16666667
      %v5322 = vmul.f32 %v5066, 0.16666667
      %v5323 = vmul.f32 %v5067, 0.16666667
      %v5324 = vmul.f32 %v5068, 0.16666667
      %v5325 = vmul.f32 %v5069, 0.16666667
      %v5326 = vmul.f32 %v5070, 0.16666667
      %v5327 = vmul.f32 %v5071, 0.16666667
      %v5328 = vmul.f32 %v5072, 0.16666667
      %v5329 = vmul.f32 %v5073, 0.16666667
      %v5330 = vmul.f32 %v5074, 0.16666667
      %v5331 = vmul.f32 %v5075, 0.16666667
      %v5332 = vmul.f32 %v5076, 0.16666667
      %v5333 = vmul.f32 %v5077, 0.16666667
      %v5334 = vmul.f32 %v5078, 0.16666667
      %v5335 = vmul.f32 %v5079, 0.16666667
      %v5336 = vmul.f32 %v5080, 0.16666667
      %v5337 = vmul.f32 %v5081, 0.16666667
      %v5338 = vmul.f32 %v5082, 0.16666667
      %v5339 = vmul.f32 %v5083, 0.16666667
      %v5340 = vmul.f32 %v5084, 0.16666667
      %v5341 = vmul.f32 %v5085, 0.16666667
      %v5342 = vmul.f32 %v5086, 0.16666667
      %v5343 = vmul.f32 %v5087, 0.16666667
      %v5344 = vmul.f32 %v5088, 0.16666667
      %v5345 = vmul.f32 %v5089, 0.16666667
      %v5346 = vmul.f32 %v5090, 0.16666667
      %v5347 = vmul.f32 %v5091, 0.16666667
      %v5348 = vmul.f32 %v5092, 0.16666667
      %v5349 = vmul.f32 %v5093, 0.16666667
      %v5350 = vmul.f32 %v5094, 0.16666667
      %v5351 = vmul.f32 %v5095, 0.16666667
      %v5352 = vmul.f32 %v5096, 0.16666667
      %v5353 = vmul.f32 %v5097, 0.16666667
      %v5354 = vmul.f32 %v5098, 0.16666667
      %v5355 = vmul.f32 %v5099, 0.16666667
      %v5356 = vmul.f32 %v5100, 0.16666667
      %v5357 = vmul.f32 %v5101, 0.16666667
      %v5358 = vmul.f32 %v5102, 0.16666667
      %v5359 = vmul.f32 %v5103, 0.16666667
      %v5360 = vmul.f32 %v5104, 0.16666667
      %v5361 = vmul.f32 %v5105, 0.16666667
      %v5362 = vmul.f32 %v5106, 0.16666667
      %v5363 = vmul.f32 %v5107, 0.16666667
      %v5364 = vmul.f32 %v5108, 0.16666667
      %v5365 = vmul.f32 %v5109, 0.16666667
      %v5366 = vmul.f32 %v5110, 0.16666667
      %v5367 = vmul.f32 %v5111, 0.16666667
      %v5368 = vmul.f32 %v5112, 0.16666667
      %v5369 = vmul.f32 %v5113, 0.16666667
      %v5370 = vmul.f32 %v5114, 0.16666667
      %v5371 = vmul.f32 %v5115, 0.16666667
      %v5372 = vmul.f32 %v5116, 0.16666667
      %v5373 = vmul.f32 %v5117, 0.16666667
      %v5374 = vmul.f32 %v5118, 0.16666667
      %v5375 = vmul.f32 %v5119, 0.16666667
      %v5376 = vmul.f32 %v5120, 0.16666667
      %v5377 = vmul.f32 %v5121, 0.16666667
      %v5378 = vmul.f32 %v5122, 0.16666667
      %v5379 = vmul.f32 %v5123, 0.16666667
      %v5380 = vmul.f32 %v5124, 0.16666667
      %v5381 = vmul.f32 %v5125, 0.16666667
      %v5382 = vmul.f32 %v5126, 0.16666667
      %v5383 = vmul.f32 %v5127, 0.16666667
      %v5384 = vmul.f32 %v5128, 0.16666667
      %v5385 = vmul.f32 %v5129, 0.16666667
      %v5386 = vmul.f32 %v5130, 0.16666667
      %v5387 = vmul.f32 %v5131, 0.16666667
      %v5388 = vmul.f32 %v5132, 0.16666667
      %v5389 = vmul.f32 %v5133, 0.16666667
      %v5390 = vmul.f32 %v5134, 0.16666667
      %v5391 = vmul.f32 %v5135, 0.16666667
      %v5392 = vmul.f32 %v5136, 0.16666667
      %v5393 = vmul.f32 %v5137, 0.16666667
      %v5394 = vmul.f32 %v5138, 0.16666667
      %v5395 = vmul.f32 %v5139, 0.16666667
      %v5396 = vmul.f32 %v5140, 0.16666667
      %v5397 = vmul.f32 %v5141, 0.16666667
      %v5398 = vmul.f32 %v5142, 0.16666667
      %v5399 = vmul.f32 %v5143, 0.16666667
      %v5400 = vmul.f32 %v5144, 0.16666667
      %v5401 = vmul.f32 %v5145, 0.16666667
      %v5402 = vmul.f32 %v5146, 0.16666667
      %v5403 = vmul.f32 %v5147, 0.16666667
      %v5404 = vmul.f32 %v5148, 0.16666667
      %v5405 = vmul.f32 %v5149, 0.16666667
      %v5406 = vmul.f32 %v5150, 0.16666667
      %v5407 = vmul.f32 %v5151, 0.16666667
      %v5408 = vmul.f32 %v5152, 0.16666667
      %v5409 = vmul.f32 %v5153, 0.16666667
      %v5410 = vmul.f32 %v5154, 0.16666667
      %v5411 = vmul.f32 %v5155, 0.16666667
      %v5412 = vmul.f32 %v5156, 0.16666667
      %v5413 = vmul.f32 %v5157, 0.16666667
      %v5414 = vmul.f32 %v5158, 0.16666667
      %v5415 = vmul.f32 %v5159, 0.16666667
      %v5416 = vmul.f32 %v5160, 0.16666667
      %v5417 = vmul.f32 %v5161, 0.16666667
      %v5418 = vmul.f32 %v5162, 0.16666667
      %v5419 = vmul.f32 %v5163, 0.16666667
      %v5420 = vmul.f32 %v5164, 0.16666667
      %v5421 = vmul.f32 %v5165, 0.16666667
      %v5422 = vmul.f32 %v5166, 0.16666667
      %v5423 = vmul.f32 %v5167, 0.16666667
      %v5424 = vmul.f32 %v5168, 0.16666667
      %v5425 = vmul.f32 %v5169, 0.16666667
      %v5426 = vmul.f32 %v5170, 0.16666667
      %v5427 = vmul.f32 %v5171, 0.16666667
      %v5428 = vmul.f32 %v5172, 0.16666667
      %v5429 = vmul.f32 %v5173, 0.16666667
      %v5430 = vmul.f32 %v5174, 0.16666667
      %v5431 = vmul.f32 %v5175, 0.16666667
      %v5432 = vmul.f32 %v5176, 0.16666667
      %v5433 = vmul.f32 %v5177, 0.16666667
      %v5434 = vmul.f32 %v5178, 0.16666667
      %v5435 = vmul.f32 %v5179, 0.16666667
      %v5436 = vmul.f32 %v5180, 0.16666667
      %v5437 = vmul.f32 %v5181, 0.16666667
      %v5438 = vmul.f32 %v5182, 0.16666667
      %v5439 = vmul.f32 %v5183, 0.16666667
      %v5440 = vmul.f32 %v5184, 0.16666667
      %v5441 = vmul.f32 %v5185, 0.16666667
      %v5442 = vmul.f32 %v5186, 0.16666667
      %v5443 = vmul.f32 %v5187, 0.16666667
      %v5444 = vmul.f32 %v5188, 0.16666667
      %v5445 = vmul.f32 %v5189, 0.16666667
      %v5446 = vmul.f32 %v5190, 0.16666667
      %v5447 = vmul.f32 %v5191, 0.16666667
      %v5448 = vmul.f32 %v5192, 0.16666667
      %v5449 = vmul.f32 %v5193, 0.16666667
      %v5450 = vmul.f32 %v5194, 0.16666667
      %v5451 = vmul.f32 %v5195, 0.16666667
      %v5452 = vmul.f32 %v5196, 0.16666667
      %v5453 = vmul.f32 %v5197, 0.16666667
      %v5454 = vmul.f32 %v5198, 0.16666667
      %v5455 = vmul.f32 %v5199, 0.16666667
      %v5456 = vmul.f32 %v5200, 0.16666667
      %v5457 = vmul.f32 %v5201, 0.16666667
      %v5458 = vmul.f32 %v5202, 0.16666667
      %v5459 = vmul.f32 %v5203, 0.16666667
      %v5460 = vmul.f32 %v5204, 0.16666667
      %v5461 = vmul.f32 %v5205, 0.16666667
      %v5462 = vmul.f32 %v5206, 0.16666667
      %v5463 = vmul.f32 %v5207, 0.16666667
      %v5464 = vmul.f32 %v5208, 0.16666667
      %v5465 = vmul.f32 %v5209, 0.16666667
      %v5466 = vmul.f32 %v5210, 0.16666667
      %v5467 = vmul.f32 %v5211, 0.16666667
      %v5468 = vmul.f32 %v5212, 0.16666667
      %v5469 = vmul.f32 %v5213, 0.16666667
      %v5470 = vmul.f32 %v5214, 0.16666667
      %v5471 = vmul.f32 %v5215, 0.16666667
      %v5472 = vmul.f32 %v5216, 0.16666667
      %v5473 = vmul.f32 %v5217, 0.16666667
      %v5474 = vmul.f32 %v5218, 0.16666667
      %v5475 = vmul.f32 %v5219, 0.16666667
      %v5476 = vmul.f32 %v5220, 0.16666667
      %v5477 = vmul.f32 %v5221, 0.16666667
      %v5478 = vmul.f32 %v5222, 0.16666667
      %v5479 = vmul.f32 %v5223, 0.16666667
      %v5480 = vmul.f32 %v5224, 0.16666667
      %v5481 = vmul.f32 %v5225, 0.16666667
      %v5482 = vmul.f32 %v5226, 0.16666667
      %v5483 = vmul.f32 %v5227, 0.16666667
      %v5484 = vmul.f32 %v5228, 0.16666667
      %v5485 = vmul.f32 %v5229, 0.16666667
      %v5486 = vmul.f32 %v5230, 0.16666667
      %v5487 = vmul.f32 %v5231, 0.16666667
      %v5488 = vmul.f32 %v5232, 0.16666667
      %v5489 = vmul.f32 %v5233, 0.16666667
      %v5490 = vmul.f32 %v5234, 0.16666667
      %v5491 = vmul.f32 %v5235, 0.16666667
      %v5492 = vmul.f32 %v5236, 0.16666667
      %v5493 = vmul.f32 %v5237, 0.16666667
      %v5494 = vmul.f32 %v5238, 0.16666667
      %v5495 = vmul.f32 %v5239, 0.16666667
      %v5496 = vmul.f32 %v5240, 0.16666667
      %v5497 = vmul.f32 %v5241, 0.16666667
      %v5498 = vmul.f32 %v3737, %v5242
      %v5499 = vmul.f32 %v3739, %v5243
      %v5500 = vmul.f32 %v3930, %v5244
      %v5501 = vmul.f32 %v3932, %v5245
      %v5502 = vmul.f32 %v4123, %v5246
      %v5503 = vmul.f32 %v4125, %v5247
      %v5504 = vmul.f32 %v4316, %v5248
      %v5505 = vmul.f32 %v4318, %v5249
      %v5506 = vmul.f32 %v3741, %v5250
      %v5507 = vmul.f32 %v3743, %v5251
      %v5508 = vmul.f32 %v3934, %v5252
      %v5509 = vmul.f32 %v3936, %v5253
      %v5510 = vmul.f32 %v4127, %v5254
      %v5511 = vmul.f32 %v4129, %v5255
      %v5512 = vmul.f32 %v4320, %v5256
      %v5513 = vmul.f32 %v4322, %v5257
      %v5514 = vmul.f32 %v3747, %v5258
      %v5515 = vmul.f32 %v3749, %v5259
      %v5516 = vmul.f32 %v3940, %v5260
      %v5517 = vmul.f32 %v3942, %v5261
      %v5518 = vmul.f32 %v4133, %v5262
      %v5519 = vmul.f32 %v4135, %v5263
      %v5520 = vmul.f32 %v4326, %v5264
      %v5521 = vmul.f32 %v4328, %v5265
      %v5522 = vmul.f32 %v3751, %v5266
      %v5523 = vmul.f32 %v3753, %v5267
      %v5524 = vmul.f32 %v3944, %v5268
      %v5525 = vmul.f32 %v3946, %v5269
      %v5526 = vmul.f32 %v4137, %v5270
      %v5527 = vmul.f32 %v4139, %v5271
      %v5528 = vmul.f32 %v4330, %v5272
      %v5529 = vmul.f32 %v4332, %v5273
      %v5530 = vmul.f32 %v3757, %v5274
      %v5531 = vmul.f32 %v3759, %v5275
      %v5532 = vmul.f32 %v3950, %v5276
      %v5533 = vmul.f32 %v3952, %v5277
      %v5534 = vmul.f32 %v4143, %v5278
      %v5535 = vmul.f32 %v4145, %v5279
      %v5536 = vmul.f32 %v4336, %v5280
      %v5537 = vmul.f32 %v4338, %v5281
      %v5538 = vmul.f32 %v3761, %v5282
      %v5539 = vmul.f32 %v3763, %v5283
      %v5540 = vmul.f32 %v3954, %v5284
      %v5541 = vmul.f32 %v3956, %v5285
      %v5542 = vmul.f32 %v4147, %v5286
      %v5543 = vmul.f32 %v4149, %v5287
      %v5544 = vmul.f32 %v4340, %v5288
      %v5545 = vmul.f32 %v4342, %v5289
      %v5546 = vmul.f32 %v3767, %v5290
      %v5547 = vmul.f32 %v3769, %v5291
      %v5548 = vmul.f32 %v3960, %v5292
      %v5549 = vmul.f32 %v3962, %v5293
      %v5550 = vmul.f32 %v4153, %v5294
      %v5551 = vmul.f32 %v4155, %v5295
      %v5552 = vmul.f32 %v4346, %v5296
      %v5553 = vmul.f32 %v4348, %v5297
      %v5554 = vmul.f32 %v3771, %v5298
      %v5555 = vmul.f32 %v3773, %v5299
      %v5556 = vmul.f32 %v3964, %v5300
      %v5557 = vmul.f32 %v3966, %v5301
      %v5558 = vmul.f32 %v4157, %v5302
      %v5559 = vmul.f32 %v4159, %v5303
      %v5560 = vmul.f32 %v4350, %v5304
      %v5561 = vmul.f32 %v4352, %v5305
      %v5562 = vmul.f32 %v3777, %v5306
      %v5563 = vmul.f32 %v3779, %v5307
      %v5564 = vmul.f32 %v3970, %v5308
      %v5565 = vmul.f32 %v3972, %v5309
      %v5566 = vmul.f32 %v4163, %v5310
      %v5567 = vmul.f32 %v4165, %v5311
      %v5568 = vmul.f32 %v4356, %v5312
      %v5569 = vmul.f32 %v4358, %v5313
      %v5570 = vmul.f32 %v3781, %v5314
      %v5571 = vmul.f32 %v3783, %v5315
      %v5572 = vmul.f32 %v3974, %v5316
      %v5573 = vmul.f32 %v3976, %v5317
      %v5574 = vmul.f32 %v4167, %v5318
      %v5575 = vmul.f32 %v4169, %v5319
      %v5576 = vmul.f32 %v4360, %v5320
      %v5577 = vmul.f32 %v4362, %v5321
      %v5578 = vmul.f32 %v3787, %v5322
      %v5579 = vmul.f32 %v3789, %v5323
      %v5580 = vmul.f32 %v3980, %v5324
      %v5581 = vmul.f32 %v3982, %v5325
      %v5582 = vmul.f32 %v4173, %v5326
      %v5583 = vmul.f32 %v4175, %v5327
      %v5584 = vmul.f32 %v4366, %v5328
      %v5585 = vmul.f32 %v4368, %v5329
      %v5586 = vmul.f32 %v3791, %v5330
      %v5587 = vmul.f32 %v3793, %v5331
      %v5588 = vmul.f32 %v3984, %v5332
      %v5589 = vmul.f32 %v3986, %v5333
      %v5590 = vmul.f32 %v4177, %v5334
      %v5591 = vmul.f32 %v4179, %v5335
      %v5592 = vmul.f32 %v4370, %v5336
      %v5593 = vmul.f32 %v4372, %v5337
      %v5594 = vmul.f32 %v3797, %v5338
      %v5595 = vmul.f32 %v3799, %v5339
      %v5596 = vmul.f32 %v3990, %v5340
      %v5597 = vmul.f32 %v3992, %v5341
      %v5598 = vmul.f32 %v4183, %v5342
      %v5599 = vmul.f32 %v4185, %v5343
      %v5600 = vmul.f32 %v4376, %v5344
      %v5601 = vmul.f32 %v4378, %v5345
      %v5602 = vmul.f32 %v3801, %v5346
      %v5603 = vmul.f32 %v3803, %v5347
      %v5604 = vmul.f32 %v3994, %v5348
      %v5605 = vmul.f32 %v3996, %v5349
      %v5606 = vmul.f32 %v4187, %v5350
      %v5607 = vmul.f32 %v4189, %v5351
      %v5608 = vmul.f32 %v4380, %v5352
      %v5609 = vmul.f32 %v4382, %v5353
      %v5610 = vmul.f32 %v3807, %v5354
      %v5611 = vmul.f32 %v3809, %v5355
      %v5612 = vmul.f32 %v4000, %v5356
      %v5613 = vmul.f32 %v4002, %v5357
      %v5614 = vmul.f32 %v4193, %v5358
      %v5615 = vmul.f32 %v4195, %v5359
      %v5616 = vmul.f32 %v4386, %v5360
      %v5617 = vmul.f32 %v4388, %v5361
      %v5618 = vmul.f32 %v3811, %v5362
      %v5619 = vmul.f32 %v3813, %v5363
      %v5620 = vmul.f32 %v4004, %v5364
      %v5621 = vmul.f32 %v4006, %v5365
      %v5622 = vmul.f32 %v4197, %v5366
      %v5623 = vmul.f32 %v4199, %v5367
      %v5624 = vmul.f32 %v4390, %v5368
      %v5625 = vmul.f32 %v4392, %v5369
      %v5626 = vmul.f32 %v3817, %v5370
      %v5627 = vmul.f32 %v3819, %v5371
      %v5628 = vmul.f32 %v4010, %v5372
      %v5629 = vmul.f32 %v4012, %v5373
      %v5630 = vmul.f32 %v4203, %v5374
      %v5631 = vmul.f32 %v4205, %v5375
      %v5632 = vmul.f32 %v4396, %v5376
      %v5633 = vmul.f32 %v4398, %v5377
      %v5634 = vmul.f32 %v3821, %v5378
      %v5635 = vmul.f32 %v3823, %v5379
      %v5636 = vmul.f32 %v4014, %v5380
      %v5637 = vmul.f32 %v4016, %v5381
      %v5638 = vmul.f32 %v4207, %v5382
      %v5639 = vmul.f32 %v4209, %v5383
      %v5640 = vmul.f32 %v4400, %v5384
      %v5641 = vmul.f32 %v4402, %v5385
      %v5642 = vmul.f32 %v3827, %v5386
      %v5643 = vmul.f32 %v3829, %v5387
      %v5644 = vmul.f32 %v4020, %v5388
      %v5645 = vmul.f32 %v4022, %v5389
      %v5646 = vmul.f32 %v4213, %v5390
      %v5647 = vmul.f32 %v4215, %v5391
      %v5648 = vmul.f32 %v4406, %v5392
      %v5649 = vmul.f32 %v4408, %v5393
      %v5650 = vmul.f32 %v3831, %v5394
      %v5651 = vmul.f32 %v3833, %v5395
      %v5652 = vmul.f32 %v4024, %v5396
      %v5653 = vmul.f32 %v4026, %v5397
      %v5654 = vmul.f32 %v4217, %v5398
      %v5655 = vmul.f32 %v4219, %v5399
      %v5656 = vmul.f32 %v4410, %v5400
      %v5657 = vmul.f32 %v4412, %v5401
      %v5658 = vmul.f32 %v3837, %v5402
      %v5659 = vmul.f32 %v3839, %v5403
      %v5660 = vmul.f32 %v4030, %v5404
      %v5661 = vmul.f32 %v4032, %v5405
      %v5662 = vmul.f32 %v4223, %v5406
      %v5663 = vmul.f32 %v4225, %v5407
      %v5664 = vmul.f32 %v4416, %v5408
      %v5665 = vmul.f32 %v4418, %v5409
      %v5666 = vmul.f32 %v3841, %v5410
      %v5667 = vmul.f32 %v3843, %v5411
      %v5668 = vmul.f32 %v4034, %v5412
      %v5669 = vmul.f32 %v4036, %v5413
      %v5670 = vmul.f32 %v4227, %v5414
      %v5671 = vmul.f32 %v4229, %v5415
      %v5672 = vmul.f32 %v4420, %v5416
      %v5673 = vmul.f32 %v4422, %v5417
      %v5674 = vmul.f32 %v3847, %v5418
      %v5675 = vmul.f32 %v3849, %v5419
      %v5676 = vmul.f32 %v4040, %v5420
      %v5677 = vmul.f32 %v4042, %v5421
      %v5678 = vmul.f32 %v4233, %v5422
      %v5679 = vmul.f32 %v4235, %v5423
      %v5680 = vmul.f32 %v4426, %v5424
      %v5681 = vmul.f32 %v4428, %v5425
      %v5682 = vmul.f32 %v3851, %v5426
      %v5683 = vmul.f32 %v3853, %v5427
      %v5684 = vmul.f32 %v4044, %v5428
      %v5685 = vmul.f32 %v4046, %v5429
      %v5686 = vmul.f32 %v4237, %v5430
      %v5687 = vmul.f32 %v4239, %v5431
      %v5688 = vmul.f32 %v4430, %v5432
      %v5689 = vmul.f32 %v4432, %v5433
      %v5690 = vmul.f32 %v3857, %v5434
      %v5691 = vmul.f32 %v3859, %v5435
      %v5692 = vmul.f32 %v4050, %v5436
      %v5693 = vmul.f32 %v4052, %v5437
      %v5694 = vmul.f32 %v4243, %v5438
      %v5695 = vmul.f32 %v4245, %v5439
      %v5696 = vmul.f32 %v4436, %v5440
      %v5697 = vmul.f32 %v4438, %v5441
      %v5698 = vmul.f32 %v3861, %v5442
      %v5699 = vmul.f32 %v3863, %v5443
      %v5700 = vmul.f32 %v4054, %v5444
      %v5701 = vmul.f32 %v4056, %v5445
      %v5702 = vmul.f32 %v4247, %v5446
      %v5703 = vmul.f32 %v4249, %v5447
      %v5704 = vmul.f32 %v4440, %v5448
      %v5705 = vmul.f32 %v4442, %v5449
      %v5706 = vmul.f32 %v3867, %v5450
      %v5707 = vmul.f32 %v3869, %v5451
      %v5708 = vmul.f32 %v4060, %v5452
      %v5709 = vmul.f32 %v4062, %v5453
      %v5710 = vmul.f32 %v4253, %v5454
      %v5711 = vmul.f32 %v4255, %v5455
      %v5712 = vmul.f32 %v4446, %v5456
      %v5713 = vmul.f32 %v4448, %v5457
      %v5714 = vmul.f32 %v3871, %v5458
      %v5715 = vmul.f32 %v3873, %v5459
      %v5716 = vmul.f32 %v4064, %v5460
      %v5717 = vmul.f32 %v4066, %v5461
      %v5718 = vmul.f32 %v4257, %v5462
      %v5719 = vmul.f32 %v4259, %v5463
      %v5720 = vmul.f32 %v4450, %v5464
      %v5721 = vmul.f32 %v4452, %v5465
      %v5722 = vmul.f32 %v3877, %v5466
      %v5723 = vmul.f32 %v3879, %v5467
      %v5724 = vmul.f32 %v4070, %v5468
      %v5725 = vmul.f32 %v4072, %v5469
      %v5726 = vmul.f32 %v4263, %v5470
      %v5727 = vmul.f32 %v4265, %v5471
      %v5728 = vmul.f32 %v4456, %v5472
      %v5729 = vmul.f32 %v4458, %v5473
      %v5730 = vmul.f32 %v3881, %v5474
      %v5731 = vmul.f32 %v3883, %v5475
      %v5732 = vmul.f32 %v4074, %v5476
      %v5733 = vmul.f32 %v4076, %v5477
      %v5734 = vmul.f32 %v4267, %v5478
      %v5735 = vmul.f32 %v4269, %v5479
      %v5736 = vmul.f32 %v4460, %v5480
      %v5737 = vmul.f32 %v4462, %v5481
      %v5738 = vmul.f32 %v3887, %v5482
      %v5739 = vmul.f32 %v3889, %v5483
      %v5740 = vmul.f32 %v4080, %v5484
      %v5741 = vmul.f32 %v4082, %v5485
      %v5742 = vmul.f32 %v4273, %v5486
      %v5743 = vmul.f32 %v4275, %v5487
      %v5744 = vmul.f32 %v4466, %v5488
      %v5745 = vmul.f32 %v4468, %v5489
      %v5746 = vmul.f32 %v3891, %v5490
      %v5747 = vmul.f32 %v3893, %v5491
      %v5748 = vmul.f32 %v4084, %v5492
      %v5749 = vmul.f32 %v4086, %v5493
      %v5750 = vmul.f32 %v4277, %v5494
      %v5751 = vmul.f32 %v4279, %v5495
      %v5752 = vmul.f32 %v4470, %v5496
      %v5753 = vmul.f32 %v4472, %v5497
      %v5754 = vadd.f32 %v5498, %v5506
      %v5755 = vadd.f32 %v5754, %v5514
      %v5756 = vadd.f32 %v5755, %v5522
      %v5757 = vadd.f32 %v5756, %v5530
      %v5758 = vadd.f32 %v5757, %v5538
      %v5759 = vadd.f32 %v5758, %v5546
      %v5760 = vadd.f32 %v5759, %v5554
      %v5761 = vadd.f32 %v5760, %v5562
      %v5762 = vadd.f32 %v5761, %v5570
      %v5763 = vadd.f32 %v5762, %v5578
      %v5764 = vadd.f32 %v5763, %v5586
      %v5765 = vadd.f32 %v5764, %v5594
      %v5766 = vadd.f32 %v5765, %v5602
      %v5767 = vadd.f32 %v5766, %v5610
      %v5768 = vadd.f32 %v5767, %v5618
      %v5769 = vadd.f32 %v5768, %v5626
      %v5770 = vadd.f32 %v5769, %v5634
      %v5771 = vadd.f32 %v5770, %v5642
      %v5772 = vadd.f32 %v5771, %v5650
      %v5773 = vadd.f32 %v5772, %v5658
      %v5774 = vadd.f32 %v5773, %v5666
      %v5775 = vadd.f32 %v5774, %v5674
      %v5776 = vadd.f32 %v5775, %v5682
      %v5777 = vadd.f32 %v5776, %v5690
      %v5778 = vadd.f32 %v5777, %v5698
      %v5779 = vadd.f32 %v5778, %v5706
      %v5780 = vadd.f32 %v5779, %v5714
      %v5781 = vadd.f32 %v5780, %v5722
      %v5782 = vadd.f32 %v5781, %v5730
      %v5783 = vadd.f32 %v5782, %v5738
      %v5784 = vadd.f32 %v5783, %v5746
      %v5785 = vrot.slane %v5784, 4
      %v5786 = vadd.f32 %v5784, %v5785
      %v5787 = vrot.slane %v5786, 2
      %v5788 = vadd.f32 %v5786, %v5787
      %v5789 = vrot.slane %v5788, 1
      %v5790 = vadd.f32 %v5788, %v5789
      %v5791 = vadd.f32 %v5499, %v5507
      %v5792 = vadd.f32 %v5791, %v5515
      %v5793 = vadd.f32 %v5792, %v5523
      %v5794 = vadd.f32 %v5793, %v5531
      %v5795 = vadd.f32 %v5794, %v5539
      %v5796 = vadd.f32 %v5795, %v5547
      %v5797 = vadd.f32 %v5796, %v5555
      %v5798 = vadd.f32 %v5797, %v5563
      %v5799 = vadd.f32 %v5798, %v5571
      %v5800 = vadd.f32 %v5799, %v5579
      %v5801 = vadd.f32 %v5800, %v5587
      %v5802 = vadd.f32 %v5801, %v5595
      %v5803 = vadd.f32 %v5802, %v5603
      %v5804 = vadd.f32 %v5803, %v5611
      %v5805 = vadd.f32 %v5804, %v5619
      %v5806 = vadd.f32 %v5805, %v5627
      %v5807 = vadd.f32 %v5806, %v5635
      %v5808 = vadd.f32 %v5807, %v5643
      %v5809 = vadd.f32 %v5808, %v5651
      %v5810 = vadd.f32 %v5809, %v5659
      %v5811 = vadd.f32 %v5810, %v5667
      %v5812 = vadd.f32 %v5811, %v5675
      %v5813 = vadd.f32 %v5812, %v5683
      %v5814 = vadd.f32 %v5813, %v5691
      %v5815 = vadd.f32 %v5814, %v5699
      %v5816 = vadd.f32 %v5815, %v5707
      %v5817 = vadd.f32 %v5816, %v5715
      %v5818 = vadd.f32 %v5817, %v5723
      %v5819 = vadd.f32 %v5818, %v5731
      %v5820 = vadd.f32 %v5819, %v5739
      %v5821 = vadd.f32 %v5820, %v5747
      %v5822 = vrot.slane %v5821, 4
      %v5823 = vadd.f32 %v5821, %v5822
      %v5824 = vrot.slane %v5823, 2
      %v5825 = vadd.f32 %v5823, %v5824
      %v5826 = vrot.slane %v5825, 1
      %v5827 = vadd.f32 %v5825, %v5826
      %v5828 = vadd.f32 %v5500, %v5508
      %v5829 = vadd.f32 %v5828, %v5516
      %v5830 = vadd.f32 %v5829, %v5524
      %v5831 = vadd.f32 %v5830, %v5532
      %v5832 = vadd.f32 %v5831, %v5540
      %v5833 = vadd.f32 %v5832, %v5548
      %v5834 = vadd.f32 %v5833, %v5556
      %v5835 = vadd.f32 %v5834, %v5564
      %v5836 = vadd.f32 %v5835, %v5572
      %v5837 = vadd.f32 %v5836, %v5580
      %v5838 = vadd.f32 %v5837, %v5588
      %v5839 = vadd.f32 %v5838, %v5596
      %v5840 = vadd.f32 %v5839, %v5604
      %v5841 = vadd.f32 %v5840, %v5612
      %v5842 = vadd.f32 %v5841, %v5620
      %v5843 = vadd.f32 %v5842, %v5628
      %v5844 = vadd.f32 %v5843, %v5636
      %v5845 = vadd.f32 %v5844, %v5644
      %v5846 = vadd.f32 %v5845, %v5652
      %v5847 = vadd.f32 %v5846, %v5660
      %v5848 = vadd.f32 %v5847, %v5668
      %v5849 = vadd.f32 %v5848, %v5676
      %v5850 = vadd.f32 %v5849, %v5684
      %v5851 = vadd.f32 %v5850, %v5692
      %v5852 = vadd.f32 %v5851, %v5700
      %v5853 = vadd.f32 %v5852, %v5708
      %v5854 = vadd.f32 %v5853, %v5716
      %v5855 = vadd.f32 %v5854, %v5724
      %v5856 = vadd.f32 %v5855, %v5732
      %v5857 = vadd.f32 %v5856, %v5740
      %v5858 = vadd.f32 %v5857, %v5748
      %v5859 = vrot.slane %v5858, 4
      %v5860 = vadd.f32 %v5858, %v5859
      %v5861 = vrot.slane %v5860, 2
      %v5862 = vadd.f32 %v5860, %v5861
      %v5863 = vrot.slane %v5862, 1
      %v5864 = vadd.f32 %v5862, %v5863
      %v5865 = vadd.f32 %v5501, %v5509
      %v5866 = vadd.f32 %v5865, %v5517
      %v5867 = vadd.f32 %v5866, %v5525
      %v5868 = vadd.f32 %v5867, %v5533
      %v5869 = vadd.f32 %v5868, %v5541
      %v5870 = vadd.f32 %v5869, %v5549
      %v5871 = vadd.f32 %v5870, %v5557
      %v5872 = vadd.f32 %v5871, %v5565
      %v5873 = vadd.f32 %v5872, %v5573
      %v5874 = vadd.f32 %v5873, %v5581
      %v5875 = vadd.f32 %v5874, %v5589
      %v5876 = vadd.f32 %v5875, %v5597
      %v5877 = vadd.f32 %v5876, %v5605
      %v5878 = vadd.f32 %v5877, %v5613
      %v5879 = vadd.f32 %v5878, %v5621
      %v5880 = vadd.f32 %v5879, %v5629
      %v5881 = vadd.f32 %v5880, %v5637
      %v5882 = vadd.f32 %v5881, %v5645
      %v5883 = vadd.f32 %v5882, %v5653
      %v5884 = vadd.f32 %v5883, %v5661
      %v5885 = vadd.f32 %v5884, %v5669
      %v5886 = vadd.f32 %v5885, %v5677
      %v5887 = vadd.f32 %v5886, %v5685
      %v5888 = vadd.f32 %v5887, %v5693
      %v5889 = vadd.f32 %v5888, %v5701
      %v5890 = vadd.f32 %v5889, %v5709
      %v5891 = vadd.f32 %v5890, %v5717
      %v5892 = vadd.f32 %v5891, %v5725
      %v5893 = vadd.f32 %v5892, %v5733
      %v5894 = vadd.f32 %v5893, %v5741
      %v5895 = vadd.f32 %v5894, %v5749
      %v5896 = vrot.slane %v5895, 4
      %v5897 = vadd.f32 %v5895, %v5896
      %v5898 = vrot.slane %v5897, 2
      %v5899 = vadd.f32 %v5897, %v5898
      %v5900 = vrot.slane %v5899, 1
      %v5901 = vadd.f32 %v5899, %v5900
      %v5902 = vadd.f32 %v5502, %v5510
      %v5903 = vadd.f32 %v5902, %v5518
      %v5904 = vadd.f32 %v5903, %v5526
      %v5905 = vadd.f32 %v5904, %v5534
      %v5906 = vadd.f32 %v5905, %v5542
      %v5907 = vadd.f32 %v5906, %v5550
      %v5908 = vadd.f32 %v5907, %v5558
      %v5909 = vadd.f32 %v5908, %v5566
      %v5910 = vadd.f32 %v5909, %v5574
      %v5911 = vadd.f32 %v5910, %v5582
      %v5912 = vadd.f32 %v5911, %v5590
      %v5913 = vadd.f32 %v5912, %v5598
      %v5914 = vadd.f32 %v5913, %v5606
      %v5915 = vadd.f32 %v5914, %v5614
      %v5916 = vadd.f32 %v5915, %v5622
      %v5917 = vadd.f32 %v5916, %v5630
      %v5918 = vadd.f32 %v5917, %v5638
      %v5919 = vadd.f32 %v5918, %v5646
      %v5920 = vadd.f32 %v5919, %v5654
      %v5921 = vadd.f32 %v5920, %v5662
      %v5922 = vadd.f32 %v5921, %v5670
      %v5923 = vadd.f32 %v5922, %v5678
      %v5924 = vadd.f32 %v5923, %v5686
      %v5925 = vadd.f32 %v5924, %v5694
      %v5926 = vadd.f32 %v5925, %v5702
      %v5927 = vadd.f32 %v5926, %v5710
      %v5928 = vadd.f32 %v5927, %v5718
      %v5929 = vadd.f32 %v5928, %v5726
      %v5930 = vadd.f32 %v5929, %v5734
      %v5931 = vadd.f32 %v5930, %v5742
      %v5932 = vadd.f32 %v5931, %v5750
      %v5933 = vrot.slane %v5932, 4
      %v5934 = vadd.f32 %v5932, %v5933
      %v5935 = vrot.slane %v5934, 2
      %v5936 = vadd.f32 %v5934, %v5935
      %v5937 = vrot.slane %v5936, 1
      %v5938 = vadd.f32 %v5936, %v5937
      %v5939 = vadd.f32 %v5503, %v5511
      %v5940 = vadd.f32 %v5939, %v5519
      %v5941 = vadd.f32 %v5940, %v5527
      %v5942 = vadd.f32 %v5941, %v5535
      %v5943 = vadd.f32 %v5942, %v5543
      %v5944 = vadd.f32 %v5943, %v5551
      %v5945 = vadd.f32 %v5944, %v5559
      %v5946 = vadd.f32 %v5945, %v5567
      %v5947 = vadd.f32 %v5946, %v5575
      %v5948 = vadd.f32 %v5947, %v5583
      %v5949 = vadd.f32 %v5948, %v5591
      %v5950 = vadd.f32 %v5949, %v5599
      %v5951 = vadd.f32 %v5950, %v5607
      %v5952 = vadd.f32 %v5951, %v5615
      %v5953 = vadd.f32 %v5952, %v5623
      %v5954 = vadd.f32 %v5953, %v5631
      %v5955 = vadd.f32 %v5954, %v5639
      %v5956 = vadd.f32 %v5955, %v5647
      %v5957 = vadd.f32 %v5956, %v5655
      %v5958 = vadd.f32 %v5957, %v5663
      %v5959 = vadd.f32 %v5958, %v5671
      %v5960 = vadd.f32 %v5959, %v5679
      %v5961 = vadd.f32 %v5960, %v5687
      %v5962 = vadd.f32 %v5961, %v5695
      %v5963 = vadd.f32 %v5962, %v5703
      %v5964 = vadd.f32 %v5963, %v5711
      %v5965 = vadd.f32 %v5964, %v5719
      %v5966 = vadd.f32 %v5965, %v5727
      %v5967 = vadd.f32 %v5966, %v5735
      %v5968 = vadd.f32 %v5967, %v5743
      %v5969 = vadd.f32 %v5968, %v5751
      %v5970 = vrot.slane %v5969, 4
      %v5971 = vadd.f32 %v5969, %v5970
      %v5972 = vrot.slane %v5971, 2
      %v5973 = vadd.f32 %v5971, %v5972
      %v5974 = vrot.slane %v5973, 1
      %v5975 = vadd.f32 %v5973, %v5974
      %v5976 = vadd.f32 %v5504, %v5512
      %v5977 = vadd.f32 %v5976, %v5520
      %v5978 = vadd.f32 %v5977, %v5528
      %v5979 = vadd.f32 %v5978, %v5536
      %v5980 = vadd.f32 %v5979, %v5544
      %v5981 = vadd.f32 %v5980, %v5552
      %v5982 = vadd.f32 %v5981, %v5560
      %v5983 = vadd.f32 %v5982, %v5568
      %v5984 = vadd.f32 %v5983, %v5576
      %v5985 = vadd.f32 %v5984, %v5584
      %v5986 = vadd.f32 %v5985, %v5592
      %v5987 = vadd.f32 %v5986, %v5600
      %v5988 = vadd.f32 %v5987, %v5608
      %v5989 = vadd.f32 %v5988, %v5616
      %v5990 = vadd.f32 %v5989, %v5624
      %v5991 = vadd.f32 %v5990, %v5632
      %v5992 = vadd.f32 %v5991, %v5640
      %v5993 = vadd.f32 %v5992, %v5648
      %v5994 = vadd.f32 %v5993, %v5656
      %v5995 = vadd.f32 %v5994, %v5664
      %v5996 = vadd.f32 %v5995, %v5672
      %v5997 = vadd.f32 %v5996, %v5680
      %v5998 = vadd.f32 %v5997, %v5688
      %v5999 = vadd.f32 %v5998, %v5696
      %v6000 = vadd.f32 %v5999, %v5704
      %v6001 = vadd.f32 %v6000, %v5712
      %v6002 = vadd.f32 %v6001, %v5720
      %v6003 = vadd.f32 %v6002, %v5728
      %v6004 = vadd.f32 %v6003, %v5736
      %v6005 = vadd.f32 %v6004, %v5744
      %v6006 = vadd.f32 %v6005, %v5752
      %v6007 = vrot.slane %v6006, 4
      %v6008 = vadd.f32 %v6006, %v6007
      %v6009 = vrot.slane %v6008, 2
      %v6010 = vadd.f32 %v6008, %v6009
      %v6011 = vrot.slane %v6010, 1
      %v6012 = vadd.f32 %v6010, %v6011
      %v6013 = vsel %vm3162, %v5505, 0.0
      %v6014 = vsel %vm3162, %v5513, 0.0
      %v6015 = vadd.f32 %v6013, %v6014
      %v6016 = vsel %vm3162, %v5521, 0.0
      %v6017 = vadd.f32 %v6015, %v6016
      %v6018 = vsel %vm3162, %v5529, 0.0
      %v6019 = vadd.f32 %v6017, %v6018
      %v6020 = vsel %vm3162, %v5537, 0.0
      %v6021 = vadd.f32 %v6019, %v6020
      %v6022 = vsel %vm3162, %v5545, 0.0
      %v6023 = vadd.f32 %v6021, %v6022
      %v6024 = vsel %vm3162, %v5553, 0.0
      %v6025 = vadd.f32 %v6023, %v6024
      %v6026 = vsel %vm3162, %v5561, 0.0
      %v6027 = vadd.f32 %v6025, %v6026
      %v6028 = vsel %vm3162, %v5569, 0.0
      %v6029 = vadd.f32 %v6027, %v6028
      %v6030 = vsel %vm3162, %v5577, 0.0
      %v6031 = vadd.f32 %v6029, %v6030
      %v6032 = vsel %vm3162, %v5585, 0.0
      %v6033 = vadd.f32 %v6031, %v6032
      %v6034 = vsel %vm3162, %v5593, 0.0
      %v6035 = vadd.f32 %v6033, %v6034
      %v6036 = vsel %vm3162, %v5601, 0.0
      %v6037 = vadd.f32 %v6035, %v6036
      %v6038 = vsel %vm3162, %v5609, 0.0
      %v6039 = vadd.f32 %v6037, %v6038
      %v6040 = vsel %vm3162, %v5617, 0.0
      %v6041 = vadd.f32 %v6039, %v6040
      %v6042 = vsel %vm3162, %v5625, 0.0
      %v6043 = vadd.f32 %v6041, %v6042
      %v6044 = vsel %vm3162, %v5633, 0.0
      %v6045 = vadd.f32 %v6043, %v6044
      %v6046 = vsel %vm3162, %v5641, 0.0
      %v6047 = vadd.f32 %v6045, %v6046
      %v6048 = vsel %vm3162, %v5649, 0.0
      %v6049 = vadd.f32 %v6047, %v6048
      %v6050 = vsel %vm3162, %v5657, 0.0
      %v6051 = vadd.f32 %v6049, %v6050
      %v6052 = vsel %vm3162, %v5665, 0.0
      %v6053 = vadd.f32 %v6051, %v6052
      %v6054 = vsel %vm3162, %v5673, 0.0
      %v6055 = vadd.f32 %v6053, %v6054
      %v6056 = vsel %vm3162, %v5681, 0.0
      %v6057 = vadd.f32 %v6055, %v6056
      %v6058 = vsel %vm3162, %v5689, 0.0
      %v6059 = vadd.f32 %v6057, %v6058
      %v6060 = vsel %vm3162, %v5697, 0.0
      %v6061 = vadd.f32 %v6059, %v6060
      %v6062 = vsel %vm3162, %v5705, 0.0
      %v6063 = vadd.f32 %v6061, %v6062
      %v6064 = vsel %vm3162, %v5713, 0.0
      %v6065 = vadd.f32 %v6063, %v6064
      %v6066 = vsel %vm3162, %v5721, 0.0
      %v6067 = vadd.f32 %v6065, %v6066
      %v6068 = vsel %vm3162, %v5729, 0.0
      %v6069 = vadd.f32 %v6067, %v6068
      %v6070 = vsel %vm3162, %v5737, 0.0
      %v6071 = vadd.f32 %v6069, %v6070
      %v6072 = vsel %vm3162, %v5745, 0.0
      %v6073 = vadd.f32 %v6071, %v6072
      %v6074 = vsel %vm3162, %v5753, 0.0
      %v6075 = vadd.f32 %v6073, %v6074
      %v6076 = vrot.slane %v6075, 4
      %v6077 = vadd.f32 %v6075, %v6076
      %v6078 = vrot.slane %v6077, 2
      %v6079 = vadd.f32 %v6077, %v6078
      %v6080 = vrot.slane %v6079, 1
      %v6081 = vadd.f32 %v6079, %v6080
      %v6082 = vmul.f32 %v5790, 0.00390625
      %v6083 = vmul.f32 %v5827, 0.00390625
      %v6084 = vmul.f32 %v5864, 0.00390625
      %v6085 = vmul.f32 %v5901, 0.00390625
      %v6086 = vmul.f32 %v5938, 0.00390625
      %v6087 = vmul.f32 %v5975, 0.00390625
      %v6088 = vmul.f32 %v6012, 0.00390625
      %v6089 = vmul.f32 %v6081, 0.00390625
      %v6098 = vcombine.low %v6082, %v6083
      %v6099 = vcombine.low %v6084, %v6085
      %v6100 = vcombine.low %v6086, %v6087
      %v6101 = vcombine.low %v6088, %v6089
      %v6103 = vunpack.c.l.s4 1966171168
      %v6104 = vunpack.c.0.s8 %v6103
      %v6105 = vlaneseq
      %v6106 = vshrl.u32 %v6105, 7
      %v6107 = vsub.s32 %v6104, %v6106
      %v6108 = vrot.slane %v6098, %v6107
      %v6110 = vunpack.c.l.s4 1966171168
      %v6111 = vunpack.c.0.s8 %v6110
      %v6112 = vlaneseq
      %v6113 = vshrl.u32 %v6112, 7
      %v6114 = vsub.s32 %v6111, %v6113
      %v6115 = vrot.slane %v6099, %v6114
      %v6117 = vunpack.c.l.s4 1966171168
      %v6118 = vunpack.c.0.s8 %v6117
      %v6119 = vlaneseq
      %v6120 = vshrl.u32 %v6119, 7
      %v6121 = vsub.s32 %v6118, %v6120
      %v6122 = vrot.slane %v6100, %v6121
      %v6124 = vunpack.c.l.s4 1966171168
      %v6125 = vunpack.c.0.s8 %v6124
      %v6126 = vlaneseq
      %v6127 = vshrl.u32 %v6126, 7
      %v6128 = vsub.s32 %v6125, %v6127
      %v6129 = vrot.slane %v6101, %v6128
      %v6130 = vcombine.low %v6108, %v6115
      %v6131 = vcombine.low %v6122, %v6129
      %v6133 = vunpack.c.l.s4 1966171168
      %v6134 = vunpack.c.0.s8 %v6133
      %v6135 = vlaneseq
      %v6136 = vshrl.u32 %v6135, 7
      %v6137 = vsub.s32 %v6134, %v6136
      %v6138 = vrot.slane %v6130, %v6137
      %v6140 = vunpack.c.l.s4 1966171168
      %v6141 = vunpack.c.0.s8 %v6140
      %v6142 = vlaneseq
      %v6143 = vshrl.u32 %v6142, 7
      %v6144 = vsub.s32 %v6141, %v6143
      %v6145 = vrot.slane %v6131, %v6144
      %v6146 = vcombine.low %v6138, %v6145
      %v6148 = vlaneseq
      %vm6149 = vcmp.ge.s32.totalorder %v6148, 0
      %vm6150 = vcmp.lt.s32.totalorder %v6148, 960
      %vm6151 = vmand %vm6149, %vm6150
      %6152 = vst.msk [vmem:[%s438] sm:$0xff] %vm6151, %v6146
      %p6153 = scmp.lt.s32.totalorder %s24, 1
      %s6154 = scalar_select %p6153, %s24, 1
      %s6155 = smul.addr %s6154, 8
      %s6156 = scalar_lea.vmem %s13, %s6155
      // Predicated region
      $region73: #{bounding_box_mobilenet_forward.2} parent=71 // pred_check
        %p6157 = pneg %p320
      $region74: #{bounding_box_mobilenet_forward.2} parent=71 // pred_check_branch
        %6159 = sbr.rel (%p6157) target = $region76
      $region75: #{bounding_box_mobilenet_forward.2} parent=71 // pred_region
        _
      $region76: #{bounding_box_mobilenet_forward.2} parent=71 // pred_fallthru
        _
    $region72: #{bounding_box_mobilenet_forward.2} parent=5 // pred_fallthru
      _
    %p6160 = scmp.le.s32.totalorder 2, %s19
    // Predicated region
    $region77: #{bounding_box_mobilenet_forward.2} parent=5 // pred_check
      %p6161 = pneg %p6160
    $region78: #{bounding_box_mobilenet_forward.2} parent=5 // pred_check_branch
      %6163 = sbr.rel (%p6161) target = $region80
    $region79: #{bounding_box_mobilenet_forward.2} parent=5 // pred_region
      %s6164 = ssub.s32 %s19, 2
      // Predicated region
      $region81: #{bounding_box_mobilenet_forward.2} parent=79 // pred_check
        %p6165 = pneg %p326
      $region82: #{bounding_box_mobilenet_forward.2} parent=79 // pred_check_branch
        %6167 = sbr.rel (%p6165) target = $region84
      $region83: #{bounding_box_mobilenet_forward.2} parent=79 // pred_region
        %p6168 = scmp.lt.s32.totalorder %s25, 1
        %s6169 = scalar_select %p6168, %s25, 1
        %s6170 = smul.addr %s6169, 8
        %s6171 = scalar_lea.vmem %s13, %s6170
      $region84: #{bounding_box_mobilenet_forward.2} parent=79 // pred_fallthru
        _
    $region80: #{bounding_box_mobilenet_forward.2} parent=5 // pred_fallthru
      _
  $region6: #{bounding_box_mobilenet_forward.2} parent=0 // loop_footer
    %s23 = sadd.s32 1, %s19
  $region7: #{bounding_box_mobilenet_forward.2} parent=0 // loop_footer_branch
    %18 = sbr.rel target = $region3
  $region8: #{bounding_box_mobilenet_forward.2} parent=0 // loop_exit
    _

</llo_original>
